<compile_context>
chip_gen: v6e
topology: v6e:2x2x1
jax: 0.10.0
libtpu: 0.0.40
codegen_flags: <defaults>
</compile_context>

<pallas_src>
import math

import jax
import jax.numpy as jnp
from jax import lax
from jax.experimental import pallas as pl
from jax.experimental.pallas import tpu as pltpu

BN_EPS = 1e-5


# --------------------------------------------------------------------------
# Port of the PyTorch `padding()` helper (per-side pads for one spatial dim)
# --------------------------------------------------------------------------
def _padding(kernel, stride, spatial_last):
    if spatial_last % stride == 0:
        p = max(kernel - stride, 0)
    else:
        p = max(kernel - spatial_last % stride, 0)
    p1 = p // 2
    return p1, p - p1


# --------------------------------------------------------------------------
# Fused Pallas kernel (built per static configuration)
# --------------------------------------------------------------------------
def _make_fused_kernel(N, H, W, Cin, Cout, kernel, use_shortcut):
    M = N * H * W
    p1, p2 = _padding(kernel, 1, W)          # stride == 1 path only
    K = kernel

    def edge_pad_hw(t):
        # replicate ("edge") padding along H and W of a VMEM-resident value
        if p1 or p2:
            t = jnp.concatenate([t[:, :1]] * p1 + [t] + [t[:, -1:]] * p2, axis=1)
            t = jnp.concatenate([t[:, :, :1]] * p1 + [t] + [t[:, :, -1:]] * p2, axis=2)
        return t

    def im2col_conv(t, w_flat, b):
        # t: (N, H+p, W+p, C) padded input; single matmul (M, K*K*C) x (K*K*C, Cout)
        C = t.shape[-1]
        cols = [t[:, kh:kh + H, kw:kw + W, :].reshape(M, C)
                for kh in range(K) for kw in range(K)]
        a = cols[0] if len(cols) == 1 else jnp.concatenate(cols, axis=-1)
        return jnp.dot(a, w_flat, preferred_element_type=jnp.float32) + b

    def bn_train(y, g, be):
        # training-mode BatchNorm2d: per-channel batch stats over all M rows
        mean = jnp.mean(y, axis=0, keepdims=True)
        c = y - mean
        var = jnp.mean(c * c, axis=0, keepdims=True)      # biased, like PyTorch
        return c * lax.rsqrt(var + BN_EPS) * g + be

    def kernel_fn(x_ref,
                  w1_ref, b1_ref, g1_ref, be1_ref,
                  w2_ref, b2_ref, g2_ref, be2_ref,
                  wsc_ref, bsc_ref, gsc_ref, besc_ref,
                  o_ref):
        x = x_ref[...]                                    # (N, H, W, Cin), VMEM resident

        # ---- residual path: conv1 -> BN1 -> conv2 -> BN2, entirely in VMEM ----
        r = im2col_conv(edge_pad_hw(x), w1_ref[...], b1_ref[...])
        r = bn_train(r, g1_ref[...], be1_ref[...])        # (M, Cout)
        r = im2col_conv(edge_pad_hw(r.reshape(N, H, W, Cout)),
                        w2_ref[...], b2_ref[...])
        r = bn_train(r, g2_ref[...], be2_ref[...])        # (M, Cout)

        # ---- shortcut path: 1x1 conv -> BN (pad is 0 for kernel=1, stride=1) ----
        if use_shortcut:
            sc = jnp.dot(x.reshape(M, Cin), wsc_ref[...],
                         preferred_element_type=jnp.float32) + bsc_ref[...]
            sc = bn_train(sc, gsc_ref[...], besc_ref[...])
        else:
            sc = x.reshape(M, Cin)                        # Cin == Cout here

        o_ref[...] = jnp.maximum(sc + r, 0.0)             # (M, Cout)

    return kernel_fn


# --------------------------------------------------------------------------
# Wrapper: NCHW in / NCHW out, one pallas_call
# --------------------------------------------------------------------------
def resnet_module_forward(x_nchw, params, kernel=3, stride=1):
    # TODO(synk): stride > 1 downsampling is not implemented in the fused Pallas kernel.
    # TODO(synk): at real activation sizes, split H across a parallel grid axis with a
    #             two-pass BN (sum/sumsq accumulators) so v7x's 2nd TensorCore is used
    #             and its 64 MiB VMEM is respected.
    assert stride == 1, "only stride=1 supported by the fused Pallas kernel"
    x = jnp.transpose(x_nchw, (0, 2, 3, 1)).astype(jnp.float32)       # NCHW -> NHWC
    N, H, W, Cin = x.shape
    Cout = params["res1_w"].shape[-1]
    M = N * H * W
    use_shortcut = (Cout != Cin) or (stride != 1)

    kern = _make_fused_kernel(N, H, W, Cin, Cout, kernel, use_shortcut)

    # host-side pre-layout: im2col weight matrices (KH*KW*Cin, Cout)
    w1 = params["res1_w"].reshape(kernel * kernel * Cin, Cout)
    w2 = params["res2_w"].reshape(kernel * kernel * Cout, Cout)
    wsc = params["sc_w"].reshape(Cin, Cout)

    def full(shape):
        return pl.BlockSpec(shape, lambda *_: (0,) * len(shape))

    vec = lambda: full((1, Cout))

    out = pl.pallas_call(
        kern,
        out_shape=jax.ShapeDtypeStruct((M, Cout), jnp.float32),
        grid=(1,),
        in_specs=[
            full((N, H, W, Cin)),
            full(w1.shape), vec(), vec(), vec(),
            full(w2.shape), vec(), vec(), vec(),
            full(wsc.shape), vec(), vec(), vec(),
        ],
        out_specs=full((M, Cout)),
        compiler_params=pltpu.CompilerParams(
            dimension_semantics=("arbitrary",)),
    )(x,
      w1, params["res1_b"], params["res1_gamma"], params["res1_beta"],
      w2, params["res2_b"], params["res2_gamma"], params["res2_beta"],
      wsc, params["sc_b"], params["sc_gamma"], params["sc_beta"])

    out = out.reshape(N, H, W, Cout)
    return jnp.transpose(out, (0, 3, 1, 2))                            # NHWC -> NCHW


# --------------------------------------------------------------------------
# Parameter init (PyTorch-like conv init; fresh-module BN: gamma=1, beta=0)
# --------------------------------------------------------------------------
def init_params(key, num_inputs, num_outputs, kernel=3):
    keys = jax.random.split(key, 6)

    def conv_init(kw_key, kb_key, cin, cout, k):
        fan_in = cin * k * k
        bound = 1.0 / math.sqrt(fan_in)
        w = jax.random.uniform(kw_key, (k, k, cin, cout), jnp.float32, -bound, bound)
        b = jax.random.uniform(kb_key, (1, cout), jnp.float32, -bound, bound)
        return w, b

    sc_w, sc_b = conv_init(keys[0], keys[1], num_inputs, num_outputs, 1)
    r1_w, r1_b = conv_init(keys[2], keys[3], num_inputs, num_outputs, kernel)
    r2_w, r2_b = conv_init(keys[4], keys[5], num_outputs, num_outputs, kernel)
    ones = jnp.ones((1, num_outputs), jnp.float32)
    zeros = jnp.zeros((1, num_outputs), jnp.float32)
    return dict(
        sc_w=sc_w, sc_b=sc_b, sc_gamma=ones, sc_beta=zeros,
        res1_w=r1_w, res1_b=r1_b, res1_gamma=ones, res1_beta=zeros,
        res2_w=r2_w, res2_b=r2_b, res2_gamma=ones, res2_beta=zeros,
    )


# --------------------------------------------------------------------------
# Pure-JAX reference (self-check of the fused Pallas kernel)
# --------------------------------------------------------------------------
def _edge_pad_nhwc(x, p1, p2):
    if p1 == 0 and p2 == 0:
        return x
    return jnp.pad(x, ((0, 0), (p1, p2), (p1, p2), (0, 0)), mode="edge")


def _ref_conv(x, w, b, stride=1):
    y = lax.conv_general_dilated(
        x, w, (stride, stride), "VALID",
        dimension_numbers=("NHWC", "HWIO", "NHWC"))
    return y + b.reshape(1, 1, 1, -1)


def _ref_bn(x, g, bt):
    mean = jnp.mean(x, axis=(0, 1, 2), keepdims=True)
    var = jnp.mean((x - mean) ** 2, axis=(0, 1, 2), keepdims=True)
    return (x - mean) / jnp.sqrt(var + BN_EPS) * g.reshape(1, 1, 1, -1) + bt.reshape(1, 1, 1, -1)


def ref_forward(x_nchw, params, kernel=3, stride=1):
    x = jnp.transpose(x_nchw, (0, 2, 3, 1)).astype(jnp.float32)
    N, H, W, Cin = x.shape
    Cout = params["res1_w"].shape[-1]
    p1, p2 = _padding(kernel, stride, W)
    r = _ref_conv(_edge_pad_nhwc(x, p1, p2), params["res1_w"], params["res1_b"], stride)
    r = _ref_bn(r, params["res1_gamma"], params["res1_beta"])
    q1, q2 = _padding(kernel, 1, r.shape[2])
    r = _ref_conv(_edge_pad_nhwc(r, q1, q2), params["res2_w"], params["res2_b"], 1)
    r = _ref_bn(r, params["res2_gamma"], params["res2_beta"])
    if (Cout != Cin) or (stride != 1):
        s1, s2 = _padding(1, stride, W)
        sc = _ref_conv(_edge_pad_nhwc(x, s1, s2), params["sc_w"], params["sc_b"], stride)
        sc = _ref_bn(sc, params["sc_gamma"], params["sc_beta"])
    else:
        sc = x
    out = jnp.maximum(sc + r, 0.0)
    return jnp.transpose(out, (0, 3, 1, 2))


# --------------------------------------------------------------------------
if __name__ == "__main__":
    key = jax.random.PRNGKey(0)
    kx, kp = jax.random.split(key)

    # num_inputs=4, num_outputs=8 => use_shortcut=True ; kernel=3, stride=1
    x = jax.random.normal(kx, (2, 4, 16, 16), jnp.float32)            # NCHW, like PyTorch
    params = init_params(kp, num_inputs=4, num_outputs=8, kernel=3)

    out = resnet_module_forward(x, params, kernel=3, stride=1)
    out = jax.block_until_ready(out)
    assert out.shape == (2, 8, 16, 16), out.shape

    ref = ref_forward(x, params, kernel=3, stride=1)
    max_err = float(jnp.max(jnp.abs(out - ref)))
    if max_err > 1e-3:
        raise SystemExit(f"mismatch vs pure-JAX reference, max abs err = {max_err:e}")

    print("KERNEL_OK")
</pallas_src>

<mosaic_0001>
module attributes {stable_mosaic.version = 11 : i64} {
  func.func @kernel_fn(%arg0: i32, %arg1: memref<2x16x16x4xf32, #tpu.memory_space<vmem>>, %arg2: memref<36x8xf32, #tpu.memory_space<vmem>>, %arg3: memref<1x8xf32, #tpu.memory_space<vmem>>, %arg4: memref<1x8xf32, #tpu.memory_space<vmem>>, %arg5: memref<1x8xf32, #tpu.memory_space<vmem>>, %arg6: memref<72x8xf32, #tpu.memory_space<vmem>>, %arg7: memref<1x8xf32, #tpu.memory_space<vmem>>, %arg8: memref<1x8xf32, #tpu.memory_space<vmem>>, %arg9: memref<1x8xf32, #tpu.memory_space<vmem>>, %arg10: memref<4x8xf32, #tpu.memory_space<vmem>>, %arg11: memref<1x8xf32, #tpu.memory_space<vmem>>, %arg12: memref<1x8xf32, #tpu.memory_space<vmem>>, %arg13: memref<1x8xf32, #tpu.memory_space<vmem>>, %arg14: memref<512x8xf32, #tpu.memory_space<vmem>>) attributes {dimension_semantics = [#tpu.dimension_semantics<arbitrary>], iteration_bounds = array<i64: 1>, scalar_prefetch = 0 : i64, scratch_operands = 0 : i64, tpu.core_type = #tpu.core_type<tc>, window_params = [{pipeline_mode = #tpu.pipeline_mode<synchronous>, transform_indices = @transform_0, window_bounds = array<i64: 2, 16, 16, 4>}, {pipeline_mode = #tpu.pipeline_mode<synchronous>, transform_indices = @transform_1, window_bounds = array<i64: 36, 8>}, {pipeline_mode = #tpu.pipeline_mode<synchronous>, transform_indices = @transform_2, window_bounds = array<i64: 1, 8>}, {pipeline_mode = #tpu.pipeline_mode<synchronous>, transform_indices = @transform_3, window_bounds = array<i64: 1, 8>}, {pipeline_mode = #tpu.pipeline_mode<synchronous>, transform_indices = @transform_4, window_bounds = array<i64: 1, 8>}, {pipeline_mode = #tpu.pipeline_mode<synchronous>, transform_indices = @transform_5, window_bounds = array<i64: 72, 8>}, {pipeline_mode = #tpu.pipeline_mode<synchronous>, transform_indices = @transform_6, window_bounds = array<i64: 1, 8>}, {pipeline_mode = #tpu.pipeline_mode<synchronous>, transform_indices = @transform_7, window_bounds = array<i64: 1, 8>}, {pipeline_mode = #tpu.pipeline_mode<synchronous>, transform_indices = @transform_8, window_bounds = array<i64: 1, 8>}, {pipeline_mode = #tpu.pipeline_mode<synchronous>, transform_indices = @transform_9, window_bounds = array<i64: 4, 8>}, {pipeline_mode = #tpu.pipeline_mode<synchronous>, transform_indices = @transform_10, window_bounds = array<i64: 1, 8>}, {pipeline_mode = #tpu.pipeline_mode<synchronous>, transform_indices = @transform_11, window_bounds = array<i64: 1, 8>}, {pipeline_mode = #tpu.pipeline_mode<synchronous>, transform_indices = @transform_12, window_bounds = array<i64: 1, 8>}, {pipeline_mode = #tpu.pipeline_mode<synchronous>, transform_indices = @transform_13, window_bounds = array<i64: 512, 8>}]} {
    %c0 = arith.constant 0 : index
    %c0_0 = arith.constant 0 : index
    %c0_1 = arith.constant 0 : index
    %c0_2 = arith.constant 0 : index
    %0 = vector.load %arg1[%c0, %c0_0, %c0_1, %c0_2] : memref<2x16x16x4xf32, #tpu.memory_space<vmem>>, vector<2x16x16x4xf32>
    %1 = vector.extract_strided_slice %0 {offsets = [0, 0, 0, 0], sizes = [2, 1, 16, 4], strides = [1, 1, 1, 1]} : vector<2x16x16x4xf32> to vector<2x1x16x4xf32>
    %2 = vector.extract_strided_slice %0 {offsets = [0, 15, 0, 0], sizes = [2, 1, 16, 4], strides = [1, 1, 1, 1]} : vector<2x16x16x4xf32> to vector<2x1x16x4xf32>
    %3 = tpu.concatenate %1, %0, %2 in 1 : vector<2x1x16x4xf32>, vector<2x16x16x4xf32>, vector<2x1x16x4xf32> -> vector<2x18x16x4xf32>
    %4 = vector.extract_strided_slice %3 {offsets = [0, 0, 0, 0], sizes = [2, 18, 1, 4], strides = [1, 1, 1, 1]} : vector<2x18x16x4xf32> to vector<2x18x1x4xf32>
    %5 = vector.extract_strided_slice %3 {offsets = [0, 0, 15, 0], sizes = [2, 18, 1, 4], strides = [1, 1, 1, 1]} : vector<2x18x16x4xf32> to vector<2x18x1x4xf32>
    %6 = tpu.concatenate %4, %3, %5 in 2 : vector<2x18x1x4xf32>, vector<2x18x16x4xf32>, vector<2x18x1x4xf32> -> vector<2x18x18x4xf32>
    %c0_3 = arith.constant 0 : index
    %c0_4 = arith.constant 0 : index
    %7 = vector.load %arg2[%c0_3, %c0_4] : memref<36x8xf32, #tpu.memory_space<vmem>>, vector<36x8xf32>
    %c0_5 = arith.constant 0 : index
    %c0_6 = arith.constant 0 : index
    %8 = vector.load %arg3[%c0_5, %c0_6] : memref<1x8xf32, #tpu.memory_space<vmem>>, vector<1x8xf32>
    %9 = vector.extract_strided_slice %6 {offsets = [0, 0, 0, 0], sizes = [2, 16, 16, 4], strides = [1, 1, 1, 1]} : vector<2x18x18x4xf32> to vector<2x16x16x4xf32>
    %10 = vector.shape_cast %9 : vector<2x16x16x4xf32> to vector<512x4xf32>
    %11 = vector.extract_strided_slice %6 {offsets = [0, 0, 1, 0], sizes = [2, 16, 16, 4], strides = [1, 1, 1, 1]} : vector<2x18x18x4xf32> to vector<2x16x16x4xf32>
    %12 = vector.shape_cast %11 : vector<2x16x16x4xf32> to vector<512x4xf32>
    %13 = vector.extract_strided_slice %6 {offsets = [0, 0, 2, 0], sizes = [2, 16, 16, 4], strides = [1, 1, 1, 1]} : vector<2x18x18x4xf32> to vector<2x16x16x4xf32>
    %14 = vector.shape_cast %13 : vector<2x16x16x4xf32> to vector<512x4xf32>
    %15 = vector.extract_strided_slice %6 {offsets = [0, 1, 0, 0], sizes = [2, 16, 16, 4], strides = [1, 1, 1, 1]} : vector<2x18x18x4xf32> to vector<2x16x16x4xf32>
    %16 = vector.shape_cast %15 : vector<2x16x16x4xf32> to vector<512x4xf32>
    %17 = vector.extract_strided_slice %6 {offsets = [0, 1, 1, 0], sizes = [2, 16, 16, 4], strides = [1, 1, 1, 1]} : vector<2x18x18x4xf32> to vector<2x16x16x4xf32>
    %18 = vector.shape_cast %17 : vector<2x16x16x4xf32> to vector<512x4xf32>
    %19 = vector.extract_strided_slice %6 {offsets = [0, 1, 2, 0], sizes = [2, 16, 16, 4], strides = [1, 1, 1, 1]} : vector<2x18x18x4xf32> to vector<2x16x16x4xf32>
    %20 = vector.shape_cast %19 : vector<2x16x16x4xf32> to vector<512x4xf32>
    %21 = vector.extract_strided_slice %6 {offsets = [0, 2, 0, 0], sizes = [2, 16, 16, 4], strides = [1, 1, 1, 1]} : vector<2x18x18x4xf32> to vector<2x16x16x4xf32>
    %22 = vector.shape_cast %21 : vector<2x16x16x4xf32> to vector<512x4xf32>
    %23 = vector.extract_strided_slice %6 {offsets = [0, 2, 1, 0], sizes = [2, 16, 16, 4], strides = [1, 1, 1, 1]} : vector<2x18x18x4xf32> to vector<2x16x16x4xf32>
    %24 = vector.shape_cast %23 : vector<2x16x16x4xf32> to vector<512x4xf32>
    %25 = vector.extract_strided_slice %6 {offsets = [0, 2, 2, 0], sizes = [2, 16, 16, 4], strides = [1, 1, 1, 1]} : vector<2x18x18x4xf32> to vector<2x16x16x4xf32>
    %26 = vector.shape_cast %25 : vector<2x16x16x4xf32> to vector<512x4xf32>
    %27 = tpu.concatenate %10, %12, %14, %16, %18, %20, %22, %24, %26 in 1 : vector<512x4xf32>, vector<512x4xf32>, vector<512x4xf32>, vector<512x4xf32>, vector<512x4xf32>, vector<512x4xf32>, vector<512x4xf32>, vector<512x4xf32>, vector<512x4xf32> -> vector<512x36xf32>
    %cst = arith.constant dense<0.000000e+00> : vector<512x8xf32>
    %28 = tpu.matmul %27, %7, %cst {dimension_numbers = #tpu.dot_dimension_numbers<[1], [0], [0], [1], [0, 0, 1, 1], [], []>} : vector<512x36xf32>, vector<36x8xf32>, vector<512x8xf32> -> vector<512x8xf32>
    %29 = vector.broadcast %8 : vector<1x8xf32> to vector<512x8xf32>
    %30 = arith.addf %28, %29 : vector<512x8xf32>
    %c0_7 = arith.constant 0 : index
    %c0_8 = arith.constant 0 : index
    %31 = vector.load %arg4[%c0_7, %c0_8] : memref<1x8xf32, #tpu.memory_space<vmem>>, vector<1x8xf32>
    %c0_9 = arith.constant 0 : index
    %c0_10 = arith.constant 0 : index
    %32 = vector.load %arg5[%c0_9, %c0_10] : memref<1x8xf32, #tpu.memory_space<vmem>>, vector<1x8xf32>
    %cst_11 = arith.constant dense<0.000000e+00> : vector<8xf32>
    %33 = vector.multi_reduction <add>, %30, %cst_11 [0] : vector<512x8xf32> to vector<8xf32>
    %34 = vector.shape_cast %33 : vector<8xf32> to vector<1x8xf32>
    %cst_12 = arith.constant 5.120000e+02 : f32
    %35 = vector.broadcast %cst_12 : f32 to vector<1x8xf32>
    %36 = arith.divf %34, %35 : vector<1x8xf32>
    %37 = vector.broadcast %36 : vector<1x8xf32> to vector<512x8xf32>
    %38 = arith.subf %30, %37 : vector<512x8xf32>
    %39 = arith.mulf %38, %38 : vector<512x8xf32>
    %cst_13 = arith.constant dense<0.000000e+00> : vector<8xf32>
    %40 = vector.multi_reduction <add>, %39, %cst_13 [0] : vector<512x8xf32> to vector<8xf32>
    %41 = vector.shape_cast %40 : vector<8xf32> to vector<1x8xf32>
    %cst_14 = arith.constant 5.120000e+02 : f32
    %42 = vector.broadcast %cst_14 : f32 to vector<1x8xf32>
    %43 = arith.divf %41, %42 : vector<1x8xf32>
    %cst_15 = arith.constant 9.99999974E-6 : f32
    %44 = vector.broadcast %cst_15 : f32 to vector<1x8xf32>
    %45 = arith.addf %43, %44 : vector<1x8xf32>
    %46 = math.rsqrt %45 : vector<1x8xf32>
    %47 = vector.broadcast %46 : vector<1x8xf32> to vector<512x8xf32>
    %48 = arith.mulf %38, %47 : vector<512x8xf32>
    %49 = vector.broadcast %31 : vector<1x8xf32> to vector<512x8xf32>
    %50 = arith.mulf %48, %49 : vector<512x8xf32>
    %51 = vector.broadcast %32 : vector<1x8xf32> to vector<512x8xf32>
    %52 = arith.addf %50, %51 : vector<512x8xf32>
    %53 = vector.shape_cast %52 : vector<512x8xf32> to vector<2x16x16x8xf32>
    %54 = vector.extract_strided_slice %53 {offsets = [0, 0, 0, 0], sizes = [2, 1, 16, 8], strides = [1, 1, 1, 1]} : vector<2x16x16x8xf32> to vector<2x1x16x8xf32>
    %55 = vector.extract_strided_slice %53 {offsets = [0, 15, 0, 0], sizes = [2, 1, 16, 8], strides = [1, 1, 1, 1]} : vector<2x16x16x8xf32> to vector<2x1x16x8xf32>
    %56 = tpu.concatenate %54, %53, %55 in 1 : vector<2x1x16x8xf32>, vector<2x16x16x8xf32>, vector<2x1x16x8xf32> -> vector<2x18x16x8xf32>
    %57 = vector.extract_strided_slice %56 {offsets = [0, 0, 0, 0], sizes = [2, 18, 1, 8], strides = [1, 1, 1, 1]} : vector<2x18x16x8xf32> to vector<2x18x1x8xf32>
    %58 = vector.extract_strided_slice %56 {offsets = [0, 0, 15, 0], sizes = [2, 18, 1, 8], strides = [1, 1, 1, 1]} : vector<2x18x16x8xf32> to vector<2x18x1x8xf32>
    %59 = tpu.concatenate %57, %56, %58 in 2 : vector<2x18x1x8xf32>, vector<2x18x16x8xf32>, vector<2x18x1x8xf32> -> vector<2x18x18x8xf32>
    %c0_16 = arith.constant 0 : index
    %c0_17 = arith.constant 0 : index
    %60 = vector.load %arg6[%c0_16, %c0_17] : memref<72x8xf32, #tpu.memory_space<vmem>>, vector<72x8xf32>
    %c0_18 = arith.constant 0 : index
    %c0_19 = arith.constant 0 : index
    %61 = vector.load %arg7[%c0_18, %c0_19] : memref<1x8xf32, #tpu.memory_space<vmem>>, vector<1x8xf32>
    %62 = vector.extract_strided_slice %59 {offsets = [0, 0, 0, 0], sizes = [2, 16, 16, 8], strides = [1, 1, 1, 1]} : vector<2x18x18x8xf32> to vector<2x16x16x8xf32>
    %63 = vector.shape_cast %62 : vector<2x16x16x8xf32> to vector<512x8xf32>
    %64 = vector.extract_strided_slice %59 {offsets = [0, 0, 1, 0], sizes = [2, 16, 16, 8], strides = [1, 1, 1, 1]} : vector<2x18x18x8xf32> to vector<2x16x16x8xf32>
    %65 = vector.shape_cast %64 : vector<2x16x16x8xf32> to vector<512x8xf32>
    %66 = vector.extract_strided_slice %59 {offsets = [0, 0, 2, 0], sizes = [2, 16, 16, 8], strides = [1, 1, 1, 1]} : vector<2x18x18x8xf32> to vector<2x16x16x8xf32>
    %67 = vector.shape_cast %66 : vector<2x16x16x8xf32> to vector<512x8xf32>
    %68 = vector.extract_strided_slice %59 {offsets = [0, 1, 0, 0], sizes = [2, 16, 16, 8], strides = [1, 1, 1, 1]} : vector<2x18x18x8xf32> to vector<2x16x16x8xf32>
    %69 = vector.shape_cast %68 : vector<2x16x16x8xf32> to vector<512x8xf32>
    %70 = vector.extract_strided_slice %59 {offsets = [0, 1, 1, 0], sizes = [2, 16, 16, 8], strides = [1, 1, 1, 1]} : vector<2x18x18x8xf32> to vector<2x16x16x8xf32>
    %71 = vector.shape_cast %70 : vector<2x16x16x8xf32> to vector<512x8xf32>
    %72 = vector.extract_strided_slice %59 {offsets = [0, 1, 2, 0], sizes = [2, 16, 16, 8], strides = [1, 1, 1, 1]} : vector<2x18x18x8xf32> to vector<2x16x16x8xf32>
    %73 = vector.shape_cast %72 : vector<2x16x16x8xf32> to vector<512x8xf32>
    %74 = vector.extract_strided_slice %59 {offsets = [0, 2, 0, 0], sizes = [2, 16, 16, 8], strides = [1, 1, 1, 1]} : vector<2x18x18x8xf32> to vector<2x16x16x8xf32>
    %75 = vector.shape_cast %74 : vector<2x16x16x8xf32> to vector<512x8xf32>
    %76 = vector.extract_strided_slice %59 {offsets = [0, 2, 1, 0], sizes = [2, 16, 16, 8], strides = [1, 1, 1, 1]} : vector<2x18x18x8xf32> to vector<2x16x16x8xf32>
    %77 = vector.shape_cast %76 : vector<2x16x16x8xf32> to vector<512x8xf32>
    %78 = vector.extract_strided_slice %59 {offsets = [0, 2, 2, 0], sizes = [2, 16, 16, 8], strides = [1, 1, 1, 1]} : vector<2x18x18x8xf32> to vector<2x16x16x8xf32>
    %79 = vector.shape_cast %78 : vector<2x16x16x8xf32> to vector<512x8xf32>
    %80 = tpu.concatenate %63, %65, %67, %69, %71, %73, %75, %77, %79 in 1 : vector<512x8xf32>, vector<512x8xf32>, vector<512x8xf32>, vector<512x8xf32>, vector<512x8xf32>, vector<512x8xf32>, vector<512x8xf32>, vector<512x8xf32>, vector<512x8xf32> -> vector<512x72xf32>
    %cst_20 = arith.constant dense<0.000000e+00> : vector<512x8xf32>
    %81 = tpu.matmul %80, %60, %cst_20 {dimension_numbers = #tpu.dot_dimension_numbers<[1], [0], [0], [1], [0, 0, 1, 1], [], []>} : vector<512x72xf32>, vector<72x8xf32>, vector<512x8xf32> -> vector<512x8xf32>
    %82 = vector.broadcast %61 : vector<1x8xf32> to vector<512x8xf32>
    %83 = arith.addf %81, %82 : vector<512x8xf32>
    %c0_21 = arith.constant 0 : index
    %c0_22 = arith.constant 0 : index
    %84 = vector.load %arg8[%c0_21, %c0_22] : memref<1x8xf32, #tpu.memory_space<vmem>>, vector<1x8xf32>
    %c0_23 = arith.constant 0 : index
    %c0_24 = arith.constant 0 : index
    %85 = vector.load %arg9[%c0_23, %c0_24] : memref<1x8xf32, #tpu.memory_space<vmem>>, vector<1x8xf32>
    %cst_25 = arith.constant dense<0.000000e+00> : vector<8xf32>
    %86 = vector.multi_reduction <add>, %83, %cst_25 [0] : vector<512x8xf32> to vector<8xf32>
    %87 = vector.shape_cast %86 : vector<8xf32> to vector<1x8xf32>
    %cst_26 = arith.constant 5.120000e+02 : f32
    %88 = vector.broadcast %cst_26 : f32 to vector<1x8xf32>
    %89 = arith.divf %87, %88 : vector<1x8xf32>
    %90 = vector.broadcast %89 : vector<1x8xf32> to vector<512x8xf32>
    %91 = arith.subf %83, %90 : vector<512x8xf32>
    %92 = arith.mulf %91, %91 : vector<512x8xf32>
    %cst_27 = arith.constant dense<0.000000e+00> : vector<8xf32>
    %93 = vector.multi_reduction <add>, %92, %cst_27 [0] : vector<512x8xf32> to vector<8xf32>
    %94 = vector.shape_cast %93 : vector<8xf32> to vector<1x8xf32>
    %cst_28 = arith.constant 5.120000e+02 : f32
    %95 = vector.broadcast %cst_28 : f32 to vector<1x8xf32>
    %96 = arith.divf %94, %95 : vector<1x8xf32>
    %cst_29 = arith.constant 9.99999974E-6 : f32
    %97 = vector.broadcast %cst_29 : f32 to vector<1x8xf32>
    %98 = arith.addf %96, %97 : vector<1x8xf32>
    %99 = math.rsqrt %98 : vector<1x8xf32>
    %100 = vector.broadcast %99 : vector<1x8xf32> to vector<512x8xf32>
    %101 = arith.mulf %91, %100 : vector<512x8xf32>
    %102 = vector.broadcast %84 : vector<1x8xf32> to vector<512x8xf32>
    %103 = arith.mulf %101, %102 : vector<512x8xf32>
    %104 = vector.broadcast %85 : vector<1x8xf32> to vector<512x8xf32>
    %105 = arith.addf %103, %104 : vector<512x8xf32>
    %106 = vector.shape_cast %0 : vector<2x16x16x4xf32> to vector<512x4xf32>
    %c0_30 = arith.constant 0 : index
    %c0_31 = arith.constant 0 : index
    %107 = vector.load %arg10[%c0_30, %c0_31] : memref<4x8xf32, #tpu.memory_space<vmem>>, vector<4x8xf32>
    %cst_32 = arith.constant dense<0.000000e+00> : vector<512x8xf32>
    %108 = tpu.matmul %106, %107, %cst_32 {dimension_numbers = #tpu.dot_dimension_numbers<[1], [0], [0], [1], [0, 0, 1, 1], [], []>} : vector<512x4xf32>, vector<4x8xf32>, vector<512x8xf32> -> vector<512x8xf32>
    %c0_33 = arith.constant 0 : index
    %c0_34 = arith.constant 0 : index
    %109 = vector.load %arg11[%c0_33, %c0_34] : memref<1x8xf32, #tpu.memory_space<vmem>>, vector<1x8xf32>
    %110 = vector.broadcast %109 : vector<1x8xf32> to vector<512x8xf32>
    %111 = arith.addf %108, %110 : vector<512x8xf32>
    %c0_35 = arith.constant 0 : index
    %c0_36 = arith.constant 0 : index
    %112 = vector.load %arg12[%c0_35, %c0_36] : memref<1x8xf32, #tpu.memory_space<vmem>>, vector<1x8xf32>
    %c0_37 = arith.constant 0 : index
    %c0_38 = arith.constant 0 : index
    %113 = vector.load %arg13[%c0_37, %c0_38] : memref<1x8xf32, #tpu.memory_space<vmem>>, vector<1x8xf32>
    %cst_39 = arith.constant dense<0.000000e+00> : vector<8xf32>
    %114 = vector.multi_reduction <add>, %111, %cst_39 [0] : vector<512x8xf32> to vector<8xf32>
    %115 = vector.shape_cast %114 : vector<8xf32> to vector<1x8xf32>
    %cst_40 = arith.constant 5.120000e+02 : f32
    %116 = vector.broadcast %cst_40 : f32 to vector<1x8xf32>
    %117 = arith.divf %115, %116 : vector<1x8xf32>
    %118 = vector.broadcast %117 : vector<1x8xf32> to vector<512x8xf32>
    %119 = arith.subf %111, %118 : vector<512x8xf32>
    %120 = arith.mulf %119, %119 : vector<512x8xf32>
    %cst_41 = arith.constant dense<0.000000e+00> : vector<8xf32>
    %121 = vector.multi_reduction <add>, %120, %cst_41 [0] : vector<512x8xf32> to vector<8xf32>
    %122 = vector.shape_cast %121 : vector<8xf32> to vector<1x8xf32>
    %cst_42 = arith.constant 5.120000e+02 : f32
    %123 = vector.broadcast %cst_42 : f32 to vector<1x8xf32>
    %124 = arith.divf %122, %123 : vector<1x8xf32>
    %cst_43 = arith.constant 9.99999974E-6 : f32
    %125 = vector.broadcast %cst_43 : f32 to vector<1x8xf32>
    %126 = arith.addf %124, %125 : vector<1x8xf32>
    %127 = math.rsqrt %126 : vector<1x8xf32>
    %128 = vector.broadcast %127 : vector<1x8xf32> to vector<512x8xf32>
    %129 = arith.mulf %119, %128 : vector<512x8xf32>
    %130 = vector.broadcast %112 : vector<1x8xf32> to vector<512x8xf32>
    %131 = arith.mulf %129, %130 : vector<512x8xf32>
    %132 = vector.broadcast %113 : vector<1x8xf32> to vector<512x8xf32>
    %133 = arith.addf %131, %132 : vector<512x8xf32>
    %134 = arith.addf %133, %105 : vector<512x8xf32>
    %cst_44 = arith.constant 0.000000e+00 : f32
    %135 = vector.broadcast %cst_44 : f32 to vector<512x8xf32>
    %136 = arith.maximumf %134, %135 : vector<512x8xf32>
    %c0_45 = arith.constant 0 : index
    %c0_46 = arith.constant 0 : index
    %137 = vector.load %arg14[%c0_45, %c0_46] : memref<512x8xf32, #tpu.memory_space<vmem>>, vector<512x8xf32>
    tpu.vector_store %arg14[%c0_45, %c0_46], %136 {strides = array<i32>} : memref<512x8xf32, #tpu.memory_space<vmem>>, vector<512x8xf32>,
    return
  }
  func.func @transform_0(%arg0: i32) -> (i32, i32, i32, i32) {
    %c0_i32 = arith.constant 0 : i32
    %c0_i32_0 = arith.constant 0 : i32
    %c0_i32_1 = arith.constant 0 : i32
    %c0_i32_2 = arith.constant 0 : i32
    %c0_i32_3 = arith.constant 0 : i32
    return %c0_i32, %c0_i32_0, %c0_i32_1, %c0_i32_2 : i32, i32, i32, i32
  }
  func.func @transform_1(%arg0: i32) -> (i32, i32) {
    %c0_i32 = arith.constant 0 : i32
    %c0_i32_0 = arith.constant 0 : i32
    %c0_i32_1 = arith.constant 0 : i32
    return %c0_i32, %c0_i32_0 : i32, i32
  }
  func.func @transform_2(%arg0: i32) -> (i32, i32) {
    %c0_i32 = arith.constant 0 : i32
    %c0_i32_0 = arith.constant 0 : i32
    %c0_i32_1 = arith.constant 0 : i32
    return %c0_i32, %c0_i32_0 : i32, i32
  }
  func.func @transform_3(%arg0: i32) -> (i32, i32) {
    %c0_i32 = arith.constant 0 : i32
    %c0_i32_0 = arith.constant 0 : i32
    %c0_i32_1 = arith.constant 0 : i32
    return %c0_i32, %c0_i32_0 : i32, i32
  }
  func.func @transform_4(%arg0: i32) -> (i32, i32) {
    %c0_i32 = arith.constant 0 : i32
    %c0_i32_0 = arith.constant 0 : i32
    %c0_i32_1 = arith.constant 0 : i32
    return %c0_i32, %c0_i32_0 : i32, i32
  }
  func.func @transform_5(%arg0: i32) -> (i32, i32) {
    %c0_i32 = arith.constant 0 : i32
    %c0_i32_0 = arith.constant 0 : i32
    %c0_i32_1 = arith.constant 0 : i32
    return %c0_i32, %c0_i32_0 : i32, i32
  }
  func.func @transform_6(%arg0: i32) -> (i32, i32) {
    %c0_i32 = arith.constant 0 : i32
    %c0_i32_0 = arith.constant 0 : i32
    %c0_i32_1 = arith.constant 0 : i32
    return %c0_i32, %c0_i32_0 : i32, i32
  }
  func.func @transform_7(%arg0: i32) -> (i32, i32) {
    %c0_i32 = arith.constant 0 : i32
    %c0_i32_0 = arith.constant 0 : i32
    %c0_i32_1 = arith.constant 0 : i32
    return %c0_i32, %c0_i32_0 : i32, i32
  }
  func.func @transform_8(%arg0: i32) -> (i32, i32) {
    %c0_i32 = arith.constant 0 : i32
    %c0_i32_0 = arith.constant 0 : i32
    %c0_i32_1 = arith.constant 0 : i32
    return %c0_i32, %c0_i32_0 : i32, i32
  }
  func.func @transform_9(%arg0: i32) -> (i32, i32) {
    %c0_i32 = arith.constant 0 : i32
    %c0_i32_0 = arith.constant 0 : i32
    %c0_i32_1 = arith.constant 0 : i32
    return %c0_i32, %c0_i32_0 : i32, i32
  }
  func.func @transform_10(%arg0: i32) -> (i32, i32) {
    %c0_i32 = arith.constant 0 : i32
    %c0_i32_0 = arith.constant 0 : i32
    %c0_i32_1 = arith.constant 0 : i32
    return %c0_i32, %c0_i32_0 : i32, i32
  }
  func.func @transform_11(%arg0: i32) -> (i32, i32) {
    %c0_i32 = arith.constant 0 : i32
    %c0_i32_0 = arith.constant 0 : i32
    %c0_i32_1 = arith.constant 0 : i32
    return %c0_i32, %c0_i32_0 : i32, i32
  }
  func.func @transform_12(%arg0: i32) -> (i32, i32) {
    %c0_i32 = arith.constant 0 : i32
    %c0_i32_0 = arith.constant 0 : i32
    %c0_i32_1 = arith.constant 0 : i32
    return %c0_i32, %c0_i32_0 : i32, i32
  }
  func.func @transform_13(%arg0: i32) -> (i32, i32) {
    %c0_i32 = arith.constant 0 : i32
    %c0_i32_0 = arith.constant 0 : i32
    %c0_i32_1 = arith.constant 0 : i32
    return %c0_i32, %c0_i32_0 : i32, i32
  }
}

</mosaic_0001>

<llo_original>
// kernel: tpu_custom_call.1
$region0: #{tpu_custom_call.1}
  #allocation0 [shape = 'u32[]', space=smem, size = 0x4, offset = 0x4, fixed_abs, tag = 'smem constant byte address 0x4 - core index']
  #allocation1 [shape = 'u32[144,128]{1,0:T(1,128)}', space=vmem, size = 0x12000, scoped, tag = 'internal scratch']
  %s0 = inlined_call_operand.vmem [shape: f32[2,16,16,4], index: 0, kind: input, shape index: {}]
  %s1 = inlined_call_operand.vmem [shape: f32[36,8], index: 1, kind: input, shape index: {}]
  %s2 = inlined_call_operand.vmem [shape: f32[1,8], index: 2, kind: input, shape index: {}]
  %s3 = inlined_call_operand.vmem [shape: f32[1,8], index: 3, kind: input, shape index: {}]
  %s4 = inlined_call_operand.vmem [shape: f32[1,8], index: 4, kind: input, shape index: {}]
  %s5 = inlined_call_operand.vmem [shape: f32[72,8], index: 5, kind: input, shape index: {}]
  %s6 = inlined_call_operand.vmem [shape: f32[1,8], index: 6, kind: input, shape index: {}]
  %s7 = inlined_call_operand.vmem [shape: f32[1,8], index: 7, kind: input, shape index: {}]
  %s8 = inlined_call_operand.vmem [shape: f32[1,8], index: 8, kind: input, shape index: {}]
  %s9 = inlined_call_operand.vmem [shape: f32[4,8], index: 9, kind: input, shape index: {}]
  %s10 = inlined_call_operand.vmem [shape: f32[1,8], index: 10, kind: input, shape index: {}]
  %s11 = inlined_call_operand.vmem [shape: f32[1,8], index: 11, kind: input, shape index: {}]
  %s12 = inlined_call_operand.vmem [shape: f32[1,8], index: 12, kind: input, shape index: {}]
  %s13 = inlined_call_operand.vmem [shape: f32[512,8], index: 13, kind: output, shape index: {}]
  %s14 = sld [smem:[#allocation0]]
  $region62: #{tpu_custom_call.1} parent=0
    _
  %s16 = ssub.s32 1, %s14
  %s17 = scalar_select 0, %s16, %s14
  // Predicated region
  $region2: #{tpu_custom_call.1} parent=0 // pred_check
    _
  $region3: #{tpu_custom_call.1} parent=0 // pred_check_branch
    %19 = sbr.rel (0) target = $region5
  $region4: #{tpu_custom_call.1} parent=0 // pred_region
    _
  $region5: #{tpu_custom_call.1} parent=0 // pred_fallthru
    _
  // Predicated region
  $region6: #{tpu_custom_call.1} parent=0 // pred_check
    _
  $region7: #{tpu_custom_call.1} parent=0 // pred_check_branch
    %21 = sbr.rel (0) target = $region9
  $region8: #{tpu_custom_call.1} parent=0 // pred_region
    _
  $region9: #{tpu_custom_call.1} parent=0 // pred_fallthru
    _
  // Predicated region
  $region10: #{tpu_custom_call.1} parent=0 // pred_check
    _
  $region11: #{tpu_custom_call.1} parent=0 // pred_check_branch
    %23 = sbr.rel (0) target = $region13
  $region12: #{tpu_custom_call.1} parent=0 // pred_region
    _
  $region13: #{tpu_custom_call.1} parent=0 // pred_fallthru
    _
  // Predicated region
  $region14: #{tpu_custom_call.1} parent=0 // pred_check
    _
  $region15: #{tpu_custom_call.1} parent=0 // pred_check_branch
    %25 = sbr.rel (0) target = $region17
  $region16: #{tpu_custom_call.1} parent=0 // pred_region
    _
  $region17: #{tpu_custom_call.1} parent=0 // pred_fallthru
    _
  // Predicated region
  $region18: #{tpu_custom_call.1} parent=0 // pred_check
    _
  $region19: #{tpu_custom_call.1} parent=0 // pred_check_branch
    %27 = sbr.rel (0) target = $region21
  $region20: #{tpu_custom_call.1} parent=0 // pred_region
    _
  $region21: #{tpu_custom_call.1} parent=0 // pred_fallthru
    _
  // Predicated region
  $region22: #{tpu_custom_call.1} parent=0 // pred_check
    _
  $region23: #{tpu_custom_call.1} parent=0 // pred_check_branch
    %29 = sbr.rel (0) target = $region25
  $region24: #{tpu_custom_call.1} parent=0 // pred_region
    _
  $region25: #{tpu_custom_call.1} parent=0 // pred_fallthru
    _
  // Predicated region
  $region26: #{tpu_custom_call.1} parent=0 // pred_check
    _
  $region27: #{tpu_custom_call.1} parent=0 // pred_check_branch
    %31 = sbr.rel (0) target = $region29
  $region28: #{tpu_custom_call.1} parent=0 // pred_region
    _
  $region29: #{tpu_custom_call.1} parent=0 // pred_fallthru
    _
  // Predicated region
  $region30: #{tpu_custom_call.1} parent=0 // pred_check
    _
  $region31: #{tpu_custom_call.1} parent=0 // pred_check_branch
    %33 = sbr.rel (0) target = $region33
  $region32: #{tpu_custom_call.1} parent=0 // pred_region
    _
  $region33: #{tpu_custom_call.1} parent=0 // pred_fallthru
    _
  // Predicated region
  $region34: #{tpu_custom_call.1} parent=0 // pred_check
    _
  $region35: #{tpu_custom_call.1} parent=0 // pred_check_branch
    %35 = sbr.rel (0) target = $region37
  $region36: #{tpu_custom_call.1} parent=0 // pred_region
    _
  $region37: #{tpu_custom_call.1} parent=0 // pred_fallthru
    _
  // Predicated region
  $region38: #{tpu_custom_call.1} parent=0 // pred_check
    _
  $region39: #{tpu_custom_call.1} parent=0 // pred_check_branch
    %37 = sbr.rel (0) target = $region41
  $region40: #{tpu_custom_call.1} parent=0 // pred_region
    _
  $region41: #{tpu_custom_call.1} parent=0 // pred_fallthru
    _
  // Predicated region
  $region42: #{tpu_custom_call.1} parent=0 // pred_check
    _
  $region43: #{tpu_custom_call.1} parent=0 // pred_check_branch
    %39 = sbr.rel (0) target = $region45
  $region44: #{tpu_custom_call.1} parent=0 // pred_region
    _
  $region45: #{tpu_custom_call.1} parent=0 // pred_fallthru
    _
  // Predicated region
  $region46: #{tpu_custom_call.1} parent=0 // pred_check
    _
  $region47: #{tpu_custom_call.1} parent=0 // pred_check_branch
    %41 = sbr.rel (0) target = $region49
  $region48: #{tpu_custom_call.1} parent=0 // pred_region
    _
  $region49: #{tpu_custom_call.1} parent=0 // pred_fallthru
    _
  // Predicated region
  $region50: #{tpu_custom_call.1} parent=0 // pred_check
    _
  $region51: #{tpu_custom_call.1} parent=0 // pred_check_branch
    %43 = sbr.rel (0) target = $region53
  $region52: #{tpu_custom_call.1} parent=0 // pred_region
    _
  $region53: #{tpu_custom_call.1} parent=0 // pred_fallthru
    _
  %v44 = vld [vmem:[%s0] sm:$0xff]
  %v45 = vld [vmem:[%s0 + $0x8] sm:$0xff]
  %v46 = vld [vmem:[%s0 + $0x10] sm:$0xff]
  %v47 = vld [vmem:[%s0 + $0x18] sm:$0xff]
  %v48 = vld [vmem:[%s0 + $0x20] sm:$0xff]
  %v49 = vld [vmem:[%s0 + $0x28] sm:$0xff]
  %v50 = vld [vmem:[%s0 + $0x30] sm:$0xff]
  %v51 = vld [vmem:[%s0 + $0x38] sm:$0xff]
  %v52 = vld [vmem:[%s0 + $0x40] sm:$0xff]
  %v53 = vld [vmem:[%s0 + $0x48] sm:$0xff]
  %v54 = vld [vmem:[%s0 + $0x50] sm:$0xff]
  %v55 = vld [vmem:[%s0 + $0x58] sm:$0xff]
  %v56 = vld [vmem:[%s0 + $0x60] sm:$0xff]
  %v57 = vld [vmem:[%s0 + $0x68] sm:$0xff]
  %v58 = vld [vmem:[%s0 + $0x70] sm:$0xff]
  %v59 = vld [vmem:[%s0 + $0x78] sm:$0xff]
  %v60 = vld [vmem:[%s0 + $0x80] sm:$0xff]
  %v61 = vld [vmem:[%s0 + $0x88] sm:$0xff]
  %v62 = vld [vmem:[%s0 + $0x90] sm:$0xff]
  %v63 = vld [vmem:[%s0 + $0x98] sm:$0xff]
  %v64 = vld [vmem:[%s0 + $0xa0] sm:$0xff]
  %v65 = vld [vmem:[%s0 + $0xa8] sm:$0xff]
  %v66 = vld [vmem:[%s0 + $0xb0] sm:$0xff]
  %v67 = vld [vmem:[%s0 + $0xb8] sm:$0xff]
  %v68 = vld [vmem:[%s0 + $0xc0] sm:$0xff]
  %v69 = vld [vmem:[%s0 + $0xc8] sm:$0xff]
  %v70 = vld [vmem:[%s0 + $0xd0] sm:$0xff]
  %v71 = vld [vmem:[%s0 + $0xd8] sm:$0xff]
  %v72 = vld [vmem:[%s0 + $0xe0] sm:$0xff]
  %v73 = vld [vmem:[%s0 + $0xe8] sm:$0xff]
  %v74 = vld [vmem:[%s0 + $0xf0] sm:$0xff]
  %v75 = vld [vmem:[%s0 + $0xf8] sm:$0xff]
  %v76 = vld [vmem:[%s0 + $0x100] sm:$0xff]
  %v77 = vld [vmem:[%s0 + $0x108] sm:$0xff]
  %v78 = vld [vmem:[%s0 + $0x110] sm:$0xff]
  %v79 = vld [vmem:[%s0 + $0x118] sm:$0xff]
  %v80 = vld [vmem:[%s0 + $0x120] sm:$0xff]
  %v81 = vld [vmem:[%s0 + $0x128] sm:$0xff]
  %v82 = vld [vmem:[%s0 + $0x130] sm:$0xff]
  %v83 = vld [vmem:[%s0 + $0x138] sm:$0xff]
  %v84 = vld [vmem:[%s0 + $0x140] sm:$0xff]
  %v85 = vld [vmem:[%s0 + $0x148] sm:$0xff]
  %v86 = vld [vmem:[%s0 + $0x150] sm:$0xff]
  %v87 = vld [vmem:[%s0 + $0x158] sm:$0xff]
  %v88 = vld [vmem:[%s0 + $0x160] sm:$0xff]
  %v89 = vld [vmem:[%s0 + $0x168] sm:$0xff]
  %v90 = vld [vmem:[%s0 + $0x170] sm:$0xff]
  %v91 = vld [vmem:[%s0 + $0x178] sm:$0xff]
  %v92 = vld [vmem:[%s0 + $0x180] sm:$0xff]
  %v93 = vld [vmem:[%s0 + $0x188] sm:$0xff]
  %v94 = vld [vmem:[%s0 + $0x190] sm:$0xff]
  %v95 = vld [vmem:[%s0 + $0x198] sm:$0xff]
  %v96 = vld [vmem:[%s0 + $0x1a0] sm:$0xff]
  %v97 = vld [vmem:[%s0 + $0x1a8] sm:$0xff]
  %v98 = vld [vmem:[%s0 + $0x1b0] sm:$0xff]
  %v99 = vld [vmem:[%s0 + $0x1b8] sm:$0xff]
  %v100 = vld [vmem:[%s0 + $0x1c0] sm:$0xff]
  %v101 = vld [vmem:[%s0 + $0x1c8] sm:$0xff]
  %v102 = vld [vmem:[%s0 + $0x1d0] sm:$0xff]
  %v103 = vld [vmem:[%s0 + $0x1d8] sm:$0xff]
  %v104 = vld [vmem:[%s0 + $0x1e0] sm:$0xff]
  %v105 = vld [vmem:[%s0 + $0x1e8] sm:$0xff]
  %v106 = vld [vmem:[%s0 + $0x1f0] sm:$0xff]
  %v107 = vld [vmem:[%s0 + $0x1f8] sm:$0xff]
  %vm172 = vcmask 1040384
  %v173 = vrot.slane %v44, 7
  %v174 = vrot.slane %v45, 7
  %v175 = vsel %vm172, %v173, %v174
  %v176 = vrot.slane %v46, 7
  %v177 = vrot.slane %v47, 7
  %v178 = vsel %vm172, %v176, %v177
  %v179 = vrot.slane %v48, 7
  %v180 = vrot.slane %v49, 7
  %v181 = vsel %vm172, %v179, %v180
  %v182 = vrot.slane %v50, 7
  %v183 = vrot.slane %v51, 7
  %v184 = vsel %vm172, %v182, %v183
  %v185 = vrot.slane %v52, 7
  %v186 = vrot.slane %v53, 7
  %v187 = vsel %vm172, %v185, %v186
  %v188 = vrot.slane %v54, 7
  %v189 = vrot.slane %v55, 7
  %v190 = vsel %vm172, %v188, %v189
  %v191 = vrot.slane %v56, 7
  %v192 = vrot.slane %v57, 7
  %v193 = vsel %vm172, %v191, %v192
  %v194 = vrot.slane %v58, 7
  %v195 = vrot.slane %v59, 7
  %v196 = vsel %vm172, %v194, %v195
  %v197 = vrot.slane %v60, 7
  %v198 = vrot.slane %v61, 7
  %v199 = vsel %vm172, %v197, %v198
  %v200 = vrot.slane %v62, 7
  %v201 = vrot.slane %v63, 7
  %v202 = vsel %vm172, %v200, %v201
  %v203 = vrot.slane %v64, 7
  %v204 = vrot.slane %v65, 7
  %v205 = vsel %vm172, %v203, %v204
  %v206 = vrot.slane %v66, 7
  %v207 = vrot.slane %v67, 7
  %v208 = vsel %vm172, %v206, %v207
  %v209 = vrot.slane %v68, 7
  %v210 = vrot.slane %v69, 7
  %v211 = vsel %vm172, %v209, %v210
  %v212 = vrot.slane %v70, 7
  %v213 = vrot.slane %v71, 7
  %v214 = vsel %vm172, %v212, %v213
  %v215 = vrot.slane %v72, 7
  %v216 = vrot.slane %v73, 7
  %v217 = vsel %vm172, %v215, %v216
  %v218 = vrot.slane %v74, 7
  %v219 = vrot.slane %v75, 7
  %v220 = vsel %vm172, %v218, %v219
  %v221 = vrot.slane %v76, 7
  %v222 = vrot.slane %v77, 7
  %v223 = vsel %vm172, %v221, %v222
  %v224 = vrot.slane %v78, 7
  %v225 = vrot.slane %v79, 7
  %v226 = vsel %vm172, %v224, %v225
  %v227 = vrot.slane %v80, 7
  %v228 = vrot.slane %v81, 7
  %v229 = vsel %vm172, %v227, %v228
  %v230 = vrot.slane %v82, 7
  %v231 = vrot.slane %v83, 7
  %v232 = vsel %vm172, %v230, %v231
  %v233 = vrot.slane %v84, 7
  %v234 = vrot.slane %v85, 7
  %v235 = vsel %vm172, %v233, %v234
  %v236 = vrot.slane %v86, 7
  %v237 = vrot.slane %v87, 7
  %v238 = vsel %vm172, %v236, %v237
  %v239 = vrot.slane %v88, 7
  %v240 = vrot.slane %v89, 7
  %v241 = vsel %vm172, %v239, %v240
  %v242 = vrot.slane %v90, 7
  %v243 = vrot.slane %v91, 7
  %v244 = vsel %vm172, %v242, %v243
  %v245 = vrot.slane %v92, 7
  %v246 = vrot.slane %v93, 7
  %v247 = vsel %vm172, %v245, %v246
  %v248 = vrot.slane %v94, 7
  %v249 = vrot.slane %v95, 7
  %v250 = vsel %vm172, %v248, %v249
  %v251 = vrot.slane %v96, 7
  %v252 = vrot.slane %v97, 7
  %v253 = vsel %vm172, %v251, %v252
  %v254 = vrot.slane %v98, 7
  %v255 = vrot.slane %v99, 7
  %v256 = vsel %vm172, %v254, %v255
  %v257 = vrot.slane %v100, 7
  %v258 = vrot.slane %v101, 7
  %v259 = vsel %vm172, %v257, %v258
  %v260 = vrot.slane %v102, 7
  %v261 = vrot.slane %v103, 7
  %v262 = vsel %vm172, %v260, %v261
  %v263 = vrot.slane %v104, 7
  %v264 = vrot.slane %v105, 7
  %v265 = vsel %vm172, %v263, %v264
  %v266 = vrot.slane %v106, 7
  %v267 = vrot.slane %v107, 7
  %v268 = vsel %vm172, %v266, %v267
  %v363 = vrot.slane %v45, 6
  %v364 = vrot.slane %v47, 6
  %v365 = vrot.slane %v49, 6
  %v366 = vrot.slane %v51, 6
  %v367 = vrot.slane %v53, 6
  %v368 = vrot.slane %v55, 6
  %v369 = vrot.slane %v57, 6
  %v370 = vrot.slane %v59, 6
  %v371 = vrot.slane %v61, 6
  %v372 = vrot.slane %v63, 6
  %v373 = vrot.slane %v65, 6
  %v374 = vrot.slane %v67, 6
  %v375 = vrot.slane %v69, 6
  %v376 = vrot.slane %v71, 6
  %v377 = vrot.slane %v73, 6
  %v378 = vrot.slane %v75, 6
  %v379 = vrot.slane %v77, 6
  %v380 = vrot.slane %v79, 6
  %v381 = vrot.slane %v81, 6
  %v382 = vrot.slane %v83, 6
  %v383 = vrot.slane %v85, 6
  %v384 = vrot.slane %v87, 6
  %v385 = vrot.slane %v89, 6
  %v386 = vrot.slane %v91, 6
  %v387 = vrot.slane %v93, 6
  %v388 = vrot.slane %v95, 6
  %v389 = vrot.slane %v97, 6
  %v390 = vrot.slane %v99, 6
  %v391 = vrot.slane %v101, 6
  %v392 = vrot.slane %v103, 6
  %v393 = vrot.slane %v105, 6
  %v394 = vrot.slane %v107, 6
  %v427 = vsel %vm172, %v44, %v173
  %v428 = vsel %vm172, %v46, %v176
  %v429 = vsel %vm172, %v48, %v179
  %v430 = vsel %vm172, %v50, %v182
  %v431 = vsel %vm172, %v52, %v185
  %v432 = vsel %vm172, %v54, %v188
  %v433 = vsel %vm172, %v56, %v191
  %v434 = vsel %vm172, %v58, %v194
  %v435 = vsel %vm172, %v60, %v197
  %v436 = vsel %vm172, %v62, %v200
  %v437 = vsel %vm172, %v64, %v203
  %v438 = vsel %vm172, %v66, %v206
  %v439 = vsel %vm172, %v68, %v209
  %v440 = vsel %vm172, %v70, %v212
  %v441 = vsel %vm172, %v72, %v215
  %v442 = vsel %vm172, %v74, %v218
  %v443 = vsel %vm172, %v76, %v221
  %v444 = vsel %vm172, %v78, %v224
  %v445 = vsel %vm172, %v80, %v227
  %v446 = vsel %vm172, %v82, %v230
  %v447 = vsel %vm172, %v84, %v233
  %v448 = vsel %vm172, %v86, %v236
  %v449 = vsel %vm172, %v88, %v239
  %v450 = vsel %vm172, %v90, %v242
  %v451 = vsel %vm172, %v92, %v245
  %v452 = vsel %vm172, %v94, %v248
  %v453 = vsel %vm172, %v96, %v251
  %v454 = vsel %vm172, %v98, %v254
  %v455 = vsel %vm172, %v100, %v257
  %v456 = vsel %vm172, %v102, %v260
  %v457 = vsel %vm172, %v104, %v263
  %v458 = vsel %vm172, %v106, %v266
  %v459 = vsel %vm172, %v174, %v363
  %v460 = vsel %vm172, %v177, %v364
  %v461 = vsel %vm172, %v180, %v365
  %v462 = vsel %vm172, %v183, %v366
  %v463 = vsel %vm172, %v186, %v367
  %v464 = vsel %vm172, %v189, %v368
  %v465 = vsel %vm172, %v192, %v369
  %v466 = vsel %vm172, %v195, %v370
  %v467 = vsel %vm172, %v198, %v371
  %v468 = vsel %vm172, %v201, %v372
  %v469 = vsel %vm172, %v204, %v373
  %v470 = vsel %vm172, %v207, %v374
  %v471 = vsel %vm172, %v210, %v375
  %v472 = vsel %vm172, %v213, %v376
  %v473 = vsel %vm172, %v216, %v377
  %v474 = vsel %vm172, %v219, %v378
  %v475 = vsel %vm172, %v222, %v379
  %v476 = vsel %vm172, %v225, %v380
  %v477 = vsel %vm172, %v228, %v381
  %v478 = vsel %vm172, %v231, %v382
  %v479 = vsel %vm172, %v234, %v383
  %v480 = vsel %vm172, %v237, %v384
  %v481 = vsel %vm172, %v240, %v385
  %v482 = vsel %vm172, %v243, %v386
  %v483 = vsel %vm172, %v246, %v387
  %v484 = vsel %vm172, %v249, %v388
  %v485 = vsel %vm172, %v252, %v389
  %v486 = vsel %vm172, %v255, %v390
  %v487 = vsel %vm172, %v258, %v391
  %v488 = vsel %vm172, %v261, %v392
  %v489 = vsel %vm172, %v264, %v393
  %v490 = vsel %vm172, %v267, %v394
  %v491 = vld [vmem:[%s1] sm:$0xff]
  %v492 = vld [vmem:[%s1 + $0x8] sm:$0xff]
  %v493 = vld [vmem:[%s1 + $0x10] sm:$0xff]
  %v494 = vld [vmem:[%s1 + $0x18] sm:$0xff]
  %v495 = vld [vmem:[%s1 + $0x20] sm:$0xf]
  %v496 = vld [vmem:[%s2] sm:$0x1]
  %vm557 = vcmask 1046528
  %v558 = vrot.slane %v427, 1
  %v559 = vrot.slane %v175, 1
  %v560 = vsel %vm557, %v558, %v559
  %v561 = vrot.slane %v459, 1
  %v562 = vsel %vm557, %v559, %v561
  %v563 = vrot.slane %v428, 1
  %v564 = vrot.slane %v178, 1
  %v565 = vsel %vm557, %v563, %v564
  %v566 = vrot.slane %v460, 1
  %v567 = vsel %vm557, %v564, %v566
  %v568 = vrot.slane %v429, 1
  %v569 = vrot.slane %v181, 1
  %v570 = vsel %vm557, %v568, %v569
  %v571 = vrot.slane %v461, 1
  %v572 = vsel %vm557, %v569, %v571
  %v573 = vrot.slane %v430, 1
  %v574 = vrot.slane %v184, 1
  %v575 = vsel %vm557, %v573, %v574
  %v576 = vrot.slane %v462, 1
  %v577 = vsel %vm557, %v574, %v576
  %v578 = vrot.slane %v431, 1
  %v579 = vrot.slane %v187, 1
  %v580 = vsel %vm557, %v578, %v579
  %v581 = vrot.slane %v463, 1
  %v582 = vsel %vm557, %v579, %v581
  %v583 = vrot.slane %v432, 1
  %v584 = vrot.slane %v190, 1
  %v585 = vsel %vm557, %v583, %v584
  %v586 = vrot.slane %v464, 1
  %v587 = vsel %vm557, %v584, %v586
  %v588 = vrot.slane %v433, 1
  %v589 = vrot.slane %v193, 1
  %v590 = vsel %vm557, %v588, %v589
  %v591 = vrot.slane %v465, 1
  %v592 = vsel %vm557, %v589, %v591
  %v593 = vrot.slane %v434, 1
  %v594 = vrot.slane %v196, 1
  %v595 = vsel %vm557, %v593, %v594
  %v596 = vrot.slane %v466, 1
  %v597 = vsel %vm557, %v594, %v596
  %v598 = vrot.slane %v435, 1
  %v599 = vrot.slane %v199, 1
  %v600 = vsel %vm557, %v598, %v599
  %v601 = vrot.slane %v467, 1
  %v602 = vsel %vm557, %v599, %v601
  %v603 = vrot.slane %v436, 1
  %v604 = vrot.slane %v202, 1
  %v605 = vsel %vm557, %v603, %v604
  %v606 = vrot.slane %v468, 1
  %v607 = vsel %vm557, %v604, %v606
  %v608 = vrot.slane %v437, 1
  %v609 = vrot.slane %v205, 1
  %v610 = vsel %vm557, %v608, %v609
  %v611 = vrot.slane %v469, 1
  %v612 = vsel %vm557, %v609, %v611
  %v613 = vrot.slane %v438, 1
  %v614 = vrot.slane %v208, 1
  %v615 = vsel %vm557, %v613, %v614
  %v616 = vrot.slane %v470, 1
  %v617 = vsel %vm557, %v614, %v616
  %v618 = vrot.slane %v439, 1
  %v619 = vrot.slane %v211, 1
  %v620 = vsel %vm557, %v618, %v619
  %v621 = vrot.slane %v471, 1
  %v622 = vsel %vm557, %v619, %v621
  %v623 = vrot.slane %v440, 1
  %v624 = vrot.slane %v214, 1
  %v625 = vsel %vm557, %v623, %v624
  %v626 = vrot.slane %v472, 1
  %v627 = vsel %vm557, %v624, %v626
  %v628 = vrot.slane %v441, 1
  %v629 = vrot.slane %v217, 1
  %v630 = vsel %vm557, %v628, %v629
  %v631 = vrot.slane %v473, 1
  %v632 = vsel %vm557, %v629, %v631
  %v633 = vrot.slane %v443, 1
  %v634 = vrot.slane %v223, 1
  %v635 = vsel %vm557, %v633, %v634
  %v636 = vrot.slane %v475, 1
  %v637 = vsel %vm557, %v634, %v636
  %v638 = vrot.slane %v444, 1
  %v639 = vrot.slane %v226, 1
  %v640 = vsel %vm557, %v638, %v639
  %v641 = vrot.slane %v476, 1
  %v642 = vsel %vm557, %v639, %v641
  %v643 = vrot.slane %v445, 1
  %v644 = vrot.slane %v229, 1
  %v645 = vsel %vm557, %v643, %v644
  %v646 = vrot.slane %v477, 1
  %v647 = vsel %vm557, %v644, %v646
  %v648 = vrot.slane %v446, 1
  %v649 = vrot.slane %v232, 1
  %v650 = vsel %vm557, %v648, %v649
  %v651 = vrot.slane %v478, 1
  %v652 = vsel %vm557, %v649, %v651
  %v653 = vrot.slane %v447, 1
  %v654 = vrot.slane %v235, 1
  %v655 = vsel %vm557, %v653, %v654
  %v656 = vrot.slane %v479, 1
  %v657 = vsel %vm557, %v654, %v656
  %v658 = vrot.slane %v448, 1
  %v659 = vrot.slane %v238, 1
  %v660 = vsel %vm557, %v658, %v659
  %v661 = vrot.slane %v480, 1
  %v662 = vsel %vm557, %v659, %v661
  %v663 = vrot.slane %v449, 1
  %v664 = vrot.slane %v241, 1
  %v665 = vsel %vm557, %v663, %v664
  %v666 = vrot.slane %v481, 1
  %v667 = vsel %vm557, %v664, %v666
  %v668 = vrot.slane %v450, 1
  %v669 = vrot.slane %v244, 1
  %v670 = vsel %vm557, %v668, %v669
  %v671 = vrot.slane %v482, 1
  %v672 = vsel %vm557, %v669, %v671
  %v673 = vrot.slane %v451, 1
  %v674 = vrot.slane %v247, 1
  %v675 = vsel %vm557, %v673, %v674
  %v676 = vrot.slane %v483, 1
  %v677 = vsel %vm557, %v674, %v676
  %v678 = vrot.slane %v452, 1
  %v679 = vrot.slane %v250, 1
  %v680 = vsel %vm557, %v678, %v679
  %v681 = vrot.slane %v484, 1
  %v682 = vsel %vm557, %v679, %v681
  %v683 = vrot.slane %v453, 1
  %v684 = vrot.slane %v253, 1
  %v685 = vsel %vm557, %v683, %v684
  %v686 = vrot.slane %v485, 1
  %v687 = vsel %vm557, %v684, %v686
  %v688 = vrot.slane %v454, 1
  %v689 = vrot.slane %v256, 1
  %v690 = vsel %vm557, %v688, %v689
  %v691 = vrot.slane %v486, 1
  %v692 = vsel %vm557, %v689, %v691
  %v693 = vrot.slane %v455, 1
  %v694 = vrot.slane %v259, 1
  %v695 = vsel %vm557, %v693, %v694
  %v696 = vrot.slane %v487, 1
  %v697 = vsel %vm557, %v694, %v696
  %v698 = vrot.slane %v456, 1
  %v699 = vrot.slane %v262, 1
  %v700 = vsel %vm557, %v698, %v699
  %v701 = vrot.slane %v488, 1
  %v702 = vsel %vm557, %v699, %v701
  %v703 = vrot.slane %v457, 1
  %v704 = vrot.slane %v265, 1
  %v705 = vsel %vm557, %v703, %v704
  %v706 = vrot.slane %v489, 1
  %v707 = vsel %vm557, %v704, %v706
  %vm708 = vcmask 1045504
  %v709 = vrot.slane %v427, 2
  %v710 = vrot.slane %v175, 2
  %v711 = vsel %vm708, %v709, %v710
  %v712 = vrot.slane %v459, 2
  %v713 = vsel %vm708, %v710, %v712
  %v714 = vrot.slane %v428, 2
  %v715 = vrot.slane %v178, 2
  %v716 = vsel %vm708, %v714, %v715
  %v717 = vrot.slane %v460, 2
  %v718 = vsel %vm708, %v715, %v717
  %v719 = vrot.slane %v429, 2
  %v720 = vrot.slane %v181, 2
  %v721 = vsel %vm708, %v719, %v720
  %v722 = vrot.slane %v461, 2
  %v723 = vsel %vm708, %v720, %v722
  %v724 = vrot.slane %v430, 2
  %v725 = vrot.slane %v184, 2
  %v726 = vsel %vm708, %v724, %v725
  %v727 = vrot.slane %v462, 2
  %v728 = vsel %vm708, %v725, %v727
  %v729 = vrot.slane %v431, 2
  %v730 = vrot.slane %v187, 2
  %v731 = vsel %vm708, %v729, %v730
  %v732 = vrot.slane %v463, 2
  %v733 = vsel %vm708, %v730, %v732
  %v734 = vrot.slane %v432, 2
  %v735 = vrot.slane %v190, 2
  %v736 = vsel %vm708, %v734, %v735
  %v737 = vrot.slane %v464, 2
  %v738 = vsel %vm708, %v735, %v737
  %v739 = vrot.slane %v433, 2
  %v740 = vrot.slane %v193, 2
  %v741 = vsel %vm708, %v739, %v740
  %v742 = vrot.slane %v465, 2
  %v743 = vsel %vm708, %v740, %v742
  %v744 = vrot.slane %v434, 2
  %v745 = vrot.slane %v196, 2
  %v746 = vsel %vm708, %v744, %v745
  %v747 = vrot.slane %v466, 2
  %v748 = vsel %vm708, %v745, %v747
  %v749 = vrot.slane %v435, 2
  %v750 = vrot.slane %v199, 2
  %v751 = vsel %vm708, %v749, %v750
  %v752 = vrot.slane %v467, 2
  %v753 = vsel %vm708, %v750, %v752
  %v754 = vrot.slane %v436, 2
  %v755 = vrot.slane %v202, 2
  %v756 = vsel %vm708, %v754, %v755
  %v757 = vrot.slane %v468, 2
  %v758 = vsel %vm708, %v755, %v757
  %v759 = vrot.slane %v437, 2
  %v760 = vrot.slane %v205, 2
  %v761 = vsel %vm708, %v759, %v760
  %v762 = vrot.slane %v469, 2
  %v763 = vsel %vm708, %v760, %v762
  %v764 = vrot.slane %v438, 2
  %v765 = vrot.slane %v208, 2
  %v766 = vsel %vm708, %v764, %v765
  %v767 = vrot.slane %v470, 2
  %v768 = vsel %vm708, %v765, %v767
  %v769 = vrot.slane %v439, 2
  %v770 = vrot.slane %v211, 2
  %v771 = vsel %vm708, %v769, %v770
  %v772 = vrot.slane %v471, 2
  %v773 = vsel %vm708, %v770, %v772
  %v774 = vrot.slane %v440, 2
  %v775 = vrot.slane %v214, 2
  %v776 = vsel %vm708, %v774, %v775
  %v777 = vrot.slane %v472, 2
  %v778 = vsel %vm708, %v775, %v777
  %v779 = vrot.slane %v441, 2
  %v780 = vrot.slane %v217, 2
  %v781 = vsel %vm708, %v779, %v780
  %v782 = vrot.slane %v473, 2
  %v783 = vsel %vm708, %v780, %v782
  %v784 = vrot.slane %v443, 2
  %v785 = vrot.slane %v223, 2
  %v786 = vsel %vm708, %v784, %v785
  %v787 = vrot.slane %v475, 2
  %v788 = vsel %vm708, %v785, %v787
  %v789 = vrot.slane %v444, 2
  %v790 = vrot.slane %v226, 2
  %v791 = vsel %vm708, %v789, %v790
  %v792 = vrot.slane %v476, 2
  %v793 = vsel %vm708, %v790, %v792
  %v794 = vrot.slane %v445, 2
  %v795 = vrot.slane %v229, 2
  %v796 = vsel %vm708, %v794, %v795
  %v797 = vrot.slane %v477, 2
  %v798 = vsel %vm708, %v795, %v797
  %v799 = vrot.slane %v446, 2
  %v800 = vrot.slane %v232, 2
  %v801 = vsel %vm708, %v799, %v800
  %v802 = vrot.slane %v478, 2
  %v803 = vsel %vm708, %v800, %v802
  %v804 = vrot.slane %v447, 2
  %v805 = vrot.slane %v235, 2
  %v806 = vsel %vm708, %v804, %v805
  %v807 = vrot.slane %v479, 2
  %v808 = vsel %vm708, %v805, %v807
  %v809 = vrot.slane %v448, 2
  %v810 = vrot.slane %v238, 2
  %v811 = vsel %vm708, %v809, %v810
  %v812 = vrot.slane %v480, 2
  %v813 = vsel %vm708, %v810, %v812
  %v814 = vrot.slane %v449, 2
  %v815 = vrot.slane %v241, 2
  %v816 = vsel %vm708, %v814, %v815
  %v817 = vrot.slane %v481, 2
  %v818 = vsel %vm708, %v815, %v817
  %v819 = vrot.slane %v450, 2
  %v820 = vrot.slane %v244, 2
  %v821 = vsel %vm708, %v819, %v820
  %v822 = vrot.slane %v482, 2
  %v823 = vsel %vm708, %v820, %v822
  %v824 = vrot.slane %v451, 2
  %v825 = vrot.slane %v247, 2
  %v826 = vsel %vm708, %v824, %v825
  %v827 = vrot.slane %v483, 2
  %v828 = vsel %vm708, %v825, %v827
  %v829 = vrot.slane %v452, 2
  %v830 = vrot.slane %v250, 2
  %v831 = vsel %vm708, %v829, %v830
  %v832 = vrot.slane %v484, 2
  %v833 = vsel %vm708, %v830, %v832
  %v834 = vrot.slane %v453, 2
  %v835 = vrot.slane %v253, 2
  %v836 = vsel %vm708, %v834, %v835
  %v837 = vrot.slane %v485, 2
  %v838 = vsel %vm708, %v835, %v837
  %v839 = vrot.slane %v454, 2
  %v840 = vrot.slane %v256, 2
  %v841 = vsel %vm708, %v839, %v840
  %v842 = vrot.slane %v486, 2
  %v843 = vsel %vm708, %v840, %v842
  %v844 = vrot.slane %v455, 2
  %v845 = vrot.slane %v259, 2
  %v846 = vsel %vm708, %v844, %v845
  %v847 = vrot.slane %v487, 2
  %v848 = vsel %vm708, %v845, %v847
  %v849 = vrot.slane %v456, 2
  %v850 = vrot.slane %v262, 2
  %v851 = vsel %vm708, %v849, %v850
  %v852 = vrot.slane %v488, 2
  %v853 = vsel %vm708, %v850, %v852
  %v854 = vrot.slane %v457, 2
  %v855 = vrot.slane %v265, 2
  %v856 = vsel %vm708, %v854, %v855
  %v857 = vrot.slane %v489, 2
  %v858 = vsel %vm708, %v855, %v857
  %v863 = vrot.slane %v442, 1
  %v864 = vrot.slane %v220, 1
  %v865 = vsel %vm557, %v863, %v864
  %v866 = vrot.slane %v474, 1
  %v867 = vsel %vm557, %v864, %v866
  %v868 = vrot.slane %v458, 1
  %v869 = vrot.slane %v268, 1
  %v870 = vsel %vm557, %v868, %v869
  %v871 = vrot.slane %v490, 1
  %v872 = vsel %vm557, %v869, %v871
  %v873 = vrot.slane %v442, 2
  %v874 = vrot.slane %v220, 2
  %v875 = vsel %vm708, %v873, %v874
  %v876 = vrot.slane %v474, 2
  %v877 = vsel %vm708, %v874, %v876
  %v878 = vrot.slane %v458, 2
  %v879 = vrot.slane %v268, 2
  %v880 = vsel %vm708, %v878, %v879
  %v881 = vrot.slane %v490, 2
  %v882 = vsel %vm708, %v879, %v881
  %883 = vrot.lane.b32.xlu0 %v560, 4
  %v884 = vpop.permute.xlu0 %883
  %885 = vrot.lane.b32.xlu0 %v562, 4
  %v886 = vpop.permute.xlu0 %885
  %887 = vrot.lane.b32.xlu0 %v565, 4
  %v888 = vpop.permute.xlu0 %887
  %889 = vrot.lane.b32.xlu0 %v567, 4
  %v890 = vpop.permute.xlu0 %889
  %891 = vrot.lane.b32.xlu0 %v570, 4
  %v892 = vpop.permute.xlu0 %891
  %893 = vrot.lane.b32.xlu0 %v572, 4
  %v894 = vpop.permute.xlu0 %893
  %895 = vrot.lane.b32.xlu0 %v575, 4
  %v896 = vpop.permute.xlu0 %895
  %897 = vrot.lane.b32.xlu0 %v577, 4
  %v898 = vpop.permute.xlu0 %897
  %899 = vrot.lane.b32.xlu0 %v580, 4
  %v900 = vpop.permute.xlu0 %899
  %901 = vrot.lane.b32.xlu0 %v582, 4
  %v902 = vpop.permute.xlu0 %901
  %903 = vrot.lane.b32.xlu0 %v585, 4
  %v904 = vpop.permute.xlu0 %903
  %905 = vrot.lane.b32.xlu0 %v587, 4
  %v906 = vpop.permute.xlu0 %905
  %907 = vrot.lane.b32.xlu0 %v590, 4
  %v908 = vpop.permute.xlu0 %907
  %909 = vrot.lane.b32.xlu0 %v592, 4
  %v910 = vpop.permute.xlu0 %909
  %911 = vrot.lane.b32.xlu0 %v595, 4
  %v912 = vpop.permute.xlu0 %911
  %913 = vrot.lane.b32.xlu0 %v597, 4
  %v914 = vpop.permute.xlu0 %913
  %915 = vrot.lane.b32.xlu0 %v600, 4
  %v916 = vpop.permute.xlu0 %915
  %917 = vrot.lane.b32.xlu0 %v602, 4
  %v918 = vpop.permute.xlu0 %917
  %919 = vrot.lane.b32.xlu0 %v605, 4
  %v920 = vpop.permute.xlu0 %919
  %921 = vrot.lane.b32.xlu0 %v607, 4
  %v922 = vpop.permute.xlu0 %921
  %923 = vrot.lane.b32.xlu0 %v610, 4
  %v924 = vpop.permute.xlu0 %923
  %925 = vrot.lane.b32.xlu0 %v612, 4
  %v926 = vpop.permute.xlu0 %925
  %927 = vrot.lane.b32.xlu0 %v615, 4
  %v928 = vpop.permute.xlu0 %927
  %929 = vrot.lane.b32.xlu0 %v617, 4
  %v930 = vpop.permute.xlu0 %929
  %931 = vrot.lane.b32.xlu0 %v620, 4
  %v932 = vpop.permute.xlu0 %931
  %933 = vrot.lane.b32.xlu0 %v622, 4
  %v934 = vpop.permute.xlu0 %933
  %935 = vrot.lane.b32.xlu0 %v625, 4
  %v936 = vpop.permute.xlu0 %935
  %937 = vrot.lane.b32.xlu0 %v627, 4
  %v938 = vpop.permute.xlu0 %937
  %939 = vrot.lane.b32.xlu0 %v630, 4
  %v940 = vpop.permute.xlu0 %939
  %941 = vrot.lane.b32.xlu0 %v632, 4
  %v942 = vpop.permute.xlu0 %941
  %943 = vrot.lane.b32.xlu0 %v635, 4
  %v944 = vpop.permute.xlu0 %943
  %945 = vrot.lane.b32.xlu0 %v637, 4
  %v946 = vpop.permute.xlu0 %945
  %947 = vrot.lane.b32.xlu0 %v640, 4
  %v948 = vpop.permute.xlu0 %947
  %949 = vrot.lane.b32.xlu0 %v642, 4
  %v950 = vpop.permute.xlu0 %949
  %951 = vrot.lane.b32.xlu0 %v645, 4
  %v952 = vpop.permute.xlu0 %951
  %953 = vrot.lane.b32.xlu0 %v647, 4
  %v954 = vpop.permute.xlu0 %953
  %955 = vrot.lane.b32.xlu0 %v650, 4
  %v956 = vpop.permute.xlu0 %955
  %957 = vrot.lane.b32.xlu0 %v652, 4
  %v958 = vpop.permute.xlu0 %957
  %959 = vrot.lane.b32.xlu0 %v655, 4
  %v960 = vpop.permute.xlu0 %959
  %961 = vrot.lane.b32.xlu0 %v657, 4
  %v962 = vpop.permute.xlu0 %961
  %963 = vrot.lane.b32.xlu0 %v660, 4
  %v964 = vpop.permute.xlu0 %963
  %965 = vrot.lane.b32.xlu0 %v662, 4
  %v966 = vpop.permute.xlu0 %965
  %967 = vrot.lane.b32.xlu0 %v665, 4
  %v968 = vpop.permute.xlu0 %967
  %969 = vrot.lane.b32.xlu0 %v667, 4
  %v970 = vpop.permute.xlu0 %969
  %971 = vrot.lane.b32.xlu0 %v670, 4
  %v972 = vpop.permute.xlu0 %971
  %973 = vrot.lane.b32.xlu0 %v672, 4
  %v974 = vpop.permute.xlu0 %973
  %975 = vrot.lane.b32.xlu0 %v675, 4
  %v976 = vpop.permute.xlu0 %975
  %977 = vrot.lane.b32.xlu0 %v677, 4
  %v978 = vpop.permute.xlu0 %977
  %979 = vrot.lane.b32.xlu0 %v680, 4
  %v980 = vpop.permute.xlu0 %979
  %981 = vrot.lane.b32.xlu0 %v682, 4
  %v982 = vpop.permute.xlu0 %981
  %983 = vrot.lane.b32.xlu0 %v685, 4
  %v984 = vpop.permute.xlu0 %983
  %985 = vrot.lane.b32.xlu0 %v687, 4
  %v986 = vpop.permute.xlu0 %985
  %987 = vrot.lane.b32.xlu0 %v690, 4
  %v988 = vpop.permute.xlu0 %987
  %989 = vrot.lane.b32.xlu0 %v692, 4
  %v990 = vpop.permute.xlu0 %989
  %991 = vrot.lane.b32.xlu0 %v695, 4
  %v992 = vpop.permute.xlu0 %991
  %993 = vrot.lane.b32.xlu0 %v697, 4
  %v994 = vpop.permute.xlu0 %993
  %995 = vrot.lane.b32.xlu0 %v700, 4
  %v996 = vpop.permute.xlu0 %995
  %997 = vrot.lane.b32.xlu0 %v702, 4
  %v998 = vpop.permute.xlu0 %997
  %999 = vrot.lane.b32.xlu0 %v705, 4
  %v1000 = vpop.permute.xlu0 %999
  %1001 = vrot.lane.b32.xlu0 %v707, 4
  %v1002 = vpop.permute.xlu0 %1001
  %1063 = vrot.lane.b32.xlu0 %v711, 8
  %v1064 = vpop.permute.xlu0 %1063
  %1065 = vrot.lane.b32.xlu0 %v713, 8
  %v1066 = vpop.permute.xlu0 %1065
  %1067 = vrot.lane.b32.xlu0 %v716, 8
  %v1068 = vpop.permute.xlu0 %1067
  %1069 = vrot.lane.b32.xlu0 %v718, 8
  %v1070 = vpop.permute.xlu0 %1069
  %1071 = vrot.lane.b32.xlu0 %v721, 8
  %v1072 = vpop.permute.xlu0 %1071
  %1073 = vrot.lane.b32.xlu0 %v723, 8
  %v1074 = vpop.permute.xlu0 %1073
  %1075 = vrot.lane.b32.xlu0 %v726, 8
  %v1076 = vpop.permute.xlu0 %1075
  %1077 = vrot.lane.b32.xlu0 %v728, 8
  %v1078 = vpop.permute.xlu0 %1077
  %1079 = vrot.lane.b32.xlu0 %v731, 8
  %v1080 = vpop.permute.xlu0 %1079
  %1081 = vrot.lane.b32.xlu0 %v733, 8
  %v1082 = vpop.permute.xlu0 %1081
  %1083 = vrot.lane.b32.xlu0 %v736, 8
  %v1084 = vpop.permute.xlu0 %1083
  %1085 = vrot.lane.b32.xlu0 %v738, 8
  %v1086 = vpop.permute.xlu0 %1085
  %1087 = vrot.lane.b32.xlu0 %v741, 8
  %v1088 = vpop.permute.xlu0 %1087
  %1089 = vrot.lane.b32.xlu0 %v743, 8
  %v1090 = vpop.permute.xlu0 %1089
  %1091 = vrot.lane.b32.xlu0 %v746, 8
  %v1092 = vpop.permute.xlu0 %1091
  %1093 = vrot.lane.b32.xlu0 %v748, 8
  %v1094 = vpop.permute.xlu0 %1093
  %1095 = vrot.lane.b32.xlu0 %v751, 8
  %v1096 = vpop.permute.xlu0 %1095
  %1097 = vrot.lane.b32.xlu0 %v753, 8
  %v1098 = vpop.permute.xlu0 %1097
  %1099 = vrot.lane.b32.xlu0 %v756, 8
  %v1100 = vpop.permute.xlu0 %1099
  %1101 = vrot.lane.b32.xlu0 %v758, 8
  %v1102 = vpop.permute.xlu0 %1101
  %1103 = vrot.lane.b32.xlu0 %v761, 8
  %v1104 = vpop.permute.xlu0 %1103
  %1105 = vrot.lane.b32.xlu0 %v763, 8
  %v1106 = vpop.permute.xlu0 %1105
  %1107 = vrot.lane.b32.xlu0 %v766, 8
  %v1108 = vpop.permute.xlu0 %1107
  %1109 = vrot.lane.b32.xlu0 %v768, 8
  %v1110 = vpop.permute.xlu0 %1109
  %1111 = vrot.lane.b32.xlu0 %v771, 8
  %v1112 = vpop.permute.xlu0 %1111
  %1113 = vrot.lane.b32.xlu0 %v773, 8
  %v1114 = vpop.permute.xlu0 %1113
  %1115 = vrot.lane.b32.xlu0 %v776, 8
  %v1116 = vpop.permute.xlu0 %1115
  %1117 = vrot.lane.b32.xlu0 %v778, 8
  %v1118 = vpop.permute.xlu0 %1117
  %1119 = vrot.lane.b32.xlu0 %v781, 8
  %v1120 = vpop.permute.xlu0 %1119
  %1121 = vrot.lane.b32.xlu0 %v783, 8
  %v1122 = vpop.permute.xlu0 %1121
  %1123 = vrot.lane.b32.xlu0 %v786, 8
  %v1124 = vpop.permute.xlu0 %1123
  %1125 = vrot.lane.b32.xlu0 %v788, 8
  %v1126 = vpop.permute.xlu0 %1125
  %1127 = vrot.lane.b32.xlu0 %v791, 8
  %v1128 = vpop.permute.xlu0 %1127
  %1129 = vrot.lane.b32.xlu0 %v793, 8
  %v1130 = vpop.permute.xlu0 %1129
  %1131 = vrot.lane.b32.xlu0 %v796, 8
  %v1132 = vpop.permute.xlu0 %1131
  %1133 = vrot.lane.b32.xlu0 %v798, 8
  %v1134 = vpop.permute.xlu0 %1133
  %1135 = vrot.lane.b32.xlu0 %v801, 8
  %v1136 = vpop.permute.xlu0 %1135
  %1137 = vrot.lane.b32.xlu0 %v803, 8
  %v1138 = vpop.permute.xlu0 %1137
  %1139 = vrot.lane.b32.xlu0 %v806, 8
  %v1140 = vpop.permute.xlu0 %1139
  %1141 = vrot.lane.b32.xlu0 %v808, 8
  %v1142 = vpop.permute.xlu0 %1141
  %1143 = vrot.lane.b32.xlu0 %v811, 8
  %v1144 = vpop.permute.xlu0 %1143
  %1145 = vrot.lane.b32.xlu0 %v813, 8
  %v1146 = vpop.permute.xlu0 %1145
  %1147 = vrot.lane.b32.xlu0 %v816, 8
  %v1148 = vpop.permute.xlu0 %1147
  %1149 = vrot.lane.b32.xlu0 %v818, 8
  %v1150 = vpop.permute.xlu0 %1149
  %1151 = vrot.lane.b32.xlu0 %v821, 8
  %v1152 = vpop.permute.xlu0 %1151
  %1153 = vrot.lane.b32.xlu0 %v823, 8
  %v1154 = vpop.permute.xlu0 %1153
  %1155 = vrot.lane.b32.xlu0 %v826, 8
  %v1156 = vpop.permute.xlu0 %1155
  %1157 = vrot.lane.b32.xlu0 %v828, 8
  %v1158 = vpop.permute.xlu0 %1157
  %1159 = vrot.lane.b32.xlu0 %v831, 8
  %v1160 = vpop.permute.xlu0 %1159
  %1161 = vrot.lane.b32.xlu0 %v833, 8
  %v1162 = vpop.permute.xlu0 %1161
  %1163 = vrot.lane.b32.xlu0 %v836, 8
  %v1164 = vpop.permute.xlu0 %1163
  %1165 = vrot.lane.b32.xlu0 %v838, 8
  %v1166 = vpop.permute.xlu0 %1165
  %1167 = vrot.lane.b32.xlu0 %v841, 8
  %v1168 = vpop.permute.xlu0 %1167
  %1169 = vrot.lane.b32.xlu0 %v843, 8
  %v1170 = vpop.permute.xlu0 %1169
  %1171 = vrot.lane.b32.xlu0 %v846, 8
  %v1172 = vpop.permute.xlu0 %1171
  %1173 = vrot.lane.b32.xlu0 %v848, 8
  %v1174 = vpop.permute.xlu0 %1173
  %1175 = vrot.lane.b32.xlu0 %v851, 8
  %v1176 = vpop.permute.xlu0 %1175
  %1177 = vrot.lane.b32.xlu0 %v853, 8
  %v1178 = vpop.permute.xlu0 %1177
  %1179 = vrot.lane.b32.xlu0 %v856, 8
  %v1180 = vpop.permute.xlu0 %1179
  %1181 = vrot.lane.b32.xlu0 %v858, 8
  %v1182 = vpop.permute.xlu0 %1181
  %1243 = vrot.lane.b32.xlu0 %v427, 12
  %v1244 = vpop.permute.xlu0 %1243
  %1245 = vrot.lane.b32.xlu0 %v175, 12
  %v1246 = vpop.permute.xlu0 %1245
  %1247 = vrot.lane.b32.xlu0 %v428, 12
  %v1248 = vpop.permute.xlu0 %1247
  %1249 = vrot.lane.b32.xlu0 %v178, 12
  %v1250 = vpop.permute.xlu0 %1249
  %1251 = vrot.lane.b32.xlu0 %v429, 12
  %v1252 = vpop.permute.xlu0 %1251
  %1253 = vrot.lane.b32.xlu0 %v181, 12
  %v1254 = vpop.permute.xlu0 %1253
  %1255 = vrot.lane.b32.xlu0 %v430, 12
  %v1256 = vpop.permute.xlu0 %1255
  %1257 = vrot.lane.b32.xlu0 %v184, 12
  %v1258 = vpop.permute.xlu0 %1257
  %1259 = vrot.lane.b32.xlu0 %v431, 12
  %v1260 = vpop.permute.xlu0 %1259
  %1261 = vrot.lane.b32.xlu0 %v187, 12
  %v1262 = vpop.permute.xlu0 %1261
  %1263 = vrot.lane.b32.xlu0 %v432, 12
  %v1264 = vpop.permute.xlu0 %1263
  %1265 = vrot.lane.b32.xlu0 %v190, 12
  %v1266 = vpop.permute.xlu0 %1265
  %1267 = vrot.lane.b32.xlu0 %v433, 12
  %v1268 = vpop.permute.xlu0 %1267
  %1269 = vrot.lane.b32.xlu0 %v193, 12
  %v1270 = vpop.permute.xlu0 %1269
  %1271 = vrot.lane.b32.xlu0 %v434, 12
  %v1272 = vpop.permute.xlu0 %1271
  %1273 = vrot.lane.b32.xlu0 %v196, 12
  %v1274 = vpop.permute.xlu0 %1273
  %1275 = vrot.lane.b32.xlu0 %v435, 12
  %v1276 = vpop.permute.xlu0 %1275
  %1277 = vrot.lane.b32.xlu0 %v199, 12
  %v1278 = vpop.permute.xlu0 %1277
  %1279 = vrot.lane.b32.xlu0 %v436, 12
  %v1280 = vpop.permute.xlu0 %1279
  %1281 = vrot.lane.b32.xlu0 %v202, 12
  %v1282 = vpop.permute.xlu0 %1281
  %1283 = vrot.lane.b32.xlu0 %v437, 12
  %v1284 = vpop.permute.xlu0 %1283
  %1285 = vrot.lane.b32.xlu0 %v205, 12
  %v1286 = vpop.permute.xlu0 %1285
  %1287 = vrot.lane.b32.xlu0 %v438, 12
  %v1288 = vpop.permute.xlu0 %1287
  %1289 = vrot.lane.b32.xlu0 %v208, 12
  %v1290 = vpop.permute.xlu0 %1289
  %1291 = vrot.lane.b32.xlu0 %v439, 12
  %v1292 = vpop.permute.xlu0 %1291
  %1293 = vrot.lane.b32.xlu0 %v211, 12
  %v1294 = vpop.permute.xlu0 %1293
  %1295 = vrot.lane.b32.xlu0 %v440, 12
  %v1296 = vpop.permute.xlu0 %1295
  %1297 = vrot.lane.b32.xlu0 %v214, 12
  %v1298 = vpop.permute.xlu0 %1297
  %1299 = vrot.lane.b32.xlu0 %v441, 12
  %v1300 = vpop.permute.xlu0 %1299
  %1301 = vrot.lane.b32.xlu0 %v217, 12
  %v1302 = vpop.permute.xlu0 %1301
  %1303 = vrot.lane.b32.xlu0 %v442, 12
  %v1304 = vpop.permute.xlu0 %1303
  %1305 = vrot.lane.b32.xlu0 %v220, 12
  %v1306 = vpop.permute.xlu0 %1305
  %1307 = vrot.lane.b32.xlu0 %v443, 12
  %v1308 = vpop.permute.xlu0 %1307
  %1309 = vrot.lane.b32.xlu0 %v223, 12
  %v1310 = vpop.permute.xlu0 %1309
  %1311 = vrot.lane.b32.xlu0 %v444, 12
  %v1312 = vpop.permute.xlu0 %1311
  %1313 = vrot.lane.b32.xlu0 %v226, 12
  %v1314 = vpop.permute.xlu0 %1313
  %1315 = vrot.lane.b32.xlu0 %v445, 12
  %v1316 = vpop.permute.xlu0 %1315
  %1317 = vrot.lane.b32.xlu0 %v229, 12
  %v1318 = vpop.permute.xlu0 %1317
  %1319 = vrot.lane.b32.xlu0 %v446, 12
  %v1320 = vpop.permute.xlu0 %1319
  %1321 = vrot.lane.b32.xlu0 %v232, 12
  %v1322 = vpop.permute.xlu0 %1321
  %1323 = vrot.lane.b32.xlu0 %v447, 12
  %v1324 = vpop.permute.xlu0 %1323
  %1325 = vrot.lane.b32.xlu0 %v235, 12
  %v1326 = vpop.permute.xlu0 %1325
  %1327 = vrot.lane.b32.xlu0 %v448, 12
  %v1328 = vpop.permute.xlu0 %1327
  %1329 = vrot.lane.b32.xlu0 %v238, 12
  %v1330 = vpop.permute.xlu0 %1329
  %1331 = vrot.lane.b32.xlu0 %v449, 12
  %v1332 = vpop.permute.xlu0 %1331
  %1333 = vrot.lane.b32.xlu0 %v241, 12
  %v1334 = vpop.permute.xlu0 %1333
  %1335 = vrot.lane.b32.xlu0 %v450, 12
  %v1336 = vpop.permute.xlu0 %1335
  %1337 = vrot.lane.b32.xlu0 %v244, 12
  %v1338 = vpop.permute.xlu0 %1337
  %1339 = vrot.lane.b32.xlu0 %v451, 12
  %v1340 = vpop.permute.xlu0 %1339
  %1341 = vrot.lane.b32.xlu0 %v247, 12
  %v1342 = vpop.permute.xlu0 %1341
  %1343 = vrot.lane.b32.xlu0 %v452, 12
  %v1344 = vpop.permute.xlu0 %1343
  %1345 = vrot.lane.b32.xlu0 %v250, 12
  %v1346 = vpop.permute.xlu0 %1345
  %1347 = vrot.lane.b32.xlu0 %v453, 12
  %v1348 = vpop.permute.xlu0 %1347
  %1349 = vrot.lane.b32.xlu0 %v253, 12
  %v1350 = vpop.permute.xlu0 %1349
  %1351 = vrot.lane.b32.xlu0 %v454, 12
  %v1352 = vpop.permute.xlu0 %1351
  %1353 = vrot.lane.b32.xlu0 %v256, 12
  %v1354 = vpop.permute.xlu0 %1353
  %1355 = vrot.lane.b32.xlu0 %v455, 12
  %v1356 = vpop.permute.xlu0 %1355
  %1357 = vrot.lane.b32.xlu0 %v259, 12
  %v1358 = vpop.permute.xlu0 %1357
  %1359 = vrot.lane.b32.xlu0 %v456, 12
  %v1360 = vpop.permute.xlu0 %1359
  %1361 = vrot.lane.b32.xlu0 %v262, 12
  %v1362 = vpop.permute.xlu0 %1361
  %1363 = vrot.lane.b32.xlu0 %v457, 12
  %v1364 = vpop.permute.xlu0 %1363
  %1365 = vrot.lane.b32.xlu0 %v265, 12
  %v1366 = vpop.permute.xlu0 %1365
  %1367 = vrot.lane.b32.xlu0 %v458, 12
  %v1368 = vpop.permute.xlu0 %1367
  %1369 = vrot.lane.b32.xlu0 %v268, 12
  %v1370 = vpop.permute.xlu0 %1369
  %1435 = vrot.lane.b32.xlu0 %v560, 16
  %v1436 = vpop.permute.xlu0 %1435
  %1437 = vrot.lane.b32.xlu0 %v562, 16
  %v1438 = vpop.permute.xlu0 %1437
  %1439 = vrot.lane.b32.xlu0 %v565, 16
  %v1440 = vpop.permute.xlu0 %1439
  %1441 = vrot.lane.b32.xlu0 %v567, 16
  %v1442 = vpop.permute.xlu0 %1441
  %1443 = vrot.lane.b32.xlu0 %v570, 16
  %v1444 = vpop.permute.xlu0 %1443
  %1445 = vrot.lane.b32.xlu0 %v572, 16
  %v1446 = vpop.permute.xlu0 %1445
  %1447 = vrot.lane.b32.xlu0 %v575, 16
  %v1448 = vpop.permute.xlu0 %1447
  %1449 = vrot.lane.b32.xlu0 %v577, 16
  %v1450 = vpop.permute.xlu0 %1449
  %1451 = vrot.lane.b32.xlu0 %v580, 16
  %v1452 = vpop.permute.xlu0 %1451
  %1453 = vrot.lane.b32.xlu0 %v582, 16
  %v1454 = vpop.permute.xlu0 %1453
  %1455 = vrot.lane.b32.xlu0 %v585, 16
  %v1456 = vpop.permute.xlu0 %1455
  %1457 = vrot.lane.b32.xlu0 %v587, 16
  %v1458 = vpop.permute.xlu0 %1457
  %1459 = vrot.lane.b32.xlu0 %v590, 16
  %v1460 = vpop.permute.xlu0 %1459
  %1461 = vrot.lane.b32.xlu0 %v592, 16
  %v1462 = vpop.permute.xlu0 %1461
  %1463 = vrot.lane.b32.xlu0 %v595, 16
  %v1464 = vpop.permute.xlu0 %1463
  %1465 = vrot.lane.b32.xlu0 %v597, 16
  %v1466 = vpop.permute.xlu0 %1465
  %1467 = vrot.lane.b32.xlu0 %v600, 16
  %v1468 = vpop.permute.xlu0 %1467
  %1469 = vrot.lane.b32.xlu0 %v602, 16
  %v1470 = vpop.permute.xlu0 %1469
  %1471 = vrot.lane.b32.xlu0 %v605, 16
  %v1472 = vpop.permute.xlu0 %1471
  %1473 = vrot.lane.b32.xlu0 %v607, 16
  %v1474 = vpop.permute.xlu0 %1473
  %1475 = vrot.lane.b32.xlu0 %v610, 16
  %v1476 = vpop.permute.xlu0 %1475
  %1477 = vrot.lane.b32.xlu0 %v612, 16
  %v1478 = vpop.permute.xlu0 %1477
  %1479 = vrot.lane.b32.xlu0 %v615, 16
  %v1480 = vpop.permute.xlu0 %1479
  %1481 = vrot.lane.b32.xlu0 %v617, 16
  %v1482 = vpop.permute.xlu0 %1481
  %1483 = vrot.lane.b32.xlu0 %v620, 16
  %v1484 = vpop.permute.xlu0 %1483
  %1485 = vrot.lane.b32.xlu0 %v622, 16
  %v1486 = vpop.permute.xlu0 %1485
  %1487 = vrot.lane.b32.xlu0 %v625, 16
  %v1488 = vpop.permute.xlu0 %1487
  %1489 = vrot.lane.b32.xlu0 %v627, 16
  %v1490 = vpop.permute.xlu0 %1489
  %1491 = vrot.lane.b32.xlu0 %v630, 16
  %v1492 = vpop.permute.xlu0 %1491
  %1493 = vrot.lane.b32.xlu0 %v632, 16
  %v1494 = vpop.permute.xlu0 %1493
  %1495 = vrot.lane.b32.xlu0 %v865, 16
  %v1496 = vpop.permute.xlu0 %1495
  %1497 = vrot.lane.b32.xlu0 %v867, 16
  %v1498 = vpop.permute.xlu0 %1497
  %1499 = vrot.lane.b32.xlu0 %v635, 16
  %v1500 = vpop.permute.xlu0 %1499
  %1501 = vrot.lane.b32.xlu0 %v637, 16
  %v1502 = vpop.permute.xlu0 %1501
  %1503 = vrot.lane.b32.xlu0 %v640, 16
  %v1504 = vpop.permute.xlu0 %1503
  %1505 = vrot.lane.b32.xlu0 %v642, 16
  %v1506 = vpop.permute.xlu0 %1505
  %1507 = vrot.lane.b32.xlu0 %v645, 16
  %v1508 = vpop.permute.xlu0 %1507
  %1509 = vrot.lane.b32.xlu0 %v647, 16
  %v1510 = vpop.permute.xlu0 %1509
  %1511 = vrot.lane.b32.xlu0 %v650, 16
  %v1512 = vpop.permute.xlu0 %1511
  %1513 = vrot.lane.b32.xlu0 %v652, 16
  %v1514 = vpop.permute.xlu0 %1513
  %1515 = vrot.lane.b32.xlu0 %v655, 16
  %v1516 = vpop.permute.xlu0 %1515
  %1517 = vrot.lane.b32.xlu0 %v657, 16
  %v1518 = vpop.permute.xlu0 %1517
  %1519 = vrot.lane.b32.xlu0 %v660, 16
  %v1520 = vpop.permute.xlu0 %1519
  %1521 = vrot.lane.b32.xlu0 %v662, 16
  %v1522 = vpop.permute.xlu0 %1521
  %1523 = vrot.lane.b32.xlu0 %v665, 16
  %v1524 = vpop.permute.xlu0 %1523
  %1525 = vrot.lane.b32.xlu0 %v667, 16
  %v1526 = vpop.permute.xlu0 %1525
  %1527 = vrot.lane.b32.xlu0 %v670, 16
  %v1528 = vpop.permute.xlu0 %1527
  %1529 = vrot.lane.b32.xlu0 %v672, 16
  %v1530 = vpop.permute.xlu0 %1529
  %1531 = vrot.lane.b32.xlu0 %v675, 16
  %v1532 = vpop.permute.xlu0 %1531
  %1533 = vrot.lane.b32.xlu0 %v677, 16
  %v1534 = vpop.permute.xlu0 %1533
  %1535 = vrot.lane.b32.xlu0 %v680, 16
  %v1536 = vpop.permute.xlu0 %1535
  %1537 = vrot.lane.b32.xlu0 %v682, 16
  %v1538 = vpop.permute.xlu0 %1537
  %1539 = vrot.lane.b32.xlu0 %v685, 16
  %v1540 = vpop.permute.xlu0 %1539
  %1541 = vrot.lane.b32.xlu0 %v687, 16
  %v1542 = vpop.permute.xlu0 %1541
  %1543 = vrot.lane.b32.xlu0 %v690, 16
  %v1544 = vpop.permute.xlu0 %1543
  %1545 = vrot.lane.b32.xlu0 %v692, 16
  %v1546 = vpop.permute.xlu0 %1545
  %1547 = vrot.lane.b32.xlu0 %v695, 16
  %v1548 = vpop.permute.xlu0 %1547
  %1549 = vrot.lane.b32.xlu0 %v697, 16
  %v1550 = vpop.permute.xlu0 %1549
  %1551 = vrot.lane.b32.xlu0 %v700, 16
  %v1552 = vpop.permute.xlu0 %1551
  %1553 = vrot.lane.b32.xlu0 %v702, 16
  %v1554 = vpop.permute.xlu0 %1553
  %1555 = vrot.lane.b32.xlu0 %v705, 16
  %v1556 = vpop.permute.xlu0 %1555
  %1557 = vrot.lane.b32.xlu0 %v707, 16
  %v1558 = vpop.permute.xlu0 %1557
  %1559 = vrot.lane.b32.xlu0 %v870, 16
  %v1560 = vpop.permute.xlu0 %1559
  %1561 = vrot.lane.b32.xlu0 %v872, 16
  %v1562 = vpop.permute.xlu0 %1561
  %1627 = vrot.lane.b32.xlu0 %v711, 20
  %v1628 = vpop.permute.xlu0 %1627
  %1629 = vrot.lane.b32.xlu0 %v713, 20
  %v1630 = vpop.permute.xlu0 %1629
  %1631 = vrot.lane.b32.xlu0 %v716, 20
  %v1632 = vpop.permute.xlu0 %1631
  %1633 = vrot.lane.b32.xlu0 %v718, 20
  %v1634 = vpop.permute.xlu0 %1633
  %1635 = vrot.lane.b32.xlu0 %v721, 20
  %v1636 = vpop.permute.xlu0 %1635
  %1637 = vrot.lane.b32.xlu0 %v723, 20
  %v1638 = vpop.permute.xlu0 %1637
  %1639 = vrot.lane.b32.xlu0 %v726, 20
  %v1640 = vpop.permute.xlu0 %1639
  %1641 = vrot.lane.b32.xlu0 %v728, 20
  %v1642 = vpop.permute.xlu0 %1641
  %1643 = vrot.lane.b32.xlu0 %v731, 20
  %v1644 = vpop.permute.xlu0 %1643
  %1645 = vrot.lane.b32.xlu0 %v733, 20
  %v1646 = vpop.permute.xlu0 %1645
  %1647 = vrot.lane.b32.xlu0 %v736, 20
  %v1648 = vpop.permute.xlu0 %1647
  %1649 = vrot.lane.b32.xlu0 %v738, 20
  %v1650 = vpop.permute.xlu0 %1649
  %1651 = vrot.lane.b32.xlu0 %v741, 20
  %v1652 = vpop.permute.xlu0 %1651
  %1653 = vrot.lane.b32.xlu0 %v743, 20
  %v1654 = vpop.permute.xlu0 %1653
  %1655 = vrot.lane.b32.xlu0 %v746, 20
  %v1656 = vpop.permute.xlu0 %1655
  %1657 = vrot.lane.b32.xlu0 %v748, 20
  %v1658 = vpop.permute.xlu0 %1657
  %1659 = vrot.lane.b32.xlu0 %v751, 20
  %v1660 = vpop.permute.xlu0 %1659
  %1661 = vrot.lane.b32.xlu0 %v753, 20
  %v1662 = vpop.permute.xlu0 %1661
  %1663 = vrot.lane.b32.xlu0 %v756, 20
  %v1664 = vpop.permute.xlu0 %1663
  %1665 = vrot.lane.b32.xlu0 %v758, 20
  %v1666 = vpop.permute.xlu0 %1665
  %1667 = vrot.lane.b32.xlu0 %v761, 20
  %v1668 = vpop.permute.xlu0 %1667
  %1669 = vrot.lane.b32.xlu0 %v763, 20
  %v1670 = vpop.permute.xlu0 %1669
  %1671 = vrot.lane.b32.xlu0 %v766, 20
  %v1672 = vpop.permute.xlu0 %1671
  %1673 = vrot.lane.b32.xlu0 %v768, 20
  %v1674 = vpop.permute.xlu0 %1673
  %1675 = vrot.lane.b32.xlu0 %v771, 20
  %v1676 = vpop.permute.xlu0 %1675
  %1677 = vrot.lane.b32.xlu0 %v773, 20
  %v1678 = vpop.permute.xlu0 %1677
  %1679 = vrot.lane.b32.xlu0 %v776, 20
  %v1680 = vpop.permute.xlu0 %1679
  %1681 = vrot.lane.b32.xlu0 %v778, 20
  %v1682 = vpop.permute.xlu0 %1681
  %1683 = vrot.lane.b32.xlu0 %v781, 20
  %v1684 = vpop.permute.xlu0 %1683
  %1685 = vrot.lane.b32.xlu0 %v783, 20
  %v1686 = vpop.permute.xlu0 %1685
  %1687 = vrot.lane.b32.xlu0 %v875, 20
  %v1688 = vpop.permute.xlu0 %1687
  %1689 = vrot.lane.b32.xlu0 %v877, 20
  %v1690 = vpop.permute.xlu0 %1689
  %1691 = vrot.lane.b32.xlu0 %v786, 20
  %v1692 = vpop.permute.xlu0 %1691
  %1693 = vrot.lane.b32.xlu0 %v788, 20
  %v1694 = vpop.permute.xlu0 %1693
  %1695 = vrot.lane.b32.xlu0 %v791, 20
  %v1696 = vpop.permute.xlu0 %1695
  %1697 = vrot.lane.b32.xlu0 %v793, 20
  %v1698 = vpop.permute.xlu0 %1697
  %1699 = vrot.lane.b32.xlu0 %v796, 20
  %v1700 = vpop.permute.xlu0 %1699
  %1701 = vrot.lane.b32.xlu0 %v798, 20
  %v1702 = vpop.permute.xlu0 %1701
  %1703 = vrot.lane.b32.xlu0 %v801, 20
  %v1704 = vpop.permute.xlu0 %1703
  %1705 = vrot.lane.b32.xlu0 %v803, 20
  %v1706 = vpop.permute.xlu0 %1705
  %1707 = vrot.lane.b32.xlu0 %v806, 20
  %v1708 = vpop.permute.xlu0 %1707
  %1709 = vrot.lane.b32.xlu0 %v808, 20
  %v1710 = vpop.permute.xlu0 %1709
  %1711 = vrot.lane.b32.xlu0 %v811, 20
  %v1712 = vpop.permute.xlu0 %1711
  %1713 = vrot.lane.b32.xlu0 %v813, 20
  %v1714 = vpop.permute.xlu0 %1713
  %1715 = vrot.lane.b32.xlu0 %v816, 20
  %v1716 = vpop.permute.xlu0 %1715
  %1717 = vrot.lane.b32.xlu0 %v818, 20
  %v1718 = vpop.permute.xlu0 %1717
  %1719 = vrot.lane.b32.xlu0 %v821, 20
  %v1720 = vpop.permute.xlu0 %1719
  %1721 = vrot.lane.b32.xlu0 %v823, 20
  %v1722 = vpop.permute.xlu0 %1721
  %1723 = vrot.lane.b32.xlu0 %v826, 20
  %v1724 = vpop.permute.xlu0 %1723
  %1725 = vrot.lane.b32.xlu0 %v828, 20
  %v1726 = vpop.permute.xlu0 %1725
  %1727 = vrot.lane.b32.xlu0 %v831, 20
  %v1728 = vpop.permute.xlu0 %1727
  %1729 = vrot.lane.b32.xlu0 %v833, 20
  %v1730 = vpop.permute.xlu0 %1729
  %1731 = vrot.lane.b32.xlu0 %v836, 20
  %v1732 = vpop.permute.xlu0 %1731
  %1733 = vrot.lane.b32.xlu0 %v838, 20
  %v1734 = vpop.permute.xlu0 %1733
  %1735 = vrot.lane.b32.xlu0 %v841, 20
  %v1736 = vpop.permute.xlu0 %1735
  %1737 = vrot.lane.b32.xlu0 %v843, 20
  %v1738 = vpop.permute.xlu0 %1737
  %1739 = vrot.lane.b32.xlu0 %v846, 20
  %v1740 = vpop.permute.xlu0 %1739
  %1741 = vrot.lane.b32.xlu0 %v848, 20
  %v1742 = vpop.permute.xlu0 %1741
  %1743 = vrot.lane.b32.xlu0 %v851, 20
  %v1744 = vpop.permute.xlu0 %1743
  %1745 = vrot.lane.b32.xlu0 %v853, 20
  %v1746 = vpop.permute.xlu0 %1745
  %1747 = vrot.lane.b32.xlu0 %v856, 20
  %v1748 = vpop.permute.xlu0 %1747
  %1749 = vrot.lane.b32.xlu0 %v858, 20
  %v1750 = vpop.permute.xlu0 %1749
  %1751 = vrot.lane.b32.xlu0 %v880, 20
  %v1752 = vpop.permute.xlu0 %1751
  %1753 = vrot.lane.b32.xlu0 %v882, 20
  %v1754 = vpop.permute.xlu0 %1753
  %1819 = vrot.lane.b32.xlu0 %v428, 24
  %v1820 = vpop.permute.xlu0 %1819
  %1821 = vrot.lane.b32.xlu0 %v178, 24
  %v1822 = vpop.permute.xlu0 %1821
  %1823 = vrot.lane.b32.xlu0 %v429, 24
  %v1824 = vpop.permute.xlu0 %1823
  %1825 = vrot.lane.b32.xlu0 %v181, 24
  %v1826 = vpop.permute.xlu0 %1825
  %1827 = vrot.lane.b32.xlu0 %v430, 24
  %v1828 = vpop.permute.xlu0 %1827
  %1829 = vrot.lane.b32.xlu0 %v184, 24
  %v1830 = vpop.permute.xlu0 %1829
  %1831 = vrot.lane.b32.xlu0 %v431, 24
  %v1832 = vpop.permute.xlu0 %1831
  %1833 = vrot.lane.b32.xlu0 %v187, 24
  %v1834 = vpop.permute.xlu0 %1833
  %1835 = vrot.lane.b32.xlu0 %v432, 24
  %v1836 = vpop.permute.xlu0 %1835
  %1837 = vrot.lane.b32.xlu0 %v190, 24
  %v1838 = vpop.permute.xlu0 %1837
  %1839 = vrot.lane.b32.xlu0 %v433, 24
  %v1840 = vpop.permute.xlu0 %1839
  %1841 = vrot.lane.b32.xlu0 %v193, 24
  %v1842 = vpop.permute.xlu0 %1841
  %1843 = vrot.lane.b32.xlu0 %v434, 24
  %v1844 = vpop.permute.xlu0 %1843
  %1845 = vrot.lane.b32.xlu0 %v196, 24
  %v1846 = vpop.permute.xlu0 %1845
  %1847 = vrot.lane.b32.xlu0 %v435, 24
  %v1848 = vpop.permute.xlu0 %1847
  %1849 = vrot.lane.b32.xlu0 %v199, 24
  %v1850 = vpop.permute.xlu0 %1849
  %1851 = vrot.lane.b32.xlu0 %v436, 24
  %v1852 = vpop.permute.xlu0 %1851
  %1853 = vrot.lane.b32.xlu0 %v202, 24
  %v1854 = vpop.permute.xlu0 %1853
  %1855 = vrot.lane.b32.xlu0 %v437, 24
  %v1856 = vpop.permute.xlu0 %1855
  %1857 = vrot.lane.b32.xlu0 %v205, 24
  %v1858 = vpop.permute.xlu0 %1857
  %1859 = vrot.lane.b32.xlu0 %v438, 24
  %v1860 = vpop.permute.xlu0 %1859
  %1861 = vrot.lane.b32.xlu0 %v208, 24
  %v1862 = vpop.permute.xlu0 %1861
  %1863 = vrot.lane.b32.xlu0 %v439, 24
  %v1864 = vpop.permute.xlu0 %1863
  %1865 = vrot.lane.b32.xlu0 %v211, 24
  %v1866 = vpop.permute.xlu0 %1865
  %1867 = vrot.lane.b32.xlu0 %v440, 24
  %v1868 = vpop.permute.xlu0 %1867
  %1869 = vrot.lane.b32.xlu0 %v214, 24
  %v1870 = vpop.permute.xlu0 %1869
  %1871 = vrot.lane.b32.xlu0 %v441, 24
  %v1872 = vpop.permute.xlu0 %1871
  %1873 = vrot.lane.b32.xlu0 %v217, 24
  %v1874 = vpop.permute.xlu0 %1873
  %1875 = vrot.lane.b32.xlu0 %v442, 24
  %v1876 = vpop.permute.xlu0 %1875
  %1877 = vrot.lane.b32.xlu0 %v220, 24
  %v1878 = vpop.permute.xlu0 %1877
  %1879 = vrot.lane.b32.xlu0 %v444, 24
  %v1880 = vpop.permute.xlu0 %1879
  %1881 = vrot.lane.b32.xlu0 %v226, 24
  %v1882 = vpop.permute.xlu0 %1881
  %1883 = vrot.lane.b32.xlu0 %v445, 24
  %v1884 = vpop.permute.xlu0 %1883
  %1885 = vrot.lane.b32.xlu0 %v229, 24
  %v1886 = vpop.permute.xlu0 %1885
  %1887 = vrot.lane.b32.xlu0 %v446, 24
  %v1888 = vpop.permute.xlu0 %1887
  %1889 = vrot.lane.b32.xlu0 %v232, 24
  %v1890 = vpop.permute.xlu0 %1889
  %1891 = vrot.lane.b32.xlu0 %v447, 24
  %v1892 = vpop.permute.xlu0 %1891
  %1893 = vrot.lane.b32.xlu0 %v235, 24
  %v1894 = vpop.permute.xlu0 %1893
  %1895 = vrot.lane.b32.xlu0 %v448, 24
  %v1896 = vpop.permute.xlu0 %1895
  %1897 = vrot.lane.b32.xlu0 %v238, 24
  %v1898 = vpop.permute.xlu0 %1897
  %1899 = vrot.lane.b32.xlu0 %v449, 24
  %v1900 = vpop.permute.xlu0 %1899
  %1901 = vrot.lane.b32.xlu0 %v241, 24
  %v1902 = vpop.permute.xlu0 %1901
  %1903 = vrot.lane.b32.xlu0 %v450, 24
  %v1904 = vpop.permute.xlu0 %1903
  %1905 = vrot.lane.b32.xlu0 %v244, 24
  %v1906 = vpop.permute.xlu0 %1905
  %1907 = vrot.lane.b32.xlu0 %v451, 24
  %v1908 = vpop.permute.xlu0 %1907
  %1909 = vrot.lane.b32.xlu0 %v247, 24
  %v1910 = vpop.permute.xlu0 %1909
  %1911 = vrot.lane.b32.xlu0 %v452, 24
  %v1912 = vpop.permute.xlu0 %1911
  %1913 = vrot.lane.b32.xlu0 %v250, 24
  %v1914 = vpop.permute.xlu0 %1913
  %1915 = vrot.lane.b32.xlu0 %v453, 24
  %v1916 = vpop.permute.xlu0 %1915
  %1917 = vrot.lane.b32.xlu0 %v253, 24
  %v1918 = vpop.permute.xlu0 %1917
  %1919 = vrot.lane.b32.xlu0 %v454, 24
  %v1920 = vpop.permute.xlu0 %1919
  %1921 = vrot.lane.b32.xlu0 %v256, 24
  %v1922 = vpop.permute.xlu0 %1921
  %1923 = vrot.lane.b32.xlu0 %v455, 24
  %v1924 = vpop.permute.xlu0 %1923
  %1925 = vrot.lane.b32.xlu0 %v259, 24
  %v1926 = vpop.permute.xlu0 %1925
  %1927 = vrot.lane.b32.xlu0 %v456, 24
  %v1928 = vpop.permute.xlu0 %1927
  %1929 = vrot.lane.b32.xlu0 %v262, 24
  %v1930 = vpop.permute.xlu0 %1929
  %1931 = vrot.lane.b32.xlu0 %v457, 24
  %v1932 = vpop.permute.xlu0 %1931
  %1933 = vrot.lane.b32.xlu0 %v265, 24
  %v1934 = vpop.permute.xlu0 %1933
  %1935 = vrot.lane.b32.xlu0 %v458, 24
  %v1936 = vpop.permute.xlu0 %1935
  %1937 = vrot.lane.b32.xlu0 %v268, 24
  %v1938 = vpop.permute.xlu0 %1937
  %1999 = vrot.lane.b32.xlu0 %v565, 28
  %v2000 = vpop.permute.xlu0 %1999
  %2001 = vrot.lane.b32.xlu0 %v567, 28
  %v2002 = vpop.permute.xlu0 %2001
  %2003 = vrot.lane.b32.xlu0 %v570, 28
  %v2004 = vpop.permute.xlu0 %2003
  %2005 = vrot.lane.b32.xlu0 %v572, 28
  %v2006 = vpop.permute.xlu0 %2005
  %2007 = vrot.lane.b32.xlu0 %v575, 28
  %v2008 = vpop.permute.xlu0 %2007
  %2009 = vrot.lane.b32.xlu0 %v577, 28
  %v2010 = vpop.permute.xlu0 %2009
  %2011 = vrot.lane.b32.xlu0 %v580, 28
  %v2012 = vpop.permute.xlu0 %2011
  %2013 = vrot.lane.b32.xlu0 %v582, 28
  %v2014 = vpop.permute.xlu0 %2013
  %2015 = vrot.lane.b32.xlu0 %v585, 28
  %v2016 = vpop.permute.xlu0 %2015
  %2017 = vrot.lane.b32.xlu0 %v587, 28
  %v2018 = vpop.permute.xlu0 %2017
  %2019 = vrot.lane.b32.xlu0 %v590, 28
  %v2020 = vpop.permute.xlu0 %2019
  %2021 = vrot.lane.b32.xlu0 %v592, 28
  %v2022 = vpop.permute.xlu0 %2021
  %2023 = vrot.lane.b32.xlu0 %v595, 28
  %v2024 = vpop.permute.xlu0 %2023
  %2025 = vrot.lane.b32.xlu0 %v597, 28
  %v2026 = vpop.permute.xlu0 %2025
  %2027 = vrot.lane.b32.xlu0 %v600, 28
  %v2028 = vpop.permute.xlu0 %2027
  %2029 = vrot.lane.b32.xlu0 %v602, 28
  %v2030 = vpop.permute.xlu0 %2029
  %2031 = vrot.lane.b32.xlu0 %v605, 28
  %v2032 = vpop.permute.xlu0 %2031
  %2033 = vrot.lane.b32.xlu0 %v607, 28
  %v2034 = vpop.permute.xlu0 %2033
  %2035 = vrot.lane.b32.xlu0 %v610, 28
  %v2036 = vpop.permute.xlu0 %2035
  %2037 = vrot.lane.b32.xlu0 %v612, 28
  %v2038 = vpop.permute.xlu0 %2037
  %2039 = vrot.lane.b32.xlu0 %v615, 28
  %v2040 = vpop.permute.xlu0 %2039
  %2041 = vrot.lane.b32.xlu0 %v617, 28
  %v2042 = vpop.permute.xlu0 %2041
  %2043 = vrot.lane.b32.xlu0 %v620, 28
  %v2044 = vpop.permute.xlu0 %2043
  %2045 = vrot.lane.b32.xlu0 %v622, 28
  %v2046 = vpop.permute.xlu0 %2045
  %2047 = vrot.lane.b32.xlu0 %v625, 28
  %v2048 = vpop.permute.xlu0 %2047
  %2049 = vrot.lane.b32.xlu0 %v627, 28
  %v2050 = vpop.permute.xlu0 %2049
  %2051 = vrot.lane.b32.xlu0 %v630, 28
  %v2052 = vpop.permute.xlu0 %2051
  %2053 = vrot.lane.b32.xlu0 %v632, 28
  %v2054 = vpop.permute.xlu0 %2053
  %2055 = vrot.lane.b32.xlu0 %v865, 28
  %v2056 = vpop.permute.xlu0 %2055
  %2057 = vrot.lane.b32.xlu0 %v867, 28
  %v2058 = vpop.permute.xlu0 %2057
  %2059 = vrot.lane.b32.xlu0 %v640, 28
  %v2060 = vpop.permute.xlu0 %2059
  %2061 = vrot.lane.b32.xlu0 %v642, 28
  %v2062 = vpop.permute.xlu0 %2061
  %2063 = vrot.lane.b32.xlu0 %v645, 28
  %v2064 = vpop.permute.xlu0 %2063
  %2065 = vrot.lane.b32.xlu0 %v647, 28
  %v2066 = vpop.permute.xlu0 %2065
  %2067 = vrot.lane.b32.xlu0 %v650, 28
  %v2068 = vpop.permute.xlu0 %2067
  %2069 = vrot.lane.b32.xlu0 %v652, 28
  %v2070 = vpop.permute.xlu0 %2069
  %2071 = vrot.lane.b32.xlu0 %v655, 28
  %v2072 = vpop.permute.xlu0 %2071
  %2073 = vrot.lane.b32.xlu0 %v657, 28
  %v2074 = vpop.permute.xlu0 %2073
  %2075 = vrot.lane.b32.xlu0 %v660, 28
  %v2076 = vpop.permute.xlu0 %2075
  %2077 = vrot.lane.b32.xlu0 %v662, 28
  %v2078 = vpop.permute.xlu0 %2077
  %2079 = vrot.lane.b32.xlu0 %v665, 28
  %v2080 = vpop.permute.xlu0 %2079
  %2081 = vrot.lane.b32.xlu0 %v667, 28
  %v2082 = vpop.permute.xlu0 %2081
  %2083 = vrot.lane.b32.xlu0 %v670, 28
  %v2084 = vpop.permute.xlu0 %2083
  %2085 = vrot.lane.b32.xlu0 %v672, 28
  %v2086 = vpop.permute.xlu0 %2085
  %2087 = vrot.lane.b32.xlu0 %v675, 28
  %v2088 = vpop.permute.xlu0 %2087
  %2089 = vrot.lane.b32.xlu0 %v677, 28
  %v2090 = vpop.permute.xlu0 %2089
  %2091 = vrot.lane.b32.xlu0 %v680, 28
  %v2092 = vpop.permute.xlu0 %2091
  %2093 = vrot.lane.b32.xlu0 %v682, 28
  %v2094 = vpop.permute.xlu0 %2093
  %2095 = vrot.lane.b32.xlu0 %v685, 28
  %v2096 = vpop.permute.xlu0 %2095
  %2097 = vrot.lane.b32.xlu0 %v687, 28
  %v2098 = vpop.permute.xlu0 %2097
  %2099 = vrot.lane.b32.xlu0 %v690, 28
  %v2100 = vpop.permute.xlu0 %2099
  %2101 = vrot.lane.b32.xlu0 %v692, 28
  %v2102 = vpop.permute.xlu0 %2101
  %2103 = vrot.lane.b32.xlu0 %v695, 28
  %v2104 = vpop.permute.xlu0 %2103
  %2105 = vrot.lane.b32.xlu0 %v697, 28
  %v2106 = vpop.permute.xlu0 %2105
  %2107 = vrot.lane.b32.xlu0 %v700, 28
  %v2108 = vpop.permute.xlu0 %2107
  %2109 = vrot.lane.b32.xlu0 %v702, 28
  %v2110 = vpop.permute.xlu0 %2109
  %2111 = vrot.lane.b32.xlu0 %v705, 28
  %v2112 = vpop.permute.xlu0 %2111
  %2113 = vrot.lane.b32.xlu0 %v707, 28
  %v2114 = vpop.permute.xlu0 %2113
  %2115 = vrot.lane.b32.xlu0 %v870, 28
  %v2116 = vpop.permute.xlu0 %2115
  %2117 = vrot.lane.b32.xlu0 %v872, 28
  %v2118 = vpop.permute.xlu0 %2117
  %2179 = vrot.lane.b32.xlu0 %v716, 32
  %v2180 = vpop.permute.xlu0 %2179
  %2181 = vrot.lane.b32.xlu0 %v718, 32
  %v2182 = vpop.permute.xlu0 %2181
  %2183 = vrot.lane.b32.xlu0 %v721, 32
  %v2184 = vpop.permute.xlu0 %2183
  %2185 = vrot.lane.b32.xlu0 %v723, 32
  %v2186 = vpop.permute.xlu0 %2185
  %2187 = vrot.lane.b32.xlu0 %v726, 32
  %v2188 = vpop.permute.xlu0 %2187
  %2189 = vrot.lane.b32.xlu0 %v728, 32
  %v2190 = vpop.permute.xlu0 %2189
  %2191 = vrot.lane.b32.xlu0 %v731, 32
  %v2192 = vpop.permute.xlu0 %2191
  %2193 = vrot.lane.b32.xlu0 %v733, 32
  %v2194 = vpop.permute.xlu0 %2193
  %2195 = vrot.lane.b32.xlu0 %v736, 32
  %v2196 = vpop.permute.xlu0 %2195
  %2197 = vrot.lane.b32.xlu0 %v738, 32
  %v2198 = vpop.permute.xlu0 %2197
  %2199 = vrot.lane.b32.xlu0 %v741, 32
  %v2200 = vpop.permute.xlu0 %2199
  %2201 = vrot.lane.b32.xlu0 %v743, 32
  %v2202 = vpop.permute.xlu0 %2201
  %2203 = vrot.lane.b32.xlu0 %v746, 32
  %v2204 = vpop.permute.xlu0 %2203
  %2205 = vrot.lane.b32.xlu0 %v748, 32
  %v2206 = vpop.permute.xlu0 %2205
  %2207 = vrot.lane.b32.xlu0 %v751, 32
  %v2208 = vpop.permute.xlu0 %2207
  %2209 = vrot.lane.b32.xlu0 %v753, 32
  %v2210 = vpop.permute.xlu0 %2209
  %2211 = vrot.lane.b32.xlu0 %v756, 32
  %v2212 = vpop.permute.xlu0 %2211
  %2213 = vrot.lane.b32.xlu0 %v758, 32
  %v2214 = vpop.permute.xlu0 %2213
  %2215 = vrot.lane.b32.xlu0 %v761, 32
  %v2216 = vpop.permute.xlu0 %2215
  %2217 = vrot.lane.b32.xlu0 %v763, 32
  %v2218 = vpop.permute.xlu0 %2217
  %2219 = vrot.lane.b32.xlu0 %v766, 32
  %v2220 = vpop.permute.xlu0 %2219
  %2221 = vrot.lane.b32.xlu0 %v768, 32
  %v2222 = vpop.permute.xlu0 %2221
  %2223 = vrot.lane.b32.xlu0 %v771, 32
  %v2224 = vpop.permute.xlu0 %2223
  %2225 = vrot.lane.b32.xlu0 %v773, 32
  %v2226 = vpop.permute.xlu0 %2225
  %2227 = vrot.lane.b32.xlu0 %v776, 32
  %v2228 = vpop.permute.xlu0 %2227
  %2229 = vrot.lane.b32.xlu0 %v778, 32
  %v2230 = vpop.permute.xlu0 %2229
  %2231 = vrot.lane.b32.xlu0 %v781, 32
  %v2232 = vpop.permute.xlu0 %2231
  %2233 = vrot.lane.b32.xlu0 %v783, 32
  %v2234 = vpop.permute.xlu0 %2233
  %2235 = vrot.lane.b32.xlu0 %v875, 32
  %v2236 = vpop.permute.xlu0 %2235
  %2237 = vrot.lane.b32.xlu0 %v877, 32
  %v2238 = vpop.permute.xlu0 %2237
  %2239 = vrot.lane.b32.xlu0 %v791, 32
  %v2240 = vpop.permute.xlu0 %2239
  %2241 = vrot.lane.b32.xlu0 %v793, 32
  %v2242 = vpop.permute.xlu0 %2241
  %2243 = vrot.lane.b32.xlu0 %v796, 32
  %v2244 = vpop.permute.xlu0 %2243
  %2245 = vrot.lane.b32.xlu0 %v798, 32
  %v2246 = vpop.permute.xlu0 %2245
  %2247 = vrot.lane.b32.xlu0 %v801, 32
  %v2248 = vpop.permute.xlu0 %2247
  %2249 = vrot.lane.b32.xlu0 %v803, 32
  %v2250 = vpop.permute.xlu0 %2249
  %2251 = vrot.lane.b32.xlu0 %v806, 32
  %v2252 = vpop.permute.xlu0 %2251
  %2253 = vrot.lane.b32.xlu0 %v808, 32
  %v2254 = vpop.permute.xlu0 %2253
  %2255 = vrot.lane.b32.xlu0 %v811, 32
  %v2256 = vpop.permute.xlu0 %2255
  %2257 = vrot.lane.b32.xlu0 %v813, 32
  %v2258 = vpop.permute.xlu0 %2257
  %2259 = vrot.lane.b32.xlu0 %v816, 32
  %v2260 = vpop.permute.xlu0 %2259
  %2261 = vrot.lane.b32.xlu0 %v818, 32
  %v2262 = vpop.permute.xlu0 %2261
  %2263 = vrot.lane.b32.xlu0 %v821, 32
  %v2264 = vpop.permute.xlu0 %2263
  %2265 = vrot.lane.b32.xlu0 %v823, 32
  %v2266 = vpop.permute.xlu0 %2265
  %2267 = vrot.lane.b32.xlu0 %v826, 32
  %v2268 = vpop.permute.xlu0 %2267
  %2269 = vrot.lane.b32.xlu0 %v828, 32
  %v2270 = vpop.permute.xlu0 %2269
  %2271 = vrot.lane.b32.xlu0 %v831, 32
  %v2272 = vpop.permute.xlu0 %2271
  %2273 = vrot.lane.b32.xlu0 %v833, 32
  %v2274 = vpop.permute.xlu0 %2273
  %2275 = vrot.lane.b32.xlu0 %v836, 32
  %v2276 = vpop.permute.xlu0 %2275
  %2277 = vrot.lane.b32.xlu0 %v838, 32
  %v2278 = vpop.permute.xlu0 %2277
  %2279 = vrot.lane.b32.xlu0 %v841, 32
  %v2280 = vpop.permute.xlu0 %2279
  %2281 = vrot.lane.b32.xlu0 %v843, 32
  %v2282 = vpop.permute.xlu0 %2281
  %2283 = vrot.lane.b32.xlu0 %v846, 32
  %v2284 = vpop.permute.xlu0 %2283
  %2285 = vrot.lane.b32.xlu0 %v848, 32
  %v2286 = vpop.permute.xlu0 %2285
  %2287 = vrot.lane.b32.xlu0 %v851, 32
  %v2288 = vpop.permute.xlu0 %2287
  %2289 = vrot.lane.b32.xlu0 %v853, 32
  %v2290 = vpop.permute.xlu0 %2289
  %2291 = vrot.lane.b32.xlu0 %v856, 32
  %v2292 = vpop.permute.xlu0 %2291
  %2293 = vrot.lane.b32.xlu0 %v858, 32
  %v2294 = vpop.permute.xlu0 %2293
  %2295 = vrot.lane.b32.xlu0 %v880, 32
  %v2296 = vpop.permute.xlu0 %2295
  %2297 = vrot.lane.b32.xlu0 %v882, 32
  %v2298 = vpop.permute.xlu0 %2297
  %vm2359 = vcmask 31744
  %v2360 = vsel %vm2359, %v427, %v884
  %v2361 = vsel %vm2359, %v175, %v886
  %v2362 = vsel %vm2359, %v428, %v888
  %v2363 = vsel %vm2359, %v178, %v890
  %v2364 = vsel %vm2359, %v429, %v892
  %v2365 = vsel %vm2359, %v181, %v894
  %v2366 = vsel %vm2359, %v430, %v896
  %v2367 = vsel %vm2359, %v184, %v898
  %v2368 = vsel %vm2359, %v431, %v900
  %v2369 = vsel %vm2359, %v187, %v902
  %v2370 = vsel %vm2359, %v432, %v904
  %v2371 = vsel %vm2359, %v190, %v906
  %v2372 = vsel %vm2359, %v433, %v908
  %v2373 = vsel %vm2359, %v193, %v910
  %v2374 = vsel %vm2359, %v434, %v912
  %v2375 = vsel %vm2359, %v196, %v914
  %v2376 = vsel %vm2359, %v435, %v916
  %v2377 = vsel %vm2359, %v199, %v918
  %v2378 = vsel %vm2359, %v436, %v920
  %v2379 = vsel %vm2359, %v202, %v922
  %v2380 = vsel %vm2359, %v437, %v924
  %v2381 = vsel %vm2359, %v205, %v926
  %v2382 = vsel %vm2359, %v438, %v928
  %v2383 = vsel %vm2359, %v208, %v930
  %v2384 = vsel %vm2359, %v439, %v932
  %v2385 = vsel %vm2359, %v211, %v934
  %v2386 = vsel %vm2359, %v440, %v936
  %v2387 = vsel %vm2359, %v214, %v938
  %v2388 = vsel %vm2359, %v441, %v940
  %v2389 = vsel %vm2359, %v217, %v942
  %v2390 = vsel %vm2359, %v443, %v944
  %v2391 = vsel %vm2359, %v223, %v946
  %v2392 = vsel %vm2359, %v444, %v948
  %v2393 = vsel %vm2359, %v226, %v950
  %v2394 = vsel %vm2359, %v445, %v952
  %v2395 = vsel %vm2359, %v229, %v954
  %v2396 = vsel %vm2359, %v446, %v956
  %v2397 = vsel %vm2359, %v232, %v958
  %v2398 = vsel %vm2359, %v447, %v960
  %v2399 = vsel %vm2359, %v235, %v962
  %v2400 = vsel %vm2359, %v448, %v964
  %v2401 = vsel %vm2359, %v238, %v966
  %v2402 = vsel %vm2359, %v449, %v968
  %v2403 = vsel %vm2359, %v241, %v970
  %v2404 = vsel %vm2359, %v450, %v972
  %v2405 = vsel %vm2359, %v244, %v974
  %v2406 = vsel %vm2359, %v451, %v976
  %v2407 = vsel %vm2359, %v247, %v978
  %v2408 = vsel %vm2359, %v452, %v980
  %v2409 = vsel %vm2359, %v250, %v982
  %v2410 = vsel %vm2359, %v453, %v984
  %v2411 = vsel %vm2359, %v253, %v986
  %v2412 = vsel %vm2359, %v454, %v988
  %v2413 = vsel %vm2359, %v256, %v990
  %v2414 = vsel %vm2359, %v455, %v992
  %v2415 = vsel %vm2359, %v259, %v994
  %v2416 = vsel %vm2359, %v456, %v996
  %v2417 = vsel %vm2359, %v262, %v998
  %v2418 = vsel %vm2359, %v457, %v1000
  %v2419 = vsel %vm2359, %v265, %v1002
  %vm2420 = vcmask 64512
  %v2421 = vsel %vm2420, %v2360, %v1064
  %v2422 = vsel %vm2420, %v2361, %v1066
  %v2423 = vsel %vm2420, %v2362, %v1068
  %v2424 = vsel %vm2420, %v2363, %v1070
  %v2425 = vsel %vm2420, %v2364, %v1072
  %v2426 = vsel %vm2420, %v2365, %v1074
  %v2427 = vsel %vm2420, %v2366, %v1076
  %v2428 = vsel %vm2420, %v2367, %v1078
  %v2429 = vsel %vm2420, %v2368, %v1080
  %v2430 = vsel %vm2420, %v2369, %v1082
  %v2431 = vsel %vm2420, %v2370, %v1084
  %v2432 = vsel %vm2420, %v2371, %v1086
  %v2433 = vsel %vm2420, %v2372, %v1088
  %v2434 = vsel %vm2420, %v2373, %v1090
  %v2435 = vsel %vm2420, %v2374, %v1092
  %v2436 = vsel %vm2420, %v2375, %v1094
  %v2437 = vsel %vm2420, %v2376, %v1096
  %v2438 = vsel %vm2420, %v2377, %v1098
  %v2439 = vsel %vm2420, %v2378, %v1100
  %v2440 = vsel %vm2420, %v2379, %v1102
  %v2441 = vsel %vm2420, %v2380, %v1104
  %v2442 = vsel %vm2420, %v2381, %v1106
  %v2443 = vsel %vm2420, %v2382, %v1108
  %v2444 = vsel %vm2420, %v2383, %v1110
  %v2445 = vsel %vm2420, %v2384, %v1112
  %v2446 = vsel %vm2420, %v2385, %v1114
  %v2447 = vsel %vm2420, %v2386, %v1116
  %v2448 = vsel %vm2420, %v2387, %v1118
  %v2449 = vsel %vm2420, %v2388, %v1120
  %v2450 = vsel %vm2420, %v2389, %v1122
  %v2451 = vsel %vm2420, %v2390, %v1124
  %v2452 = vsel %vm2420, %v2391, %v1126
  %v2453 = vsel %vm2420, %v2392, %v1128
  %v2454 = vsel %vm2420, %v2393, %v1130
  %v2455 = vsel %vm2420, %v2394, %v1132
  %v2456 = vsel %vm2420, %v2395, %v1134
  %v2457 = vsel %vm2420, %v2396, %v1136
  %v2458 = vsel %vm2420, %v2397, %v1138
  %v2459 = vsel %vm2420, %v2398, %v1140
  %v2460 = vsel %vm2420, %v2399, %v1142
  %v2461 = vsel %vm2420, %v2400, %v1144
  %v2462 = vsel %vm2420, %v2401, %v1146
  %v2463 = vsel %vm2420, %v2402, %v1148
  %v2464 = vsel %vm2420, %v2403, %v1150
  %v2465 = vsel %vm2420, %v2404, %v1152
  %v2466 = vsel %vm2420, %v2405, %v1154
  %v2467 = vsel %vm2420, %v2406, %v1156
  %v2468 = vsel %vm2420, %v2407, %v1158
  %v2469 = vsel %vm2420, %v2408, %v1160
  %v2470 = vsel %vm2420, %v2409, %v1162
  %v2471 = vsel %vm2420, %v2410, %v1164
  %v2472 = vsel %vm2420, %v2411, %v1166
  %v2473 = vsel %vm2420, %v2412, %v1168
  %v2474 = vsel %vm2420, %v2413, %v1170
  %v2475 = vsel %vm2420, %v2414, %v1172
  %v2476 = vsel %vm2420, %v2415, %v1174
  %v2477 = vsel %vm2420, %v2416, %v1176
  %v2478 = vsel %vm2420, %v2417, %v1178
  %v2479 = vsel %vm2420, %v2418, %v1180
  %v2480 = vsel %vm2420, %v2419, %v1182
  %vm2481 = vcmask 97280
  %v2482 = vsel %vm2481, %v2421, %v1244
  %v2483 = vsel %vm2481, %v2422, %v1246
  %v2484 = vsel %vm2481, %v2421, %v1248
  %v2485 = vsel %vm2481, %v2422, %v1250
  %v2486 = vsel %vm2481, %v2423, %v1252
  %v2487 = vsel %vm2481, %v2424, %v1254
  %v2488 = vsel %vm2481, %v2425, %v1256
  %v2489 = vsel %vm2481, %v2426, %v1258
  %v2490 = vsel %vm2481, %v2427, %v1260
  %v2491 = vsel %vm2481, %v2428, %v1262
  %v2492 = vsel %vm2481, %v2429, %v1264
  %v2493 = vsel %vm2481, %v2430, %v1266
  %v2494 = vsel %vm2481, %v2431, %v1268
  %v2495 = vsel %vm2481, %v2432, %v1270
  %v2496 = vsel %vm2481, %v2433, %v1272
  %v2497 = vsel %vm2481, %v2434, %v1274
  %v2498 = vsel %vm2481, %v2435, %v1276
  %v2499 = vsel %vm2481, %v2436, %v1278
  %v2500 = vsel %vm2481, %v2437, %v1280
  %v2501 = vsel %vm2481, %v2438, %v1282
  %v2502 = vsel %vm2481, %v2439, %v1284
  %v2503 = vsel %vm2481, %v2440, %v1286
  %v2504 = vsel %vm2481, %v2441, %v1288
  %v2505 = vsel %vm2481, %v2442, %v1290
  %v2506 = vsel %vm2481, %v2443, %v1292
  %v2507 = vsel %vm2481, %v2444, %v1294
  %v2508 = vsel %vm2481, %v2445, %v1296
  %v2509 = vsel %vm2481, %v2446, %v1298
  %v2510 = vsel %vm2481, %v2447, %v1300
  %v2511 = vsel %vm2481, %v2448, %v1302
  %v2512 = vsel %vm2481, %v2449, %v1304
  %v2513 = vsel %vm2481, %v2450, %v1306
  %v2514 = vsel %vm2481, %v2451, %v1308
  %v2515 = vsel %vm2481, %v2452, %v1310
  %v2516 = vsel %vm2481, %v2451, %v1312
  %v2517 = vsel %vm2481, %v2452, %v1314
  %v2518 = vsel %vm2481, %v2453, %v1316
  %v2519 = vsel %vm2481, %v2454, %v1318
  %v2520 = vsel %vm2481, %v2455, %v1320
  %v2521 = vsel %vm2481, %v2456, %v1322
  %v2522 = vsel %vm2481, %v2457, %v1324
  %v2523 = vsel %vm2481, %v2458, %v1326
  %v2524 = vsel %vm2481, %v2459, %v1328
  %v2525 = vsel %vm2481, %v2460, %v1330
  %v2526 = vsel %vm2481, %v2461, %v1332
  %v2527 = vsel %vm2481, %v2462, %v1334
  %v2528 = vsel %vm2481, %v2463, %v1336
  %v2529 = vsel %vm2481, %v2464, %v1338
  %v2530 = vsel %vm2481, %v2465, %v1340
  %v2531 = vsel %vm2481, %v2466, %v1342
  %v2532 = vsel %vm2481, %v2467, %v1344
  %v2533 = vsel %vm2481, %v2468, %v1346
  %v2534 = vsel %vm2481, %v2469, %v1348
  %v2535 = vsel %vm2481, %v2470, %v1350
  %v2536 = vsel %vm2481, %v2471, %v1352
  %v2537 = vsel %vm2481, %v2472, %v1354
  %v2538 = vsel %vm2481, %v2473, %v1356
  %v2539 = vsel %vm2481, %v2474, %v1358
  %v2540 = vsel %vm2481, %v2475, %v1360
  %v2541 = vsel %vm2481, %v2476, %v1362
  %v2542 = vsel %vm2481, %v2477, %v1364
  %v2543 = vsel %vm2481, %v2478, %v1366
  %v2544 = vsel %vm2481, %v2479, %v1368
  %v2545 = vsel %vm2481, %v2480, %v1370
  %vm2546 = vcmask 130048
  %v2547 = vsel %vm2546, %v2482, %v1436
  %v2548 = vsel %vm2546, %v2483, %v1438
  %v2549 = vsel %vm2546, %v2484, %v1440
  %v2550 = vsel %vm2546, %v2485, %v1442
  %v2551 = vsel %vm2546, %v2486, %v1444
  %v2552 = vsel %vm2546, %v2487, %v1446
  %v2553 = vsel %vm2546, %v2488, %v1448
  %v2554 = vsel %vm2546, %v2489, %v1450
  %v2555 = vsel %vm2546, %v2490, %v1452
  %v2556 = vsel %vm2546, %v2491, %v1454
  %v2557 = vsel %vm2546, %v2492, %v1456
  %v2558 = vsel %vm2546, %v2493, %v1458
  %v2559 = vsel %vm2546, %v2494, %v1460
  %v2560 = vsel %vm2546, %v2495, %v1462
  %v2561 = vsel %vm2546, %v2496, %v1464
  %v2562 = vsel %vm2546, %v2497, %v1466
  %v2563 = vsel %vm2546, %v2498, %v1468
  %v2564 = vsel %vm2546, %v2499, %v1470
  %v2565 = vsel %vm2546, %v2500, %v1472
  %v2566 = vsel %vm2546, %v2501, %v1474
  %v2567 = vsel %vm2546, %v2502, %v1476
  %v2568 = vsel %vm2546, %v2503, %v1478
  %v2569 = vsel %vm2546, %v2504, %v1480
  %v2570 = vsel %vm2546, %v2505, %v1482
  %v2571 = vsel %vm2546, %v2506, %v1484
  %v2572 = vsel %vm2546, %v2507, %v1486
  %v2573 = vsel %vm2546, %v2508, %v1488
  %v2574 = vsel %vm2546, %v2509, %v1490
  %v2575 = vsel %vm2546, %v2510, %v1492
  %v2576 = vsel %vm2546, %v2511, %v1494
  %v2577 = vsel %vm2546, %v2512, %v1496
  %v2578 = vsel %vm2546, %v2513, %v1498
  %v2579 = vsel %vm2546, %v2514, %v1500
  %v2580 = vsel %vm2546, %v2515, %v1502
  %v2581 = vsel %vm2546, %v2516, %v1504
  %v2582 = vsel %vm2546, %v2517, %v1506
  %v2583 = vsel %vm2546, %v2518, %v1508
  %v2584 = vsel %vm2546, %v2519, %v1510
  %v2585 = vsel %vm2546, %v2520, %v1512
  %v2586 = vsel %vm2546, %v2521, %v1514
  %v2587 = vsel %vm2546, %v2522, %v1516
  %v2588 = vsel %vm2546, %v2523, %v1518
  %v2589 = vsel %vm2546, %v2524, %v1520
  %v2590 = vsel %vm2546, %v2525, %v1522
  %v2591 = vsel %vm2546, %v2526, %v1524
  %v2592 = vsel %vm2546, %v2527, %v1526
  %v2593 = vsel %vm2546, %v2528, %v1528
  %v2594 = vsel %vm2546, %v2529, %v1530
  %v2595 = vsel %vm2546, %v2530, %v1532
  %v2596 = vsel %vm2546, %v2531, %v1534
  %v2597 = vsel %vm2546, %v2532, %v1536
  %v2598 = vsel %vm2546, %v2533, %v1538
  %v2599 = vsel %vm2546, %v2534, %v1540
  %v2600 = vsel %vm2546, %v2535, %v1542
  %v2601 = vsel %vm2546, %v2536, %v1544
  %v2602 = vsel %vm2546, %v2537, %v1546
  %v2603 = vsel %vm2546, %v2538, %v1548
  %v2604 = vsel %vm2546, %v2539, %v1550
  %v2605 = vsel %vm2546, %v2540, %v1552
  %v2606 = vsel %vm2546, %v2541, %v1554
  %v2607 = vsel %vm2546, %v2542, %v1556
  %v2608 = vsel %vm2546, %v2543, %v1558
  %v2609 = vsel %vm2546, %v2544, %v1560
  %v2610 = vsel %vm2546, %v2545, %v1562
  %vm2611 = vcmask 162816
  %v2612 = vsel %vm2611, %v2547, %v1628
  %v2613 = vsel %vm2611, %v2548, %v1630
  %v2614 = vsel %vm2611, %v2549, %v1632
  %v2615 = vsel %vm2611, %v2550, %v1634
  %v2616 = vsel %vm2611, %v2551, %v1636
  %v2617 = vsel %vm2611, %v2552, %v1638
  %v2618 = vsel %vm2611, %v2553, %v1640
  %v2619 = vsel %vm2611, %v2554, %v1642
  %v2620 = vsel %vm2611, %v2555, %v1644
  %v2621 = vsel %vm2611, %v2556, %v1646
  %v2622 = vsel %vm2611, %v2557, %v1648
  %v2623 = vsel %vm2611, %v2558, %v1650
  %v2624 = vsel %vm2611, %v2559, %v1652
  %v2625 = vsel %vm2611, %v2560, %v1654
  %v2626 = vsel %vm2611, %v2561, %v1656
  %v2627 = vsel %vm2611, %v2562, %v1658
  %v2628 = vsel %vm2611, %v2563, %v1660
  %v2629 = vsel %vm2611, %v2564, %v1662
  %v2630 = vsel %vm2611, %v2565, %v1664
  %v2631 = vsel %vm2611, %v2566, %v1666
  %v2632 = vsel %vm2611, %v2567, %v1668
  %v2633 = vsel %vm2611, %v2568, %v1670
  %v2634 = vsel %vm2611, %v2569, %v1672
  %v2635 = vsel %vm2611, %v2570, %v1674
  %v2636 = vsel %vm2611, %v2571, %v1676
  %v2637 = vsel %vm2611, %v2572, %v1678
  %v2638 = vsel %vm2611, %v2573, %v1680
  %v2639 = vsel %vm2611, %v2574, %v1682
  %v2640 = vsel %vm2611, %v2575, %v1684
  %v2641 = vsel %vm2611, %v2576, %v1686
  %v2642 = vsel %vm2611, %v2577, %v1688
  %v2643 = vsel %vm2611, %v2578, %v1690
  %v2644 = vsel %vm2611, %v2579, %v1692
  %v2645 = vsel %vm2611, %v2580, %v1694
  %v2646 = vsel %vm2611, %v2581, %v1696
  %v2647 = vsel %vm2611, %v2582, %v1698
  %v2648 = vsel %vm2611, %v2583, %v1700
  %v2649 = vsel %vm2611, %v2584, %v1702
  %v2650 = vsel %vm2611, %v2585, %v1704
  %v2651 = vsel %vm2611, %v2586, %v1706
  %v2652 = vsel %vm2611, %v2587, %v1708
  %v2653 = vsel %vm2611, %v2588, %v1710
  %v2654 = vsel %vm2611, %v2589, %v1712
  %v2655 = vsel %vm2611, %v2590, %v1714
  %v2656 = vsel %vm2611, %v2591, %v1716
  %v2657 = vsel %vm2611, %v2592, %v1718
  %v2658 = vsel %vm2611, %v2593, %v1720
  %v2659 = vsel %vm2611, %v2594, %v1722
  %v2660 = vsel %vm2611, %v2595, %v1724
  %v2661 = vsel %vm2611, %v2596, %v1726
  %v2662 = vsel %vm2611, %v2597, %v1728
  %v2663 = vsel %vm2611, %v2598, %v1730
  %v2664 = vsel %vm2611, %v2599, %v1732
  %v2665 = vsel %vm2611, %v2600, %v1734
  %v2666 = vsel %vm2611, %v2601, %v1736
  %v2667 = vsel %vm2611, %v2602, %v1738
  %v2668 = vsel %vm2611, %v2603, %v1740
  %v2669 = vsel %vm2611, %v2604, %v1742
  %v2670 = vsel %vm2611, %v2605, %v1744
  %v2671 = vsel %vm2611, %v2606, %v1746
  %v2672 = vsel %vm2611, %v2607, %v1748
  %v2673 = vsel %vm2611, %v2608, %v1750
  %v2674 = vsel %vm2611, %v2609, %v1752
  %v2675 = vsel %vm2611, %v2610, %v1754
  %vm2676 = vcmask 195584
  %v2677 = vsel %vm2676, %v2612, %v1820
  %v2678 = vsel %vm2676, %v2613, %v1822
  %v2679 = vsel %vm2676, %v2614, %v1824
  %v2680 = vsel %vm2676, %v2615, %v1826
  %v2681 = vsel %vm2676, %v2616, %v1828
  %v2682 = vsel %vm2676, %v2617, %v1830
  %v2683 = vsel %vm2676, %v2618, %v1832
  %v2684 = vsel %vm2676, %v2619, %v1834
  %v2685 = vsel %vm2676, %v2620, %v1836
  %v2686 = vsel %vm2676, %v2621, %v1838
  %v2687 = vsel %vm2676, %v2622, %v1840
  %v2688 = vsel %vm2676, %v2623, %v1842
  %v2689 = vsel %vm2676, %v2624, %v1844
  %v2690 = vsel %vm2676, %v2625, %v1846
  %v2691 = vsel %vm2676, %v2626, %v1848
  %v2692 = vsel %vm2676, %v2627, %v1850
  %v2693 = vsel %vm2676, %v2628, %v1852
  %v2694 = vsel %vm2676, %v2629, %v1854
  %v2695 = vsel %vm2676, %v2630, %v1856
  %v2696 = vsel %vm2676, %v2631, %v1858
  %v2697 = vsel %vm2676, %v2632, %v1860
  %v2698 = vsel %vm2676, %v2633, %v1862
  %v2699 = vsel %vm2676, %v2634, %v1864
  %v2700 = vsel %vm2676, %v2635, %v1866
  %v2701 = vsel %vm2676, %v2636, %v1868
  %v2702 = vsel %vm2676, %v2637, %v1870
  %v2703 = vsel %vm2676, %v2638, %v1872
  %v2704 = vsel %vm2676, %v2639, %v1874
  %v2705 = vsel %vm2676, %v2640, %v1876
  %v2706 = vsel %vm2676, %v2641, %v1878
  %v2707 = vsel %vm2676, %v2642, %v1876
  %v2708 = vsel %vm2676, %v2643, %v1878
  %v2709 = vsel %vm2676, %v2644, %v1880
  %v2710 = vsel %vm2676, %v2645, %v1882
  %v2711 = vsel %vm2676, %v2646, %v1884
  %v2712 = vsel %vm2676, %v2647, %v1886
  %v2713 = vsel %vm2676, %v2648, %v1888
  %v2714 = vsel %vm2676, %v2649, %v1890
  %v2715 = vsel %vm2676, %v2650, %v1892
  %v2716 = vsel %vm2676, %v2651, %v1894
  %v2717 = vsel %vm2676, %v2652, %v1896
  %v2718 = vsel %vm2676, %v2653, %v1898
  %v2719 = vsel %vm2676, %v2654, %v1900
  %v2720 = vsel %vm2676, %v2655, %v1902
  %v2721 = vsel %vm2676, %v2656, %v1904
  %v2722 = vsel %vm2676, %v2657, %v1906
  %v2723 = vsel %vm2676, %v2658, %v1908
  %v2724 = vsel %vm2676, %v2659, %v1910
  %v2725 = vsel %vm2676, %v2660, %v1912
  %v2726 = vsel %vm2676, %v2661, %v1914
  %v2727 = vsel %vm2676, %v2662, %v1916
  %v2728 = vsel %vm2676, %v2663, %v1918
  %v2729 = vsel %vm2676, %v2664, %v1920
  %v2730 = vsel %vm2676, %v2665, %v1922
  %v2731 = vsel %vm2676, %v2666, %v1924
  %v2732 = vsel %vm2676, %v2667, %v1926
  %v2733 = vsel %vm2676, %v2668, %v1928
  %v2734 = vsel %vm2676, %v2669, %v1930
  %v2735 = vsel %vm2676, %v2670, %v1932
  %v2736 = vsel %vm2676, %v2671, %v1934
  %v2737 = vsel %vm2676, %v2672, %v1936
  %v2738 = vsel %vm2676, %v2673, %v1938
  %v2739 = vsel %vm2676, %v2674, %v1936
  %v2740 = vsel %vm2676, %v2675, %v1938
  %vm2741 = vcmask 228352
  %v2742 = vsel %vm2741, %v2677, %v2000
  %v2743 = vsel %vm2741, %v2678, %v2002
  %v2744 = vsel %vm2741, %v2679, %v2004
  %v2745 = vsel %vm2741, %v2680, %v2006
  %v2746 = vsel %vm2741, %v2681, %v2008
  %v2747 = vsel %vm2741, %v2682, %v2010
  %v2748 = vsel %vm2741, %v2683, %v2012
  %v2749 = vsel %vm2741, %v2684, %v2014
  %v2750 = vsel %vm2741, %v2685, %v2016
  %v2751 = vsel %vm2741, %v2686, %v2018
  %v2752 = vsel %vm2741, %v2687, %v2020
  %v2753 = vsel %vm2741, %v2688, %v2022
  %v2754 = vsel %vm2741, %v2689, %v2024
  %v2755 = vsel %vm2741, %v2690, %v2026
  %v2756 = vsel %vm2741, %v2691, %v2028
  %v2757 = vsel %vm2741, %v2692, %v2030
  %v2758 = vsel %vm2741, %v2693, %v2032
  %v2759 = vsel %vm2741, %v2694, %v2034
  %v2760 = vsel %vm2741, %v2695, %v2036
  %v2761 = vsel %vm2741, %v2696, %v2038
  %v2762 = vsel %vm2741, %v2697, %v2040
  %v2763 = vsel %vm2741, %v2698, %v2042
  %v2764 = vsel %vm2741, %v2699, %v2044
  %v2765 = vsel %vm2741, %v2700, %v2046
  %v2766 = vsel %vm2741, %v2701, %v2048
  %v2767 = vsel %vm2741, %v2702, %v2050
  %v2768 = vsel %vm2741, %v2703, %v2052
  %v2769 = vsel %vm2741, %v2704, %v2054
  %v2770 = vsel %vm2741, %v2705, %v2056
  %v2771 = vsel %vm2741, %v2706, %v2058
  %v2772 = vsel %vm2741, %v2707, %v2056
  %v2773 = vsel %vm2741, %v2708, %v2058
  %v2774 = vsel %vm2741, %v2709, %v2060
  %v2775 = vsel %vm2741, %v2710, %v2062
  %v2776 = vsel %vm2741, %v2711, %v2064
  %v2777 = vsel %vm2741, %v2712, %v2066
  %v2778 = vsel %vm2741, %v2713, %v2068
  %v2779 = vsel %vm2741, %v2714, %v2070
  %v2780 = vsel %vm2741, %v2715, %v2072
  %v2781 = vsel %vm2741, %v2716, %v2074
  %v2782 = vsel %vm2741, %v2717, %v2076
  %v2783 = vsel %vm2741, %v2718, %v2078
  %v2784 = vsel %vm2741, %v2719, %v2080
  %v2785 = vsel %vm2741, %v2720, %v2082
  %v2786 = vsel %vm2741, %v2721, %v2084
  %v2787 = vsel %vm2741, %v2722, %v2086
  %v2788 = vsel %vm2741, %v2723, %v2088
  %v2789 = vsel %vm2741, %v2724, %v2090
  %v2790 = vsel %vm2741, %v2725, %v2092
  %v2791 = vsel %vm2741, %v2726, %v2094
  %v2792 = vsel %vm2741, %v2727, %v2096
  %v2793 = vsel %vm2741, %v2728, %v2098
  %v2794 = vsel %vm2741, %v2729, %v2100
  %v2795 = vsel %vm2741, %v2730, %v2102
  %v2796 = vsel %vm2741, %v2731, %v2104
  %v2797 = vsel %vm2741, %v2732, %v2106
  %v2798 = vsel %vm2741, %v2733, %v2108
  %v2799 = vsel %vm2741, %v2734, %v2110
  %v2800 = vsel %vm2741, %v2735, %v2112
  %v2801 = vsel %vm2741, %v2736, %v2114
  %v2802 = vsel %vm2741, %v2737, %v2116
  %v2803 = vsel %vm2741, %v2738, %v2118
  %v2804 = vsel %vm2741, %v2739, %v2116
  %v2805 = vsel %vm2741, %v2740, %v2118
  %vm2806 = vcmask 261120
  %v2807 = vsel %vm2806, %v2742, %v2180
  %v2808 = vsel %vm2806, %v2743, %v2182
  %v2809 = vsel %vm2806, %v2744, %v2184
  %v2810 = vsel %vm2806, %v2745, %v2186
  %v2811 = vsel %vm2806, %v2746, %v2188
  %v2812 = vsel %vm2806, %v2747, %v2190
  %v2813 = vsel %vm2806, %v2748, %v2192
  %v2814 = vsel %vm2806, %v2749, %v2194
  %v2815 = vsel %vm2806, %v2750, %v2196
  %v2816 = vsel %vm2806, %v2751, %v2198
  %v2817 = vsel %vm2806, %v2752, %v2200
  %v2818 = vsel %vm2806, %v2753, %v2202
  %v2819 = vsel %vm2806, %v2754, %v2204
  %v2820 = vsel %vm2806, %v2755, %v2206
  %v2821 = vsel %vm2806, %v2756, %v2208
  %v2822 = vsel %vm2806, %v2757, %v2210
  %v2823 = vsel %vm2806, %v2758, %v2212
  %v2824 = vsel %vm2806, %v2759, %v2214
  %v2825 = vsel %vm2806, %v2760, %v2216
  %v2826 = vsel %vm2806, %v2761, %v2218
  %v2827 = vsel %vm2806, %v2762, %v2220
  %v2828 = vsel %vm2806, %v2763, %v2222
  %v2829 = vsel %vm2806, %v2764, %v2224
  %v2830 = vsel %vm2806, %v2765, %v2226
  %v2831 = vsel %vm2806, %v2766, %v2228
  %v2832 = vsel %vm2806, %v2767, %v2230
  %v2833 = vsel %vm2806, %v2768, %v2232
  %v2834 = vsel %vm2806, %v2769, %v2234
  %v2835 = vsel %vm2806, %v2770, %v2236
  %v2836 = vsel %vm2806, %v2771, %v2238
  %v2837 = vsel %vm2806, %v2772, %v2236
  %v2838 = vsel %vm2806, %v2773, %v2238
  %v2839 = vsel %vm2806, %v2774, %v2240
  %v2840 = vsel %vm2806, %v2775, %v2242
  %v2841 = vsel %vm2806, %v2776, %v2244
  %v2842 = vsel %vm2806, %v2777, %v2246
  %v2843 = vsel %vm2806, %v2778, %v2248
  %v2844 = vsel %vm2806, %v2779, %v2250
  %v2845 = vsel %vm2806, %v2780, %v2252
  %v2846 = vsel %vm2806, %v2781, %v2254
  %v2847 = vsel %vm2806, %v2782, %v2256
  %v2848 = vsel %vm2806, %v2783, %v2258
  %v2849 = vsel %vm2806, %v2784, %v2260
  %v2850 = vsel %vm2806, %v2785, %v2262
  %v2851 = vsel %vm2806, %v2786, %v2264
  %v2852 = vsel %vm2806, %v2787, %v2266
  %v2853 = vsel %vm2806, %v2788, %v2268
  %v2854 = vsel %vm2806, %v2789, %v2270
  %v2855 = vsel %vm2806, %v2790, %v2272
  %v2856 = vsel %vm2806, %v2791, %v2274
  %v2857 = vsel %vm2806, %v2792, %v2276
  %v2858 = vsel %vm2806, %v2793, %v2278
  %v2859 = vsel %vm2806, %v2794, %v2280
  %v2860 = vsel %vm2806, %v2795, %v2282
  %v2861 = vsel %vm2806, %v2796, %v2284
  %v2862 = vsel %vm2806, %v2797, %v2286
  %v2863 = vsel %vm2806, %v2798, %v2288
  %v2864 = vsel %vm2806, %v2799, %v2290
  %v2865 = vsel %vm2806, %v2800, %v2292
  %v2866 = vsel %vm2806, %v2801, %v2294
  %v2867 = vsel %vm2806, %v2802, %v2296
  %v2868 = vsel %vm2806, %v2803, %v2298
  %v2869 = vsel %vm2806, %v2804, %v2296
  %v2870 = vsel %vm2806, %v2805, %v2298
  %v2872 = vlaneseq
  %v2873 = vshrl.u32 %v2872, 7
  %v2874 = vsub.s32 0, %v2873
  %v2875 = vrot.slane %v496, %v2874
  %vm2877 = vcmask 293888
  %v2879 = vsel %vm2877, %v2807, 0
  %v2882 = vsel %vm2877, %v2808, 0
  %v2885 = vsel %vm2877, %v2809, 0
  %v2888 = vsel %vm2877, %v2810, 0
  %v2891 = vsel %vm2877, %v2811, 0
  %v2894 = vsel %vm2877, %v2812, 0
  %v2897 = vsel %vm2877, %v2813, 0
  %v2900 = vsel %vm2877, %v2814, 0
  %v2903 = vsel %vm2877, %v2815, 0
  %v2906 = vsel %vm2877, %v2816, 0
  %v2909 = vsel %vm2877, %v2817, 0
  %v2912 = vsel %vm2877, %v2818, 0
  %v2915 = vsel %vm2877, %v2819, 0
  %v2918 = vsel %vm2877, %v2820, 0
  %v2921 = vsel %vm2877, %v2821, 0
  %v2924 = vsel %vm2877, %v2822, 0
  %v2927 = vsel %vm2877, %v2823, 0
  %v2930 = vsel %vm2877, %v2824, 0
  %v2933 = vsel %vm2877, %v2825, 0
  %v2936 = vsel %vm2877, %v2826, 0
  %v2939 = vsel %vm2877, %v2827, 0
  %v2942 = vsel %vm2877, %v2828, 0
  %v2945 = vsel %vm2877, %v2829, 0
  %v2948 = vsel %vm2877, %v2830, 0
  %v2951 = vsel %vm2877, %v2831, 0
  %v2954 = vsel %vm2877, %v2832, 0
  %v2957 = vsel %vm2877, %v2833, 0
  %v2960 = vsel %vm2877, %v2834, 0
  %v2963 = vsel %vm2877, %v2835, 0
  %v2966 = vsel %vm2877, %v2836, 0
  %v2969 = vsel %vm2877, %v2837, 0
  %v2972 = vsel %vm2877, %v2838, 0
  %v2975 = vsel %vm2877, %v2839, 0
  %v2978 = vsel %vm2877, %v2840, 0
  %v2981 = vsel %vm2877, %v2841, 0
  %v2984 = vsel %vm2877, %v2842, 0
  %v2987 = vsel %vm2877, %v2843, 0
  %v2990 = vsel %vm2877, %v2844, 0
  %v2993 = vsel %vm2877, %v2845, 0
  %v2996 = vsel %vm2877, %v2846, 0
  %v2999 = vsel %vm2877, %v2847, 0
  %v3002 = vsel %vm2877, %v2848, 0
  %v3005 = vsel %vm2877, %v2849, 0
  %v3008 = vsel %vm2877, %v2850, 0
  %v3011 = vsel %vm2877, %v2851, 0
  %v3014 = vsel %vm2877, %v2852, 0
  %v3017 = vsel %vm2877, %v2853, 0
  %v3020 = vsel %vm2877, %v2854, 0
  %v3023 = vsel %vm2877, %v2855, 0
  %v3026 = vsel %vm2877, %v2856, 0
  %v3029 = vsel %vm2877, %v2857, 0
  %v3032 = vsel %vm2877, %v2858, 0
  %v3035 = vsel %vm2877, %v2859, 0
  %v3038 = vsel %vm2877, %v2860, 0
  %v3041 = vsel %vm2877, %v2861, 0
  %v3044 = vsel %vm2877, %v2862, 0
  %v3047 = vsel %vm2877, %v2863, 0
  %v3050 = vsel %vm2877, %v2864, 0
  %v3053 = vsel %vm2877, %v2865, 0
  %v3056 = vsel %vm2877, %v2866, 0
  %v3059 = vsel %vm2877, %v2867, 0
  %v3062 = vsel %vm2877, %v2868, 0
  %v3065 = vsel %vm2877, %v2869, 0
  %v3068 = vsel %vm2877, %v2870, 0
  %vm3070 = vcmask 1043456
  %v3072 = vsel %vm3070, %v495, 0
  %3074 = vmatprep.subr.mxu0 0.0
  %3075 = vmatpush1.msra.mxu0 0.0
  %3076 = vmatprep.subr.mxu0 0.0
  %3077 = vmatpush1.msra.mxu0 0.0
  %3078 = vmatprep.subr.mxu0 0.0
  %3079 = vmatpush1.msra.mxu0 0.0
  %3080 = vmatprep.subr.mxu0 0.0
  %3081 = vmatpush1.msra.mxu0 0.0
  %3082 = vmatprep.subr.mxu0 0.0
  %3083 = vmatpush1.msra.mxu0 0.0
  %3084 = vmatprep.subr.mxu0 0.0
  %3085 = vmatpush1.msra.mxu0 0.0
  %3086 = vmatprep.subr.mxu0 0.0
  %3087 = vmatpush1.msra.mxu0 0.0
  %3088 = vmatprep.subr.mxu0 0.0
  %3089 = vmatpush1.msra.mxu0 0.0
  %3090 = vmatprep.subr.mxu0 0.0
  %3091 = vmatpush1.msra.mxu0 0.0
  %3092 = vmatprep.subr.mxu0 0.0
  %3093 = vmatpush1.msra.mxu0 0.0
  %3094 = vmatprep.subr.mxu0 0.0
  %3095 = vmatpush1.msra.mxu0 0.0
  %3096 = vmatprep.subr.mxu0 0.0
  %3097 = vmatpush1.msra.mxu0 %v3072
  %3098 = vmatprep.subr.mxu0 0.0
  %3099 = vmatpush1.msra.mxu0 %v494
  %3100 = vmatprep.subr.mxu0 0.0
  %3101 = vmatpush1.msra.mxu0 %v493
  %3102 = vmatprep.subr.mxu0 0.0
  %3103 = vmatpush1.msra.mxu0 %v492
  %3104 = vmatprep.subr.mxu0 0.0
  %3105 = vmatpush1.msra.mxu0 %v491
  %3106 = vmatprep.subr.mxu0 0.0
  %3107 = vmatpush2.msra.mxu0 0.0
  %3108 = vmatprep.subr.mxu0 0.0
  %3109 = vmatpush2.msra.mxu0 0.0
  %3110 = vmatprep.subr.mxu0 0.0
  %3111 = vmatpush2.msra.mxu0 0.0
  %3112 = vmatprep.subr.mxu0 0.0
  %3113 = vmatpush2.msra.mxu0 0.0
  %3114 = vmatprep.subr.mxu0 0.0
  %3115 = vmatpush2.msra.mxu0 0.0
  %3116 = vmatprep.subr.mxu0 0.0
  %3117 = vmatpush2.msra.mxu0 0.0
  %3118 = vmatprep.subr.mxu0 0.0
  %3119 = vmatpush2.msra.mxu0 0.0
  %3120 = vmatprep.subr.mxu0 0.0
  %3121 = vmatpush2.msra.mxu0 0.0
  %3122 = vmatprep.subr.mxu0 0.0
  %3123 = vmatpush2.msra.mxu0 0.0
  %3124 = vmatprep.subr.mxu0 0.0
  %3125 = vmatpush2.msra.mxu0 0.0
  %3126 = vmatprep.subr.mxu0 0.0
  %3127 = vmatpush2.msra.mxu0 0.0
  %3128 = vmatprep.subr.mxu0 0.0
  %3129 = vmatpush2.msra.mxu0 0.0
  %3130 = vmatprep.subr.mxu0 0.0
  %3131 = vmatpush2.msra.mxu0 0.0
  %3132 = vmatprep.subr.mxu0 0.0
  %3133 = vmatpush2.msra.mxu0 0.0
  %3134 = vmatprep.subr.mxu0 0.0
  %3135 = vmatpush2.msra.mxu0 0.0
  %3136 = vmatprep.subr.mxu0 0.0
  %3137 = vmatpush2.msra.mxu0 0.0
  %3138 = vmatprep.mubr.f32.mxu0 0.0
  %3139 = vmatmul.mubr.f32.gmra.mxu0 %v2879
  %v3140 = vpop.f32.mrf.mxu0
  %v3141 = vadd.f32 %v2875, %v3140
  %v3142 = vpop.f32.mrf.mxu0
  %3143 = vmatprep.mubr.f32.mxu0 0.0
  %3144 = vmatmul.mubr.f32.gmra.mxu0 %v2882
  %v3145 = vpop.f32.mrf.mxu0
  %v3146 = vadd.f32 %v2875, %v3145
  %v3147 = vpop.f32.mrf.mxu0
  %3148 = vmatprep.mubr.f32.mxu0 0.0
  %3149 = vmatmul.mubr.f32.gmra.mxu0 %v2885
  %v3150 = vpop.f32.mrf.mxu0
  %v3151 = vadd.f32 %v2875, %v3150
  %v3152 = vpop.f32.mrf.mxu0
  %3153 = vmatprep.mubr.f32.mxu0 0.0
  %3154 = vmatmul.mubr.f32.gmra.mxu0 %v2888
  %v3155 = vpop.f32.mrf.mxu0
  %v3156 = vadd.f32 %v2875, %v3155
  %v3157 = vpop.f32.mrf.mxu0
  %3158 = vmatprep.mubr.f32.mxu0 0.0
  %3159 = vmatmul.mubr.f32.gmra.mxu0 %v2891
  %v3160 = vpop.f32.mrf.mxu0
  %v3161 = vadd.f32 %v2875, %v3160
  %v3162 = vpop.f32.mrf.mxu0
  %3163 = vmatprep.mubr.f32.mxu0 0.0
  %3164 = vmatmul.mubr.f32.gmra.mxu0 %v2894
  %v3165 = vpop.f32.mrf.mxu0
  %v3166 = vadd.f32 %v2875, %v3165
  %v3167 = vpop.f32.mrf.mxu0
  %3168 = vmatprep.mubr.f32.mxu0 0.0
  %3169 = vmatmul.mubr.f32.gmra.mxu0 %v2897
  %v3170 = vpop.f32.mrf.mxu0
  %v3171 = vadd.f32 %v2875, %v3170
  %v3172 = vpop.f32.mrf.mxu0
  %3173 = vmatprep.mubr.f32.mxu0 0.0
  %3174 = vmatmul.mubr.f32.gmra.mxu0 %v2900
  %v3175 = vpop.f32.mrf.mxu0
  %v3176 = vadd.f32 %v2875, %v3175
  %v3177 = vpop.f32.mrf.mxu0
  %3178 = vmatprep.mubr.f32.mxu0 0.0
  %3179 = vmatmul.mubr.f32.gmra.mxu0 %v2903
  %v3180 = vpop.f32.mrf.mxu0
  %v3181 = vadd.f32 %v2875, %v3180
  %v3182 = vpop.f32.mrf.mxu0
  %3183 = vmatprep.mubr.f32.mxu0 0.0
  %3184 = vmatmul.mubr.f32.gmra.mxu0 %v2906
  %v3185 = vpop.f32.mrf.mxu0
  %v3186 = vadd.f32 %v2875, %v3185
  %v3187 = vpop.f32.mrf.mxu0
  %3188 = vmatprep.mubr.f32.mxu0 0.0
  %3189 = vmatmul.mubr.f32.gmra.mxu0 %v2909
  %v3190 = vpop.f32.mrf.mxu0
  %v3191 = vadd.f32 %v2875, %v3190
  %v3192 = vpop.f32.mrf.mxu0
  %3193 = vmatprep.mubr.f32.mxu0 0.0
  %3194 = vmatmul.mubr.f32.gmra.mxu0 %v2912
  %v3195 = vpop.f32.mrf.mxu0
  %v3196 = vadd.f32 %v2875, %v3195
  %v3197 = vpop.f32.mrf.mxu0
  %3198 = vmatprep.mubr.f32.mxu0 0.0
  %3199 = vmatmul.mubr.f32.gmra.mxu0 %v2915
  %v3200 = vpop.f32.mrf.mxu0
  %v3201 = vadd.f32 %v2875, %v3200
  %v3202 = vpop.f32.mrf.mxu0
  %3203 = vmatprep.mubr.f32.mxu0 0.0
  %3204 = vmatmul.mubr.f32.gmra.mxu0 %v2918
  %v3205 = vpop.f32.mrf.mxu0
  %v3206 = vadd.f32 %v2875, %v3205
  %v3207 = vpop.f32.mrf.mxu0
  %3208 = vmatprep.mubr.f32.mxu0 0.0
  %3209 = vmatmul.mubr.f32.gmra.mxu0 %v2921
  %v3210 = vpop.f32.mrf.mxu0
  %v3211 = vadd.f32 %v2875, %v3210
  %v3212 = vpop.f32.mrf.mxu0
  %3213 = vmatprep.mubr.f32.mxu0 0.0
  %3214 = vmatmul.mubr.f32.gmra.mxu0 %v2924
  %v3215 = vpop.f32.mrf.mxu0
  %v3216 = vadd.f32 %v2875, %v3215
  %v3217 = vpop.f32.mrf.mxu0
  %3218 = vmatprep.mubr.f32.mxu0 0.0
  %3219 = vmatmul.mubr.f32.gmra.mxu0 %v2927
  %v3220 = vpop.f32.mrf.mxu0
  %v3221 = vadd.f32 %v2875, %v3220
  %v3222 = vpop.f32.mrf.mxu0
  %3223 = vmatprep.mubr.f32.mxu0 0.0
  %3224 = vmatmul.mubr.f32.gmra.mxu0 %v2930
  %v3225 = vpop.f32.mrf.mxu0
  %v3226 = vadd.f32 %v2875, %v3225
  %v3227 = vpop.f32.mrf.mxu0
  %3228 = vmatprep.mubr.f32.mxu0 0.0
  %3229 = vmatmul.mubr.f32.gmra.mxu0 %v2933
  %v3230 = vpop.f32.mrf.mxu0
  %v3231 = vadd.f32 %v2875, %v3230
  %v3232 = vpop.f32.mrf.mxu0
  %3233 = vmatprep.mubr.f32.mxu0 0.0
  %3234 = vmatmul.mubr.f32.gmra.mxu0 %v2936
  %v3235 = vpop.f32.mrf.mxu0
  %v3236 = vadd.f32 %v2875, %v3235
  %v3237 = vpop.f32.mrf.mxu0
  %3238 = vmatprep.mubr.f32.mxu0 0.0
  %3239 = vmatmul.mubr.f32.gmra.mxu0 %v2939
  %v3240 = vpop.f32.mrf.mxu0
  %v3241 = vadd.f32 %v2875, %v3240
  %v3242 = vpop.f32.mrf.mxu0
  %3243 = vmatprep.mubr.f32.mxu0 0.0
  %3244 = vmatmul.mubr.f32.gmra.mxu0 %v2942
  %v3245 = vpop.f32.mrf.mxu0
  %v3246 = vadd.f32 %v2875, %v3245
  %v3247 = vpop.f32.mrf.mxu0
  %3248 = vmatprep.mubr.f32.mxu0 0.0
  %3249 = vmatmul.mubr.f32.gmra.mxu0 %v2945
  %v3250 = vpop.f32.mrf.mxu0
  %v3251 = vadd.f32 %v2875, %v3250
  %v3252 = vpop.f32.mrf.mxu0
  %3253 = vmatprep.mubr.f32.mxu0 0.0
  %3254 = vmatmul.mubr.f32.gmra.mxu0 %v2948
  %v3255 = vpop.f32.mrf.mxu0
  %v3256 = vadd.f32 %v2875, %v3255
  %v3257 = vpop.f32.mrf.mxu0
  %3258 = vmatprep.mubr.f32.mxu0 0.0
  %3259 = vmatmul.mubr.f32.gmra.mxu0 %v2951
  %v3260 = vpop.f32.mrf.mxu0
  %v3261 = vadd.f32 %v2875, %v3260
  %v3262 = vpop.f32.mrf.mxu0
  %3263 = vmatprep.mubr.f32.mxu0 0.0
  %3264 = vmatmul.mubr.f32.gmra.mxu0 %v2954
  %v3265 = vpop.f32.mrf.mxu0
  %v3266 = vadd.f32 %v2875, %v3265
  %v3267 = vpop.f32.mrf.mxu0
  %3268 = vmatprep.mubr.f32.mxu0 0.0
  %3269 = vmatmul.mubr.f32.gmra.mxu0 %v2957
  %v3270 = vpop.f32.mrf.mxu0
  %v3271 = vadd.f32 %v2875, %v3270
  %v3272 = vpop.f32.mrf.mxu0
  %3273 = vmatprep.mubr.f32.mxu0 0.0
  %3274 = vmatmul.mubr.f32.gmra.mxu0 %v2960
  %v3275 = vpop.f32.mrf.mxu0
  %v3276 = vadd.f32 %v2875, %v3275
  %v3277 = vpop.f32.mrf.mxu0
  %3278 = vmatprep.mubr.f32.mxu0 0.0
  %3279 = vmatmul.mubr.f32.gmra.mxu0 %v2963
  %v3280 = vpop.f32.mrf.mxu0
  %v3281 = vadd.f32 %v2875, %v3280
  %v3282 = vpop.f32.mrf.mxu0
  %3283 = vmatprep.mubr.f32.mxu0 0.0
  %3284 = vmatmul.mubr.f32.gmra.mxu0 %v2966
  %v3285 = vpop.f32.mrf.mxu0
  %v3286 = vadd.f32 %v2875, %v3285
  %v3287 = vpop.f32.mrf.mxu0
  %3288 = vmatprep.mubr.f32.mxu0 0.0
  %3289 = vmatmul.mubr.f32.gmra.mxu0 %v2969
  %v3290 = vpop.f32.mrf.mxu0
  %v3291 = vadd.f32 %v2875, %v3290
  %v3292 = vpop.f32.mrf.mxu0
  %3293 = vmatprep.mubr.f32.mxu0 0.0
  %3294 = vmatmul.mubr.f32.gmra.mxu0 %v2972
  %v3295 = vpop.f32.mrf.mxu0
  %v3296 = vadd.f32 %v2875, %v3295
  %v3297 = vpop.f32.mrf.mxu0
  %3298 = vmatprep.mubr.f32.mxu0 0.0
  %3299 = vmatmul.mubr.f32.gmra.mxu0 %v2975
  %v3300 = vpop.f32.mrf.mxu0
  %v3301 = vadd.f32 %v2875, %v3300
  %v3302 = vpop.f32.mrf.mxu0
  %3303 = vmatprep.mubr.f32.mxu0 0.0
  %3304 = vmatmul.mubr.f32.gmra.mxu0 %v2978
  %v3305 = vpop.f32.mrf.mxu0
  %v3306 = vadd.f32 %v2875, %v3305
  %v3307 = vpop.f32.mrf.mxu0
  %3308 = vmatprep.mubr.f32.mxu0 0.0
  %3309 = vmatmul.mubr.f32.gmra.mxu0 %v2981
  %v3310 = vpop.f32.mrf.mxu0
  %v3311 = vadd.f32 %v2875, %v3310
  %v3312 = vpop.f32.mrf.mxu0
  %3313 = vmatprep.mubr.f32.mxu0 0.0
  %3314 = vmatmul.mubr.f32.gmra.mxu0 %v2984
  %v3315 = vpop.f32.mrf.mxu0
  %v3316 = vadd.f32 %v2875, %v3315
  %v3317 = vpop.f32.mrf.mxu0
  %3318 = vmatprep.mubr.f32.mxu0 0.0
  %3319 = vmatmul.mubr.f32.gmra.mxu0 %v2987
  %v3320 = vpop.f32.mrf.mxu0
  %v3321 = vadd.f32 %v2875, %v3320
  %v3322 = vpop.f32.mrf.mxu0
  %3323 = vmatprep.mubr.f32.mxu0 0.0
  %3324 = vmatmul.mubr.f32.gmra.mxu0 %v2990
  %v3325 = vpop.f32.mrf.mxu0
  %v3326 = vadd.f32 %v2875, %v3325
  %v3327 = vpop.f32.mrf.mxu0
  %3328 = vmatprep.mubr.f32.mxu0 0.0
  %3329 = vmatmul.mubr.f32.gmra.mxu0 %v2993
  %v3330 = vpop.f32.mrf.mxu0
  %v3331 = vadd.f32 %v2875, %v3330
  %v3332 = vpop.f32.mrf.mxu0
  %3333 = vmatprep.mubr.f32.mxu0 0.0
  %3334 = vmatmul.mubr.f32.gmra.mxu0 %v2996
  %v3335 = vpop.f32.mrf.mxu0
  %v3336 = vadd.f32 %v2875, %v3335
  %v3337 = vpop.f32.mrf.mxu0
  %3338 = vmatprep.mubr.f32.mxu0 0.0
  %3339 = vmatmul.mubr.f32.gmra.mxu0 %v2999
  %v3340 = vpop.f32.mrf.mxu0
  %v3341 = vadd.f32 %v2875, %v3340
  %v3342 = vpop.f32.mrf.mxu0
  %3343 = vmatprep.mubr.f32.mxu0 0.0
  %3344 = vmatmul.mubr.f32.gmra.mxu0 %v3002
  %v3345 = vpop.f32.mrf.mxu0
  %v3346 = vadd.f32 %v2875, %v3345
  %v3347 = vpop.f32.mrf.mxu0
  %3348 = vmatprep.mubr.f32.mxu0 0.0
  %3349 = vmatmul.mubr.f32.gmra.mxu0 %v3005
  %v3350 = vpop.f32.mrf.mxu0
  %v3351 = vadd.f32 %v2875, %v3350
  %v3352 = vpop.f32.mrf.mxu0
  %3353 = vmatprep.mubr.f32.mxu0 0.0
  %3354 = vmatmul.mubr.f32.gmra.mxu0 %v3008
  %v3355 = vpop.f32.mrf.mxu0
  %v3356 = vadd.f32 %v2875, %v3355
  %v3357 = vpop.f32.mrf.mxu0
  %3358 = vmatprep.mubr.f32.mxu0 0.0
  %3359 = vmatmul.mubr.f32.gmra.mxu0 %v3011
  %v3360 = vpop.f32.mrf.mxu0
  %v3361 = vadd.f32 %v2875, %v3360
  %v3362 = vpop.f32.mrf.mxu0
  %3363 = vmatprep.mubr.f32.mxu0 0.0
  %3364 = vmatmul.mubr.f32.gmra.mxu0 %v3014
  %v3365 = vpop.f32.mrf.mxu0
  %v3366 = vadd.f32 %v2875, %v3365
  %v3367 = vpop.f32.mrf.mxu0
  %3368 = vmatprep.mubr.f32.mxu0 0.0
  %3369 = vmatmul.mubr.f32.gmra.mxu0 %v3017
  %v3370 = vpop.f32.mrf.mxu0
  %v3371 = vadd.f32 %v2875, %v3370
  %v3372 = vpop.f32.mrf.mxu0
  %3373 = vmatprep.mubr.f32.mxu0 0.0
  %3374 = vmatmul.mubr.f32.gmra.mxu0 %v3020
  %v3375 = vpop.f32.mrf.mxu0
  %v3376 = vadd.f32 %v2875, %v3375
  %v3377 = vpop.f32.mrf.mxu0
  %3378 = vmatprep.mubr.f32.mxu0 0.0
  %3379 = vmatmul.mubr.f32.gmra.mxu0 %v3023
  %v3380 = vpop.f32.mrf.mxu0
  %v3381 = vadd.f32 %v2875, %v3380
  %v3382 = vpop.f32.mrf.mxu0
  %3383 = vmatprep.mubr.f32.mxu0 0.0
  %3384 = vmatmul.mubr.f32.gmra.mxu0 %v3026
  %v3385 = vpop.f32.mrf.mxu0
  %v3386 = vadd.f32 %v2875, %v3385
  %v3387 = vpop.f32.mrf.mxu0
  %3388 = vmatprep.mubr.f32.mxu0 0.0
  %3389 = vmatmul.mubr.f32.gmra.mxu0 %v3029
  %v3390 = vpop.f32.mrf.mxu0
  %v3391 = vadd.f32 %v2875, %v3390
  %v3392 = vpop.f32.mrf.mxu0
  %3393 = vmatprep.mubr.f32.mxu0 0.0
  %3394 = vmatmul.mubr.f32.gmra.mxu0 %v3032
  %v3395 = vpop.f32.mrf.mxu0
  %v3396 = vadd.f32 %v2875, %v3395
  %v3397 = vpop.f32.mrf.mxu0
  %3398 = vmatprep.mubr.f32.mxu0 0.0
  %3399 = vmatmul.mubr.f32.gmra.mxu0 %v3035
  %v3400 = vpop.f32.mrf.mxu0
  %v3401 = vadd.f32 %v2875, %v3400
  %v3402 = vpop.f32.mrf.mxu0
  %3403 = vmatprep.mubr.f32.mxu0 0.0
  %3404 = vmatmul.mubr.f32.gmra.mxu0 %v3038
  %v3405 = vpop.f32.mrf.mxu0
  %v3406 = vadd.f32 %v2875, %v3405
  %v3407 = vpop.f32.mrf.mxu0
  %3408 = vmatprep.mubr.f32.mxu0 0.0
  %3409 = vmatmul.mubr.f32.gmra.mxu0 %v3041
  %v3410 = vpop.f32.mrf.mxu0
  %v3411 = vadd.f32 %v2875, %v3410
  %v3412 = vpop.f32.mrf.mxu0
  %3413 = vmatprep.mubr.f32.mxu0 0.0
  %3414 = vmatmul.mubr.f32.gmra.mxu0 %v3044
  %v3415 = vpop.f32.mrf.mxu0
  %v3416 = vadd.f32 %v2875, %v3415
  %v3417 = vpop.f32.mrf.mxu0
  %3418 = vmatprep.mubr.f32.mxu0 0.0
  %3419 = vmatmul.mubr.f32.gmra.mxu0 %v3047
  %v3420 = vpop.f32.mrf.mxu0
  %v3421 = vadd.f32 %v2875, %v3420
  %v3422 = vpop.f32.mrf.mxu0
  %3423 = vmatprep.mubr.f32.mxu0 0.0
  %3424 = vmatmul.mubr.f32.gmra.mxu0 %v3050
  %v3425 = vpop.f32.mrf.mxu0
  %v3426 = vadd.f32 %v2875, %v3425
  %v3427 = vpop.f32.mrf.mxu0
  %3428 = vmatprep.mubr.f32.mxu0 0.0
  %3429 = vmatmul.mubr.f32.gmra.mxu0 %v3053
  %v3430 = vpop.f32.mrf.mxu0
  %v3431 = vadd.f32 %v2875, %v3430
  %v3432 = vpop.f32.mrf.mxu0
  %3433 = vmatprep.mubr.f32.mxu0 0.0
  %3434 = vmatmul.mubr.f32.gmra.mxu0 %v3056
  %v3435 = vpop.f32.mrf.mxu0
  %v3436 = vadd.f32 %v2875, %v3435
  %v3437 = vpop.f32.mrf.mxu0
  %3438 = vmatprep.mubr.f32.mxu0 0.0
  %3439 = vmatmul.mubr.f32.gmra.mxu0 %v3059
  %v3440 = vpop.f32.mrf.mxu0
  %v3441 = vadd.f32 %v2875, %v3440
  %v3442 = vpop.f32.mrf.mxu0
  %3443 = vmatprep.mubr.f32.mxu0 0.0
  %3444 = vmatmul.mubr.f32.gmra.mxu0 %v3062
  %v3445 = vpop.f32.mrf.mxu0
  %v3446 = vadd.f32 %v2875, %v3445
  %v3447 = vpop.f32.mrf.mxu0
  %3448 = vmatprep.mubr.f32.mxu0 0.0
  %3449 = vmatmul.mubr.f32.gmra.mxu0 %v3065
  %v3450 = vpop.f32.mrf.mxu0
  %v3451 = vadd.f32 %v2875, %v3450
  %v3452 = vpop.f32.mrf.mxu0
  %3453 = vmatprep.mubr.f32.mxu0 0.0
  %3454 = vmatmul.mubr.f32.gmra.mxu0 %v3068
  %v3455 = vpop.f32.mrf.mxu0
  %v3456 = vadd.f32 %v2875, %v3455
  %v3457 = vpop.f32.mrf.mxu0
  %3458 = vdwg.mxu0
  %v3459 = vld [vmem:[%s3] sm:$0x1]
  %v3460 = vld [vmem:[%s4] sm:$0x1]
  %v3461 = vsel %vm2420, %v3141, 0.0
  %v3462 = vsel %vm2420, %v3146, 0.0
  %v3463 = vadd.f32 %v3461, %v3462
  %v3464 = vsel %vm2420, %v3151, 0.0
  %v3465 = vadd.f32 %v3463, %v3464
  %v3466 = vsel %vm2420, %v3156, 0.0
  %v3467 = vadd.f32 %v3465, %v3466
  %v3468 = vsel %vm2420, %v3161, 0.0
  %v3469 = vadd.f32 %v3467, %v3468
  %v3470 = vsel %vm2420, %v3166, 0.0
  %v3471 = vadd.f32 %v3469, %v3470
  %v3472 = vsel %vm2420, %v3171, 0.0
  %v3473 = vadd.f32 %v3471, %v3472
  %v3474 = vsel %vm2420, %v3176, 0.0
  %v3475 = vadd.f32 %v3473, %v3474
  %v3476 = vsel %vm2420, %v3181, 0.0
  %v3477 = vadd.f32 %v3475, %v3476
  %v3478 = vsel %vm2420, %v3186, 0.0
  %v3479 = vadd.f32 %v3477, %v3478
  %v3480 = vsel %vm2420, %v3191, 0.0
  %v3481 = vadd.f32 %v3479, %v3480
  %v3482 = vsel %vm2420, %v3196, 0.0
  %v3483 = vadd.f32 %v3481, %v3482
  %v3484 = vsel %vm2420, %v3201, 0.0
  %v3485 = vadd.f32 %v3483, %v3484
  %v3486 = vsel %vm2420, %v3206, 0.0
  %v3487 = vadd.f32 %v3485, %v3486
  %v3488 = vsel %vm2420, %v3211, 0.0
  %v3489 = vadd.f32 %v3487, %v3488
  %v3490 = vsel %vm2420, %v3216, 0.0
  %v3491 = vadd.f32 %v3489, %v3490
  %v3492 = vsel %vm2420, %v3221, 0.0
  %v3493 = vadd.f32 %v3491, %v3492
  %v3494 = vsel %vm2420, %v3226, 0.0
  %v3495 = vadd.f32 %v3493, %v3494
  %v3496 = vsel %vm2420, %v3231, 0.0
  %v3497 = vadd.f32 %v3495, %v3496
  %v3498 = vsel %vm2420, %v3236, 0.0
  %v3499 = vadd.f32 %v3497, %v3498
  %v3500 = vsel %vm2420, %v3241, 0.0
  %v3501 = vadd.f32 %v3499, %v3500
  %v3502 = vsel %vm2420, %v3246, 0.0
  %v3503 = vadd.f32 %v3501, %v3502
  %v3504 = vsel %vm2420, %v3251, 0.0
  %v3505 = vadd.f32 %v3503, %v3504
  %v3506 = vsel %vm2420, %v3256, 0.0
  %v3507 = vadd.f32 %v3505, %v3506
  %v3508 = vsel %vm2420, %v3261, 0.0
  %v3509 = vadd.f32 %v3507, %v3508
  %v3510 = vsel %vm2420, %v3266, 0.0
  %v3511 = vadd.f32 %v3509, %v3510
  %v3512 = vsel %vm2420, %v3271, 0.0
  %v3513 = vadd.f32 %v3511, %v3512
  %v3514 = vsel %vm2420, %v3276, 0.0
  %v3515 = vadd.f32 %v3513, %v3514
  %v3516 = vsel %vm2420, %v3281, 0.0
  %v3517 = vadd.f32 %v3515, %v3516
  %v3518 = vsel %vm2420, %v3286, 0.0
  %v3519 = vadd.f32 %v3517, %v3518
  %v3520 = vsel %vm2420, %v3291, 0.0
  %v3521 = vadd.f32 %v3519, %v3520
  %v3522 = vsel %vm2420, %v3296, 0.0
  %v3523 = vadd.f32 %v3521, %v3522
  %v3524 = vsel %vm2420, %v3301, 0.0
  %v3525 = vadd.f32 %v3523, %v3524
  %v3526 = vsel %vm2420, %v3306, 0.0
  %v3527 = vadd.f32 %v3525, %v3526
  %v3528 = vsel %vm2420, %v3311, 0.0
  %v3529 = vadd.f32 %v3527, %v3528
  %v3530 = vsel %vm2420, %v3316, 0.0
  %v3531 = vadd.f32 %v3529, %v3530
  %v3532 = vsel %vm2420, %v3321, 0.0
  %v3533 = vadd.f32 %v3531, %v3532
  %v3534 = vsel %vm2420, %v3326, 0.0
  %v3535 = vadd.f32 %v3533, %v3534
  %v3536 = vsel %vm2420, %v3331, 0.0
  %v3537 = vadd.f32 %v3535, %v3536
  %v3538 = vsel %vm2420, %v3336, 0.0
  %v3539 = vadd.f32 %v3537, %v3538
  %v3540 = vsel %vm2420, %v3341, 0.0
  %v3541 = vadd.f32 %v3539, %v3540
  %v3542 = vsel %vm2420, %v3346, 0.0
  %v3543 = vadd.f32 %v3541, %v3542
  %v3544 = vsel %vm2420, %v3351, 0.0
  %v3545 = vadd.f32 %v3543, %v3544
  %v3546 = vsel %vm2420, %v3356, 0.0
  %v3547 = vadd.f32 %v3545, %v3546
  %v3548 = vsel %vm2420, %v3361, 0.0
  %v3549 = vadd.f32 %v3547, %v3548
  %v3550 = vsel %vm2420, %v3366, 0.0
  %v3551 = vadd.f32 %v3549, %v3550
  %v3552 = vsel %vm2420, %v3371, 0.0
  %v3553 = vadd.f32 %v3551, %v3552
  %v3554 = vsel %vm2420, %v3376, 0.0
  %v3555 = vadd.f32 %v3553, %v3554
  %v3556 = vsel %vm2420, %v3381, 0.0
  %v3557 = vadd.f32 %v3555, %v3556
  %v3558 = vsel %vm2420, %v3386, 0.0
  %v3559 = vadd.f32 %v3557, %v3558
  %v3560 = vsel %vm2420, %v3391, 0.0
  %v3561 = vadd.f32 %v3559, %v3560
  %v3562 = vsel %vm2420, %v3396, 0.0
  %v3563 = vadd.f32 %v3561, %v3562
  %v3564 = vsel %vm2420, %v3401, 0.0
  %v3565 = vadd.f32 %v3563, %v3564
  %v3566 = vsel %vm2420, %v3406, 0.0
  %v3567 = vadd.f32 %v3565, %v3566
  %v3568 = vsel %vm2420, %v3411, 0.0
  %v3569 = vadd.f32 %v3567, %v3568
  %v3570 = vsel %vm2420, %v3416, 0.0
  %v3571 = vadd.f32 %v3569, %v3570
  %v3572 = vsel %vm2420, %v3421, 0.0
  %v3573 = vadd.f32 %v3571, %v3572
  %v3574 = vsel %vm2420, %v3426, 0.0
  %v3575 = vadd.f32 %v3573, %v3574
  %v3576 = vsel %vm2420, %v3431, 0.0
  %v3577 = vadd.f32 %v3575, %v3576
  %v3578 = vsel %vm2420, %v3436, 0.0
  %v3579 = vadd.f32 %v3577, %v3578
  %v3580 = vsel %vm2420, %v3441, 0.0
  %v3581 = vadd.f32 %v3579, %v3580
  %v3582 = vsel %vm2420, %v3446, 0.0
  %v3583 = vadd.f32 %v3581, %v3582
  %v3584 = vsel %vm2420, %v3451, 0.0
  %v3585 = vadd.f32 %v3583, %v3584
  %v3586 = vsel %vm2420, %v3456, 0.0
  %v3587 = vadd.f32 %v3585, %v3586
  %v3588 = vrot.slane %v3587, 4
  %v3589 = vadd.f32 %v3587, %v3588
  %v3590 = vrot.slane %v3589, 2
  %v3591 = vadd.f32 %v3589, %v3590
  %v3592 = vrot.slane %v3591, 1
  %v3593 = vadd.f32 %v3591, %v3592
  %v3594 = vrcp.pop 512.0
  %v3595 = vmul.f32 %v3593, %v3594
  %v3596 = vsub.f32 %v3141, %v3595
  %v3597 = vsub.f32 %v3146, %v3595
  %v3598 = vsub.f32 %v3151, %v3595
  %v3599 = vsub.f32 %v3156, %v3595
  %v3600 = vsub.f32 %v3161, %v3595
  %v3601 = vsub.f32 %v3166, %v3595
  %v3602 = vsub.f32 %v3171, %v3595
  %v3603 = vsub.f32 %v3176, %v3595
  %v3604 = vsub.f32 %v3181, %v3595
  %v3605 = vsub.f32 %v3186, %v3595
  %v3606 = vsub.f32 %v3191, %v3595
  %v3607 = vsub.f32 %v3196, %v3595
  %v3608 = vsub.f32 %v3201, %v3595
  %v3609 = vsub.f32 %v3206, %v3595
  %v3610 = vsub.f32 %v3211, %v3595
  %v3611 = vsub.f32 %v3216, %v3595
  %v3612 = vsub.f32 %v3221, %v3595
  %v3613 = vsub.f32 %v3226, %v3595
  %v3614 = vsub.f32 %v3231, %v3595
  %v3615 = vsub.f32 %v3236, %v3595
  %v3616 = vsub.f32 %v3241, %v3595
  %v3617 = vsub.f32 %v3246, %v3595
  %v3618 = vsub.f32 %v3251, %v3595
  %v3619 = vsub.f32 %v3256, %v3595
  %v3620 = vsub.f32 %v3261, %v3595
  %v3621 = vsub.f32 %v3266, %v3595
  %v3622 = vsub.f32 %v3271, %v3595
  %v3623 = vsub.f32 %v3276, %v3595
  %v3624 = vsub.f32 %v3281, %v3595
  %v3625 = vsub.f32 %v3286, %v3595
  %v3626 = vsub.f32 %v3291, %v3595
  %v3627 = vsub.f32 %v3296, %v3595
  %v3628 = vsub.f32 %v3301, %v3595
  %v3629 = vsub.f32 %v3306, %v3595
  %v3630 = vsub.f32 %v3311, %v3595
  %v3631 = vsub.f32 %v3316, %v3595
  %v3632 = vsub.f32 %v3321, %v3595
  %v3633 = vsub.f32 %v3326, %v3595
  %v3634 = vsub.f32 %v3331, %v3595
  %v3635 = vsub.f32 %v3336, %v3595
  %v3636 = vsub.f32 %v3341, %v3595
  %v3637 = vsub.f32 %v3346, %v3595
  %v3638 = vsub.f32 %v3351, %v3595
  %v3639 = vsub.f32 %v3356, %v3595
  %v3640 = vsub.f32 %v3361, %v3595
  %v3641 = vsub.f32 %v3366, %v3595
  %v3642 = vsub.f32 %v3371, %v3595
  %v3643 = vsub.f32 %v3376, %v3595
  %v3644 = vsub.f32 %v3381, %v3595
  %v3645 = vsub.f32 %v3386, %v3595
  %v3646 = vsub.f32 %v3391, %v3595
  %v3647 = vsub.f32 %v3396, %v3595
  %v3648 = vsub.f32 %v3401, %v3595
  %v3649 = vsub.f32 %v3406, %v3595
  %v3650 = vsub.f32 %v3411, %v3595
  %v3651 = vsub.f32 %v3416, %v3595
  %v3652 = vsub.f32 %v3421, %v3595
  %v3653 = vsub.f32 %v3426, %v3595
  %v3654 = vsub.f32 %v3431, %v3595
  %v3655 = vsub.f32 %v3436, %v3595
  %v3656 = vsub.f32 %v3441, %v3595
  %v3657 = vsub.f32 %v3446, %v3595
  %v3658 = vsub.f32 %v3451, %v3595
  %v3659 = vsub.f32 %v3456, %v3595
  %v3660 = vmul.f32 %v3596, %v3596
  %v3661 = vmul.f32 %v3597, %v3597
  %v3662 = vmul.f32 %v3598, %v3598
  %v3663 = vmul.f32 %v3599, %v3599
  %v3664 = vmul.f32 %v3600, %v3600
  %v3665 = vmul.f32 %v3601, %v3601
  %v3666 = vmul.f32 %v3602, %v3602
  %v3667 = vmul.f32 %v3603, %v3603
  %v3668 = vmul.f32 %v3604, %v3604
  %v3669 = vmul.f32 %v3605, %v3605
  %v3670 = vmul.f32 %v3606, %v3606
  %v3671 = vmul.f32 %v3607, %v3607
  %v3672 = vmul.f32 %v3608, %v3608
  %v3673 = vmul.f32 %v3609, %v3609
  %v3674 = vmul.f32 %v3610, %v3610
  %v3675 = vmul.f32 %v3611, %v3611
  %v3676 = vmul.f32 %v3612, %v3612
  %v3677 = vmul.f32 %v3613, %v3613
  %v3678 = vmul.f32 %v3614, %v3614
  %v3679 = vmul.f32 %v3615, %v3615
  %v3680 = vmul.f32 %v3616, %v3616
  %v3681 = vmul.f32 %v3617, %v3617
  %v3682 = vmul.f32 %v3618, %v3618
  %v3683 = vmul.f32 %v3619, %v3619
  %v3684 = vmul.f32 %v3620, %v3620
  %v3685 = vmul.f32 %v3621, %v3621
  %v3686 = vmul.f32 %v3622, %v3622
  %v3687 = vmul.f32 %v3623, %v3623
  %v3688 = vmul.f32 %v3624, %v3624
  %v3689 = vmul.f32 %v3625, %v3625
  %v3690 = vmul.f32 %v3626, %v3626
  %v3691 = vmul.f32 %v3627, %v3627
  %v3692 = vmul.f32 %v3628, %v3628
  %v3693 = vmul.f32 %v3629, %v3629
  %v3694 = vmul.f32 %v3630, %v3630
  %v3695 = vmul.f32 %v3631, %v3631
  %v3696 = vmul.f32 %v3632, %v3632
  %v3697 = vmul.f32 %v3633, %v3633
  %v3698 = vmul.f32 %v3634, %v3634
  %v3699 = vmul.f32 %v3635, %v3635
  %v3700 = vmul.f32 %v3636, %v3636
  %v3701 = vmul.f32 %v3637, %v3637
  %v3702 = vmul.f32 %v3638, %v3638
  %v3703 = vmul.f32 %v3639, %v3639
  %v3704 = vmul.f32 %v3640, %v3640
  %v3705 = vmul.f32 %v3641, %v3641
  %v3706 = vmul.f32 %v3642, %v3642
  %v3707 = vmul.f32 %v3643, %v3643
  %v3708 = vmul.f32 %v3644, %v3644
  %v3709 = vmul.f32 %v3645, %v3645
  %v3710 = vmul.f32 %v3646, %v3646
  %v3711 = vmul.f32 %v3647, %v3647
  %v3712 = vmul.f32 %v3648, %v3648
  %v3713 = vmul.f32 %v3649, %v3649
  %v3714 = vmul.f32 %v3650, %v3650
  %v3715 = vmul.f32 %v3651, %v3651
  %v3716 = vmul.f32 %v3652, %v3652
  %v3717 = vmul.f32 %v3653, %v3653
  %v3718 = vmul.f32 %v3654, %v3654
  %v3719 = vmul.f32 %v3655, %v3655
  %v3720 = vmul.f32 %v3656, %v3656
  %v3721 = vmul.f32 %v3657, %v3657
  %v3722 = vmul.f32 %v3658, %v3658
  %v3723 = vmul.f32 %v3659, %v3659
  %v3724 = vsel %vm2420, %v3660, 0.0
  %v3725 = vsel %vm2420, %v3661, 0.0
  %v3726 = vadd.f32 %v3724, %v3725
  %v3727 = vsel %vm2420, %v3662, 0.0
  %v3728 = vadd.f32 %v3726, %v3727
  %v3729 = vsel %vm2420, %v3663, 0.0
  %v3730 = vadd.f32 %v3728, %v3729
  %v3731 = vsel %vm2420, %v3664, 0.0
  %v3732 = vadd.f32 %v3730, %v3731
  %v3733 = vsel %vm2420, %v3665, 0.0
  %v3734 = vadd.f32 %v3732, %v3733
  %v3735 = vsel %vm2420, %v3666, 0.0
  %v3736 = vadd.f32 %v3734, %v3735
  %v3737 = vsel %vm2420, %v3667, 0.0
  %v3738 = vadd.f32 %v3736, %v3737
  %v3739 = vsel %vm2420, %v3668, 0.0
  %v3740 = vadd.f32 %v3738, %v3739
  %v3741 = vsel %vm2420, %v3669, 0.0
  %v3742 = vadd.f32 %v3740, %v3741
  %v3743 = vsel %vm2420, %v3670, 0.0
  %v3744 = vadd.f32 %v3742, %v3743
  %v3745 = vsel %vm2420, %v3671, 0.0
  %v3746 = vadd.f32 %v3744, %v3745
  %v3747 = vsel %vm2420, %v3672, 0.0
  %v3748 = vadd.f32 %v3746, %v3747
  %v3749 = vsel %vm2420, %v3673, 0.0
  %v3750 = vadd.f32 %v3748, %v3749
  %v3751 = vsel %vm2420, %v3674, 0.0
  %v3752 = vadd.f32 %v3750, %v3751
  %v3753 = vsel %vm2420, %v3675, 0.0
  %v3754 = vadd.f32 %v3752, %v3753
  %v3755 = vsel %vm2420, %v3676, 0.0
  %v3756 = vadd.f32 %v3754, %v3755
  %v3757 = vsel %vm2420, %v3677, 0.0
  %v3758 = vadd.f32 %v3756, %v3757
  %v3759 = vsel %vm2420, %v3678, 0.0
  %v3760 = vadd.f32 %v3758, %v3759
  %v3761 = vsel %vm2420, %v3679, 0.0
  %v3762 = vadd.f32 %v3760, %v3761
  %v3763 = vsel %vm2420, %v3680, 0.0
  %v3764 = vadd.f32 %v3762, %v3763
  %v3765 = vsel %vm2420, %v3681, 0.0
  %v3766 = vadd.f32 %v3764, %v3765
  %v3767 = vsel %vm2420, %v3682, 0.0
  %v3768 = vadd.f32 %v3766, %v3767
  %v3769 = vsel %vm2420, %v3683, 0.0
  %v3770 = vadd.f32 %v3768, %v3769
  %v3771 = vsel %vm2420, %v3684, 0.0
  %v3772 = vadd.f32 %v3770, %v3771
  %v3773 = vsel %vm2420, %v3685, 0.0
  %v3774 = vadd.f32 %v3772, %v3773
  %v3775 = vsel %vm2420, %v3686, 0.0
  %v3776 = vadd.f32 %v3774, %v3775
  %v3777 = vsel %vm2420, %v3687, 0.0
  %v3778 = vadd.f32 %v3776, %v3777
  %v3779 = vsel %vm2420, %v3688, 0.0
  %v3780 = vadd.f32 %v3778, %v3779
  %v3781 = vsel %vm2420, %v3689, 0.0
  %v3782 = vadd.f32 %v3780, %v3781
  %v3783 = vsel %vm2420, %v3690, 0.0
  %v3784 = vadd.f32 %v3782, %v3783
  %v3785 = vsel %vm2420, %v3691, 0.0
  %v3786 = vadd.f32 %v3784, %v3785
  %v3787 = vsel %vm2420, %v3692, 0.0
  %v3788 = vadd.f32 %v3786, %v3787
  %v3789 = vsel %vm2420, %v3693, 0.0
  %v3790 = vadd.f32 %v3788, %v3789
  %v3791 = vsel %vm2420, %v3694, 0.0
  %v3792 = vadd.f32 %v3790, %v3791
  %v3793 = vsel %vm2420, %v3695, 0.0
  %v3794 = vadd.f32 %v3792, %v3793
  %v3795 = vsel %vm2420, %v3696, 0.0
  %v3796 = vadd.f32 %v3794, %v3795
  %v3797 = vsel %vm2420, %v3697, 0.0
  %v3798 = vadd.f32 %v3796, %v3797
  %v3799 = vsel %vm2420, %v3698, 0.0
  %v3800 = vadd.f32 %v3798, %v3799
  %v3801 = vsel %vm2420, %v3699, 0.0
  %v3802 = vadd.f32 %v3800, %v3801
  %v3803 = vsel %vm2420, %v3700, 0.0
  %v3804 = vadd.f32 %v3802, %v3803
  %v3805 = vsel %vm2420, %v3701, 0.0
  %v3806 = vadd.f32 %v3804, %v3805
  %v3807 = vsel %vm2420, %v3702, 0.0
  %v3808 = vadd.f32 %v3806, %v3807
  %v3809 = vsel %vm2420, %v3703, 0.0
  %v3810 = vadd.f32 %v3808, %v3809
  %v3811 = vsel %vm2420, %v3704, 0.0
  %v3812 = vadd.f32 %v3810, %v3811
  %v3813 = vsel %vm2420, %v3705, 0.0
  %v3814 = vadd.f32 %v3812, %v3813
  %v3815 = vsel %vm2420, %v3706, 0.0
  %v3816 = vadd.f32 %v3814, %v3815
  %v3817 = vsel %vm2420, %v3707, 0.0
  %v3818 = vadd.f32 %v3816, %v3817
  %v3819 = vsel %vm2420, %v3708, 0.0
  %v3820 = vadd.f32 %v3818, %v3819
  %v3821 = vsel %vm2420, %v3709, 0.0
  %v3822 = vadd.f32 %v3820, %v3821
  %v3823 = vsel %vm2420, %v3710, 0.0
  %v3824 = vadd.f32 %v3822, %v3823
  %v3825 = vsel %vm2420, %v3711, 0.0
  %v3826 = vadd.f32 %v3824, %v3825
  %v3827 = vsel %vm2420, %v3712, 0.0
  %v3828 = vadd.f32 %v3826, %v3827
  %v3829 = vsel %vm2420, %v3713, 0.0
  %v3830 = vadd.f32 %v3828, %v3829
  %v3831 = vsel %vm2420, %v3714, 0.0
  %v3832 = vadd.f32 %v3830, %v3831
  %v3833 = vsel %vm2420, %v3715, 0.0
  %v3834 = vadd.f32 %v3832, %v3833
  %v3835 = vsel %vm2420, %v3716, 0.0
  %v3836 = vadd.f32 %v3834, %v3835
  %v3837 = vsel %vm2420, %v3717, 0.0
  %v3838 = vadd.f32 %v3836, %v3837
  %v3839 = vsel %vm2420, %v3718, 0.0
  %v3840 = vadd.f32 %v3838, %v3839
  %v3841 = vsel %vm2420, %v3719, 0.0
  %v3842 = vadd.f32 %v3840, %v3841
  %v3843 = vsel %vm2420, %v3720, 0.0
  %v3844 = vadd.f32 %v3842, %v3843
  %v3845 = vsel %vm2420, %v3721, 0.0
  %v3846 = vadd.f32 %v3844, %v3845
  %v3847 = vsel %vm2420, %v3722, 0.0
  %v3848 = vadd.f32 %v3846, %v3847
  %v3849 = vsel %vm2420, %v3723, 0.0
  %v3850 = vadd.f32 %v3848, %v3849
  %v3851 = vrot.slane %v3850, 4
  %v3852 = vadd.f32 %v3850, %v3851
  %v3853 = vrot.slane %v3852, 2
  %v3854 = vadd.f32 %v3852, %v3853
  %v3855 = vrot.slane %v3854, 1
  %v3856 = vadd.f32 %v3854, %v3855
  %v3857 = vmul.f32 %v3856, %v3594
  %v3858 = vadd.f32 %v3857, 1e-05
  %v3859 = vrsqrt.pop %v3858
  %v3860 = vmul.f32 %v3596, %v3859
  %v3861 = vmul.f32 %v3597, %v3859
  %v3862 = vmul.f32 %v3598, %v3859
  %v3863 = vmul.f32 %v3599, %v3859
  %v3864 = vmul.f32 %v3600, %v3859
  %v3865 = vmul.f32 %v3601, %v3859
  %v3866 = vmul.f32 %v3602, %v3859
  %v3867 = vmul.f32 %v3603, %v3859
  %v3868 = vmul.f32 %v3604, %v3859
  %v3869 = vmul.f32 %v3605, %v3859
  %v3870 = vmul.f32 %v3606, %v3859
  %v3871 = vmul.f32 %v3607, %v3859
  %v3872 = vmul.f32 %v3608, %v3859
  %v3873 = vmul.f32 %v3609, %v3859
  %v3874 = vmul.f32 %v3610, %v3859
  %v3875 = vmul.f32 %v3611, %v3859
  %v3876 = vmul.f32 %v3612, %v3859
  %v3877 = vmul.f32 %v3613, %v3859
  %v3878 = vmul.f32 %v3614, %v3859
  %v3879 = vmul.f32 %v3615, %v3859
  %v3880 = vmul.f32 %v3616, %v3859
  %v3881 = vmul.f32 %v3617, %v3859
  %v3882 = vmul.f32 %v3618, %v3859
  %v3883 = vmul.f32 %v3619, %v3859
  %v3884 = vmul.f32 %v3620, %v3859
  %v3885 = vmul.f32 %v3621, %v3859
  %v3886 = vmul.f32 %v3622, %v3859
  %v3887 = vmul.f32 %v3623, %v3859
  %v3888 = vmul.f32 %v3624, %v3859
  %v3889 = vmul.f32 %v3625, %v3859
  %v3890 = vmul.f32 %v3626, %v3859
  %v3891 = vmul.f32 %v3627, %v3859
  %v3892 = vmul.f32 %v3628, %v3859
  %v3893 = vmul.f32 %v3629, %v3859
  %v3894 = vmul.f32 %v3630, %v3859
  %v3895 = vmul.f32 %v3631, %v3859
  %v3896 = vmul.f32 %v3632, %v3859
  %v3897 = vmul.f32 %v3633, %v3859
  %v3898 = vmul.f32 %v3634, %v3859
  %v3899 = vmul.f32 %v3635, %v3859
  %v3900 = vmul.f32 %v3636, %v3859
  %v3901 = vmul.f32 %v3637, %v3859
  %v3902 = vmul.f32 %v3638, %v3859
  %v3903 = vmul.f32 %v3639, %v3859
  %v3904 = vmul.f32 %v3640, %v3859
  %v3905 = vmul.f32 %v3641, %v3859
  %v3906 = vmul.f32 %v3642, %v3859
  %v3907 = vmul.f32 %v3643, %v3859
  %v3908 = vmul.f32 %v3644, %v3859
  %v3909 = vmul.f32 %v3645, %v3859
  %v3910 = vmul.f32 %v3646, %v3859
  %v3911 = vmul.f32 %v3647, %v3859
  %v3912 = vmul.f32 %v3648, %v3859
  %v3913 = vmul.f32 %v3649, %v3859
  %v3914 = vmul.f32 %v3650, %v3859
  %v3915 = vmul.f32 %v3651, %v3859
  %v3916 = vmul.f32 %v3652, %v3859
  %v3917 = vmul.f32 %v3653, %v3859
  %v3918 = vmul.f32 %v3654, %v3859
  %v3919 = vmul.f32 %v3655, %v3859
  %v3920 = vmul.f32 %v3656, %v3859
  %v3921 = vmul.f32 %v3657, %v3859
  %v3922 = vmul.f32 %v3658, %v3859
  %v3923 = vmul.f32 %v3659, %v3859
  %v3925 = vlaneseq
  %v3926 = vshrl.u32 %v3925, 7
  %v3927 = vsub.s32 0, %v3926
  %v3928 = vrot.slane %v3459, %v3927
  %v3930 = vmul.f32 %v3860, %v3928
  %v3931 = vmul.f32 %v3861, %v3928
  %v3932 = vmul.f32 %v3862, %v3928
  %v3933 = vmul.f32 %v3863, %v3928
  %v3934 = vmul.f32 %v3864, %v3928
  %v3935 = vmul.f32 %v3865, %v3928
  %v3936 = vmul.f32 %v3866, %v3928
  %v3937 = vmul.f32 %v3867, %v3928
  %v3938 = vmul.f32 %v3868, %v3928
  %v3939 = vmul.f32 %v3869, %v3928
  %v3940 = vmul.f32 %v3870, %v3928
  %v3941 = vmul.f32 %v3871, %v3928
  %v3942 = vmul.f32 %v3872, %v3928
  %v3943 = vmul.f32 %v3873, %v3928
  %v3944 = vmul.f32 %v3874, %v3928
  %v3945 = vmul.f32 %v3875, %v3928
  %v3946 = vmul.f32 %v3876, %v3928
  %v3947 = vmul.f32 %v3877, %v3928
  %v3948 = vmul.f32 %v3878, %v3928
  %v3949 = vmul.f32 %v3879, %v3928
  %v3950 = vmul.f32 %v3880, %v3928
  %v3951 = vmul.f32 %v3881, %v3928
  %v3952 = vmul.f32 %v3882, %v3928
  %v3953 = vmul.f32 %v3883, %v3928
  %v3954 = vmul.f32 %v3884, %v3928
  %v3955 = vmul.f32 %v3885, %v3928
  %v3956 = vmul.f32 %v3886, %v3928
  %v3957 = vmul.f32 %v3887, %v3928
  %v3958 = vmul.f32 %v3888, %v3928
  %v3959 = vmul.f32 %v3889, %v3928
  %v3960 = vmul.f32 %v3890, %v3928
  %v3961 = vmul.f32 %v3891, %v3928
  %v3962 = vmul.f32 %v3892, %v3928
  %v3963 = vmul.f32 %v3893, %v3928
  %v3964 = vmul.f32 %v3894, %v3928
  %v3965 = vmul.f32 %v3895, %v3928
  %v3966 = vmul.f32 %v3896, %v3928
  %v3967 = vmul.f32 %v3897, %v3928
  %v3968 = vmul.f32 %v3898, %v3928
  %v3969 = vmul.f32 %v3899, %v3928
  %v3970 = vmul.f32 %v3900, %v3928
  %v3971 = vmul.f32 %v3901, %v3928
  %v3972 = vmul.f32 %v3902, %v3928
  %v3973 = vmul.f32 %v3903, %v3928
  %v3974 = vmul.f32 %v3904, %v3928
  %v3975 = vmul.f32 %v3905, %v3928
  %v3976 = vmul.f32 %v3906, %v3928
  %v3977 = vmul.f32 %v3907, %v3928
  %v3978 = vmul.f32 %v3908, %v3928
  %v3979 = vmul.f32 %v3909, %v3928
  %v3980 = vmul.f32 %v3910, %v3928
  %v3981 = vmul.f32 %v3911, %v3928
  %v3982 = vmul.f32 %v3912, %v3928
  %v3983 = vmul.f32 %v3913, %v3928
  %v3984 = vmul.f32 %v3914, %v3928
  %v3985 = vmul.f32 %v3915, %v3928
  %v3986 = vmul.f32 %v3916, %v3928
  %v3987 = vmul.f32 %v3917, %v3928
  %v3988 = vmul.f32 %v3918, %v3928
  %v3989 = vmul.f32 %v3919, %v3928
  %v3990 = vmul.f32 %v3920, %v3928
  %v3991 = vmul.f32 %v3921, %v3928
  %v3992 = vmul.f32 %v3922, %v3928
  %v3993 = vmul.f32 %v3923, %v3928
  %v3995 = vlaneseq
  %v3996 = vshrl.u32 %v3995, 7
  %v3997 = vsub.s32 0, %v3996
  %v3998 = vrot.slane %v3460, %v3997
  %v4000 = vadd.f32 %v3930, %v3998
  %v4001 = vadd.f32 %v3931, %v3998
  %v4002 = vadd.f32 %v3932, %v3998
  %v4003 = vadd.f32 %v3933, %v3998
  %v4004 = vadd.f32 %v3934, %v3998
  %v4005 = vadd.f32 %v3935, %v3998
  %v4006 = vadd.f32 %v3936, %v3998
  %v4007 = vadd.f32 %v3937, %v3998
  %v4008 = vadd.f32 %v3938, %v3998
  %v4009 = vadd.f32 %v3939, %v3998
  %v4010 = vadd.f32 %v3940, %v3998
  %v4011 = vadd.f32 %v3941, %v3998
  %v4012 = vadd.f32 %v3942, %v3998
  %v4013 = vadd.f32 %v3943, %v3998
  %v4014 = vadd.f32 %v3944, %v3998
  %v4015 = vadd.f32 %v3945, %v3998
  %v4016 = vadd.f32 %v3946, %v3998
  %v4017 = vadd.f32 %v3947, %v3998
  %v4018 = vadd.f32 %v3948, %v3998
  %v4019 = vadd.f32 %v3949, %v3998
  %v4020 = vadd.f32 %v3950, %v3998
  %v4021 = vadd.f32 %v3951, %v3998
  %v4022 = vadd.f32 %v3952, %v3998
  %v4023 = vadd.f32 %v3953, %v3998
  %v4024 = vadd.f32 %v3954, %v3998
  %v4025 = vadd.f32 %v3955, %v3998
  %v4026 = vadd.f32 %v3956, %v3998
  %v4027 = vadd.f32 %v3957, %v3998
  %v4028 = vadd.f32 %v3958, %v3998
  %v4029 = vadd.f32 %v3959, %v3998
  %v4030 = vadd.f32 %v3960, %v3998
  %v4031 = vadd.f32 %v3961, %v3998
  %v4032 = vadd.f32 %v3962, %v3998
  %v4033 = vadd.f32 %v3963, %v3998
  %v4034 = vadd.f32 %v3964, %v3998
  %v4035 = vadd.f32 %v3965, %v3998
  %v4036 = vadd.f32 %v3966, %v3998
  %v4037 = vadd.f32 %v3967, %v3998
  %v4038 = vadd.f32 %v3968, %v3998
  %v4039 = vadd.f32 %v3969, %v3998
  %v4040 = vadd.f32 %v3970, %v3998
  %v4041 = vadd.f32 %v3971, %v3998
  %v4042 = vadd.f32 %v3972, %v3998
  %v4043 = vadd.f32 %v3973, %v3998
  %v4044 = vadd.f32 %v3974, %v3998
  %v4045 = vadd.f32 %v3975, %v3998
  %v4046 = vadd.f32 %v3976, %v3998
  %v4047 = vadd.f32 %v3977, %v3998
  %v4048 = vadd.f32 %v3978, %v3998
  %v4049 = vadd.f32 %v3979, %v3998
  %v4050 = vadd.f32 %v3980, %v3998
  %v4051 = vadd.f32 %v3981, %v3998
  %v4052 = vadd.f32 %v3982, %v3998
  %v4053 = vadd.f32 %v3983, %v3998
  %v4054 = vadd.f32 %v3984, %v3998
  %v4055 = vadd.f32 %v3985, %v3998
  %v4056 = vadd.f32 %v3986, %v3998
  %v4057 = vadd.f32 %v3987, %v3998
  %v4058 = vadd.f32 %v3988, %v3998
  %v4059 = vadd.f32 %v3989, %v3998
  %v4060 = vadd.f32 %v3990, %v3998
  %v4061 = vadd.f32 %v3991, %v3998
  %v4062 = vadd.f32 %v3992, %v3998
  %v4063 = vadd.f32 %v3993, %v3998
  %v4128 = vrot.slane %v4000, 7
  %v4129 = vrot.slane %v4001, 7
  %v4130 = vsel %vm172, %v4128, %v4129
  %v4131 = vrot.slane %v4002, 7
  %v4132 = vrot.slane %v4003, 7
  %v4133 = vsel %vm172, %v4131, %v4132
  %v4134 = vrot.slane %v4004, 7
  %v4135 = vrot.slane %v4005, 7
  %v4136 = vsel %vm172, %v4134, %v4135
  %v4137 = vrot.slane %v4006, 7
  %v4138 = vrot.slane %v4007, 7
  %v4139 = vsel %vm172, %v4137, %v4138
  %v4140 = vrot.slane %v4008, 7
  %v4141 = vrot.slane %v4009, 7
  %v4142 = vsel %vm172, %v4140, %v4141
  %v4143 = vrot.slane %v4010, 7
  %v4144 = vrot.slane %v4011, 7
  %v4145 = vsel %vm172, %v4143, %v4144
  %v4146 = vrot.slane %v4012, 7
  %v4147 = vrot.slane %v4013, 7
  %v4148 = vsel %vm172, %v4146, %v4147
  %v4149 = vrot.slane %v4014, 7
  %v4150 = vrot.slane %v4015, 7
  %v4151 = vsel %vm172, %v4149, %v4150
  %v4152 = vrot.slane %v4016, 7
  %v4153 = vrot.slane %v4017, 7
  %v4154 = vsel %vm172, %v4152, %v4153
  %v4155 = vrot.slane %v4018, 7
  %v4156 = vrot.slane %v4019, 7
  %v4157 = vsel %vm172, %v4155, %v4156
  %v4158 = vrot.slane %v4020, 7
  %v4159 = vrot.slane %v4021, 7
  %v4160 = vsel %vm172, %v4158, %v4159
  %v4161 = vrot.slane %v4022, 7
  %v4162 = vrot.slane %v4023, 7
  %v4163 = vsel %vm172, %v4161, %v4162
  %v4164 = vrot.slane %v4024, 7
  %v4165 = vrot.slane %v4025, 7
  %v4166 = vsel %vm172, %v4164, %v4165
  %v4167 = vrot.slane %v4026, 7
  %v4168 = vrot.slane %v4027, 7
  %v4169 = vsel %vm172, %v4167, %v4168
  %v4170 = vrot.slane %v4028, 7
  %v4171 = vrot.slane %v4029, 7
  %v4172 = vsel %vm172, %v4170, %v4171
  %v4173 = vrot.slane %v4030, 7
  %v4174 = vrot.slane %v4031, 7
  %v4175 = vsel %vm172, %v4173, %v4174
  %v4176 = vrot.slane %v4032, 7
  %v4177 = vrot.slane %v4033, 7
  %v4178 = vsel %vm172, %v4176, %v4177
  %v4179 = vrot.slane %v4034, 7
  %v4180 = vrot.slane %v4035, 7
  %v4181 = vsel %vm172, %v4179, %v4180
  %v4182 = vrot.slane %v4036, 7
  %v4183 = vrot.slane %v4037, 7
  %v4184 = vsel %vm172, %v4182, %v4183
  %v4185 = vrot.slane %v4038, 7
  %v4186 = vrot.slane %v4039, 7
  %v4187 = vsel %vm172, %v4185, %v4186
  %v4188 = vrot.slane %v4040, 7
  %v4189 = vrot.slane %v4041, 7
  %v4190 = vsel %vm172, %v4188, %v4189
  %v4191 = vrot.slane %v4042, 7
  %v4192 = vrot.slane %v4043, 7
  %v4193 = vsel %vm172, %v4191, %v4192
  %v4194 = vrot.slane %v4044, 7
  %v4195 = vrot.slane %v4045, 7
  %v4196 = vsel %vm172, %v4194, %v4195
  %v4197 = vrot.slane %v4046, 7
  %v4198 = vrot.slane %v4047, 7
  %v4199 = vsel %vm172, %v4197, %v4198
  %v4200 = vrot.slane %v4048, 7
  %v4201 = vrot.slane %v4049, 7
  %v4202 = vsel %vm172, %v4200, %v4201
  %v4203 = vrot.slane %v4050, 7
  %v4204 = vrot.slane %v4051, 7
  %v4205 = vsel %vm172, %v4203, %v4204
  %v4206 = vrot.slane %v4052, 7
  %v4207 = vrot.slane %v4053, 7
  %v4208 = vsel %vm172, %v4206, %v4207
  %v4209 = vrot.slane %v4054, 7
  %v4210 = vrot.slane %v4055, 7
  %v4211 = vsel %vm172, %v4209, %v4210
  %v4212 = vrot.slane %v4056, 7
  %v4213 = vrot.slane %v4057, 7
  %v4214 = vsel %vm172, %v4212, %v4213
  %v4215 = vrot.slane %v4058, 7
  %v4216 = vrot.slane %v4059, 7
  %v4217 = vsel %vm172, %v4215, %v4216
  %v4218 = vrot.slane %v4060, 7
  %v4219 = vrot.slane %v4061, 7
  %v4220 = vsel %vm172, %v4218, %v4219
  %v4221 = vrot.slane %v4062, 7
  %v4222 = vrot.slane %v4063, 7
  %v4223 = vsel %vm172, %v4221, %v4222
  %v4318 = vrot.slane %v4001, 6
  %v4319 = vrot.slane %v4003, 6
  %v4320 = vrot.slane %v4005, 6
  %v4321 = vrot.slane %v4007, 6
  %v4322 = vrot.slane %v4009, 6
  %v4323 = vrot.slane %v4011, 6
  %v4324 = vrot.slane %v4013, 6
  %v4325 = vrot.slane %v4015, 6
  %v4326 = vrot.slane %v4017, 6
  %v4327 = vrot.slane %v4019, 6
  %v4328 = vrot.slane %v4021, 6
  %v4329 = vrot.slane %v4023, 6
  %v4330 = vrot.slane %v4025, 6
  %v4331 = vrot.slane %v4027, 6
  %v4332 = vrot.slane %v4029, 6
  %v4333 = vrot.slane %v4031, 6
  %v4334 = vrot.slane %v4033, 6
  %v4335 = vrot.slane %v4035, 6
  %v4336 = vrot.slane %v4037, 6
  %v4337 = vrot.slane %v4039, 6
  %v4338 = vrot.slane %v4041, 6
  %v4339 = vrot.slane %v4043, 6
  %v4340 = vrot.slane %v4045, 6
  %v4341 = vrot.slane %v4047, 6
  %v4342 = vrot.slane %v4049, 6
  %v4343 = vrot.slane %v4051, 6
  %v4344 = vrot.slane %v4053, 6
  %v4345 = vrot.slane %v4055, 6
  %v4346 = vrot.slane %v4057, 6
  %v4347 = vrot.slane %v4059, 6
  %v4348 = vrot.slane %v4061, 6
  %v4349 = vrot.slane %v4063, 6
  %v4382 = vsel %vm172, %v4000, %v4128
  %v4383 = vsel %vm172, %v4002, %v4131
  %v4384 = vsel %vm172, %v4004, %v4134
  %v4385 = vsel %vm172, %v4006, %v4137
  %v4386 = vsel %vm172, %v4008, %v4140
  %v4387 = vsel %vm172, %v4010, %v4143
  %v4388 = vsel %vm172, %v4012, %v4146
  %v4389 = vsel %vm172, %v4014, %v4149
  %v4390 = vsel %vm172, %v4016, %v4152
  %v4391 = vsel %vm172, %v4018, %v4155
  %v4392 = vsel %vm172, %v4020, %v4158
  %v4393 = vsel %vm172, %v4022, %v4161
  %v4394 = vsel %vm172, %v4024, %v4164
  %v4395 = vsel %vm172, %v4026, %v4167
  %v4396 = vsel %vm172, %v4028, %v4170
  %v4397 = vsel %vm172, %v4030, %v4173
  %v4398 = vsel %vm172, %v4032, %v4176
  %v4399 = vsel %vm172, %v4034, %v4179
  %v4400 = vsel %vm172, %v4036, %v4182
  %v4401 = vsel %vm172, %v4038, %v4185
  %v4402 = vsel %vm172, %v4040, %v4188
  %v4403 = vsel %vm172, %v4042, %v4191
  %v4404 = vsel %vm172, %v4044, %v4194
  %v4405 = vsel %vm172, %v4046, %v4197
  %v4406 = vsel %vm172, %v4048, %v4200
  %v4407 = vsel %vm172, %v4050, %v4203
  %v4408 = vsel %vm172, %v4052, %v4206
  %v4409 = vsel %vm172, %v4054, %v4209
  %v4410 = vsel %vm172, %v4056, %v4212
  %v4411 = vsel %vm172, %v4058, %v4215
  %v4412 = vsel %vm172, %v4060, %v4218
  %v4413 = vsel %vm172, %v4062, %v4221
  %v4414 = vsel %vm172, %v4129, %v4318
  %v4415 = vsel %vm172, %v4132, %v4319
  %v4416 = vsel %vm172, %v4135, %v4320
  %v4417 = vsel %vm172, %v4138, %v4321
  %v4418 = vsel %vm172, %v4141, %v4322
  %v4419 = vsel %vm172, %v4144, %v4323
  %v4420 = vsel %vm172, %v4147, %v4324
  %v4421 = vsel %vm172, %v4150, %v4325
  %v4422 = vsel %vm172, %v4153, %v4326
  %v4423 = vsel %vm172, %v4156, %v4327
  %v4424 = vsel %vm172, %v4159, %v4328
  %v4425 = vsel %vm172, %v4162, %v4329
  %v4426 = vsel %vm172, %v4165, %v4330
  %v4427 = vsel %vm172, %v4168, %v4331
  %v4428 = vsel %vm172, %v4171, %v4332
  %v4429 = vsel %vm172, %v4174, %v4333
  %v4430 = vsel %vm172, %v4177, %v4334
  %v4431 = vsel %vm172, %v4180, %v4335
  %v4432 = vsel %vm172, %v4183, %v4336
  %v4433 = vsel %vm172, %v4186, %v4337
  %v4434 = vsel %vm172, %v4189, %v4338
  %v4435 = vsel %vm172, %v4192, %v4339
  %v4436 = vsel %vm172, %v4195, %v4340
  %v4437 = vsel %vm172, %v4198, %v4341
  %v4438 = vsel %vm172, %v4201, %v4342
  %v4439 = vsel %vm172, %v4204, %v4343
  %v4440 = vsel %vm172, %v4207, %v4344
  %v4441 = vsel %vm172, %v4210, %v4345
  %v4442 = vsel %vm172, %v4213, %v4346
  %v4443 = vsel %vm172, %v4216, %v4347
  %v4444 = vsel %vm172, %v4219, %v4348
  %v4445 = vsel %vm172, %v4222, %v4349
  %v4446 = vld [vmem:[%s5] sm:$0xff]
  %v4447 = vld [vmem:[%s5 + $0x8] sm:$0xff]
  %v4448 = vld [vmem:[%s5 + $0x10] sm:$0xff]
  %v4449 = vld [vmem:[%s5 + $0x18] sm:$0xff]
  %v4450 = vld [vmem:[%s5 + $0x20] sm:$0xff]
  %v4451 = vld [vmem:[%s5 + $0x28] sm:$0xff]
  %v4452 = vld [vmem:[%s5 + $0x30] sm:$0xff]
  %v4453 = vld [vmem:[%s5 + $0x38] sm:$0xff]
  %v4454 = vld [vmem:[%s5 + $0x40] sm:$0xff]
  %v4455 = vld [vmem:[%s6] sm:$0x1]
  %v4516 = vrot.slane %v4382, 1
  %v4517 = vrot.slane %v4130, 1
  %v4518 = vsel %vm557, %v4516, %v4517
  %v4519 = vrot.slane %v4414, 1
  %v4520 = vsel %vm557, %v4517, %v4519
  %v4521 = vrot.slane %v4383, 1
  %v4522 = vrot.slane %v4133, 1
  %v4523 = vsel %vm557, %v4521, %v4522
  %v4524 = vrot.slane %v4415, 1
  %v4525 = vsel %vm557, %v4522, %v4524
  %v4526 = vrot.slane %v4384, 1
  %v4527 = vrot.slane %v4136, 1
  %v4528 = vsel %vm557, %v4526, %v4527
  %v4529 = vrot.slane %v4416, 1
  %v4530 = vsel %vm557, %v4527, %v4529
  %v4531 = vrot.slane %v4385, 1
  %v4532 = vrot.slane %v4139, 1
  %v4533 = vsel %vm557, %v4531, %v4532
  %v4534 = vrot.slane %v4417, 1
  %v4535 = vsel %vm557, %v4532, %v4534
  %v4536 = vrot.slane %v4386, 1
  %v4537 = vrot.slane %v4142, 1
  %v4538 = vsel %vm557, %v4536, %v4537
  %v4539 = vrot.slane %v4418, 1
  %v4540 = vsel %vm557, %v4537, %v4539
  %v4541 = vrot.slane %v4387, 1
  %v4542 = vrot.slane %v4145, 1
  %v4543 = vsel %vm557, %v4541, %v4542
  %v4544 = vrot.slane %v4419, 1
  %v4545 = vsel %vm557, %v4542, %v4544
  %v4546 = vrot.slane %v4388, 1
  %v4547 = vrot.slane %v4148, 1
  %v4548 = vsel %vm557, %v4546, %v4547
  %v4549 = vrot.slane %v4420, 1
  %v4550 = vsel %vm557, %v4547, %v4549
  %v4551 = vrot.slane %v4389, 1
  %v4552 = vrot.slane %v4151, 1
  %v4553 = vsel %vm557, %v4551, %v4552
  %v4554 = vrot.slane %v4421, 1
  %v4555 = vsel %vm557, %v4552, %v4554
  %v4556 = vrot.slane %v4390, 1
  %v4557 = vrot.slane %v4154, 1
  %v4558 = vsel %vm557, %v4556, %v4557
  %v4559 = vrot.slane %v4422, 1
  %v4560 = vsel %vm557, %v4557, %v4559
  %v4561 = vrot.slane %v4391, 1
  %v4562 = vrot.slane %v4157, 1
  %v4563 = vsel %vm557, %v4561, %v4562
  %v4564 = vrot.slane %v4423, 1
  %v4565 = vsel %vm557, %v4562, %v4564
  %v4566 = vrot.slane %v4392, 1
  %v4567 = vrot.slane %v4160, 1
  %v4568 = vsel %vm557, %v4566, %v4567
  %v4569 = vrot.slane %v4424, 1
  %v4570 = vsel %vm557, %v4567, %v4569
  %v4571 = vrot.slane %v4393, 1
  %v4572 = vrot.slane %v4163, 1
  %v4573 = vsel %vm557, %v4571, %v4572
  %v4574 = vrot.slane %v4425, 1
  %v4575 = vsel %vm557, %v4572, %v4574
  %v4576 = vrot.slane %v4394, 1
  %v4577 = vrot.slane %v4166, 1
  %v4578 = vsel %vm557, %v4576, %v4577
  %v4579 = vrot.slane %v4426, 1
  %v4580 = vsel %vm557, %v4577, %v4579
  %v4581 = vrot.slane %v4395, 1
  %v4582 = vrot.slane %v4169, 1
  %v4583 = vsel %vm557, %v4581, %v4582
  %v4584 = vrot.slane %v4427, 1
  %v4585 = vsel %vm557, %v4582, %v4584
  %v4586 = vrot.slane %v4396, 1
  %v4587 = vrot.slane %v4172, 1
  %v4588 = vsel %vm557, %v4586, %v4587
  %v4589 = vrot.slane %v4428, 1
  %v4590 = vsel %vm557, %v4587, %v4589
  %v4591 = vrot.slane %v4398, 1
  %v4592 = vrot.slane %v4178, 1
  %v4593 = vsel %vm557, %v4591, %v4592
  %v4594 = vrot.slane %v4430, 1
  %v4595 = vsel %vm557, %v4592, %v4594
  %v4596 = vrot.slane %v4399, 1
  %v4597 = vrot.slane %v4181, 1
  %v4598 = vsel %vm557, %v4596, %v4597
  %v4599 = vrot.slane %v4431, 1
  %v4600 = vsel %vm557, %v4597, %v4599
  %v4601 = vrot.slane %v4400, 1
  %v4602 = vrot.slane %v4184, 1
  %v4603 = vsel %vm557, %v4601, %v4602
  %v4604 = vrot.slane %v4432, 1
  %v4605 = vsel %vm557, %v4602, %v4604
  %v4606 = vrot.slane %v4401, 1
  %v4607 = vrot.slane %v4187, 1
  %v4608 = vsel %vm557, %v4606, %v4607
  %v4609 = vrot.slane %v4433, 1
  %v4610 = vsel %vm557, %v4607, %v4609
  %v4611 = vrot.slane %v4402, 1
  %v4612 = vrot.slane %v4190, 1
  %v4613 = vsel %vm557, %v4611, %v4612
  %v4614 = vrot.slane %v4434, 1
  %v4615 = vsel %vm557, %v4612, %v4614
  %v4616 = vrot.slane %v4403, 1
  %v4617 = vrot.slane %v4193, 1
  %v4618 = vsel %vm557, %v4616, %v4617
  %v4619 = vrot.slane %v4435, 1
  %v4620 = vsel %vm557, %v4617, %v4619
  %v4621 = vrot.slane %v4404, 1
  %v4622 = vrot.slane %v4196, 1
  %v4623 = vsel %vm557, %v4621, %v4622
  %v4624 = vrot.slane %v4436, 1
  %v4625 = vsel %vm557, %v4622, %v4624
  %v4626 = vrot.slane %v4405, 1
  %v4627 = vrot.slane %v4199, 1
  %v4628 = vsel %vm557, %v4626, %v4627
  %v4629 = vrot.slane %v4437, 1
  %v4630 = vsel %vm557, %v4627, %v4629
  %v4631 = vrot.slane %v4406, 1
  %v4632 = vrot.slane %v4202, 1
  %v4633 = vsel %vm557, %v4631, %v4632
  %v4634 = vrot.slane %v4438, 1
  %v4635 = vsel %vm557, %v4632, %v4634
  %v4636 = vrot.slane %v4407, 1
  %v4637 = vrot.slane %v4205, 1
  %v4638 = vsel %vm557, %v4636, %v4637
  %v4639 = vrot.slane %v4439, 1
  %v4640 = vsel %vm557, %v4637, %v4639
  %v4641 = vrot.slane %v4408, 1
  %v4642 = vrot.slane %v4208, 1
  %v4643 = vsel %vm557, %v4641, %v4642
  %v4644 = vrot.slane %v4440, 1
  %v4645 = vsel %vm557, %v4642, %v4644
  %v4646 = vrot.slane %v4409, 1
  %v4647 = vrot.slane %v4211, 1
  %v4648 = vsel %vm557, %v4646, %v4647
  %v4649 = vrot.slane %v4441, 1
  %v4650 = vsel %vm557, %v4647, %v4649
  %v4651 = vrot.slane %v4410, 1
  %v4652 = vrot.slane %v4214, 1
  %v4653 = vsel %vm557, %v4651, %v4652
  %v4654 = vrot.slane %v4442, 1
  %v4655 = vsel %vm557, %v4652, %v4654
  %v4656 = vrot.slane %v4411, 1
  %v4657 = vrot.slane %v4217, 1
  %v4658 = vsel %vm557, %v4656, %v4657
  %v4659 = vrot.slane %v4443, 1
  %v4660 = vsel %vm557, %v4657, %v4659
  %v4661 = vrot.slane %v4412, 1
  %v4662 = vrot.slane %v4220, 1
  %v4663 = vsel %vm557, %v4661, %v4662
  %v4664 = vrot.slane %v4444, 1
  %v4665 = vsel %vm557, %v4662, %v4664
  %v4666 = vrot.slane %v4382, 2
  %v4667 = vrot.slane %v4130, 2
  %v4668 = vsel %vm708, %v4666, %v4667
  %v4669 = vrot.slane %v4414, 2
  %v4670 = vsel %vm708, %v4667, %v4669
  %v4671 = vrot.slane %v4383, 2
  %v4672 = vrot.slane %v4133, 2
  %v4673 = vsel %vm708, %v4671, %v4672
  %v4674 = vrot.slane %v4415, 2
  %v4675 = vsel %vm708, %v4672, %v4674
  %v4676 = vrot.slane %v4384, 2
  %v4677 = vrot.slane %v4136, 2
  %v4678 = vsel %vm708, %v4676, %v4677
  %v4679 = vrot.slane %v4416, 2
  %v4680 = vsel %vm708, %v4677, %v4679
  %v4681 = vrot.slane %v4385, 2
  %v4682 = vrot.slane %v4139, 2
  %v4683 = vsel %vm708, %v4681, %v4682
  %v4684 = vrot.slane %v4417, 2
  %v4685 = vsel %vm708, %v4682, %v4684
  %v4686 = vrot.slane %v4386, 2
  %v4687 = vrot.slane %v4142, 2
  %v4688 = vsel %vm708, %v4686, %v4687
  %v4689 = vrot.slane %v4418, 2
  %v4690 = vsel %vm708, %v4687, %v4689
  %v4691 = vrot.slane %v4387, 2
  %v4692 = vrot.slane %v4145, 2
  %v4693 = vsel %vm708, %v4691, %v4692
  %v4694 = vrot.slane %v4419, 2
  %v4695 = vsel %vm708, %v4692, %v4694
  %v4696 = vrot.slane %v4388, 2
  %v4697 = vrot.slane %v4148, 2
  %v4698 = vsel %vm708, %v4696, %v4697
  %v4699 = vrot.slane %v4420, 2
  %v4700 = vsel %vm708, %v4697, %v4699
  %v4701 = vrot.slane %v4389, 2
  %v4702 = vrot.slane %v4151, 2
  %v4703 = vsel %vm708, %v4701, %v4702
  %v4704 = vrot.slane %v4421, 2
  %v4705 = vsel %vm708, %v4702, %v4704
  %v4706 = vrot.slane %v4390, 2
  %v4707 = vrot.slane %v4154, 2
  %v4708 = vsel %vm708, %v4706, %v4707
  %v4709 = vrot.slane %v4422, 2
  %v4710 = vsel %vm708, %v4707, %v4709
  %v4711 = vrot.slane %v4391, 2
  %v4712 = vrot.slane %v4157, 2
  %v4713 = vsel %vm708, %v4711, %v4712
  %v4714 = vrot.slane %v4423, 2
  %v4715 = vsel %vm708, %v4712, %v4714
  %v4716 = vrot.slane %v4392, 2
  %v4717 = vrot.slane %v4160, 2
  %v4718 = vsel %vm708, %v4716, %v4717
  %v4719 = vrot.slane %v4424, 2
  %v4720 = vsel %vm708, %v4717, %v4719
  %v4721 = vrot.slane %v4393, 2
  %v4722 = vrot.slane %v4163, 2
  %v4723 = vsel %vm708, %v4721, %v4722
  %v4724 = vrot.slane %v4425, 2
  %v4725 = vsel %vm708, %v4722, %v4724
  %v4726 = vrot.slane %v4394, 2
  %v4727 = vrot.slane %v4166, 2
  %v4728 = vsel %vm708, %v4726, %v4727
  %v4729 = vrot.slane %v4426, 2
  %v4730 = vsel %vm708, %v4727, %v4729
  %v4731 = vrot.slane %v4395, 2
  %v4732 = vrot.slane %v4169, 2
  %v4733 = vsel %vm708, %v4731, %v4732
  %v4734 = vrot.slane %v4427, 2
  %v4735 = vsel %vm708, %v4732, %v4734
  %v4736 = vrot.slane %v4396, 2
  %v4737 = vrot.slane %v4172, 2
  %v4738 = vsel %vm708, %v4736, %v4737
  %v4739 = vrot.slane %v4428, 2
  %v4740 = vsel %vm708, %v4737, %v4739
  %v4741 = vrot.slane %v4398, 2
  %v4742 = vrot.slane %v4178, 2
  %v4743 = vsel %vm708, %v4741, %v4742
  %v4744 = vrot.slane %v4430, 2
  %v4745 = vsel %vm708, %v4742, %v4744
  %v4746 = vrot.slane %v4399, 2
  %v4747 = vrot.slane %v4181, 2
  %v4748 = vsel %vm708, %v4746, %v4747
  %v4749 = vrot.slane %v4431, 2
  %v4750 = vsel %vm708, %v4747, %v4749
  %v4751 = vrot.slane %v4400, 2
  %v4752 = vrot.slane %v4184, 2
  %v4753 = vsel %vm708, %v4751, %v4752
  %v4754 = vrot.slane %v4432, 2
  %v4755 = vsel %vm708, %v4752, %v4754
  %v4756 = vrot.slane %v4401, 2
  %v4757 = vrot.slane %v4187, 2
  %v4758 = vsel %vm708, %v4756, %v4757
  %v4759 = vrot.slane %v4433, 2
  %v4760 = vsel %vm708, %v4757, %v4759
  %v4761 = vrot.slane %v4402, 2
  %v4762 = vrot.slane %v4190, 2
  %v4763 = vsel %vm708, %v4761, %v4762
  %v4764 = vrot.slane %v4434, 2
  %v4765 = vsel %vm708, %v4762, %v4764
  %v4766 = vrot.slane %v4403, 2
  %v4767 = vrot.slane %v4193, 2
  %v4768 = vsel %vm708, %v4766, %v4767
  %v4769 = vrot.slane %v4435, 2
  %v4770 = vsel %vm708, %v4767, %v4769
  %v4771 = vrot.slane %v4404, 2
  %v4772 = vrot.slane %v4196, 2
  %v4773 = vsel %vm708, %v4771, %v4772
  %v4774 = vrot.slane %v4436, 2
  %v4775 = vsel %vm708, %v4772, %v4774
  %v4776 = vrot.slane %v4405, 2
  %v4777 = vrot.slane %v4199, 2
  %v4778 = vsel %vm708, %v4776, %v4777
  %v4779 = vrot.slane %v4437, 2
  %v4780 = vsel %vm708, %v4777, %v4779
  %v4781 = vrot.slane %v4406, 2
  %v4782 = vrot.slane %v4202, 2
  %v4783 = vsel %vm708, %v4781, %v4782
  %v4784 = vrot.slane %v4438, 2
  %v4785 = vsel %vm708, %v4782, %v4784
  %v4786 = vrot.slane %v4407, 2
  %v4787 = vrot.slane %v4205, 2
  %v4788 = vsel %vm708, %v4786, %v4787
  %v4789 = vrot.slane %v4439, 2
  %v4790 = vsel %vm708, %v4787, %v4789
  %v4791 = vrot.slane %v4408, 2
  %v4792 = vrot.slane %v4208, 2
  %v4793 = vsel %vm708, %v4791, %v4792
  %v4794 = vrot.slane %v4440, 2
  %v4795 = vsel %vm708, %v4792, %v4794
  %v4796 = vrot.slane %v4409, 2
  %v4797 = vrot.slane %v4211, 2
  %v4798 = vsel %vm708, %v4796, %v4797
  %v4799 = vrot.slane %v4441, 2
  %v4800 = vsel %vm708, %v4797, %v4799
  %v4801 = vrot.slane %v4410, 2
  %v4802 = vrot.slane %v4214, 2
  %v4803 = vsel %vm708, %v4801, %v4802
  %v4804 = vrot.slane %v4442, 2
  %v4805 = vsel %vm708, %v4802, %v4804
  %v4806 = vrot.slane %v4411, 2
  %v4807 = vrot.slane %v4217, 2
  %v4808 = vsel %vm708, %v4806, %v4807
  %v4809 = vrot.slane %v4443, 2
  %v4810 = vsel %vm708, %v4807, %v4809
  %v4811 = vrot.slane %v4412, 2
  %v4812 = vrot.slane %v4220, 2
  %v4813 = vsel %vm708, %v4811, %v4812
  %v4814 = vrot.slane %v4444, 2
  %v4815 = vsel %vm708, %v4812, %v4814
  %v4820 = vrot.slane %v4397, 1
  %v4821 = vrot.slane %v4175, 1
  %v4822 = vsel %vm557, %v4820, %v4821
  %v4823 = vrot.slane %v4429, 1
  %v4824 = vsel %vm557, %v4821, %v4823
  %v4825 = vrot.slane %v4413, 1
  %v4826 = vrot.slane %v4223, 1
  %v4827 = vsel %vm557, %v4825, %v4826
  %v4828 = vrot.slane %v4445, 1
  %v4829 = vsel %vm557, %v4826, %v4828
  %v4830 = vrot.slane %v4397, 2
  %v4831 = vrot.slane %v4175, 2
  %v4832 = vsel %vm708, %v4830, %v4831
  %v4833 = vrot.slane %v4429, 2
  %v4834 = vsel %vm708, %v4831, %v4833
  %v4835 = vrot.slane %v4413, 2
  %v4836 = vrot.slane %v4223, 2
  %v4837 = vsel %vm708, %v4835, %v4836
  %v4838 = vrot.slane %v4445, 2
  %v4839 = vsel %vm708, %v4836, %v4838
  %4840 = vrot.lane.b32.xlu0 %v4518, 8
  %v4841 = vpop.permute.xlu0 %4840
  %4842 = vrot.lane.b32.xlu0 %v4520, 8
  %v4843 = vpop.permute.xlu0 %4842
  %4844 = vrot.lane.b32.xlu0 %v4523, 8
  %v4845 = vpop.permute.xlu0 %4844
  %4846 = vrot.lane.b32.xlu0 %v4525, 8
  %v4847 = vpop.permute.xlu0 %4846
  %4848 = vrot.lane.b32.xlu0 %v4528, 8
  %v4849 = vpop.permute.xlu0 %4848
  %4850 = vrot.lane.b32.xlu0 %v4530, 8
  %v4851 = vpop.permute.xlu0 %4850
  %4852 = vrot.lane.b32.xlu0 %v4533, 8
  %v4853 = vpop.permute.xlu0 %4852
  %4854 = vrot.lane.b32.xlu0 %v4535, 8
  %v4855 = vpop.permute.xlu0 %4854
  %4856 = vrot.lane.b32.xlu0 %v4538, 8
  %v4857 = vpop.permute.xlu0 %4856
  %4858 = vrot.lane.b32.xlu0 %v4540, 8
  %v4859 = vpop.permute.xlu0 %4858
  %4860 = vrot.lane.b32.xlu0 %v4543, 8
  %v4861 = vpop.permute.xlu0 %4860
  %4862 = vrot.lane.b32.xlu0 %v4545, 8
  %v4863 = vpop.permute.xlu0 %4862
  %4864 = vrot.lane.b32.xlu0 %v4548, 8
  %v4865 = vpop.permute.xlu0 %4864
  %4866 = vrot.lane.b32.xlu0 %v4550, 8
  %v4867 = vpop.permute.xlu0 %4866
  %4868 = vrot.lane.b32.xlu0 %v4553, 8
  %v4869 = vpop.permute.xlu0 %4868
  %4870 = vrot.lane.b32.xlu0 %v4555, 8
  %v4871 = vpop.permute.xlu0 %4870
  %4872 = vrot.lane.b32.xlu0 %v4558, 8
  %v4873 = vpop.permute.xlu0 %4872
  %4874 = vrot.lane.b32.xlu0 %v4560, 8
  %v4875 = vpop.permute.xlu0 %4874
  %4876 = vrot.lane.b32.xlu0 %v4563, 8
  %v4877 = vpop.permute.xlu0 %4876
  %4878 = vrot.lane.b32.xlu0 %v4565, 8
  %v4879 = vpop.permute.xlu0 %4878
  %4880 = vrot.lane.b32.xlu0 %v4568, 8
  %v4881 = vpop.permute.xlu0 %4880
  %4882 = vrot.lane.b32.xlu0 %v4570, 8
  %v4883 = vpop.permute.xlu0 %4882
  %4884 = vrot.lane.b32.xlu0 %v4573, 8
  %v4885 = vpop.permute.xlu0 %4884
  %4886 = vrot.lane.b32.xlu0 %v4575, 8
  %v4887 = vpop.permute.xlu0 %4886
  %4888 = vrot.lane.b32.xlu0 %v4578, 8
  %v4889 = vpop.permute.xlu0 %4888
  %4890 = vrot.lane.b32.xlu0 %v4580, 8
  %v4891 = vpop.permute.xlu0 %4890
  %4892 = vrot.lane.b32.xlu0 %v4583, 8
  %v4893 = vpop.permute.xlu0 %4892
  %4894 = vrot.lane.b32.xlu0 %v4585, 8
  %v4895 = vpop.permute.xlu0 %4894
  %4896 = vrot.lane.b32.xlu0 %v4588, 8
  %v4897 = vpop.permute.xlu0 %4896
  %4898 = vrot.lane.b32.xlu0 %v4590, 8
  %v4899 = vpop.permute.xlu0 %4898
  %4900 = vrot.lane.b32.xlu0 %v4593, 8
  %v4901 = vpop.permute.xlu0 %4900
  %4902 = vrot.lane.b32.xlu0 %v4595, 8
  %v4903 = vpop.permute.xlu0 %4902
  %4904 = vrot.lane.b32.xlu0 %v4598, 8
  %v4905 = vpop.permute.xlu0 %4904
  %4906 = vrot.lane.b32.xlu0 %v4600, 8
  %v4907 = vpop.permute.xlu0 %4906
  %4908 = vrot.lane.b32.xlu0 %v4603, 8
  %v4909 = vpop.permute.xlu0 %4908
  %4910 = vrot.lane.b32.xlu0 %v4605, 8
  %v4911 = vpop.permute.xlu0 %4910
  %4912 = vrot.lane.b32.xlu0 %v4608, 8
  %v4913 = vpop.permute.xlu0 %4912
  %4914 = vrot.lane.b32.xlu0 %v4610, 8
  %v4915 = vpop.permute.xlu0 %4914
  %4916 = vrot.lane.b32.xlu0 %v4613, 8
  %v4917 = vpop.permute.xlu0 %4916
  %4918 = vrot.lane.b32.xlu0 %v4615, 8
  %v4919 = vpop.permute.xlu0 %4918
  %4920 = vrot.lane.b32.xlu0 %v4618, 8
  %v4921 = vpop.permute.xlu0 %4920
  %4922 = vrot.lane.b32.xlu0 %v4620, 8
  %v4923 = vpop.permute.xlu0 %4922
  %4924 = vrot.lane.b32.xlu0 %v4623, 8
  %v4925 = vpop.permute.xlu0 %4924
  %4926 = vrot.lane.b32.xlu0 %v4625, 8
  %v4927 = vpop.permute.xlu0 %4926
  %4928 = vrot.lane.b32.xlu0 %v4628, 8
  %v4929 = vpop.permute.xlu0 %4928
  %4930 = vrot.lane.b32.xlu0 %v4630, 8
  %v4931 = vpop.permute.xlu0 %4930
  %4932 = vrot.lane.b32.xlu0 %v4633, 8
  %v4933 = vpop.permute.xlu0 %4932
  %4934 = vrot.lane.b32.xlu0 %v4635, 8
  %v4935 = vpop.permute.xlu0 %4934
  %4936 = vrot.lane.b32.xlu0 %v4638, 8
  %v4937 = vpop.permute.xlu0 %4936
  %4938 = vrot.lane.b32.xlu0 %v4640, 8
  %v4939 = vpop.permute.xlu0 %4938
  %4940 = vrot.lane.b32.xlu0 %v4643, 8
  %v4941 = vpop.permute.xlu0 %4940
  %4942 = vrot.lane.b32.xlu0 %v4645, 8
  %v4943 = vpop.permute.xlu0 %4942
  %4944 = vrot.lane.b32.xlu0 %v4648, 8
  %v4945 = vpop.permute.xlu0 %4944
  %4946 = vrot.lane.b32.xlu0 %v4650, 8
  %v4947 = vpop.permute.xlu0 %4946
  %4948 = vrot.lane.b32.xlu0 %v4653, 8
  %v4949 = vpop.permute.xlu0 %4948
  %4950 = vrot.lane.b32.xlu0 %v4655, 8
  %v4951 = vpop.permute.xlu0 %4950
  %4952 = vrot.lane.b32.xlu0 %v4658, 8
  %v4953 = vpop.permute.xlu0 %4952
  %4954 = vrot.lane.b32.xlu0 %v4660, 8
  %v4955 = vpop.permute.xlu0 %4954
  %4956 = vrot.lane.b32.xlu0 %v4663, 8
  %v4957 = vpop.permute.xlu0 %4956
  %4958 = vrot.lane.b32.xlu0 %v4665, 8
  %v4959 = vpop.permute.xlu0 %4958
  %5020 = vrot.lane.b32.xlu0 %v4668, 16
  %v5021 = vpop.permute.xlu0 %5020
  %5022 = vrot.lane.b32.xlu0 %v4670, 16
  %v5023 = vpop.permute.xlu0 %5022
  %5024 = vrot.lane.b32.xlu0 %v4673, 16
  %v5025 = vpop.permute.xlu0 %5024
  %5026 = vrot.lane.b32.xlu0 %v4675, 16
  %v5027 = vpop.permute.xlu0 %5026
  %5028 = vrot.lane.b32.xlu0 %v4678, 16
  %v5029 = vpop.permute.xlu0 %5028
  %5030 = vrot.lane.b32.xlu0 %v4680, 16
  %v5031 = vpop.permute.xlu0 %5030
  %5032 = vrot.lane.b32.xlu0 %v4683, 16
  %v5033 = vpop.permute.xlu0 %5032
  %5034 = vrot.lane.b32.xlu0 %v4685, 16
  %v5035 = vpop.permute.xlu0 %5034
  %5036 = vrot.lane.b32.xlu0 %v4688, 16
  %v5037 = vpop.permute.xlu0 %5036
  %5038 = vrot.lane.b32.xlu0 %v4690, 16
  %v5039 = vpop.permute.xlu0 %5038
  %5040 = vrot.lane.b32.xlu0 %v4693, 16
  %v5041 = vpop.permute.xlu0 %5040
  %5042 = vrot.lane.b32.xlu0 %v4695, 16
  %v5043 = vpop.permute.xlu0 %5042
  %5044 = vrot.lane.b32.xlu0 %v4698, 16
  %v5045 = vpop.permute.xlu0 %5044
  %5046 = vrot.lane.b32.xlu0 %v4700, 16
  %v5047 = vpop.permute.xlu0 %5046
  %5048 = vrot.lane.b32.xlu0 %v4703, 16
  %v5049 = vpop.permute.xlu0 %5048
  %5050 = vrot.lane.b32.xlu0 %v4705, 16
  %v5051 = vpop.permute.xlu0 %5050
  %5052 = vrot.lane.b32.xlu0 %v4708, 16
  %v5053 = vpop.permute.xlu0 %5052
  %5054 = vrot.lane.b32.xlu0 %v4710, 16
  %v5055 = vpop.permute.xlu0 %5054
  %5056 = vrot.lane.b32.xlu0 %v4713, 16
  %v5057 = vpop.permute.xlu0 %5056
  %5058 = vrot.lane.b32.xlu0 %v4715, 16
  %v5059 = vpop.permute.xlu0 %5058
  %5060 = vrot.lane.b32.xlu0 %v4718, 16
  %v5061 = vpop.permute.xlu0 %5060
  %5062 = vrot.lane.b32.xlu0 %v4720, 16
  %v5063 = vpop.permute.xlu0 %5062
  %5064 = vrot.lane.b32.xlu0 %v4723, 16
  %v5065 = vpop.permute.xlu0 %5064
  %5066 = vrot.lane.b32.xlu0 %v4725, 16
  %v5067 = vpop.permute.xlu0 %5066
  %5068 = vrot.lane.b32.xlu0 %v4728, 16
  %v5069 = vpop.permute.xlu0 %5068
  %5070 = vrot.lane.b32.xlu0 %v4730, 16
  %v5071 = vpop.permute.xlu0 %5070
  %5072 = vrot.lane.b32.xlu0 %v4733, 16
  %v5073 = vpop.permute.xlu0 %5072
  %5074 = vrot.lane.b32.xlu0 %v4735, 16
  %v5075 = vpop.permute.xlu0 %5074
  %5076 = vrot.lane.b32.xlu0 %v4738, 16
  %v5077 = vpop.permute.xlu0 %5076
  %5078 = vrot.lane.b32.xlu0 %v4740, 16
  %v5079 = vpop.permute.xlu0 %5078
  %5080 = vrot.lane.b32.xlu0 %v4743, 16
  %v5081 = vpop.permute.xlu0 %5080
  %5082 = vrot.lane.b32.xlu0 %v4745, 16
  %v5083 = vpop.permute.xlu0 %5082
  %5084 = vrot.lane.b32.xlu0 %v4748, 16
  %v5085 = vpop.permute.xlu0 %5084
  %5086 = vrot.lane.b32.xlu0 %v4750, 16
  %v5087 = vpop.permute.xlu0 %5086
  %5088 = vrot.lane.b32.xlu0 %v4753, 16
  %v5089 = vpop.permute.xlu0 %5088
  %5090 = vrot.lane.b32.xlu0 %v4755, 16
  %v5091 = vpop.permute.xlu0 %5090
  %5092 = vrot.lane.b32.xlu0 %v4758, 16
  %v5093 = vpop.permute.xlu0 %5092
  %5094 = vrot.lane.b32.xlu0 %v4760, 16
  %v5095 = vpop.permute.xlu0 %5094
  %5096 = vrot.lane.b32.xlu0 %v4763, 16
  %v5097 = vpop.permute.xlu0 %5096
  %5098 = vrot.lane.b32.xlu0 %v4765, 16
  %v5099 = vpop.permute.xlu0 %5098
  %5100 = vrot.lane.b32.xlu0 %v4768, 16
  %v5101 = vpop.permute.xlu0 %5100
  %5102 = vrot.lane.b32.xlu0 %v4770, 16
  %v5103 = vpop.permute.xlu0 %5102
  %5104 = vrot.lane.b32.xlu0 %v4773, 16
  %v5105 = vpop.permute.xlu0 %5104
  %5106 = vrot.lane.b32.xlu0 %v4775, 16
  %v5107 = vpop.permute.xlu0 %5106
  %5108 = vrot.lane.b32.xlu0 %v4778, 16
  %v5109 = vpop.permute.xlu0 %5108
  %5110 = vrot.lane.b32.xlu0 %v4780, 16
  %v5111 = vpop.permute.xlu0 %5110
  %5112 = vrot.lane.b32.xlu0 %v4783, 16
  %v5113 = vpop.permute.xlu0 %5112
  %5114 = vrot.lane.b32.xlu0 %v4785, 16
  %v5115 = vpop.permute.xlu0 %5114
  %5116 = vrot.lane.b32.xlu0 %v4788, 16
  %v5117 = vpop.permute.xlu0 %5116
  %5118 = vrot.lane.b32.xlu0 %v4790, 16
  %v5119 = vpop.permute.xlu0 %5118
  %5120 = vrot.lane.b32.xlu0 %v4793, 16
  %v5121 = vpop.permute.xlu0 %5120
  %5122 = vrot.lane.b32.xlu0 %v4795, 16
  %v5123 = vpop.permute.xlu0 %5122
  %5124 = vrot.lane.b32.xlu0 %v4798, 16
  %v5125 = vpop.permute.xlu0 %5124
  %5126 = vrot.lane.b32.xlu0 %v4800, 16
  %v5127 = vpop.permute.xlu0 %5126
  %5128 = vrot.lane.b32.xlu0 %v4803, 16
  %v5129 = vpop.permute.xlu0 %5128
  %5130 = vrot.lane.b32.xlu0 %v4805, 16
  %v5131 = vpop.permute.xlu0 %5130
  %5132 = vrot.lane.b32.xlu0 %v4808, 16
  %v5133 = vpop.permute.xlu0 %5132
  %5134 = vrot.lane.b32.xlu0 %v4810, 16
  %v5135 = vpop.permute.xlu0 %5134
  %5136 = vrot.lane.b32.xlu0 %v4813, 16
  %v5137 = vpop.permute.xlu0 %5136
  %5138 = vrot.lane.b32.xlu0 %v4815, 16
  %v5139 = vpop.permute.xlu0 %5138
  %5200 = vrot.lane.b32.xlu0 %v4382, 24
  %v5201 = vpop.permute.xlu0 %5200
  %5202 = vrot.lane.b32.xlu0 %v4130, 24
  %v5203 = vpop.permute.xlu0 %5202
  %5204 = vrot.lane.b32.xlu0 %v4383, 24
  %v5205 = vpop.permute.xlu0 %5204
  %5206 = vrot.lane.b32.xlu0 %v4133, 24
  %v5207 = vpop.permute.xlu0 %5206
  %5208 = vrot.lane.b32.xlu0 %v4384, 24
  %v5209 = vpop.permute.xlu0 %5208
  %5210 = vrot.lane.b32.xlu0 %v4136, 24
  %v5211 = vpop.permute.xlu0 %5210
  %5212 = vrot.lane.b32.xlu0 %v4385, 24
  %v5213 = vpop.permute.xlu0 %5212
  %5214 = vrot.lane.b32.xlu0 %v4139, 24
  %v5215 = vpop.permute.xlu0 %5214
  %5216 = vrot.lane.b32.xlu0 %v4386, 24
  %v5217 = vpop.permute.xlu0 %5216
  %5218 = vrot.lane.b32.xlu0 %v4142, 24
  %v5219 = vpop.permute.xlu0 %5218
  %5220 = vrot.lane.b32.xlu0 %v4387, 24
  %v5221 = vpop.permute.xlu0 %5220
  %5222 = vrot.lane.b32.xlu0 %v4145, 24
  %v5223 = vpop.permute.xlu0 %5222
  %5224 = vrot.lane.b32.xlu0 %v4388, 24
  %v5225 = vpop.permute.xlu0 %5224
  %5226 = vrot.lane.b32.xlu0 %v4148, 24
  %v5227 = vpop.permute.xlu0 %5226
  %5228 = vrot.lane.b32.xlu0 %v4389, 24
  %v5229 = vpop.permute.xlu0 %5228
  %5230 = vrot.lane.b32.xlu0 %v4151, 24
  %v5231 = vpop.permute.xlu0 %5230
  %5232 = vrot.lane.b32.xlu0 %v4390, 24
  %v5233 = vpop.permute.xlu0 %5232
  %5234 = vrot.lane.b32.xlu0 %v4154, 24
  %v5235 = vpop.permute.xlu0 %5234
  %5236 = vrot.lane.b32.xlu0 %v4391, 24
  %v5237 = vpop.permute.xlu0 %5236
  %5238 = vrot.lane.b32.xlu0 %v4157, 24
  %v5239 = vpop.permute.xlu0 %5238
  %5240 = vrot.lane.b32.xlu0 %v4392, 24
  %v5241 = vpop.permute.xlu0 %5240
  %5242 = vrot.lane.b32.xlu0 %v4160, 24
  %v5243 = vpop.permute.xlu0 %5242
  %5244 = vrot.lane.b32.xlu0 %v4393, 24
  %v5245 = vpop.permute.xlu0 %5244
  %5246 = vrot.lane.b32.xlu0 %v4163, 24
  %v5247 = vpop.permute.xlu0 %5246
  %5248 = vrot.lane.b32.xlu0 %v4394, 24
  %v5249 = vpop.permute.xlu0 %5248
  %5250 = vrot.lane.b32.xlu0 %v4166, 24
  %v5251 = vpop.permute.xlu0 %5250
  %5252 = vrot.lane.b32.xlu0 %v4395, 24
  %v5253 = vpop.permute.xlu0 %5252
  %5254 = vrot.lane.b32.xlu0 %v4169, 24
  %v5255 = vpop.permute.xlu0 %5254
  %5256 = vrot.lane.b32.xlu0 %v4396, 24
  %v5257 = vpop.permute.xlu0 %5256
  %5258 = vrot.lane.b32.xlu0 %v4172, 24
  %v5259 = vpop.permute.xlu0 %5258
  %5260 = vrot.lane.b32.xlu0 %v4397, 24
  %v5261 = vpop.permute.xlu0 %5260
  %5262 = vrot.lane.b32.xlu0 %v4175, 24
  %v5263 = vpop.permute.xlu0 %5262
  %5264 = vrot.lane.b32.xlu0 %v4398, 24
  %v5265 = vpop.permute.xlu0 %5264
  %5266 = vrot.lane.b32.xlu0 %v4178, 24
  %v5267 = vpop.permute.xlu0 %5266
  %5268 = vrot.lane.b32.xlu0 %v4399, 24
  %v5269 = vpop.permute.xlu0 %5268
  %5270 = vrot.lane.b32.xlu0 %v4181, 24
  %v5271 = vpop.permute.xlu0 %5270
  %5272 = vrot.lane.b32.xlu0 %v4400, 24
  %v5273 = vpop.permute.xlu0 %5272
  %5274 = vrot.lane.b32.xlu0 %v4184, 24
  %v5275 = vpop.permute.xlu0 %5274
  %5276 = vrot.lane.b32.xlu0 %v4401, 24
  %v5277 = vpop.permute.xlu0 %5276
  %5278 = vrot.lane.b32.xlu0 %v4187, 24
  %v5279 = vpop.permute.xlu0 %5278
  %5280 = vrot.lane.b32.xlu0 %v4402, 24
  %v5281 = vpop.permute.xlu0 %5280
  %5282 = vrot.lane.b32.xlu0 %v4190, 24
  %v5283 = vpop.permute.xlu0 %5282
  %5284 = vrot.lane.b32.xlu0 %v4403, 24
  %v5285 = vpop.permute.xlu0 %5284
  %5286 = vrot.lane.b32.xlu0 %v4193, 24
  %v5287 = vpop.permute.xlu0 %5286
  %5288 = vrot.lane.b32.xlu0 %v4404, 24
  %v5289 = vpop.permute.xlu0 %5288
  %5290 = vrot.lane.b32.xlu0 %v4196, 24
  %v5291 = vpop.permute.xlu0 %5290
  %5292 = vrot.lane.b32.xlu0 %v4405, 24
  %v5293 = vpop.permute.xlu0 %5292
  %5294 = vrot.lane.b32.xlu0 %v4199, 24
  %v5295 = vpop.permute.xlu0 %5294
  %5296 = vrot.lane.b32.xlu0 %v4406, 24
  %v5297 = vpop.permute.xlu0 %5296
  %5298 = vrot.lane.b32.xlu0 %v4202, 24
  %v5299 = vpop.permute.xlu0 %5298
  %5300 = vrot.lane.b32.xlu0 %v4407, 24
  %v5301 = vpop.permute.xlu0 %5300
  %5302 = vrot.lane.b32.xlu0 %v4205, 24
  %v5303 = vpop.permute.xlu0 %5302
  %5304 = vrot.lane.b32.xlu0 %v4408, 24
  %v5305 = vpop.permute.xlu0 %5304
  %5306 = vrot.lane.b32.xlu0 %v4208, 24
  %v5307 = vpop.permute.xlu0 %5306
  %5308 = vrot.lane.b32.xlu0 %v4409, 24
  %v5309 = vpop.permute.xlu0 %5308
  %5310 = vrot.lane.b32.xlu0 %v4211, 24
  %v5311 = vpop.permute.xlu0 %5310
  %5312 = vrot.lane.b32.xlu0 %v4410, 24
  %v5313 = vpop.permute.xlu0 %5312
  %5314 = vrot.lane.b32.xlu0 %v4214, 24
  %v5315 = vpop.permute.xlu0 %5314
  %5316 = vrot.lane.b32.xlu0 %v4411, 24
  %v5317 = vpop.permute.xlu0 %5316
  %5318 = vrot.lane.b32.xlu0 %v4217, 24
  %v5319 = vpop.permute.xlu0 %5318
  %5320 = vrot.lane.b32.xlu0 %v4412, 24
  %v5321 = vpop.permute.xlu0 %5320
  %5322 = vrot.lane.b32.xlu0 %v4220, 24
  %v5323 = vpop.permute.xlu0 %5322
  %5324 = vrot.lane.b32.xlu0 %v4413, 24
  %v5325 = vpop.permute.xlu0 %5324
  %5326 = vrot.lane.b32.xlu0 %v4223, 24
  %v5327 = vpop.permute.xlu0 %5326
  %5392 = vrot.lane.b32.xlu0 %v4518, 32
  %v5393 = vpop.permute.xlu0 %5392
  %5394 = vrot.lane.b32.xlu0 %v4520, 32
  %v5395 = vpop.permute.xlu0 %5394
  %5396 = vrot.lane.b32.xlu0 %v4523, 32
  %v5397 = vpop.permute.xlu0 %5396
  %5398 = vrot.lane.b32.xlu0 %v4525, 32
  %v5399 = vpop.permute.xlu0 %5398
  %5400 = vrot.lane.b32.xlu0 %v4528, 32
  %v5401 = vpop.permute.xlu0 %5400
  %5402 = vrot.lane.b32.xlu0 %v4530, 32
  %v5403 = vpop.permute.xlu0 %5402
  %5404 = vrot.lane.b32.xlu0 %v4533, 32
  %v5405 = vpop.permute.xlu0 %5404
  %5406 = vrot.lane.b32.xlu0 %v4535, 32
  %v5407 = vpop.permute.xlu0 %5406
  %5408 = vrot.lane.b32.xlu0 %v4538, 32
  %v5409 = vpop.permute.xlu0 %5408
  %5410 = vrot.lane.b32.xlu0 %v4540, 32
  %v5411 = vpop.permute.xlu0 %5410
  %5412 = vrot.lane.b32.xlu0 %v4543, 32
  %v5413 = vpop.permute.xlu0 %5412
  %5414 = vrot.lane.b32.xlu0 %v4545, 32
  %v5415 = vpop.permute.xlu0 %5414
  %5416 = vrot.lane.b32.xlu0 %v4548, 32
  %v5417 = vpop.permute.xlu0 %5416
  %5418 = vrot.lane.b32.xlu0 %v4550, 32
  %v5419 = vpop.permute.xlu0 %5418
  %5420 = vrot.lane.b32.xlu0 %v4553, 32
  %v5421 = vpop.permute.xlu0 %5420
  %5422 = vrot.lane.b32.xlu0 %v4555, 32
  %v5423 = vpop.permute.xlu0 %5422
  %5424 = vrot.lane.b32.xlu0 %v4558, 32
  %v5425 = vpop.permute.xlu0 %5424
  %5426 = vrot.lane.b32.xlu0 %v4560, 32
  %v5427 = vpop.permute.xlu0 %5426
  %5428 = vrot.lane.b32.xlu0 %v4563, 32
  %v5429 = vpop.permute.xlu0 %5428
  %5430 = vrot.lane.b32.xlu0 %v4565, 32
  %v5431 = vpop.permute.xlu0 %5430
  %5432 = vrot.lane.b32.xlu0 %v4568, 32
  %v5433 = vpop.permute.xlu0 %5432
  %5434 = vrot.lane.b32.xlu0 %v4570, 32
  %v5435 = vpop.permute.xlu0 %5434
  %5436 = vrot.lane.b32.xlu0 %v4573, 32
  %v5437 = vpop.permute.xlu0 %5436
  %5438 = vrot.lane.b32.xlu0 %v4575, 32
  %v5439 = vpop.permute.xlu0 %5438
  %5440 = vrot.lane.b32.xlu0 %v4578, 32
  %v5441 = vpop.permute.xlu0 %5440
  %5442 = vrot.lane.b32.xlu0 %v4580, 32
  %v5443 = vpop.permute.xlu0 %5442
  %5444 = vrot.lane.b32.xlu0 %v4583, 32
  %v5445 = vpop.permute.xlu0 %5444
  %5446 = vrot.lane.b32.xlu0 %v4585, 32
  %v5447 = vpop.permute.xlu0 %5446
  %5448 = vrot.lane.b32.xlu0 %v4588, 32
  %v5449 = vpop.permute.xlu0 %5448
  %5450 = vrot.lane.b32.xlu0 %v4590, 32
  %v5451 = vpop.permute.xlu0 %5450
  %5452 = vrot.lane.b32.xlu0 %v4822, 32
  %v5453 = vpop.permute.xlu0 %5452
  %5454 = vrot.lane.b32.xlu0 %v4824, 32
  %v5455 = vpop.permute.xlu0 %5454
  %5456 = vrot.lane.b32.xlu0 %v4593, 32
  %v5457 = vpop.permute.xlu0 %5456
  %5458 = vrot.lane.b32.xlu0 %v4595, 32
  %v5459 = vpop.permute.xlu0 %5458
  %5460 = vrot.lane.b32.xlu0 %v4598, 32
  %v5461 = vpop.permute.xlu0 %5460
  %5462 = vrot.lane.b32.xlu0 %v4600, 32
  %v5463 = vpop.permute.xlu0 %5462
  %5464 = vrot.lane.b32.xlu0 %v4603, 32
  %v5465 = vpop.permute.xlu0 %5464
  %5466 = vrot.lane.b32.xlu0 %v4605, 32
  %v5467 = vpop.permute.xlu0 %5466
  %5468 = vrot.lane.b32.xlu0 %v4608, 32
  %v5469 = vpop.permute.xlu0 %5468
  %5470 = vrot.lane.b32.xlu0 %v4610, 32
  %v5471 = vpop.permute.xlu0 %5470
  %5472 = vrot.lane.b32.xlu0 %v4613, 32
  %v5473 = vpop.permute.xlu0 %5472
  %5474 = vrot.lane.b32.xlu0 %v4615, 32
  %v5475 = vpop.permute.xlu0 %5474
  %5476 = vrot.lane.b32.xlu0 %v4618, 32
  %v5477 = vpop.permute.xlu0 %5476
  %5478 = vrot.lane.b32.xlu0 %v4620, 32
  %v5479 = vpop.permute.xlu0 %5478
  %5480 = vrot.lane.b32.xlu0 %v4623, 32
  %v5481 = vpop.permute.xlu0 %5480
  %5482 = vrot.lane.b32.xlu0 %v4625, 32
  %v5483 = vpop.permute.xlu0 %5482
  %5484 = vrot.lane.b32.xlu0 %v4628, 32
  %v5485 = vpop.permute.xlu0 %5484
  %5486 = vrot.lane.b32.xlu0 %v4630, 32
  %v5487 = vpop.permute.xlu0 %5486
  %5488 = vrot.lane.b32.xlu0 %v4633, 32
  %v5489 = vpop.permute.xlu0 %5488
  %5490 = vrot.lane.b32.xlu0 %v4635, 32
  %v5491 = vpop.permute.xlu0 %5490
  %5492 = vrot.lane.b32.xlu0 %v4638, 32
  %v5493 = vpop.permute.xlu0 %5492
  %5494 = vrot.lane.b32.xlu0 %v4640, 32
  %v5495 = vpop.permute.xlu0 %5494
  %5496 = vrot.lane.b32.xlu0 %v4643, 32
  %v5497 = vpop.permute.xlu0 %5496
  %5498 = vrot.lane.b32.xlu0 %v4645, 32
  %v5499 = vpop.permute.xlu0 %5498
  %5500 = vrot.lane.b32.xlu0 %v4648, 32
  %v5501 = vpop.permute.xlu0 %5500
  %5502 = vrot.lane.b32.xlu0 %v4650, 32
  %v5503 = vpop.permute.xlu0 %5502
  %5504 = vrot.lane.b32.xlu0 %v4653, 32
  %v5505 = vpop.permute.xlu0 %5504
  %5506 = vrot.lane.b32.xlu0 %v4655, 32
  %v5507 = vpop.permute.xlu0 %5506
  %5508 = vrot.lane.b32.xlu0 %v4658, 32
  %v5509 = vpop.permute.xlu0 %5508
  %5510 = vrot.lane.b32.xlu0 %v4660, 32
  %v5511 = vpop.permute.xlu0 %5510
  %5512 = vrot.lane.b32.xlu0 %v4663, 32
  %v5513 = vpop.permute.xlu0 %5512
  %5514 = vrot.lane.b32.xlu0 %v4665, 32
  %v5515 = vpop.permute.xlu0 %5514
  %5516 = vrot.lane.b32.xlu0 %v4827, 32
  %v5517 = vpop.permute.xlu0 %5516
  %5518 = vrot.lane.b32.xlu0 %v4829, 32
  %v5519 = vpop.permute.xlu0 %5518
  %5584 = vrot.lane.b32.xlu0 %v4668, 40
  %v5585 = vpop.permute.xlu0 %5584
  %5586 = vrot.lane.b32.xlu0 %v4670, 40
  %v5587 = vpop.permute.xlu0 %5586
  %5588 = vrot.lane.b32.xlu0 %v4673, 40
  %v5589 = vpop.permute.xlu0 %5588
  %5590 = vrot.lane.b32.xlu0 %v4675, 40
  %v5591 = vpop.permute.xlu0 %5590
  %5592 = vrot.lane.b32.xlu0 %v4678, 40
  %v5593 = vpop.permute.xlu0 %5592
  %5594 = vrot.lane.b32.xlu0 %v4680, 40
  %v5595 = vpop.permute.xlu0 %5594
  %5596 = vrot.lane.b32.xlu0 %v4683, 40
  %v5597 = vpop.permute.xlu0 %5596
  %5598 = vrot.lane.b32.xlu0 %v4685, 40
  %v5599 = vpop.permute.xlu0 %5598
  %5600 = vrot.lane.b32.xlu0 %v4688, 40
  %v5601 = vpop.permute.xlu0 %5600
  %5602 = vrot.lane.b32.xlu0 %v4690, 40
  %v5603 = vpop.permute.xlu0 %5602
  %5604 = vrot.lane.b32.xlu0 %v4693, 40
  %v5605 = vpop.permute.xlu0 %5604
  %5606 = vrot.lane.b32.xlu0 %v4695, 40
  %v5607 = vpop.permute.xlu0 %5606
  %5608 = vrot.lane.b32.xlu0 %v4698, 40
  %v5609 = vpop.permute.xlu0 %5608
  %5610 = vrot.lane.b32.xlu0 %v4700, 40
  %v5611 = vpop.permute.xlu0 %5610
  %5612 = vrot.lane.b32.xlu0 %v4703, 40
  %v5613 = vpop.permute.xlu0 %5612
  %5614 = vrot.lane.b32.xlu0 %v4705, 40
  %v5615 = vpop.permute.xlu0 %5614
  %5616 = vrot.lane.b32.xlu0 %v4708, 40
  %v5617 = vpop.permute.xlu0 %5616
  %5618 = vrot.lane.b32.xlu0 %v4710, 40
  %v5619 = vpop.permute.xlu0 %5618
  %5620 = vrot.lane.b32.xlu0 %v4713, 40
  %v5621 = vpop.permute.xlu0 %5620
  %5622 = vrot.lane.b32.xlu0 %v4715, 40
  %v5623 = vpop.permute.xlu0 %5622
  %5624 = vrot.lane.b32.xlu0 %v4718, 40
  %v5625 = vpop.permute.xlu0 %5624
  %5626 = vrot.lane.b32.xlu0 %v4720, 40
  %v5627 = vpop.permute.xlu0 %5626
  %5628 = vrot.lane.b32.xlu0 %v4723, 40
  %v5629 = vpop.permute.xlu0 %5628
  %5630 = vrot.lane.b32.xlu0 %v4725, 40
  %v5631 = vpop.permute.xlu0 %5630
  %5632 = vrot.lane.b32.xlu0 %v4728, 40
  %v5633 = vpop.permute.xlu0 %5632
  %5634 = vrot.lane.b32.xlu0 %v4730, 40
  %v5635 = vpop.permute.xlu0 %5634
  %5636 = vrot.lane.b32.xlu0 %v4733, 40
  %v5637 = vpop.permute.xlu0 %5636
  %5638 = vrot.lane.b32.xlu0 %v4735, 40
  %v5639 = vpop.permute.xlu0 %5638
  %5640 = vrot.lane.b32.xlu0 %v4738, 40
  %v5641 = vpop.permute.xlu0 %5640
  %5642 = vrot.lane.b32.xlu0 %v4740, 40
  %v5643 = vpop.permute.xlu0 %5642
  %5644 = vrot.lane.b32.xlu0 %v4832, 40
  %v5645 = vpop.permute.xlu0 %5644
  %5646 = vrot.lane.b32.xlu0 %v4834, 40
  %v5647 = vpop.permute.xlu0 %5646
  %5648 = vrot.lane.b32.xlu0 %v4743, 40
  %v5649 = vpop.permute.xlu0 %5648
  %5650 = vrot.lane.b32.xlu0 %v4745, 40
  %v5651 = vpop.permute.xlu0 %5650
  %5652 = vrot.lane.b32.xlu0 %v4748, 40
  %v5653 = vpop.permute.xlu0 %5652
  %5654 = vrot.lane.b32.xlu0 %v4750, 40
  %v5655 = vpop.permute.xlu0 %5654
  %5656 = vrot.lane.b32.xlu0 %v4753, 40
  %v5657 = vpop.permute.xlu0 %5656
  %5658 = vrot.lane.b32.xlu0 %v4755, 40
  %v5659 = vpop.permute.xlu0 %5658
  %5660 = vrot.lane.b32.xlu0 %v4758, 40
  %v5661 = vpop.permute.xlu0 %5660
  %5662 = vrot.lane.b32.xlu0 %v4760, 40
  %v5663 = vpop.permute.xlu0 %5662
  %5664 = vrot.lane.b32.xlu0 %v4763, 40
  %v5665 = vpop.permute.xlu0 %5664
  %5666 = vrot.lane.b32.xlu0 %v4765, 40
  %v5667 = vpop.permute.xlu0 %5666
  %5668 = vrot.lane.b32.xlu0 %v4768, 40
  %v5669 = vpop.permute.xlu0 %5668
  %5670 = vrot.lane.b32.xlu0 %v4770, 40
  %v5671 = vpop.permute.xlu0 %5670
  %5672 = vrot.lane.b32.xlu0 %v4773, 40
  %v5673 = vpop.permute.xlu0 %5672
  %5674 = vrot.lane.b32.xlu0 %v4775, 40
  %v5675 = vpop.permute.xlu0 %5674
  %5676 = vrot.lane.b32.xlu0 %v4778, 40
  %v5677 = vpop.permute.xlu0 %5676
  %5678 = vrot.lane.b32.xlu0 %v4780, 40
  %v5679 = vpop.permute.xlu0 %5678
  %5680 = vrot.lane.b32.xlu0 %v4783, 40
  %v5681 = vpop.permute.xlu0 %5680
  %5682 = vrot.lane.b32.xlu0 %v4785, 40
  %v5683 = vpop.permute.xlu0 %5682
  %5684 = vrot.lane.b32.xlu0 %v4788, 40
  %v5685 = vpop.permute.xlu0 %5684
  %5686 = vrot.lane.b32.xlu0 %v4790, 40
  %v5687 = vpop.permute.xlu0 %5686
  %5688 = vrot.lane.b32.xlu0 %v4793, 40
  %v5689 = vpop.permute.xlu0 %5688
  %5690 = vrot.lane.b32.xlu0 %v4795, 40
  %v5691 = vpop.permute.xlu0 %5690
  %5692 = vrot.lane.b32.xlu0 %v4798, 40
  %v5693 = vpop.permute.xlu0 %5692
  %5694 = vrot.lane.b32.xlu0 %v4800, 40
  %v5695 = vpop.permute.xlu0 %5694
  %5696 = vrot.lane.b32.xlu0 %v4803, 40
  %v5697 = vpop.permute.xlu0 %5696
  %5698 = vrot.lane.b32.xlu0 %v4805, 40
  %v5699 = vpop.permute.xlu0 %5698
  %5700 = vrot.lane.b32.xlu0 %v4808, 40
  %v5701 = vpop.permute.xlu0 %5700
  %5702 = vrot.lane.b32.xlu0 %v4810, 40
  %v5703 = vpop.permute.xlu0 %5702
  %5704 = vrot.lane.b32.xlu0 %v4813, 40
  %v5705 = vpop.permute.xlu0 %5704
  %5706 = vrot.lane.b32.xlu0 %v4815, 40
  %v5707 = vpop.permute.xlu0 %5706
  %5708 = vrot.lane.b32.xlu0 %v4837, 40
  %v5709 = vpop.permute.xlu0 %5708
  %5710 = vrot.lane.b32.xlu0 %v4839, 40
  %v5711 = vpop.permute.xlu0 %5710
  %5776 = vrot.lane.b32.xlu0 %v4383, 48
  %v5777 = vpop.permute.xlu0 %5776
  %5778 = vrot.lane.b32.xlu0 %v4133, 48
  %v5779 = vpop.permute.xlu0 %5778
  %5780 = vrot.lane.b32.xlu0 %v4384, 48
  %v5781 = vpop.permute.xlu0 %5780
  %5782 = vrot.lane.b32.xlu0 %v4136, 48
  %v5783 = vpop.permute.xlu0 %5782
  %5784 = vrot.lane.b32.xlu0 %v4385, 48
  %v5785 = vpop.permute.xlu0 %5784
  %5786 = vrot.lane.b32.xlu0 %v4139, 48
  %v5787 = vpop.permute.xlu0 %5786
  %5788 = vrot.lane.b32.xlu0 %v4386, 48
  %v5789 = vpop.permute.xlu0 %5788
  %5790 = vrot.lane.b32.xlu0 %v4142, 48
  %v5791 = vpop.permute.xlu0 %5790
  %5792 = vrot.lane.b32.xlu0 %v4387, 48
  %v5793 = vpop.permute.xlu0 %5792
  %5794 = vrot.lane.b32.xlu0 %v4145, 48
  %v5795 = vpop.permute.xlu0 %5794
  %5796 = vrot.lane.b32.xlu0 %v4388, 48
  %v5797 = vpop.permute.xlu0 %5796
  %5798 = vrot.lane.b32.xlu0 %v4148, 48
  %v5799 = vpop.permute.xlu0 %5798
  %5800 = vrot.lane.b32.xlu0 %v4389, 48
  %v5801 = vpop.permute.xlu0 %5800
  %5802 = vrot.lane.b32.xlu0 %v4151, 48
  %v5803 = vpop.permute.xlu0 %5802
  %5804 = vrot.lane.b32.xlu0 %v4390, 48
  %v5805 = vpop.permute.xlu0 %5804
  %5806 = vrot.lane.b32.xlu0 %v4154, 48
  %v5807 = vpop.permute.xlu0 %5806
  %5808 = vrot.lane.b32.xlu0 %v4391, 48
  %v5809 = vpop.permute.xlu0 %5808
  %5810 = vrot.lane.b32.xlu0 %v4157, 48
  %v5811 = vpop.permute.xlu0 %5810
  %5812 = vrot.lane.b32.xlu0 %v4392, 48
  %v5813 = vpop.permute.xlu0 %5812
  %5814 = vrot.lane.b32.xlu0 %v4160, 48
  %v5815 = vpop.permute.xlu0 %5814
  %5816 = vrot.lane.b32.xlu0 %v4393, 48
  %v5817 = vpop.permute.xlu0 %5816
  %5818 = vrot.lane.b32.xlu0 %v4163, 48
  %v5819 = vpop.permute.xlu0 %5818
  %5820 = vrot.lane.b32.xlu0 %v4394, 48
  %v5821 = vpop.permute.xlu0 %5820
  %5822 = vrot.lane.b32.xlu0 %v4166, 48
  %v5823 = vpop.permute.xlu0 %5822
  %5824 = vrot.lane.b32.xlu0 %v4395, 48
  %v5825 = vpop.permute.xlu0 %5824
  %5826 = vrot.lane.b32.xlu0 %v4169, 48
  %v5827 = vpop.permute.xlu0 %5826
  %5828 = vrot.lane.b32.xlu0 %v4396, 48
  %v5829 = vpop.permute.xlu0 %5828
  %5830 = vrot.lane.b32.xlu0 %v4172, 48
  %v5831 = vpop.permute.xlu0 %5830
  %5832 = vrot.lane.b32.xlu0 %v4397, 48
  %v5833 = vpop.permute.xlu0 %5832
  %5834 = vrot.lane.b32.xlu0 %v4175, 48
  %v5835 = vpop.permute.xlu0 %5834
  %5836 = vrot.lane.b32.xlu0 %v4399, 48
  %v5837 = vpop.permute.xlu0 %5836
  %5838 = vrot.lane.b32.xlu0 %v4181, 48
  %v5839 = vpop.permute.xlu0 %5838
  %5840 = vrot.lane.b32.xlu0 %v4400, 48
  %v5841 = vpop.permute.xlu0 %5840
  %5842 = vrot.lane.b32.xlu0 %v4184, 48
  %v5843 = vpop.permute.xlu0 %5842
  %5844 = vrot.lane.b32.xlu0 %v4401, 48
  %v5845 = vpop.permute.xlu0 %5844
  %5846 = vrot.lane.b32.xlu0 %v4187, 48
  %v5847 = vpop.permute.xlu0 %5846
  %5848 = vrot.lane.b32.xlu0 %v4402, 48
  %v5849 = vpop.permute.xlu0 %5848
  %5850 = vrot.lane.b32.xlu0 %v4190, 48
  %v5851 = vpop.permute.xlu0 %5850
  %5852 = vrot.lane.b32.xlu0 %v4403, 48
  %v5853 = vpop.permute.xlu0 %5852
  %5854 = vrot.lane.b32.xlu0 %v4193, 48
  %v5855 = vpop.permute.xlu0 %5854
  %5856 = vrot.lane.b32.xlu0 %v4404, 48
  %v5857 = vpop.permute.xlu0 %5856
  %5858 = vrot.lane.b32.xlu0 %v4196, 48
  %v5859 = vpop.permute.xlu0 %5858
  %5860 = vrot.lane.b32.xlu0 %v4405, 48
  %v5861 = vpop.permute.xlu0 %5860
  %5862 = vrot.lane.b32.xlu0 %v4199, 48
  %v5863 = vpop.permute.xlu0 %5862
  %5864 = vrot.lane.b32.xlu0 %v4406, 48
  %v5865 = vpop.permute.xlu0 %5864
  %5866 = vrot.lane.b32.xlu0 %v4202, 48
  %v5867 = vpop.permute.xlu0 %5866
  %5868 = vrot.lane.b32.xlu0 %v4407, 48
  %v5869 = vpop.permute.xlu0 %5868
  %5870 = vrot.lane.b32.xlu0 %v4205, 48
  %v5871 = vpop.permute.xlu0 %5870
  %5872 = vrot.lane.b32.xlu0 %v4408, 48
  %v5873 = vpop.permute.xlu0 %5872
  %5874 = vrot.lane.b32.xlu0 %v4208, 48
  %v5875 = vpop.permute.xlu0 %5874
  %5876 = vrot.lane.b32.xlu0 %v4409, 48
  %v5877 = vpop.permute.xlu0 %5876
  %5878 = vrot.lane.b32.xlu0 %v4211, 48
  %v5879 = vpop.permute.xlu0 %5878
  %5880 = vrot.lane.b32.xlu0 %v4410, 48
  %v5881 = vpop.permute.xlu0 %5880
  %5882 = vrot.lane.b32.xlu0 %v4214, 48
  %v5883 = vpop.permute.xlu0 %5882
  %5884 = vrot.lane.b32.xlu0 %v4411, 48
  %v5885 = vpop.permute.xlu0 %5884
  %5886 = vrot.lane.b32.xlu0 %v4217, 48
  %v5887 = vpop.permute.xlu0 %5886
  %5888 = vrot.lane.b32.xlu0 %v4412, 48
  %v5889 = vpop.permute.xlu0 %5888
  %5890 = vrot.lane.b32.xlu0 %v4220, 48
  %v5891 = vpop.permute.xlu0 %5890
  %5892 = vrot.lane.b32.xlu0 %v4413, 48
  %v5893 = vpop.permute.xlu0 %5892
  %5894 = vrot.lane.b32.xlu0 %v4223, 48
  %v5895 = vpop.permute.xlu0 %5894
  %5956 = vrot.lane.b32.xlu0 %v4523, 56
  %v5957 = vpop.permute.xlu0 %5956
  %5958 = vrot.lane.b32.xlu0 %v4525, 56
  %v5959 = vpop.permute.xlu0 %5958
  %5960 = vrot.lane.b32.xlu0 %v4528, 56
  %v5961 = vpop.permute.xlu0 %5960
  %5962 = vrot.lane.b32.xlu0 %v4530, 56
  %v5963 = vpop.permute.xlu0 %5962
  %5964 = vrot.lane.b32.xlu0 %v4533, 56
  %v5965 = vpop.permute.xlu0 %5964
  %5966 = vrot.lane.b32.xlu0 %v4535, 56
  %v5967 = vpop.permute.xlu0 %5966
  %5968 = vrot.lane.b32.xlu0 %v4538, 56
  %v5969 = vpop.permute.xlu0 %5968
  %5970 = vrot.lane.b32.xlu0 %v4540, 56
  %v5971 = vpop.permute.xlu0 %5970
  %5972 = vrot.lane.b32.xlu0 %v4543, 56
  %v5973 = vpop.permute.xlu0 %5972
  %5974 = vrot.lane.b32.xlu0 %v4545, 56
  %v5975 = vpop.permute.xlu0 %5974
  %5976 = vrot.lane.b32.xlu0 %v4548, 56
  %v5977 = vpop.permute.xlu0 %5976
  %5978 = vrot.lane.b32.xlu0 %v4550, 56
  %v5979 = vpop.permute.xlu0 %5978
  %5980 = vrot.lane.b32.xlu0 %v4553, 56
  %v5981 = vpop.permute.xlu0 %5980
  %5982 = vrot.lane.b32.xlu0 %v4555, 56
  %v5983 = vpop.permute.xlu0 %5982
  %5984 = vrot.lane.b32.xlu0 %v4558, 56
  %v5985 = vpop.permute.xlu0 %5984
  %5986 = vrot.lane.b32.xlu0 %v4560, 56
  %v5987 = vpop.permute.xlu0 %5986
  %5988 = vrot.lane.b32.xlu0 %v4563, 56
  %v5989 = vpop.permute.xlu0 %5988
  %5990 = vrot.lane.b32.xlu0 %v4565, 56
  %v5991 = vpop.permute.xlu0 %5990
  %5992 = vrot.lane.b32.xlu0 %v4568, 56
  %v5993 = vpop.permute.xlu0 %5992
  %5994 = vrot.lane.b32.xlu0 %v4570, 56
  %v5995 = vpop.permute.xlu0 %5994
  %5996 = vrot.lane.b32.xlu0 %v4573, 56
  %v5997 = vpop.permute.xlu0 %5996
  %5998 = vrot.lane.b32.xlu0 %v4575, 56
  %v5999 = vpop.permute.xlu0 %5998
  %6000 = vrot.lane.b32.xlu0 %v4578, 56
  %v6001 = vpop.permute.xlu0 %6000
  %6002 = vrot.lane.b32.xlu0 %v4580, 56
  %v6003 = vpop.permute.xlu0 %6002
  %6004 = vrot.lane.b32.xlu0 %v4583, 56
  %v6005 = vpop.permute.xlu0 %6004
  %6006 = vrot.lane.b32.xlu0 %v4585, 56
  %v6007 = vpop.permute.xlu0 %6006
  %6008 = vrot.lane.b32.xlu0 %v4588, 56
  %v6009 = vpop.permute.xlu0 %6008
  %6010 = vrot.lane.b32.xlu0 %v4590, 56
  %v6011 = vpop.permute.xlu0 %6010
  %6012 = vrot.lane.b32.xlu0 %v4822, 56
  %v6013 = vpop.permute.xlu0 %6012
  %6014 = vrot.lane.b32.xlu0 %v4824, 56
  %v6015 = vpop.permute.xlu0 %6014
  %6016 = vrot.lane.b32.xlu0 %v4598, 56
  %v6017 = vpop.permute.xlu0 %6016
  %6018 = vrot.lane.b32.xlu0 %v4600, 56
  %v6019 = vpop.permute.xlu0 %6018
  %6020 = vrot.lane.b32.xlu0 %v4603, 56
  %v6021 = vpop.permute.xlu0 %6020
  %6022 = vrot.lane.b32.xlu0 %v4605, 56
  %v6023 = vpop.permute.xlu0 %6022
  %6024 = vrot.lane.b32.xlu0 %v4608, 56
  %v6025 = vpop.permute.xlu0 %6024
  %6026 = vrot.lane.b32.xlu0 %v4610, 56
  %v6027 = vpop.permute.xlu0 %6026
  %6028 = vrot.lane.b32.xlu0 %v4613, 56
  %v6029 = vpop.permute.xlu0 %6028
  %6030 = vrot.lane.b32.xlu0 %v4615, 56
  %v6031 = vpop.permute.xlu0 %6030
  %6032 = vrot.lane.b32.xlu0 %v4618, 56
  %v6033 = vpop.permute.xlu0 %6032
  %6034 = vrot.lane.b32.xlu0 %v4620, 56
  %v6035 = vpop.permute.xlu0 %6034
  %6036 = vrot.lane.b32.xlu0 %v4623, 56
  %v6037 = vpop.permute.xlu0 %6036
  %6038 = vrot.lane.b32.xlu0 %v4625, 56
  %v6039 = vpop.permute.xlu0 %6038
  %6040 = vrot.lane.b32.xlu0 %v4628, 56
  %v6041 = vpop.permute.xlu0 %6040
  %6042 = vrot.lane.b32.xlu0 %v4630, 56
  %v6043 = vpop.permute.xlu0 %6042
  %6044 = vrot.lane.b32.xlu0 %v4633, 56
  %v6045 = vpop.permute.xlu0 %6044
  %6046 = vrot.lane.b32.xlu0 %v4635, 56
  %v6047 = vpop.permute.xlu0 %6046
  %6048 = vrot.lane.b32.xlu0 %v4638, 56
  %v6049 = vpop.permute.xlu0 %6048
  %6050 = vrot.lane.b32.xlu0 %v4640, 56
  %v6051 = vpop.permute.xlu0 %6050
  %6052 = vrot.lane.b32.xlu0 %v4643, 56
  %v6053 = vpop.permute.xlu0 %6052
  %6054 = vrot.lane.b32.xlu0 %v4645, 56
  %v6055 = vpop.permute.xlu0 %6054
  %6056 = vrot.lane.b32.xlu0 %v4648, 56
  %v6057 = vpop.permute.xlu0 %6056
  %6058 = vrot.lane.b32.xlu0 %v4650, 56
  %v6059 = vpop.permute.xlu0 %6058
  %6060 = vrot.lane.b32.xlu0 %v4653, 56
  %v6061 = vpop.permute.xlu0 %6060
  %6062 = vrot.lane.b32.xlu0 %v4655, 56
  %v6063 = vpop.permute.xlu0 %6062
  %6064 = vrot.lane.b32.xlu0 %v4658, 56
  %v6065 = vpop.permute.xlu0 %6064
  %6066 = vrot.lane.b32.xlu0 %v4660, 56
  %v6067 = vpop.permute.xlu0 %6066
  %6068 = vrot.lane.b32.xlu0 %v4663, 56
  %v6069 = vpop.permute.xlu0 %6068
  %6070 = vrot.lane.b32.xlu0 %v4665, 56
  %v6071 = vpop.permute.xlu0 %6070
  %6072 = vrot.lane.b32.xlu0 %v4827, 56
  %v6073 = vpop.permute.xlu0 %6072
  %6074 = vrot.lane.b32.xlu0 %v4829, 56
  %v6075 = vpop.permute.xlu0 %6074
  %6136 = vrot.lane.b32.xlu0 %v4673, 64
  %v6137 = vpop.permute.xlu0 %6136
  %6138 = vrot.lane.b32.xlu0 %v4675, 64
  %v6139 = vpop.permute.xlu0 %6138
  %6140 = vrot.lane.b32.xlu0 %v4678, 64
  %v6141 = vpop.permute.xlu0 %6140
  %6142 = vrot.lane.b32.xlu0 %v4680, 64
  %v6143 = vpop.permute.xlu0 %6142
  %6144 = vrot.lane.b32.xlu0 %v4683, 64
  %v6145 = vpop.permute.xlu0 %6144
  %6146 = vrot.lane.b32.xlu0 %v4685, 64
  %v6147 = vpop.permute.xlu0 %6146
  %6148 = vrot.lane.b32.xlu0 %v4688, 64
  %v6149 = vpop.permute.xlu0 %6148
  %6150 = vrot.lane.b32.xlu0 %v4690, 64
  %v6151 = vpop.permute.xlu0 %6150
  %6152 = vrot.lane.b32.xlu0 %v4693, 64
  %v6153 = vpop.permute.xlu0 %6152
  %6154 = vrot.lane.b32.xlu0 %v4695, 64
  %v6155 = vpop.permute.xlu0 %6154
  %6156 = vrot.lane.b32.xlu0 %v4698, 64
  %v6157 = vpop.permute.xlu0 %6156
  %6158 = vrot.lane.b32.xlu0 %v4700, 64
  %v6159 = vpop.permute.xlu0 %6158
  %6160 = vrot.lane.b32.xlu0 %v4703, 64
  %v6161 = vpop.permute.xlu0 %6160
  %6162 = vrot.lane.b32.xlu0 %v4705, 64
  %v6163 = vpop.permute.xlu0 %6162
  %6164 = vrot.lane.b32.xlu0 %v4708, 64
  %v6165 = vpop.permute.xlu0 %6164
  %6166 = vrot.lane.b32.xlu0 %v4710, 64
  %v6167 = vpop.permute.xlu0 %6166
  %6168 = vrot.lane.b32.xlu0 %v4713, 64
  %v6169 = vpop.permute.xlu0 %6168
  %6170 = vrot.lane.b32.xlu0 %v4715, 64
  %v6171 = vpop.permute.xlu0 %6170
  %6172 = vrot.lane.b32.xlu0 %v4718, 64
  %v6173 = vpop.permute.xlu0 %6172
  %6174 = vrot.lane.b32.xlu0 %v4720, 64
  %v6175 = vpop.permute.xlu0 %6174
  %6176 = vrot.lane.b32.xlu0 %v4723, 64
  %v6177 = vpop.permute.xlu0 %6176
  %6178 = vrot.lane.b32.xlu0 %v4725, 64
  %v6179 = vpop.permute.xlu0 %6178
  %6180 = vrot.lane.b32.xlu0 %v4728, 64
  %v6181 = vpop.permute.xlu0 %6180
  %6182 = vrot.lane.b32.xlu0 %v4730, 64
  %v6183 = vpop.permute.xlu0 %6182
  %6184 = vrot.lane.b32.xlu0 %v4733, 64
  %v6185 = vpop.permute.xlu0 %6184
  %6186 = vrot.lane.b32.xlu0 %v4735, 64
  %v6187 = vpop.permute.xlu0 %6186
  %6188 = vrot.lane.b32.xlu0 %v4738, 64
  %v6189 = vpop.permute.xlu0 %6188
  %6190 = vrot.lane.b32.xlu0 %v4740, 64
  %v6191 = vpop.permute.xlu0 %6190
  %6192 = vrot.lane.b32.xlu0 %v4832, 64
  %v6193 = vpop.permute.xlu0 %6192
  %6194 = vrot.lane.b32.xlu0 %v4834, 64
  %v6195 = vpop.permute.xlu0 %6194
  %6196 = vrot.lane.b32.xlu0 %v4748, 64
  %v6197 = vpop.permute.xlu0 %6196
  %6198 = vrot.lane.b32.xlu0 %v4750, 64
  %v6199 = vpop.permute.xlu0 %6198
  %6200 = vrot.lane.b32.xlu0 %v4753, 64
  %v6201 = vpop.permute.xlu0 %6200
  %6202 = vrot.lane.b32.xlu0 %v4755, 64
  %v6203 = vpop.permute.xlu0 %6202
  %6204 = vrot.lane.b32.xlu0 %v4758, 64
  %v6205 = vpop.permute.xlu0 %6204
  %6206 = vrot.lane.b32.xlu0 %v4760, 64
  %v6207 = vpop.permute.xlu0 %6206
  %6208 = vrot.lane.b32.xlu0 %v4763, 64
  %v6209 = vpop.permute.xlu0 %6208
  %6210 = vrot.lane.b32.xlu0 %v4765, 64
  %v6211 = vpop.permute.xlu0 %6210
  %6212 = vrot.lane.b32.xlu0 %v4768, 64
  %v6213 = vpop.permute.xlu0 %6212
  %6214 = vrot.lane.b32.xlu0 %v4770, 64
  %v6215 = vpop.permute.xlu0 %6214
  %6216 = vrot.lane.b32.xlu0 %v4773, 64
  %v6217 = vpop.permute.xlu0 %6216
  %6218 = vrot.lane.b32.xlu0 %v4775, 64
  %v6219 = vpop.permute.xlu0 %6218
  %6220 = vrot.lane.b32.xlu0 %v4778, 64
  %v6221 = vpop.permute.xlu0 %6220
  %6222 = vrot.lane.b32.xlu0 %v4780, 64
  %v6223 = vpop.permute.xlu0 %6222
  %6224 = vrot.lane.b32.xlu0 %v4783, 64
  %v6225 = vpop.permute.xlu0 %6224
  %6226 = vrot.lane.b32.xlu0 %v4785, 64
  %v6227 = vpop.permute.xlu0 %6226
  %6228 = vrot.lane.b32.xlu0 %v4788, 64
  %v6229 = vpop.permute.xlu0 %6228
  %6230 = vrot.lane.b32.xlu0 %v4790, 64
  %v6231 = vpop.permute.xlu0 %6230
  %6232 = vrot.lane.b32.xlu0 %v4793, 64
  %v6233 = vpop.permute.xlu0 %6232
  %6234 = vrot.lane.b32.xlu0 %v4795, 64
  %v6235 = vpop.permute.xlu0 %6234
  %6236 = vrot.lane.b32.xlu0 %v4798, 64
  %v6237 = vpop.permute.xlu0 %6236
  %6238 = vrot.lane.b32.xlu0 %v4800, 64
  %v6239 = vpop.permute.xlu0 %6238
  %6240 = vrot.lane.b32.xlu0 %v4803, 64
  %v6241 = vpop.permute.xlu0 %6240
  %6242 = vrot.lane.b32.xlu0 %v4805, 64
  %v6243 = vpop.permute.xlu0 %6242
  %6244 = vrot.lane.b32.xlu0 %v4808, 64
  %v6245 = vpop.permute.xlu0 %6244
  %6246 = vrot.lane.b32.xlu0 %v4810, 64
  %v6247 = vpop.permute.xlu0 %6246
  %6248 = vrot.lane.b32.xlu0 %v4813, 64
  %v6249 = vpop.permute.xlu0 %6248
  %6250 = vrot.lane.b32.xlu0 %v4815, 64
  %v6251 = vpop.permute.xlu0 %6250
  %6252 = vrot.lane.b32.xlu0 %v4837, 64
  %v6253 = vpop.permute.xlu0 %6252
  %6254 = vrot.lane.b32.xlu0 %v4839, 64
  %v6255 = vpop.permute.xlu0 %6254
  %v6316 = vsel %vm2420, %v4382, %v4841
  %v6317 = vsel %vm2420, %v4130, %v4843
  %v6318 = vsel %vm2420, %v4383, %v4845
  %v6319 = vsel %vm2420, %v4133, %v4847
  %v6320 = vsel %vm2420, %v4384, %v4849
  %v6321 = vsel %vm2420, %v4136, %v4851
  %v6322 = vsel %vm2420, %v4385, %v4853
  %v6323 = vsel %vm2420, %v4139, %v4855
  %v6324 = vsel %vm2420, %v4386, %v4857
  %v6325 = vsel %vm2420, %v4142, %v4859
  %v6326 = vsel %vm2420, %v4387, %v4861
  %v6327 = vsel %vm2420, %v4145, %v4863
  %v6328 = vsel %vm2420, %v4388, %v4865
  %v6329 = vsel %vm2420, %v4148, %v4867
  %v6330 = vsel %vm2420, %v4389, %v4869
  %v6331 = vsel %vm2420, %v4151, %v4871
  %v6332 = vsel %vm2420, %v4390, %v4873
  %v6333 = vsel %vm2420, %v4154, %v4875
  %v6334 = vsel %vm2420, %v4391, %v4877
  %v6335 = vsel %vm2420, %v4157, %v4879
  %v6336 = vsel %vm2420, %v4392, %v4881
  %v6337 = vsel %vm2420, %v4160, %v4883
  %v6338 = vsel %vm2420, %v4393, %v4885
  %v6339 = vsel %vm2420, %v4163, %v4887
  %v6340 = vsel %vm2420, %v4394, %v4889
  %v6341 = vsel %vm2420, %v4166, %v4891
  %v6342 = vsel %vm2420, %v4395, %v4893
  %v6343 = vsel %vm2420, %v4169, %v4895
  %v6344 = vsel %vm2420, %v4396, %v4897
  %v6345 = vsel %vm2420, %v4172, %v4899
  %v6346 = vsel %vm2420, %v4398, %v4901
  %v6347 = vsel %vm2420, %v4178, %v4903
  %v6348 = vsel %vm2420, %v4399, %v4905
  %v6349 = vsel %vm2420, %v4181, %v4907
  %v6350 = vsel %vm2420, %v4400, %v4909
  %v6351 = vsel %vm2420, %v4184, %v4911
  %v6352 = vsel %vm2420, %v4401, %v4913
  %v6353 = vsel %vm2420, %v4187, %v4915
  %v6354 = vsel %vm2420, %v4402, %v4917
  %v6355 = vsel %vm2420, %v4190, %v4919
  %v6356 = vsel %vm2420, %v4403, %v4921
  %v6357 = vsel %vm2420, %v4193, %v4923
  %v6358 = vsel %vm2420, %v4404, %v4925
  %v6359 = vsel %vm2420, %v4196, %v4927
  %v6360 = vsel %vm2420, %v4405, %v4929
  %v6361 = vsel %vm2420, %v4199, %v4931
  %v6362 = vsel %vm2420, %v4406, %v4933
  %v6363 = vsel %vm2420, %v4202, %v4935
  %v6364 = vsel %vm2420, %v4407, %v4937
  %v6365 = vsel %vm2420, %v4205, %v4939
  %v6366 = vsel %vm2420, %v4408, %v4941
  %v6367 = vsel %vm2420, %v4208, %v4943
  %v6368 = vsel %vm2420, %v4409, %v4945
  %v6369 = vsel %vm2420, %v4211, %v4947
  %v6370 = vsel %vm2420, %v4410, %v4949
  %v6371 = vsel %vm2420, %v4214, %v4951
  %v6372 = vsel %vm2420, %v4411, %v4953
  %v6373 = vsel %vm2420, %v4217, %v4955
  %v6374 = vsel %vm2420, %v4412, %v4957
  %v6375 = vsel %vm2420, %v4220, %v4959
  %v6376 = vsel %vm2546, %v6316, %v5021
  %v6377 = vsel %vm2546, %v6317, %v5023
  %v6378 = vsel %vm2546, %v6318, %v5025
  %v6379 = vsel %vm2546, %v6319, %v5027
  %v6380 = vsel %vm2546, %v6320, %v5029
  %v6381 = vsel %vm2546, %v6321, %v5031
  %v6382 = vsel %vm2546, %v6322, %v5033
  %v6383 = vsel %vm2546, %v6323, %v5035
  %v6384 = vsel %vm2546, %v6324, %v5037
  %v6385 = vsel %vm2546, %v6325, %v5039
  %v6386 = vsel %vm2546, %v6326, %v5041
  %v6387 = vsel %vm2546, %v6327, %v5043
  %v6388 = vsel %vm2546, %v6328, %v5045
  %v6389 = vsel %vm2546, %v6329, %v5047
  %v6390 = vsel %vm2546, %v6330, %v5049
  %v6391 = vsel %vm2546, %v6331, %v5051
  %v6392 = vsel %vm2546, %v6332, %v5053
  %v6393 = vsel %vm2546, %v6333, %v5055
  %v6394 = vsel %vm2546, %v6334, %v5057
  %v6395 = vsel %vm2546, %v6335, %v5059
  %v6396 = vsel %vm2546, %v6336, %v5061
  %v6397 = vsel %vm2546, %v6337, %v5063
  %v6398 = vsel %vm2546, %v6338, %v5065
  %v6399 = vsel %vm2546, %v6339, %v5067
  %v6400 = vsel %vm2546, %v6340, %v5069
  %v6401 = vsel %vm2546, %v6341, %v5071
  %v6402 = vsel %vm2546, %v6342, %v5073
  %v6403 = vsel %vm2546, %v6343, %v5075
  %v6404 = vsel %vm2546, %v6344, %v5077
  %v6405 = vsel %vm2546, %v6345, %v5079
  %v6406 = vsel %vm2546, %v6346, %v5081
  %v6407 = vsel %vm2546, %v6347, %v5083
  %v6408 = vsel %vm2546, %v6348, %v5085
  %v6409 = vsel %vm2546, %v6349, %v5087
  %v6410 = vsel %vm2546, %v6350, %v5089
  %v6411 = vsel %vm2546, %v6351, %v5091
  %v6412 = vsel %vm2546, %v6352, %v5093
  %v6413 = vsel %vm2546, %v6353, %v5095
  %v6414 = vsel %vm2546, %v6354, %v5097
  %v6415 = vsel %vm2546, %v6355, %v5099
  %v6416 = vsel %vm2546, %v6356, %v5101
  %v6417 = vsel %vm2546, %v6357, %v5103
  %v6418 = vsel %vm2546, %v6358, %v5105
  %v6419 = vsel %vm2546, %v6359, %v5107
  %v6420 = vsel %vm2546, %v6360, %v5109
  %v6421 = vsel %vm2546, %v6361, %v5111
  %v6422 = vsel %vm2546, %v6362, %v5113
  %v6423 = vsel %vm2546, %v6363, %v5115
  %v6424 = vsel %vm2546, %v6364, %v5117
  %v6425 = vsel %vm2546, %v6365, %v5119
  %v6426 = vsel %vm2546, %v6366, %v5121
  %v6427 = vsel %vm2546, %v6367, %v5123
  %v6428 = vsel %vm2546, %v6368, %v5125
  %v6429 = vsel %vm2546, %v6369, %v5127
  %v6430 = vsel %vm2546, %v6370, %v5129
  %v6431 = vsel %vm2546, %v6371, %v5131
  %v6432 = vsel %vm2546, %v6372, %v5133
  %v6433 = vsel %vm2546, %v6373, %v5135
  %v6434 = vsel %vm2546, %v6374, %v5137
  %v6435 = vsel %vm2546, %v6375, %v5139
  %v6436 = vsel %vm2676, %v6376, %v5201
  %v6437 = vsel %vm2676, %v6377, %v5203
  %v6438 = vsel %vm2676, %v6376, %v5205
  %v6439 = vsel %vm2676, %v6377, %v5207
  %v6440 = vsel %vm2676, %v6378, %v5209
  %v6441 = vsel %vm2676, %v6379, %v5211
  %v6442 = vsel %vm2676, %v6380, %v5213
  %v6443 = vsel %vm2676, %v6381, %v5215
  %v6444 = vsel %vm2676, %v6382, %v5217
  %v6445 = vsel %vm2676, %v6383, %v5219
  %v6446 = vsel %vm2676, %v6384, %v5221
  %v6447 = vsel %vm2676, %v6385, %v5223
  %v6448 = vsel %vm2676, %v6386, %v5225
  %v6449 = vsel %vm2676, %v6387, %v5227
  %v6450 = vsel %vm2676, %v6388, %v5229
  %v6451 = vsel %vm2676, %v6389, %v5231
  %v6452 = vsel %vm2676, %v6390, %v5233
  %v6453 = vsel %vm2676, %v6391, %v5235
  %v6454 = vsel %vm2676, %v6392, %v5237
  %v6455 = vsel %vm2676, %v6393, %v5239
  %v6456 = vsel %vm2676, %v6394, %v5241
  %v6457 = vsel %vm2676, %v6395, %v5243
  %v6458 = vsel %vm2676, %v6396, %v5245
  %v6459 = vsel %vm2676, %v6397, %v5247
  %v6460 = vsel %vm2676, %v6398, %v5249
  %v6461 = vsel %vm2676, %v6399, %v5251
  %v6462 = vsel %vm2676, %v6400, %v5253
  %v6463 = vsel %vm2676, %v6401, %v5255
  %v6464 = vsel %vm2676, %v6402, %v5257
  %v6465 = vsel %vm2676, %v6403, %v5259
  %v6466 = vsel %vm2676, %v6404, %v5261
  %v6467 = vsel %vm2676, %v6405, %v5263
  %v6468 = vsel %vm2676, %v6406, %v5265
  %v6469 = vsel %vm2676, %v6407, %v5267
  %v6470 = vsel %vm2676, %v6406, %v5269
  %v6471 = vsel %vm2676, %v6407, %v5271
  %v6472 = vsel %vm2676, %v6408, %v5273
  %v6473 = vsel %vm2676, %v6409, %v5275
  %v6474 = vsel %vm2676, %v6410, %v5277
  %v6475 = vsel %vm2676, %v6411, %v5279
  %v6476 = vsel %vm2676, %v6412, %v5281
  %v6477 = vsel %vm2676, %v6413, %v5283
  %v6478 = vsel %vm2676, %v6414, %v5285
  %v6479 = vsel %vm2676, %v6415, %v5287
  %v6480 = vsel %vm2676, %v6416, %v5289
  %v6481 = vsel %vm2676, %v6417, %v5291
  %v6482 = vsel %vm2676, %v6418, %v5293
  %v6483 = vsel %vm2676, %v6419, %v5295
  %v6484 = vsel %vm2676, %v6420, %v5297
  %v6485 = vsel %vm2676, %v6421, %v5299
  %v6486 = vsel %vm2676, %v6422, %v5301
  %v6487 = vsel %vm2676, %v6423, %v5303
  %v6488 = vsel %vm2676, %v6424, %v5305
  %v6489 = vsel %vm2676, %v6425, %v5307
  %v6490 = vsel %vm2676, %v6426, %v5309
  %v6491 = vsel %vm2676, %v6427, %v5311
  %v6492 = vsel %vm2676, %v6428, %v5313
  %v6493 = vsel %vm2676, %v6429, %v5315
  %v6494 = vsel %vm2676, %v6430, %v5317
  %v6495 = vsel %vm2676, %v6431, %v5319
  %v6496 = vsel %vm2676, %v6432, %v5321
  %v6497 = vsel %vm2676, %v6433, %v5323
  %v6498 = vsel %vm2676, %v6434, %v5325
  %v6499 = vsel %vm2676, %v6435, %v5327
  %v6500 = vsel %vm2806, %v6436, %v5393
  %v6501 = vsel %vm2806, %v6437, %v5395
  %v6502 = vsel %vm2806, %v6438, %v5397
  %v6503 = vsel %vm2806, %v6439, %v5399
  %v6504 = vsel %vm2806, %v6440, %v5401
  %v6505 = vsel %vm2806, %v6441, %v5403
  %v6506 = vsel %vm2806, %v6442, %v5405
  %v6507 = vsel %vm2806, %v6443, %v5407
  %v6508 = vsel %vm2806, %v6444, %v5409
  %v6509 = vsel %vm2806, %v6445, %v5411
  %v6510 = vsel %vm2806, %v6446, %v5413
  %v6511 = vsel %vm2806, %v6447, %v5415
  %v6512 = vsel %vm2806, %v6448, %v5417
  %v6513 = vsel %vm2806, %v6449, %v5419
  %v6514 = vsel %vm2806, %v6450, %v5421
  %v6515 = vsel %vm2806, %v6451, %v5423
  %v6516 = vsel %vm2806, %v6452, %v5425
  %v6517 = vsel %vm2806, %v6453, %v5427
  %v6518 = vsel %vm2806, %v6454, %v5429
  %v6519 = vsel %vm2806, %v6455, %v5431
  %v6520 = vsel %vm2806, %v6456, %v5433
  %v6521 = vsel %vm2806, %v6457, %v5435
  %v6522 = vsel %vm2806, %v6458, %v5437
  %v6523 = vsel %vm2806, %v6459, %v5439
  %v6524 = vsel %vm2806, %v6460, %v5441
  %v6525 = vsel %vm2806, %v6461, %v5443
  %v6526 = vsel %vm2806, %v6462, %v5445
  %v6527 = vsel %vm2806, %v6463, %v5447
  %v6528 = vsel %vm2806, %v6464, %v5449
  %v6529 = vsel %vm2806, %v6465, %v5451
  %v6530 = vsel %vm2806, %v6466, %v5453
  %v6531 = vsel %vm2806, %v6467, %v5455
  %v6532 = vsel %vm2806, %v6468, %v5457
  %v6533 = vsel %vm2806, %v6469, %v5459
  %v6534 = vsel %vm2806, %v6470, %v5461
  %v6535 = vsel %vm2806, %v6471, %v5463
  %v6536 = vsel %vm2806, %v6472, %v5465
  %v6537 = vsel %vm2806, %v6473, %v5467
  %v6538 = vsel %vm2806, %v6474, %v5469
  %v6539 = vsel %vm2806, %v6475, %v5471
  %v6540 = vsel %vm2806, %v6476, %v5473
  %v6541 = vsel %vm2806, %v6477, %v5475
  %v6542 = vsel %vm2806, %v6478, %v5477
  %v6543 = vsel %vm2806, %v6479, %v5479
  %v6544 = vsel %vm2806, %v6480, %v5481
  %v6545 = vsel %vm2806, %v6481, %v5483
  %v6546 = vsel %vm2806, %v6482, %v5485
  %v6547 = vsel %vm2806, %v6483, %v5487
  %v6548 = vsel %vm2806, %v6484, %v5489
  %v6549 = vsel %vm2806, %v6485, %v5491
  %v6550 = vsel %vm2806, %v6486, %v5493
  %v6551 = vsel %vm2806, %v6487, %v5495
  %v6552 = vsel %vm2806, %v6488, %v5497
  %v6553 = vsel %vm2806, %v6489, %v5499
  %v6554 = vsel %vm2806, %v6490, %v5501
  %v6555 = vsel %vm2806, %v6491, %v5503
  %v6556 = vsel %vm2806, %v6492, %v5505
  %v6557 = vsel %vm2806, %v6493, %v5507
  %v6558 = vsel %vm2806, %v6494, %v5509
  %v6559 = vsel %vm2806, %v6495, %v5511
  %v6560 = vsel %vm2806, %v6496, %v5513
  %v6561 = vsel %vm2806, %v6497, %v5515
  %v6562 = vsel %vm2806, %v6498, %v5517
  %v6563 = vsel %vm2806, %v6499, %v5519
  %vm6564 = vcmask 326656
  %v6565 = vsel %vm6564, %v6500, %v5585
  %v6566 = vsel %vm6564, %v6501, %v5587
  %v6567 = vsel %vm6564, %v6502, %v5589
  %v6568 = vsel %vm6564, %v6503, %v5591
  %v6569 = vsel %vm6564, %v6504, %v5593
  %v6570 = vsel %vm6564, %v6505, %v5595
  %v6571 = vsel %vm6564, %v6506, %v5597
  %v6572 = vsel %vm6564, %v6507, %v5599
  %v6573 = vsel %vm6564, %v6508, %v5601
  %v6574 = vsel %vm6564, %v6509, %v5603
  %v6575 = vsel %vm6564, %v6510, %v5605
  %v6576 = vsel %vm6564, %v6511, %v5607
  %v6577 = vsel %vm6564, %v6512, %v5609
  %v6578 = vsel %vm6564, %v6513, %v5611
  %v6579 = vsel %vm6564, %v6514, %v5613
  %v6580 = vsel %vm6564, %v6515, %v5615
  %v6581 = vsel %vm6564, %v6516, %v5617
  %v6582 = vsel %vm6564, %v6517, %v5619
  %v6583 = vsel %vm6564, %v6518, %v5621
  %v6584 = vsel %vm6564, %v6519, %v5623
  %v6585 = vsel %vm6564, %v6520, %v5625
  %v6586 = vsel %vm6564, %v6521, %v5627
  %v6587 = vsel %vm6564, %v6522, %v5629
  %v6588 = vsel %vm6564, %v6523, %v5631
  %v6589 = vsel %vm6564, %v6524, %v5633
  %v6590 = vsel %vm6564, %v6525, %v5635
  %v6591 = vsel %vm6564, %v6526, %v5637
  %v6592 = vsel %vm6564, %v6527, %v5639
  %v6593 = vsel %vm6564, %v6528, %v5641
  %v6594 = vsel %vm6564, %v6529, %v5643
  %v6595 = vsel %vm6564, %v6530, %v5645
  %v6596 = vsel %vm6564, %v6531, %v5647
  %v6597 = vsel %vm6564, %v6532, %v5649
  %v6598 = vsel %vm6564, %v6533, %v5651
  %v6599 = vsel %vm6564, %v6534, %v5653
  %v6600 = vsel %vm6564, %v6535, %v5655
  %v6601 = vsel %vm6564, %v6536, %v5657
  %v6602 = vsel %vm6564, %v6537, %v5659
  %v6603 = vsel %vm6564, %v6538, %v5661
  %v6604 = vsel %vm6564, %v6539, %v5663
  %v6605 = vsel %vm6564, %v6540, %v5665
  %v6606 = vsel %vm6564, %v6541, %v5667
  %v6607 = vsel %vm6564, %v6542, %v5669
  %v6608 = vsel %vm6564, %v6543, %v5671
  %v6609 = vsel %vm6564, %v6544, %v5673
  %v6610 = vsel %vm6564, %v6545, %v5675
  %v6611 = vsel %vm6564, %v6546, %v5677
  %v6612 = vsel %vm6564, %v6547, %v5679
  %v6613 = vsel %vm6564, %v6548, %v5681
  %v6614 = vsel %vm6564, %v6549, %v5683
  %v6615 = vsel %vm6564, %v6550, %v5685
  %v6616 = vsel %vm6564, %v6551, %v5687
  %v6617 = vsel %vm6564, %v6552, %v5689
  %v6618 = vsel %vm6564, %v6553, %v5691
  %v6619 = vsel %vm6564, %v6554, %v5693
  %v6620 = vsel %vm6564, %v6555, %v5695
  %v6621 = vsel %vm6564, %v6556, %v5697
  %v6622 = vsel %vm6564, %v6557, %v5699
  %v6623 = vsel %vm6564, %v6558, %v5701
  %v6624 = vsel %vm6564, %v6559, %v5703
  %v6625 = vsel %vm6564, %v6560, %v5705
  %v6626 = vsel %vm6564, %v6561, %v5707
  %v6627 = vsel %vm6564, %v6562, %v5709
  %v6628 = vsel %vm6564, %v6563, %v5711
  %vm6629 = vcmask 392192
  %v6630 = vsel %vm6629, %v6565, %v5777
  %v6631 = vsel %vm6629, %v6566, %v5779
  %v6632 = vsel %vm6629, %v6567, %v5781
  %v6633 = vsel %vm6629, %v6568, %v5783
  %v6634 = vsel %vm6629, %v6569, %v5785
  %v6635 = vsel %vm6629, %v6570, %v5787
  %v6636 = vsel %vm6629, %v6571, %v5789
  %v6637 = vsel %vm6629, %v6572, %v5791
  %v6638 = vsel %vm6629, %v6573, %v5793
  %v6639 = vsel %vm6629, %v6574, %v5795
  %v6640 = vsel %vm6629, %v6575, %v5797
  %v6641 = vsel %vm6629, %v6576, %v5799
  %v6642 = vsel %vm6629, %v6577, %v5801
  %v6643 = vsel %vm6629, %v6578, %v5803
  %v6644 = vsel %vm6629, %v6579, %v5805
  %v6645 = vsel %vm6629, %v6580, %v5807
  %v6646 = vsel %vm6629, %v6581, %v5809
  %v6647 = vsel %vm6629, %v6582, %v5811
  %v6648 = vsel %vm6629, %v6583, %v5813
  %v6649 = vsel %vm6629, %v6584, %v5815
  %v6650 = vsel %vm6629, %v6585, %v5817
  %v6651 = vsel %vm6629, %v6586, %v5819
  %v6652 = vsel %vm6629, %v6587, %v5821
  %v6653 = vsel %vm6629, %v6588, %v5823
  %v6654 = vsel %vm6629, %v6589, %v5825
  %v6655 = vsel %vm6629, %v6590, %v5827
  %v6656 = vsel %vm6629, %v6591, %v5829
  %v6657 = vsel %vm6629, %v6592, %v5831
  %v6658 = vsel %vm6629, %v6593, %v5833
  %v6659 = vsel %vm6629, %v6594, %v5835
  %v6660 = vsel %vm6629, %v6595, %v5833
  %v6661 = vsel %vm6629, %v6596, %v5835
  %v6662 = vsel %vm6629, %v6597, %v5837
  %v6663 = vsel %vm6629, %v6598, %v5839
  %v6664 = vsel %vm6629, %v6599, %v5841
  %v6665 = vsel %vm6629, %v6600, %v5843
  %v6666 = vsel %vm6629, %v6601, %v5845
  %v6667 = vsel %vm6629, %v6602, %v5847
  %v6668 = vsel %vm6629, %v6603, %v5849
  %v6669 = vsel %vm6629, %v6604, %v5851
  %v6670 = vsel %vm6629, %v6605, %v5853
  %v6671 = vsel %vm6629, %v6606, %v5855
  %v6672 = vsel %vm6629, %v6607, %v5857
  %v6673 = vsel %vm6629, %v6608, %v5859
  %v6674 = vsel %vm6629, %v6609, %v5861
  %v6675 = vsel %vm6629, %v6610, %v5863
  %v6676 = vsel %vm6629, %v6611, %v5865
  %v6677 = vsel %vm6629, %v6612, %v5867
  %v6678 = vsel %vm6629, %v6613, %v5869
  %v6679 = vsel %vm6629, %v6614, %v5871
  %v6680 = vsel %vm6629, %v6615, %v5873
  %v6681 = vsel %vm6629, %v6616, %v5875
  %v6682 = vsel %vm6629, %v6617, %v5877
  %v6683 = vsel %vm6629, %v6618, %v5879
  %v6684 = vsel %vm6629, %v6619, %v5881
  %v6685 = vsel %vm6629, %v6620, %v5883
  %v6686 = vsel %vm6629, %v6621, %v5885
  %v6687 = vsel %vm6629, %v6622, %v5887
  %v6688 = vsel %vm6629, %v6623, %v5889
  %v6689 = vsel %vm6629, %v6624, %v5891
  %v6690 = vsel %vm6629, %v6625, %v5893
  %v6691 = vsel %vm6629, %v6626, %v5895
  %v6692 = vsel %vm6629, %v6627, %v5893
  %v6693 = vsel %vm6629, %v6628, %v5895
  %vm6694 = vcmask 457728
  %v6695 = vsel %vm6694, %v6630, %v5957
  %v6696 = vsel %vm6694, %v6631, %v5959
  %v6697 = vsel %vm6694, %v6632, %v5961
  %v6698 = vsel %vm6694, %v6633, %v5963
  %v6699 = vsel %vm6694, %v6634, %v5965
  %v6700 = vsel %vm6694, %v6635, %v5967
  %v6701 = vsel %vm6694, %v6636, %v5969
  %v6702 = vsel %vm6694, %v6637, %v5971
  %v6703 = vsel %vm6694, %v6638, %v5973
  %v6704 = vsel %vm6694, %v6639, %v5975
  %v6705 = vsel %vm6694, %v6640, %v5977
  %v6706 = vsel %vm6694, %v6641, %v5979
  %v6707 = vsel %vm6694, %v6642, %v5981
  %v6708 = vsel %vm6694, %v6643, %v5983
  %v6709 = vsel %vm6694, %v6644, %v5985
  %v6710 = vsel %vm6694, %v6645, %v5987
  %v6711 = vsel %vm6694, %v6646, %v5989
  %v6712 = vsel %vm6694, %v6647, %v5991
  %v6713 = vsel %vm6694, %v6648, %v5993
  %v6714 = vsel %vm6694, %v6649, %v5995
  %v6715 = vsel %vm6694, %v6650, %v5997
  %v6716 = vsel %vm6694, %v6651, %v5999
  %v6717 = vsel %vm6694, %v6652, %v6001
  %v6718 = vsel %vm6694, %v6653, %v6003
  %v6719 = vsel %vm6694, %v6654, %v6005
  %v6720 = vsel %vm6694, %v6655, %v6007
  %v6721 = vsel %vm6694, %v6656, %v6009
  %v6722 = vsel %vm6694, %v6657, %v6011
  %v6723 = vsel %vm6694, %v6658, %v6013
  %v6724 = vsel %vm6694, %v6659, %v6015
  %v6725 = vsel %vm6694, %v6660, %v6013
  %v6726 = vsel %vm6694, %v6661, %v6015
  %v6727 = vsel %vm6694, %v6662, %v6017
  %v6728 = vsel %vm6694, %v6663, %v6019
  %v6729 = vsel %vm6694, %v6664, %v6021
  %v6730 = vsel %vm6694, %v6665, %v6023
  %v6731 = vsel %vm6694, %v6666, %v6025
  %v6732 = vsel %vm6694, %v6667, %v6027
  %v6733 = vsel %vm6694, %v6668, %v6029
  %v6734 = vsel %vm6694, %v6669, %v6031
  %v6735 = vsel %vm6694, %v6670, %v6033
  %v6736 = vsel %vm6694, %v6671, %v6035
  %v6737 = vsel %vm6694, %v6672, %v6037
  %v6738 = vsel %vm6694, %v6673, %v6039
  %v6739 = vsel %vm6694, %v6674, %v6041
  %v6740 = vsel %vm6694, %v6675, %v6043
  %v6741 = vsel %vm6694, %v6676, %v6045
  %v6742 = vsel %vm6694, %v6677, %v6047
  %v6743 = vsel %vm6694, %v6678, %v6049
  %v6744 = vsel %vm6694, %v6679, %v6051
  %v6745 = vsel %vm6694, %v6680, %v6053
  %v6746 = vsel %vm6694, %v6681, %v6055
  %v6747 = vsel %vm6694, %v6682, %v6057
  %v6748 = vsel %vm6694, %v6683, %v6059
  %v6749 = vsel %vm6694, %v6684, %v6061
  %v6750 = vsel %vm6694, %v6685, %v6063
  %v6751 = vsel %vm6694, %v6686, %v6065
  %v6752 = vsel %vm6694, %v6687, %v6067
  %v6753 = vsel %vm6694, %v6688, %v6069
  %v6754 = vsel %vm6694, %v6689, %v6071
  %v6755 = vsel %vm6694, %v6690, %v6073
  %v6756 = vsel %vm6694, %v6691, %v6075
  %v6757 = vsel %vm6694, %v6692, %v6073
  %v6758 = vsel %vm6694, %v6693, %v6075
  %vm6759 = vcmask 523264
  %v6760 = vsel %vm6759, %v6695, %v6137
  %v6761 = vsel %vm6759, %v6696, %v6139
  %v6762 = vsel %vm6759, %v6697, %v6141
  %v6763 = vsel %vm6759, %v6698, %v6143
  %v6764 = vsel %vm6759, %v6699, %v6145
  %v6765 = vsel %vm6759, %v6700, %v6147
  %v6766 = vsel %vm6759, %v6701, %v6149
  %v6767 = vsel %vm6759, %v6702, %v6151
  %v6768 = vsel %vm6759, %v6703, %v6153
  %v6769 = vsel %vm6759, %v6704, %v6155
  %v6770 = vsel %vm6759, %v6705, %v6157
  %v6771 = vsel %vm6759, %v6706, %v6159
  %v6772 = vsel %vm6759, %v6707, %v6161
  %v6773 = vsel %vm6759, %v6708, %v6163
  %v6774 = vsel %vm6759, %v6709, %v6165
  %v6775 = vsel %vm6759, %v6710, %v6167
  %v6776 = vsel %vm6759, %v6711, %v6169
  %v6777 = vsel %vm6759, %v6712, %v6171
  %v6778 = vsel %vm6759, %v6713, %v6173
  %v6779 = vsel %vm6759, %v6714, %v6175
  %v6780 = vsel %vm6759, %v6715, %v6177
  %v6781 = vsel %vm6759, %v6716, %v6179
  %v6782 = vsel %vm6759, %v6717, %v6181
  %v6783 = vsel %vm6759, %v6718, %v6183
  %v6784 = vsel %vm6759, %v6719, %v6185
  %v6785 = vsel %vm6759, %v6720, %v6187
  %v6786 = vsel %vm6759, %v6721, %v6189
  %v6787 = vsel %vm6759, %v6722, %v6191
  %v6788 = vsel %vm6759, %v6723, %v6193
  %v6789 = vsel %vm6759, %v6724, %v6195
  %v6790 = vsel %vm6759, %v6725, %v6193
  %v6791 = vsel %vm6759, %v6726, %v6195
  %v6792 = vsel %vm6759, %v6727, %v6197
  %v6793 = vsel %vm6759, %v6728, %v6199
  %v6794 = vsel %vm6759, %v6729, %v6201
  %v6795 = vsel %vm6759, %v6730, %v6203
  %v6796 = vsel %vm6759, %v6731, %v6205
  %v6797 = vsel %vm6759, %v6732, %v6207
  %v6798 = vsel %vm6759, %v6733, %v6209
  %v6799 = vsel %vm6759, %v6734, %v6211
  %v6800 = vsel %vm6759, %v6735, %v6213
  %v6801 = vsel %vm6759, %v6736, %v6215
  %v6802 = vsel %vm6759, %v6737, %v6217
  %v6803 = vsel %vm6759, %v6738, %v6219
  %v6804 = vsel %vm6759, %v6739, %v6221
  %v6805 = vsel %vm6759, %v6740, %v6223
  %v6806 = vsel %vm6759, %v6741, %v6225
  %v6807 = vsel %vm6759, %v6742, %v6227
  %v6808 = vsel %vm6759, %v6743, %v6229
  %v6809 = vsel %vm6759, %v6744, %v6231
  %v6810 = vsel %vm6759, %v6745, %v6233
  %v6811 = vsel %vm6759, %v6746, %v6235
  %v6812 = vsel %vm6759, %v6747, %v6237
  %v6813 = vsel %vm6759, %v6748, %v6239
  %v6814 = vsel %vm6759, %v6749, %v6241
  %v6815 = vsel %vm6759, %v6750, %v6243
  %v6816 = vsel %vm6759, %v6751, %v6245
  %v6817 = vsel %vm6759, %v6752, %v6247
  %v6818 = vsel %vm6759, %v6753, %v6249
  %v6819 = vsel %vm6759, %v6754, %v6251
  %v6820 = vsel %vm6759, %v6755, %v6253
  %v6821 = vsel %vm6759, %v6756, %v6255
  %v6822 = vsel %vm6759, %v6757, %v6253
  %v6823 = vsel %vm6759, %v6758, %v6255
  %v6825 = vlaneseq
  %v6826 = vshrl.u32 %v6825, 7
  %v6827 = vsub.s32 0, %v6826
  %v6828 = vrot.slane %v4455, %v6827
  %vm6830 = vcmask 588800
  %v6832 = vsel %vm6830, %v6760, 0
  %v6835 = vsel %vm6830, %v6761, 0
  %v6838 = vsel %vm6830, %v6762, 0
  %v6841 = vsel %vm6830, %v6763, 0
  %v6844 = vsel %vm6830, %v6764, 0
  %v6847 = vsel %vm6830, %v6765, 0
  %v6850 = vsel %vm6830, %v6766, 0
  %v6853 = vsel %vm6830, %v6767, 0
  %v6856 = vsel %vm6830, %v6768, 0
  %v6859 = vsel %vm6830, %v6769, 0
  %v6862 = vsel %vm6830, %v6770, 0
  %v6865 = vsel %vm6830, %v6771, 0
  %v6868 = vsel %vm6830, %v6772, 0
  %v6871 = vsel %vm6830, %v6773, 0
  %v6874 = vsel %vm6830, %v6774, 0
  %v6877 = vsel %vm6830, %v6775, 0
  %v6880 = vsel %vm6830, %v6776, 0
  %v6883 = vsel %vm6830, %v6777, 0
  %v6886 = vsel %vm6830, %v6778, 0
  %v6889 = vsel %vm6830, %v6779, 0
  %v6892 = vsel %vm6830, %v6780, 0
  %v6895 = vsel %vm6830, %v6781, 0
  %v6898 = vsel %vm6830, %v6782, 0
  %v6901 = vsel %vm6830, %v6783, 0
  %v6904 = vsel %vm6830, %v6784, 0
  %v6907 = vsel %vm6830, %v6785, 0
  %v6910 = vsel %vm6830, %v6786, 0
  %v6913 = vsel %vm6830, %v6787, 0
  %v6916 = vsel %vm6830, %v6788, 0
  %v6919 = vsel %vm6830, %v6789, 0
  %v6922 = vsel %vm6830, %v6790, 0
  %v6925 = vsel %vm6830, %v6791, 0
  %v6928 = vsel %vm6830, %v6792, 0
  %v6931 = vsel %vm6830, %v6793, 0
  %v6934 = vsel %vm6830, %v6794, 0
  %v6937 = vsel %vm6830, %v6795, 0
  %v6940 = vsel %vm6830, %v6796, 0
  %v6943 = vsel %vm6830, %v6797, 0
  %v6946 = vsel %vm6830, %v6798, 0
  %v6949 = vsel %vm6830, %v6799, 0
  %v6952 = vsel %vm6830, %v6800, 0
  %v6955 = vsel %vm6830, %v6801, 0
  %v6958 = vsel %vm6830, %v6802, 0
  %v6961 = vsel %vm6830, %v6803, 0
  %v6964 = vsel %vm6830, %v6804, 0
  %v6967 = vsel %vm6830, %v6805, 0
  %v6970 = vsel %vm6830, %v6806, 0
  %v6973 = vsel %vm6830, %v6807, 0
  %v6976 = vsel %vm6830, %v6808, 0
  %v6979 = vsel %vm6830, %v6809, 0
  %v6982 = vsel %vm6830, %v6810, 0
  %v6985 = vsel %vm6830, %v6811, 0
  %v6988 = vsel %vm6830, %v6812, 0
  %v6991 = vsel %vm6830, %v6813, 0
  %v6994 = vsel %vm6830, %v6814, 0
  %v6997 = vsel %vm6830, %v6815, 0
  %v7000 = vsel %vm6830, %v6816, 0
  %v7003 = vsel %vm6830, %v6817, 0
  %v7006 = vsel %vm6830, %v6818, 0
  %v7009 = vsel %vm6830, %v6819, 0
  %v7012 = vsel %vm6830, %v6820, 0
  %v7015 = vsel %vm6830, %v6821, 0
  %v7018 = vsel %vm6830, %v6822, 0
  %v7021 = vsel %vm6830, %v6823, 0
  %7023 = vmatprep.subr.mxu0 0.0
  %7024 = vmatpush1.msra.mxu0 0.0
  %7025 = vmatprep.subr.mxu0 0.0
  %7026 = vmatpush1.msra.mxu0 0.0
  %7027 = vmatprep.subr.mxu0 0.0
  %7028 = vmatpush1.msra.mxu0 0.0
  %7029 = vmatprep.subr.mxu0 0.0
  %7030 = vmatpush1.msra.mxu0 0.0
  %7031 = vmatprep.subr.mxu0 0.0
  %7032 = vmatpush1.msra.mxu0 0.0
  %7033 = vmatprep.subr.mxu0 0.0
  %7034 = vmatpush1.msra.mxu0 0.0
  %7035 = vmatprep.subr.mxu0 0.0
  %7036 = vmatpush1.msra.mxu0 0.0
  %7037 = vmatprep.subr.mxu0 0.0
  %7038 = vmatpush1.msra.mxu0 %v4454
  %7039 = vmatprep.subr.mxu0 0.0
  %7040 = vmatpush1.msra.mxu0 %v4453
  %7041 = vmatprep.subr.mxu0 0.0
  %7042 = vmatpush1.msra.mxu0 %v4452
  %7043 = vmatprep.subr.mxu0 0.0
  %7044 = vmatpush1.msra.mxu0 %v4451
  %7045 = vmatprep.subr.mxu0 0.0
  %7046 = vmatpush1.msra.mxu0 %v4450
  %7047 = vmatprep.subr.mxu0 0.0
  %7048 = vmatpush1.msra.mxu0 %v4449
  %7049 = vmatprep.subr.mxu0 0.0
  %7050 = vmatpush1.msra.mxu0 %v4448
  %7051 = vmatprep.subr.mxu0 0.0
  %7052 = vmatpush1.msra.mxu0 %v4447
  %7053 = vmatprep.subr.mxu0 0.0
  %7054 = vmatpush1.msra.mxu0 %v4446
  %7055 = vmatprep.subr.mxu0 0.0
  %7056 = vmatpush2.msra.mxu0 0.0
  %7057 = vmatprep.subr.mxu0 0.0
  %7058 = vmatpush2.msra.mxu0 0.0
  %7059 = vmatprep.subr.mxu0 0.0
  %7060 = vmatpush2.msra.mxu0 0.0
  %7061 = vmatprep.subr.mxu0 0.0
  %7062 = vmatpush2.msra.mxu0 0.0
  %7063 = vmatprep.subr.mxu0 0.0
  %7064 = vmatpush2.msra.mxu0 0.0
  %7065 = vmatprep.subr.mxu0 0.0
  %7066 = vmatpush2.msra.mxu0 0.0
  %7067 = vmatprep.subr.mxu0 0.0
  %7068 = vmatpush2.msra.mxu0 0.0
  %7069 = vmatprep.subr.mxu0 0.0
  %7070 = vmatpush2.msra.mxu0 0.0
  %7071 = vmatprep.subr.mxu0 0.0
  %7072 = vmatpush2.msra.mxu0 0.0
  %7073 = vmatprep.subr.mxu0 0.0
  %7074 = vmatpush2.msra.mxu0 0.0
  %7075 = vmatprep.subr.mxu0 0.0
  %7076 = vmatpush2.msra.mxu0 0.0
  %7077 = vmatprep.subr.mxu0 0.0
  %7078 = vmatpush2.msra.mxu0 0.0
  %7079 = vmatprep.subr.mxu0 0.0
  %7080 = vmatpush2.msra.mxu0 0.0
  %7081 = vmatprep.subr.mxu0 0.0
  %7082 = vmatpush2.msra.mxu0 0.0
  %7083 = vmatprep.subr.mxu0 0.0
  %7084 = vmatpush2.msra.mxu0 0.0
  %7085 = vmatprep.subr.mxu0 0.0
  %7086 = vmatpush2.msra.mxu0 0.0
  %7087 = vmatprep.mubr.f32.mxu0 0.0
  %7088 = vmatmul.mubr.f32.gmra.mxu0 %v6832
  %v7089 = vpop.f32.mrf.mxu0
  %v7090 = vadd.f32 %v6828, %v7089
  %v7091 = vpop.f32.mrf.mxu0
  %7092 = vmatprep.mubr.f32.mxu0 0.0
  %7093 = vmatmul.mubr.f32.gmra.mxu0 %v6835
  %v7094 = vpop.f32.mrf.mxu0
  %v7095 = vadd.f32 %v6828, %v7094
  %v7096 = vpop.f32.mrf.mxu0
  %7097 = vmatprep.mubr.f32.mxu0 0.0
  %7098 = vmatmul.mubr.f32.gmra.mxu0 %v6838
  %v7099 = vpop.f32.mrf.mxu0
  %v7100 = vadd.f32 %v6828, %v7099
  %v7101 = vpop.f32.mrf.mxu0
  %7102 = vmatprep.mubr.f32.mxu0 0.0
  %7103 = vmatmul.mubr.f32.gmra.mxu0 %v6841
  %v7104 = vpop.f32.mrf.mxu0
  %v7105 = vadd.f32 %v6828, %v7104
  %v7106 = vpop.f32.mrf.mxu0
  %7107 = vmatprep.mubr.f32.mxu0 0.0
  %7108 = vmatmul.mubr.f32.gmra.mxu0 %v6844
  %v7109 = vpop.f32.mrf.mxu0
  %v7110 = vadd.f32 %v6828, %v7109
  %v7111 = vpop.f32.mrf.mxu0
  %7112 = vmatprep.mubr.f32.mxu0 0.0
  %7113 = vmatmul.mubr.f32.gmra.mxu0 %v6847
  %v7114 = vpop.f32.mrf.mxu0
  %v7115 = vadd.f32 %v6828, %v7114
  %v7116 = vpop.f32.mrf.mxu0
  %7117 = vmatprep.mubr.f32.mxu0 0.0
  %7118 = vmatmul.mubr.f32.gmra.mxu0 %v6850
  %v7119 = vpop.f32.mrf.mxu0
  %v7120 = vadd.f32 %v6828, %v7119
  %v7121 = vpop.f32.mrf.mxu0
  %7122 = vmatprep.mubr.f32.mxu0 0.0
  %7123 = vmatmul.mubr.f32.gmra.mxu0 %v6853
  %v7124 = vpop.f32.mrf.mxu0
  %v7125 = vadd.f32 %v6828, %v7124
  %v7126 = vpop.f32.mrf.mxu0
  %7127 = vmatprep.mubr.f32.mxu0 0.0
  %7128 = vmatmul.mubr.f32.gmra.mxu0 %v6856
  %v7129 = vpop.f32.mrf.mxu0
  %v7130 = vadd.f32 %v6828, %v7129
  %v7131 = vpop.f32.mrf.mxu0
  %7132 = vmatprep.mubr.f32.mxu0 0.0
  %7133 = vmatmul.mubr.f32.gmra.mxu0 %v6859
  %v7134 = vpop.f32.mrf.mxu0
  %v7135 = vadd.f32 %v6828, %v7134
  %v7136 = vpop.f32.mrf.mxu0
  %7137 = vmatprep.mubr.f32.mxu0 0.0
  %7138 = vmatmul.mubr.f32.gmra.mxu0 %v6862
  %v7139 = vpop.f32.mrf.mxu0
  %v7140 = vadd.f32 %v6828, %v7139
  %v7141 = vpop.f32.mrf.mxu0
  %7142 = vmatprep.mubr.f32.mxu0 0.0
  %7143 = vmatmul.mubr.f32.gmra.mxu0 %v6865
  %v7144 = vpop.f32.mrf.mxu0
  %v7145 = vadd.f32 %v6828, %v7144
  %v7146 = vpop.f32.mrf.mxu0
  %7147 = vmatprep.mubr.f32.mxu0 0.0
  %7148 = vmatmul.mubr.f32.gmra.mxu0 %v6868
  %v7149 = vpop.f32.mrf.mxu0
  %v7150 = vadd.f32 %v6828, %v7149
  %v7151 = vpop.f32.mrf.mxu0
  %7152 = vmatprep.mubr.f32.mxu0 0.0
  %7153 = vmatmul.mubr.f32.gmra.mxu0 %v6871
  %v7154 = vpop.f32.mrf.mxu0
  %v7155 = vadd.f32 %v6828, %v7154
  %v7156 = vpop.f32.mrf.mxu0
  %7157 = vmatprep.mubr.f32.mxu0 0.0
  %7158 = vmatmul.mubr.f32.gmra.mxu0 %v6874
  %v7159 = vpop.f32.mrf.mxu0
  %v7160 = vadd.f32 %v6828, %v7159
  %v7161 = vpop.f32.mrf.mxu0
  %7162 = vmatprep.mubr.f32.mxu0 0.0
  %7163 = vmatmul.mubr.f32.gmra.mxu0 %v6877
  %v7164 = vpop.f32.mrf.mxu0
  %v7165 = vadd.f32 %v6828, %v7164
  %v7166 = vpop.f32.mrf.mxu0
  %7167 = vmatprep.mubr.f32.mxu0 0.0
  %7168 = vmatmul.mubr.f32.gmra.mxu0 %v6880
  %v7169 = vpop.f32.mrf.mxu0
  %v7170 = vadd.f32 %v6828, %v7169
  %v7171 = vpop.f32.mrf.mxu0
  %7172 = vmatprep.mubr.f32.mxu0 0.0
  %7173 = vmatmul.mubr.f32.gmra.mxu0 %v6883
  %v7174 = vpop.f32.mrf.mxu0
  %v7175 = vadd.f32 %v6828, %v7174
  %v7176 = vpop.f32.mrf.mxu0
  %7177 = vmatprep.mubr.f32.mxu0 0.0
  %7178 = vmatmul.mubr.f32.gmra.mxu0 %v6886
  %v7179 = vpop.f32.mrf.mxu0
  %v7180 = vadd.f32 %v6828, %v7179
  %v7181 = vpop.f32.mrf.mxu0
  %7182 = vmatprep.mubr.f32.mxu0 0.0
  %7183 = vmatmul.mubr.f32.gmra.mxu0 %v6889
  %v7184 = vpop.f32.mrf.mxu0
  %v7185 = vadd.f32 %v6828, %v7184
  %v7186 = vpop.f32.mrf.mxu0
  %7187 = vmatprep.mubr.f32.mxu0 0.0
  %7188 = vmatmul.mubr.f32.gmra.mxu0 %v6892
  %v7189 = vpop.f32.mrf.mxu0
  %v7190 = vadd.f32 %v6828, %v7189
  %v7191 = vpop.f32.mrf.mxu0
  %7192 = vmatprep.mubr.f32.mxu0 0.0
  %7193 = vmatmul.mubr.f32.gmra.mxu0 %v6895
  %v7194 = vpop.f32.mrf.mxu0
  %v7195 = vadd.f32 %v6828, %v7194
  %v7196 = vpop.f32.mrf.mxu0
  %7197 = vmatprep.mubr.f32.mxu0 0.0
  %7198 = vmatmul.mubr.f32.gmra.mxu0 %v6898
  %v7199 = vpop.f32.mrf.mxu0
  %v7200 = vadd.f32 %v6828, %v7199
  %v7201 = vpop.f32.mrf.mxu0
  %7202 = vmatprep.mubr.f32.mxu0 0.0
  %7203 = vmatmul.mubr.f32.gmra.mxu0 %v6901
  %v7204 = vpop.f32.mrf.mxu0
  %v7205 = vadd.f32 %v6828, %v7204
  %v7206 = vpop.f32.mrf.mxu0
  %7207 = vmatprep.mubr.f32.mxu0 0.0
  %7208 = vmatmul.mubr.f32.gmra.mxu0 %v6904
  %v7209 = vpop.f32.mrf.mxu0
  %v7210 = vadd.f32 %v6828, %v7209
  %v7211 = vpop.f32.mrf.mxu0
  %7212 = vmatprep.mubr.f32.mxu0 0.0
  %7213 = vmatmul.mubr.f32.gmra.mxu0 %v6907
  %v7214 = vpop.f32.mrf.mxu0
  %v7215 = vadd.f32 %v6828, %v7214
  %v7216 = vpop.f32.mrf.mxu0
  %7217 = vmatprep.mubr.f32.mxu0 0.0
  %7218 = vmatmul.mubr.f32.gmra.mxu0 %v6910
  %v7219 = vpop.f32.mrf.mxu0
  %v7220 = vadd.f32 %v6828, %v7219
  %v7221 = vpop.f32.mrf.mxu0
  %7222 = vmatprep.mubr.f32.mxu0 0.0
  %7223 = vmatmul.mubr.f32.gmra.mxu0 %v6913
  %v7224 = vpop.f32.mrf.mxu0
  %v7225 = vadd.f32 %v6828, %v7224
  %v7226 = vpop.f32.mrf.mxu0
  %7227 = vmatprep.mubr.f32.mxu0 0.0
  %7228 = vmatmul.mubr.f32.gmra.mxu0 %v6916
  %v7229 = vpop.f32.mrf.mxu0
  %v7230 = vadd.f32 %v6828, %v7229
  %v7231 = vpop.f32.mrf.mxu0
  %7232 = vmatprep.mubr.f32.mxu0 0.0
  %7233 = vmatmul.mubr.f32.gmra.mxu0 %v6919
  %v7234 = vpop.f32.mrf.mxu0
  %v7235 = vadd.f32 %v6828, %v7234
  %v7236 = vpop.f32.mrf.mxu0
  %7237 = vmatprep.mubr.f32.mxu0 0.0
  %7238 = vmatmul.mubr.f32.gmra.mxu0 %v6922
  %v7239 = vpop.f32.mrf.mxu0
  %v7240 = vadd.f32 %v6828, %v7239
  %v7241 = vpop.f32.mrf.mxu0
  %7242 = vmatprep.mubr.f32.mxu0 0.0
  %7243 = vmatmul.mubr.f32.gmra.mxu0 %v6925
  %v7244 = vpop.f32.mrf.mxu0
  %v7245 = vadd.f32 %v6828, %v7244
  %v7246 = vpop.f32.mrf.mxu0
  %7247 = vmatprep.mubr.f32.mxu0 0.0
  %7248 = vmatmul.mubr.f32.gmra.mxu0 %v6928
  %v7249 = vpop.f32.mrf.mxu0
  %v7250 = vadd.f32 %v6828, %v7249
  %v7251 = vpop.f32.mrf.mxu0
  %7252 = vmatprep.mubr.f32.mxu0 0.0
  %7253 = vmatmul.mubr.f32.gmra.mxu0 %v6931
  %v7254 = vpop.f32.mrf.mxu0
  %v7255 = vadd.f32 %v6828, %v7254
  %v7256 = vpop.f32.mrf.mxu0
  %7257 = vmatprep.mubr.f32.mxu0 0.0
  %7258 = vmatmul.mubr.f32.gmra.mxu0 %v6934
  %v7259 = vpop.f32.mrf.mxu0
  %v7260 = vadd.f32 %v6828, %v7259
  %v7261 = vpop.f32.mrf.mxu0
  %7262 = vmatprep.mubr.f32.mxu0 0.0
  %7263 = vmatmul.mubr.f32.gmra.mxu0 %v6937
  %v7264 = vpop.f32.mrf.mxu0
  %v7265 = vadd.f32 %v6828, %v7264
  %v7266 = vpop.f32.mrf.mxu0
  %7267 = vmatprep.mubr.f32.mxu0 0.0
  %7268 = vmatmul.mubr.f32.gmra.mxu0 %v6940
  %v7269 = vpop.f32.mrf.mxu0
  %v7270 = vadd.f32 %v6828, %v7269
  %v7271 = vpop.f32.mrf.mxu0
  %7272 = vmatprep.mubr.f32.mxu0 0.0
  %7273 = vmatmul.mubr.f32.gmra.mxu0 %v6943
  %v7274 = vpop.f32.mrf.mxu0
  %v7275 = vadd.f32 %v6828, %v7274
  %v7276 = vpop.f32.mrf.mxu0
  %7277 = vmatprep.mubr.f32.mxu0 0.0
  %7278 = vmatmul.mubr.f32.gmra.mxu0 %v6946
  %v7279 = vpop.f32.mrf.mxu0
  %v7280 = vadd.f32 %v6828, %v7279
  %v7281 = vpop.f32.mrf.mxu0
  %7282 = vmatprep.mubr.f32.mxu0 0.0
  %7283 = vmatmul.mubr.f32.gmra.mxu0 %v6949
  %v7284 = vpop.f32.mrf.mxu0
  %v7285 = vadd.f32 %v6828, %v7284
  %v7286 = vpop.f32.mrf.mxu0
  %7287 = vmatprep.mubr.f32.mxu0 0.0
  %7288 = vmatmul.mubr.f32.gmra.mxu0 %v6952
  %v7289 = vpop.f32.mrf.mxu0
  %v7290 = vadd.f32 %v6828, %v7289
  %v7291 = vpop.f32.mrf.mxu0
  %7292 = vmatprep.mubr.f32.mxu0 0.0
  %7293 = vmatmul.mubr.f32.gmra.mxu0 %v6955
  %v7294 = vpop.f32.mrf.mxu0
  %v7295 = vadd.f32 %v6828, %v7294
  %v7296 = vpop.f32.mrf.mxu0
  %7297 = vmatprep.mubr.f32.mxu0 0.0
  %7298 = vmatmul.mubr.f32.gmra.mxu0 %v6958
  %v7299 = vpop.f32.mrf.mxu0
  %v7300 = vadd.f32 %v6828, %v7299
  %v7301 = vpop.f32.mrf.mxu0
  %7302 = vmatprep.mubr.f32.mxu0 0.0
  %7303 = vmatmul.mubr.f32.gmra.mxu0 %v6961
  %v7304 = vpop.f32.mrf.mxu0
  %v7305 = vadd.f32 %v6828, %v7304
  %v7306 = vpop.f32.mrf.mxu0
  %7307 = vmatprep.mubr.f32.mxu0 0.0
  %7308 = vmatmul.mubr.f32.gmra.mxu0 %v6964
  %v7309 = vpop.f32.mrf.mxu0
  %v7310 = vadd.f32 %v6828, %v7309
  %v7311 = vpop.f32.mrf.mxu0
  %7312 = vmatprep.mubr.f32.mxu0 0.0
  %7313 = vmatmul.mubr.f32.gmra.mxu0 %v6967
  %v7314 = vpop.f32.mrf.mxu0
  %v7315 = vadd.f32 %v6828, %v7314
  %v7316 = vpop.f32.mrf.mxu0
  %7317 = vmatprep.mubr.f32.mxu0 0.0
  %7318 = vmatmul.mubr.f32.gmra.mxu0 %v6970
  %v7319 = vpop.f32.mrf.mxu0
  %v7320 = vadd.f32 %v6828, %v7319
  %v7321 = vpop.f32.mrf.mxu0
  %7322 = vmatprep.mubr.f32.mxu0 0.0
  %7323 = vmatmul.mubr.f32.gmra.mxu0 %v6973
  %v7324 = vpop.f32.mrf.mxu0
  %v7325 = vadd.f32 %v6828, %v7324
  %v7326 = vpop.f32.mrf.mxu0
  %7327 = vmatprep.mubr.f32.mxu0 0.0
  %7328 = vmatmul.mubr.f32.gmra.mxu0 %v6976
  %v7329 = vpop.f32.mrf.mxu0
  %v7330 = vadd.f32 %v6828, %v7329
  %v7331 = vpop.f32.mrf.mxu0
  %7332 = vmatprep.mubr.f32.mxu0 0.0
  %7333 = vmatmul.mubr.f32.gmra.mxu0 %v6979
  %v7334 = vpop.f32.mrf.mxu0
  %v7335 = vadd.f32 %v6828, %v7334
  %v7336 = vpop.f32.mrf.mxu0
  %7337 = vmatprep.mubr.f32.mxu0 0.0
  %7338 = vmatmul.mubr.f32.gmra.mxu0 %v6982
  %v7339 = vpop.f32.mrf.mxu0
  %v7340 = vadd.f32 %v6828, %v7339
  %v7341 = vpop.f32.mrf.mxu0
  %7342 = vmatprep.mubr.f32.mxu0 0.0
  %7343 = vmatmul.mubr.f32.gmra.mxu0 %v6985
  %v7344 = vpop.f32.mrf.mxu0
  %v7345 = vadd.f32 %v6828, %v7344
  %v7346 = vpop.f32.mrf.mxu0
  %7347 = vmatprep.mubr.f32.mxu0 0.0
  %7348 = vmatmul.mubr.f32.gmra.mxu0 %v6988
  %v7349 = vpop.f32.mrf.mxu0
  %v7350 = vadd.f32 %v6828, %v7349
  %v7351 = vpop.f32.mrf.mxu0
  %7352 = vmatprep.mubr.f32.mxu0 0.0
  %7353 = vmatmul.mubr.f32.gmra.mxu0 %v6991
  %v7354 = vpop.f32.mrf.mxu0
  %v7355 = vadd.f32 %v6828, %v7354
  %v7356 = vpop.f32.mrf.mxu0
  %7357 = vmatprep.mubr.f32.mxu0 0.0
  %7358 = vmatmul.mubr.f32.gmra.mxu0 %v6994
  %v7359 = vpop.f32.mrf.mxu0
  %v7360 = vadd.f32 %v6828, %v7359
  %v7361 = vpop.f32.mrf.mxu0
  %7362 = vmatprep.mubr.f32.mxu0 0.0
  %7363 = vmatmul.mubr.f32.gmra.mxu0 %v6997
  %v7364 = vpop.f32.mrf.mxu0
  %v7365 = vadd.f32 %v6828, %v7364
  %v7366 = vpop.f32.mrf.mxu0
  %7367 = vmatprep.mubr.f32.mxu0 0.0
  %7368 = vmatmul.mubr.f32.gmra.mxu0 %v7000
  %v7369 = vpop.f32.mrf.mxu0
  %v7370 = vadd.f32 %v6828, %v7369
  %v7371 = vpop.f32.mrf.mxu0
  %7372 = vmatprep.mubr.f32.mxu0 0.0
  %7373 = vmatmul.mubr.f32.gmra.mxu0 %v7003
  %v7374 = vpop.f32.mrf.mxu0
  %v7375 = vadd.f32 %v6828, %v7374
  %v7376 = vpop.f32.mrf.mxu0
  %7377 = vmatprep.mubr.f32.mxu0 0.0
  %7378 = vmatmul.mubr.f32.gmra.mxu0 %v7006
  %v7379 = vpop.f32.mrf.mxu0
  %v7380 = vadd.f32 %v6828, %v7379
  %v7381 = vpop.f32.mrf.mxu0
  %7382 = vmatprep.mubr.f32.mxu0 0.0
  %7383 = vmatmul.mubr.f32.gmra.mxu0 %v7009
  %v7384 = vpop.f32.mrf.mxu0
  %v7385 = vadd.f32 %v6828, %v7384
  %v7386 = vpop.f32.mrf.mxu0
  %7387 = vmatprep.mubr.f32.mxu0 0.0
  %7388 = vmatmul.mubr.f32.gmra.mxu0 %v7012
  %v7389 = vpop.f32.mrf.mxu0
  %v7390 = vadd.f32 %v6828, %v7389
  %v7391 = vpop.f32.mrf.mxu0
  %7392 = vmatprep.mubr.f32.mxu0 0.0
  %7393 = vmatmul.mubr.f32.gmra.mxu0 %v7015
  %v7394 = vpop.f32.mrf.mxu0
  %v7395 = vadd.f32 %v6828, %v7394
  %v7396 = vpop.f32.mrf.mxu0
  %7397 = vmatprep.mubr.f32.mxu0 0.0
  %7398 = vmatmul.mubr.f32.gmra.mxu0 %v7018
  %v7399 = vpop.f32.mrf.mxu0
  %v7400 = vadd.f32 %v6828, %v7399
  %v7401 = vpop.f32.mrf.mxu0
  %7402 = vmatprep.mubr.f32.mxu0 0.0
  %7403 = vmatmul.mubr.f32.gmra.mxu0 %v7021
  %v7404 = vpop.f32.mrf.mxu0
  %v7405 = vadd.f32 %v6828, %v7404
  %v7406 = vpop.f32.mrf.mxu0
  %7407 = vdwg.mxu0
  %v7408 = vld [vmem:[%s7] sm:$0x1]
  %v7409 = vld [vmem:[%s8] sm:$0x1]
  %v7410 = vsel %vm2420, %v7090, 0.0
  %v7411 = vsel %vm2420, %v7095, 0.0
  %v7412 = vadd.f32 %v7410, %v7411
  %v7413 = vsel %vm2420, %v7100, 0.0
  %v7414 = vadd.f32 %v7412, %v7413
  %v7415 = vsel %vm2420, %v7105, 0.0
  %v7416 = vadd.f32 %v7414, %v7415
  %v7417 = vsel %vm2420, %v7110, 0.0
  %v7418 = vadd.f32 %v7416, %v7417
  %v7419 = vsel %vm2420, %v7115, 0.0
  %v7420 = vadd.f32 %v7418, %v7419
  %v7421 = vsel %vm2420, %v7120, 0.0
  %v7422 = vadd.f32 %v7420, %v7421
  %v7423 = vsel %vm2420, %v7125, 0.0
  %v7424 = vadd.f32 %v7422, %v7423
  %v7425 = vsel %vm2420, %v7130, 0.0
  %v7426 = vadd.f32 %v7424, %v7425
  %v7427 = vsel %vm2420, %v7135, 0.0
  %v7428 = vadd.f32 %v7426, %v7427
  %v7429 = vsel %vm2420, %v7140, 0.0
  %v7430 = vadd.f32 %v7428, %v7429
  %v7431 = vsel %vm2420, %v7145, 0.0
  %v7432 = vadd.f32 %v7430, %v7431
  %v7433 = vsel %vm2420, %v7150, 0.0
  %v7434 = vadd.f32 %v7432, %v7433
  %v7435 = vsel %vm2420, %v7155, 0.0
  %v7436 = vadd.f32 %v7434, %v7435
  %v7437 = vsel %vm2420, %v7160, 0.0
  %v7438 = vadd.f32 %v7436, %v7437
  %v7439 = vsel %vm2420, %v7165, 0.0
  %v7440 = vadd.f32 %v7438, %v7439
  %v7441 = vsel %vm2420, %v7170, 0.0
  %v7442 = vadd.f32 %v7440, %v7441
  %v7443 = vsel %vm2420, %v7175, 0.0
  %v7444 = vadd.f32 %v7442, %v7443
  %v7445 = vsel %vm2420, %v7180, 0.0
  %v7446 = vadd.f32 %v7444, %v7445
  %v7447 = vsel %vm2420, %v7185, 0.0
  %v7448 = vadd.f32 %v7446, %v7447
  %v7449 = vsel %vm2420, %v7190, 0.0
  %v7450 = vadd.f32 %v7448, %v7449
  %v7451 = vsel %vm2420, %v7195, 0.0
  %v7452 = vadd.f32 %v7450, %v7451
  %v7453 = vsel %vm2420, %v7200, 0.0
  %v7454 = vadd.f32 %v7452, %v7453
  %v7455 = vsel %vm2420, %v7205, 0.0
  %v7456 = vadd.f32 %v7454, %v7455
  %v7457 = vsel %vm2420, %v7210, 0.0
  %v7458 = vadd.f32 %v7456, %v7457
  %v7459 = vsel %vm2420, %v7215, 0.0
  %v7460 = vadd.f32 %v7458, %v7459
  %v7461 = vsel %vm2420, %v7220, 0.0
  %v7462 = vadd.f32 %v7460, %v7461
  %v7463 = vsel %vm2420, %v7225, 0.0
  %v7464 = vadd.f32 %v7462, %v7463
  %v7465 = vsel %vm2420, %v7230, 0.0
  %v7466 = vadd.f32 %v7464, %v7465
  %v7467 = vsel %vm2420, %v7235, 0.0
  %v7468 = vadd.f32 %v7466, %v7467
  %v7469 = vsel %vm2420, %v7240, 0.0
  %v7470 = vadd.f32 %v7468, %v7469
  %v7471 = vsel %vm2420, %v7245, 0.0
  %v7472 = vadd.f32 %v7470, %v7471
  %v7473 = vsel %vm2420, %v7250, 0.0
  %v7474 = vadd.f32 %v7472, %v7473
  %v7475 = vsel %vm2420, %v7255, 0.0
  %v7476 = vadd.f32 %v7474, %v7475
  %v7477 = vsel %vm2420, %v7260, 0.0
  %v7478 = vadd.f32 %v7476, %v7477
  %v7479 = vsel %vm2420, %v7265, 0.0
  %v7480 = vadd.f32 %v7478, %v7479
  %v7481 = vsel %vm2420, %v7270, 0.0
  %v7482 = vadd.f32 %v7480, %v7481
  %v7483 = vsel %vm2420, %v7275, 0.0
  %v7484 = vadd.f32 %v7482, %v7483
  %v7485 = vsel %vm2420, %v7280, 0.0
  %v7486 = vadd.f32 %v7484, %v7485
  %v7487 = vsel %vm2420, %v7285, 0.0
  %v7488 = vadd.f32 %v7486, %v7487
  %v7489 = vsel %vm2420, %v7290, 0.0
  %v7490 = vadd.f32 %v7488, %v7489
  %v7491 = vsel %vm2420, %v7295, 0.0
  %v7492 = vadd.f32 %v7490, %v7491
  %v7493 = vsel %vm2420, %v7300, 0.0
  %v7494 = vadd.f32 %v7492, %v7493
  %v7495 = vsel %vm2420, %v7305, 0.0
  %v7496 = vadd.f32 %v7494, %v7495
  %v7497 = vsel %vm2420, %v7310, 0.0
  %v7498 = vadd.f32 %v7496, %v7497
  %v7499 = vsel %vm2420, %v7315, 0.0
  %v7500 = vadd.f32 %v7498, %v7499
  %v7501 = vsel %vm2420, %v7320, 0.0
  %v7502 = vadd.f32 %v7500, %v7501
  %v7503 = vsel %vm2420, %v7325, 0.0
  %v7504 = vadd.f32 %v7502, %v7503
  %v7505 = vsel %vm2420, %v7330, 0.0
  %v7506 = vadd.f32 %v7504, %v7505
  %v7507 = vsel %vm2420, %v7335, 0.0
  %v7508 = vadd.f32 %v7506, %v7507
  %v7509 = vsel %vm2420, %v7340, 0.0
  %v7510 = vadd.f32 %v7508, %v7509
  %v7511 = vsel %vm2420, %v7345, 0.0
  %v7512 = vadd.f32 %v7510, %v7511
  %v7513 = vsel %vm2420, %v7350, 0.0
  %v7514 = vadd.f32 %v7512, %v7513
  %v7515 = vsel %vm2420, %v7355, 0.0
  %v7516 = vadd.f32 %v7514, %v7515
  %v7517 = vsel %vm2420, %v7360, 0.0
  %v7518 = vadd.f32 %v7516, %v7517
  %v7519 = vsel %vm2420, %v7365, 0.0
  %v7520 = vadd.f32 %v7518, %v7519
  %v7521 = vsel %vm2420, %v7370, 0.0
  %v7522 = vadd.f32 %v7520, %v7521
  %v7523 = vsel %vm2420, %v7375, 0.0
  %v7524 = vadd.f32 %v7522, %v7523
  %v7525 = vsel %vm2420, %v7380, 0.0
  %v7526 = vadd.f32 %v7524, %v7525
  %v7527 = vsel %vm2420, %v7385, 0.0
  %v7528 = vadd.f32 %v7526, %v7527
  %v7529 = vsel %vm2420, %v7390, 0.0
  %v7530 = vadd.f32 %v7528, %v7529
  %v7531 = vsel %vm2420, %v7395, 0.0
  %v7532 = vadd.f32 %v7530, %v7531
  %v7533 = vsel %vm2420, %v7400, 0.0
  %v7534 = vadd.f32 %v7532, %v7533
  %v7535 = vsel %vm2420, %v7405, 0.0
  %v7536 = vadd.f32 %v7534, %v7535
  %v7537 = vrot.slane %v7536, 4
  %v7538 = vadd.f32 %v7536, %v7537
  %v7539 = vrot.slane %v7538, 2
  %v7540 = vadd.f32 %v7538, %v7539
  %v7541 = vrot.slane %v7540, 1
  %v7542 = vadd.f32 %v7540, %v7541
  %v7543 = vmul.f32 %v7542, %v3594
  %v7544 = vsub.f32 %v7090, %v7543
  %v7545 = vsub.f32 %v7095, %v7543
  %v7546 = vsub.f32 %v7100, %v7543
  %v7547 = vsub.f32 %v7105, %v7543
  %v7548 = vsub.f32 %v7110, %v7543
  %v7549 = vsub.f32 %v7115, %v7543
  %v7550 = vsub.f32 %v7120, %v7543
  %v7551 = vsub.f32 %v7125, %v7543
  %v7552 = vsub.f32 %v7130, %v7543
  %v7553 = vsub.f32 %v7135, %v7543
  %v7554 = vsub.f32 %v7140, %v7543
  %v7555 = vsub.f32 %v7145, %v7543
  %v7556 = vsub.f32 %v7150, %v7543
  %v7557 = vsub.f32 %v7155, %v7543
  %v7558 = vsub.f32 %v7160, %v7543
  %v7559 = vsub.f32 %v7165, %v7543
  %v7560 = vsub.f32 %v7170, %v7543
  %v7561 = vsub.f32 %v7175, %v7543
  %v7562 = vsub.f32 %v7180, %v7543
  %v7563 = vsub.f32 %v7185, %v7543
  %v7564 = vsub.f32 %v7190, %v7543
  %v7565 = vsub.f32 %v7195, %v7543
  %v7566 = vsub.f32 %v7200, %v7543
  %v7567 = vsub.f32 %v7205, %v7543
  %v7568 = vsub.f32 %v7210, %v7543
  %v7569 = vsub.f32 %v7215, %v7543
  %v7570 = vsub.f32 %v7220, %v7543
  %v7571 = vsub.f32 %v7225, %v7543
  %v7572 = vsub.f32 %v7230, %v7543
  %v7573 = vsub.f32 %v7235, %v7543
  %v7574 = vsub.f32 %v7240, %v7543
  %v7575 = vsub.f32 %v7245, %v7543
  %v7576 = vsub.f32 %v7250, %v7543
  %v7577 = vsub.f32 %v7255, %v7543
  %v7578 = vsub.f32 %v7260, %v7543
  %v7579 = vsub.f32 %v7265, %v7543
  %v7580 = vsub.f32 %v7270, %v7543
  %v7581 = vsub.f32 %v7275, %v7543
  %v7582 = vsub.f32 %v7280, %v7543
  %v7583 = vsub.f32 %v7285, %v7543
  %v7584 = vsub.f32 %v7290, %v7543
  %v7585 = vsub.f32 %v7295, %v7543
  %v7586 = vsub.f32 %v7300, %v7543
  %v7587 = vsub.f32 %v7305, %v7543
  %v7588 = vsub.f32 %v7310, %v7543
  %v7589 = vsub.f32 %v7315, %v7543
  %v7590 = vsub.f32 %v7320, %v7543
  %v7591 = vsub.f32 %v7325, %v7543
  %v7592 = vsub.f32 %v7330, %v7543
  %v7593 = vsub.f32 %v7335, %v7543
  %v7594 = vsub.f32 %v7340, %v7543
  %v7595 = vsub.f32 %v7345, %v7543
  %v7596 = vsub.f32 %v7350, %v7543
  %v7597 = vsub.f32 %v7355, %v7543
  %v7598 = vsub.f32 %v7360, %v7543
  %v7599 = vsub.f32 %v7365, %v7543
  %v7600 = vsub.f32 %v7370, %v7543
  %v7601 = vsub.f32 %v7375, %v7543
  %v7602 = vsub.f32 %v7380, %v7543
  %v7603 = vsub.f32 %v7385, %v7543
  %v7604 = vsub.f32 %v7390, %v7543
  %v7605 = vsub.f32 %v7395, %v7543
  %v7606 = vsub.f32 %v7400, %v7543
  %v7607 = vsub.f32 %v7405, %v7543
  %v7608 = vmul.f32 %v7544, %v7544
  %v7609 = vmul.f32 %v7545, %v7545
  %v7610 = vmul.f32 %v7546, %v7546
  %v7611 = vmul.f32 %v7547, %v7547
  %v7612 = vmul.f32 %v7548, %v7548
  %v7613 = vmul.f32 %v7549, %v7549
  %v7614 = vmul.f32 %v7550, %v7550
  %v7615 = vmul.f32 %v7551, %v7551
  %v7616 = vmul.f32 %v7552, %v7552
  %v7617 = vmul.f32 %v7553, %v7553
  %v7618 = vmul.f32 %v7554, %v7554
  %v7619 = vmul.f32 %v7555, %v7555
  %v7620 = vmul.f32 %v7556, %v7556
  %v7621 = vmul.f32 %v7557, %v7557
  %v7622 = vmul.f32 %v7558, %v7558
  %v7623 = vmul.f32 %v7559, %v7559
  %v7624 = vmul.f32 %v7560, %v7560
  %v7625 = vmul.f32 %v7561, %v7561
  %v7626 = vmul.f32 %v7562, %v7562
  %v7627 = vmul.f32 %v7563, %v7563
  %v7628 = vmul.f32 %v7564, %v7564
  %v7629 = vmul.f32 %v7565, %v7565
  %v7630 = vmul.f32 %v7566, %v7566
  %v7631 = vmul.f32 %v7567, %v7567
  %v7632 = vmul.f32 %v7568, %v7568
  %v7633 = vmul.f32 %v7569, %v7569
  %v7634 = vmul.f32 %v7570, %v7570
  %v7635 = vmul.f32 %v7571, %v7571
  %v7636 = vmul.f32 %v7572, %v7572
  %v7637 = vmul.f32 %v7573, %v7573
  %v7638 = vmul.f32 %v7574, %v7574
  %v7639 = vmul.f32 %v7575, %v7575
  %v7640 = vmul.f32 %v7576, %v7576
  %v7641 = vmul.f32 %v7577, %v7577
  %v7642 = vmul.f32 %v7578, %v7578
  %v7643 = vmul.f32 %v7579, %v7579
  %v7644 = vmul.f32 %v7580, %v7580
  %v7645 = vmul.f32 %v7581, %v7581
  %v7646 = vmul.f32 %v7582, %v7582
  %v7647 = vmul.f32 %v7583, %v7583
  %v7648 = vmul.f32 %v7584, %v7584
  %v7649 = vmul.f32 %v7585, %v7585
  %v7650 = vmul.f32 %v7586, %v7586
  %v7651 = vmul.f32 %v7587, %v7587
  %v7652 = vmul.f32 %v7588, %v7588
  %v7653 = vmul.f32 %v7589, %v7589
  %v7654 = vmul.f32 %v7590, %v7590
  %v7655 = vmul.f32 %v7591, %v7591
  %v7656 = vmul.f32 %v7592, %v7592
  %v7657 = vmul.f32 %v7593, %v7593
  %v7658 = vmul.f32 %v7594, %v7594
  %v7659 = vmul.f32 %v7595, %v7595
  %v7660 = vmul.f32 %v7596, %v7596
  %v7661 = vmul.f32 %v7597, %v7597
  %v7662 = vmul.f32 %v7598, %v7598
  %v7663 = vmul.f32 %v7599, %v7599
  %v7664 = vmul.f32 %v7600, %v7600
  %v7665 = vmul.f32 %v7601, %v7601
  %v7666 = vmul.f32 %v7602, %v7602
  %v7667 = vmul.f32 %v7603, %v7603
  %v7668 = vmul.f32 %v7604, %v7604
  %v7669 = vmul.f32 %v7605, %v7605
  %v7670 = vmul.f32 %v7606, %v7606
  %v7671 = vmul.f32 %v7607, %v7607
  %v7672 = vsel %vm2420, %v7608, 0.0
  %v7673 = vsel %vm2420, %v7609, 0.0
  %v7674 = vadd.f32 %v7672, %v7673
  %v7675 = vsel %vm2420, %v7610, 0.0
  %v7676 = vadd.f32 %v7674, %v7675
  %v7677 = vsel %vm2420, %v7611, 0.0
  %v7678 = vadd.f32 %v7676, %v7677
  %v7679 = vsel %vm2420, %v7612, 0.0
  %v7680 = vadd.f32 %v7678, %v7679
  %v7681 = vsel %vm2420, %v7613, 0.0
  %v7682 = vadd.f32 %v7680, %v7681
  %v7683 = vsel %vm2420, %v7614, 0.0
  %v7684 = vadd.f32 %v7682, %v7683
  %v7685 = vsel %vm2420, %v7615, 0.0
  %v7686 = vadd.f32 %v7684, %v7685
  %v7687 = vsel %vm2420, %v7616, 0.0
  %v7688 = vadd.f32 %v7686, %v7687
  %v7689 = vsel %vm2420, %v7617, 0.0
  %v7690 = vadd.f32 %v7688, %v7689
  %v7691 = vsel %vm2420, %v7618, 0.0
  %v7692 = vadd.f32 %v7690, %v7691
  %v7693 = vsel %vm2420, %v7619, 0.0
  %v7694 = vadd.f32 %v7692, %v7693
  %v7695 = vsel %vm2420, %v7620, 0.0
  %v7696 = vadd.f32 %v7694, %v7695
  %v7697 = vsel %vm2420, %v7621, 0.0
  %v7698 = vadd.f32 %v7696, %v7697
  %v7699 = vsel %vm2420, %v7622, 0.0
  %v7700 = vadd.f32 %v7698, %v7699
  %v7701 = vsel %vm2420, %v7623, 0.0
  %v7702 = vadd.f32 %v7700, %v7701
  %v7703 = vsel %vm2420, %v7624, 0.0
  %v7704 = vadd.f32 %v7702, %v7703
  %v7705 = vsel %vm2420, %v7625, 0.0
  %v7706 = vadd.f32 %v7704, %v7705
  %v7707 = vsel %vm2420, %v7626, 0.0
  %v7708 = vadd.f32 %v7706, %v7707
  %v7709 = vsel %vm2420, %v7627, 0.0
  %v7710 = vadd.f32 %v7708, %v7709
  %v7711 = vsel %vm2420, %v7628, 0.0
  %v7712 = vadd.f32 %v7710, %v7711
  %v7713 = vsel %vm2420, %v7629, 0.0
  %v7714 = vadd.f32 %v7712, %v7713
  %v7715 = vsel %vm2420, %v7630, 0.0
  %v7716 = vadd.f32 %v7714, %v7715
  %v7717 = vsel %vm2420, %v7631, 0.0
  %v7718 = vadd.f32 %v7716, %v7717
  %v7719 = vsel %vm2420, %v7632, 0.0
  %v7720 = vadd.f32 %v7718, %v7719
  %v7721 = vsel %vm2420, %v7633, 0.0
  %v7722 = vadd.f32 %v7720, %v7721
  %v7723 = vsel %vm2420, %v7634, 0.0
  %v7724 = vadd.f32 %v7722, %v7723
  %v7725 = vsel %vm2420, %v7635, 0.0
  %v7726 = vadd.f32 %v7724, %v7725
  %v7727 = vsel %vm2420, %v7636, 0.0
  %v7728 = vadd.f32 %v7726, %v7727
  %v7729 = vsel %vm2420, %v7637, 0.0
  %v7730 = vadd.f32 %v7728, %v7729
  %v7731 = vsel %vm2420, %v7638, 0.0
  %v7732 = vadd.f32 %v7730, %v7731
  %v7733 = vsel %vm2420, %v7639, 0.0
  %v7734 = vadd.f32 %v7732, %v7733
  %v7735 = vsel %vm2420, %v7640, 0.0
  %v7736 = vadd.f32 %v7734, %v7735
  %v7737 = vsel %vm2420, %v7641, 0.0
  %v7738 = vadd.f32 %v7736, %v7737
  %v7739 = vsel %vm2420, %v7642, 0.0
  %v7740 = vadd.f32 %v7738, %v7739
  %v7741 = vsel %vm2420, %v7643, 0.0
  %v7742 = vadd.f32 %v7740, %v7741
  %v7743 = vsel %vm2420, %v7644, 0.0
  %v7744 = vadd.f32 %v7742, %v7743
  %v7745 = vsel %vm2420, %v7645, 0.0
  %v7746 = vadd.f32 %v7744, %v7745
  %v7747 = vsel %vm2420, %v7646, 0.0
  %v7748 = vadd.f32 %v7746, %v7747
  %v7749 = vsel %vm2420, %v7647, 0.0
  %v7750 = vadd.f32 %v7748, %v7749
  %v7751 = vsel %vm2420, %v7648, 0.0
  %v7752 = vadd.f32 %v7750, %v7751
  %v7753 = vsel %vm2420, %v7649, 0.0
  %v7754 = vadd.f32 %v7752, %v7753
  %v7755 = vsel %vm2420, %v7650, 0.0
  %v7756 = vadd.f32 %v7754, %v7755
  %v7757 = vsel %vm2420, %v7651, 0.0
  %v7758 = vadd.f32 %v7756, %v7757
  %v7759 = vsel %vm2420, %v7652, 0.0
  %v7760 = vadd.f32 %v7758, %v7759
  %v7761 = vsel %vm2420, %v7653, 0.0
  %v7762 = vadd.f32 %v7760, %v7761
  %v7763 = vsel %vm2420, %v7654, 0.0
  %v7764 = vadd.f32 %v7762, %v7763
  %v7765 = vsel %vm2420, %v7655, 0.0
  %v7766 = vadd.f32 %v7764, %v7765
  %v7767 = vsel %vm2420, %v7656, 0.0
  %v7768 = vadd.f32 %v7766, %v7767
  %v7769 = vsel %vm2420, %v7657, 0.0
  %v7770 = vadd.f32 %v7768, %v7769
  %v7771 = vsel %vm2420, %v7658, 0.0
  %v7772 = vadd.f32 %v7770, %v7771
  %v7773 = vsel %vm2420, %v7659, 0.0
  %v7774 = vadd.f32 %v7772, %v7773
  %v7775 = vsel %vm2420, %v7660, 0.0
  %v7776 = vadd.f32 %v7774, %v7775
  %v7777 = vsel %vm2420, %v7661, 0.0
  %v7778 = vadd.f32 %v7776, %v7777
  %v7779 = vsel %vm2420, %v7662, 0.0
  %v7780 = vadd.f32 %v7778, %v7779
  %v7781 = vsel %vm2420, %v7663, 0.0
  %v7782 = vadd.f32 %v7780, %v7781
  %v7783 = vsel %vm2420, %v7664, 0.0
  %v7784 = vadd.f32 %v7782, %v7783
  %v7785 = vsel %vm2420, %v7665, 0.0
  %v7786 = vadd.f32 %v7784, %v7785
  %v7787 = vsel %vm2420, %v7666, 0.0
  %v7788 = vadd.f32 %v7786, %v7787
  %v7789 = vsel %vm2420, %v7667, 0.0
  %v7790 = vadd.f32 %v7788, %v7789
  %v7791 = vsel %vm2420, %v7668, 0.0
  %v7792 = vadd.f32 %v7790, %v7791
  %v7793 = vsel %vm2420, %v7669, 0.0
  %v7794 = vadd.f32 %v7792, %v7793
  %v7795 = vsel %vm2420, %v7670, 0.0
  %v7796 = vadd.f32 %v7794, %v7795
  %v7797 = vsel %vm2420, %v7671, 0.0
  %v7798 = vadd.f32 %v7796, %v7797
  %v7799 = vrot.slane %v7798, 4
  %v7800 = vadd.f32 %v7798, %v7799
  %v7801 = vrot.slane %v7800, 2
  %v7802 = vadd.f32 %v7800, %v7801
  %v7803 = vrot.slane %v7802, 1
  %v7804 = vadd.f32 %v7802, %v7803
  %v7805 = vmul.f32 %v7804, %v3594
  %v7806 = vadd.f32 %v7805, 1e-05
  %v7807 = vrsqrt.pop %v7806
  %v7808 = vmul.f32 %v7544, %v7807
  %v7809 = vmul.f32 %v7545, %v7807
  %v7810 = vmul.f32 %v7546, %v7807
  %v7811 = vmul.f32 %v7547, %v7807
  %v7812 = vmul.f32 %v7548, %v7807
  %v7813 = vmul.f32 %v7549, %v7807
  %v7814 = vmul.f32 %v7550, %v7807
  %v7815 = vmul.f32 %v7551, %v7807
  %v7816 = vmul.f32 %v7552, %v7807
  %v7817 = vmul.f32 %v7553, %v7807
  %v7818 = vmul.f32 %v7554, %v7807
  %v7819 = vmul.f32 %v7555, %v7807
  %v7820 = vmul.f32 %v7556, %v7807
  %v7821 = vmul.f32 %v7557, %v7807
  %v7822 = vmul.f32 %v7558, %v7807
  %v7823 = vmul.f32 %v7559, %v7807
  %v7824 = vmul.f32 %v7560, %v7807
  %v7825 = vmul.f32 %v7561, %v7807
  %v7826 = vmul.f32 %v7562, %v7807
  %v7827 = vmul.f32 %v7563, %v7807
  %v7828 = vmul.f32 %v7564, %v7807
  %v7829 = vmul.f32 %v7565, %v7807
  %v7830 = vmul.f32 %v7566, %v7807
  %v7831 = vmul.f32 %v7567, %v7807
  %v7832 = vmul.f32 %v7568, %v7807
  %v7833 = vmul.f32 %v7569, %v7807
  %v7834 = vmul.f32 %v7570, %v7807
  %v7835 = vmul.f32 %v7571, %v7807
  %v7836 = vmul.f32 %v7572, %v7807
  %v7837 = vmul.f32 %v7573, %v7807
  %v7838 = vmul.f32 %v7574, %v7807
  %v7839 = vmul.f32 %v7575, %v7807
  %v7840 = vmul.f32 %v7576, %v7807
  %v7841 = vmul.f32 %v7577, %v7807
  %v7842 = vmul.f32 %v7578, %v7807
  %v7843 = vmul.f32 %v7579, %v7807
  %v7844 = vmul.f32 %v7580, %v7807
  %v7845 = vmul.f32 %v7581, %v7807
  %v7846 = vmul.f32 %v7582, %v7807
  %v7847 = vmul.f32 %v7583, %v7807
  %v7848 = vmul.f32 %v7584, %v7807
  %v7849 = vmul.f32 %v7585, %v7807
  %v7850 = vmul.f32 %v7586, %v7807
  %v7851 = vmul.f32 %v7587, %v7807
  %v7852 = vmul.f32 %v7588, %v7807
  %v7853 = vmul.f32 %v7589, %v7807
  %v7854 = vmul.f32 %v7590, %v7807
  %v7855 = vmul.f32 %v7591, %v7807
  %v7856 = vmul.f32 %v7592, %v7807
  %v7857 = vmul.f32 %v7593, %v7807
  %v7858 = vmul.f32 %v7594, %v7807
  %v7859 = vmul.f32 %v7595, %v7807
  %v7860 = vmul.f32 %v7596, %v7807
  %v7861 = vmul.f32 %v7597, %v7807
  %v7862 = vmul.f32 %v7598, %v7807
  %v7863 = vmul.f32 %v7599, %v7807
  %v7864 = vmul.f32 %v7600, %v7807
  %v7865 = vmul.f32 %v7601, %v7807
  %v7866 = vmul.f32 %v7602, %v7807
  %v7867 = vmul.f32 %v7603, %v7807
  %v7868 = vmul.f32 %v7604, %v7807
  %v7869 = vmul.f32 %v7605, %v7807
  %v7870 = vmul.f32 %v7606, %v7807
  %v7871 = vmul.f32 %v7607, %v7807
  %v7873 = vlaneseq
  %v7874 = vshrl.u32 %v7873, 7
  %v7875 = vsub.s32 0, %v7874
  %v7876 = vrot.slane %v7408, %v7875
  %v7878 = vmul.f32 %v7808, %v7876
  %v7879 = vmul.f32 %v7809, %v7876
  %v7880 = vmul.f32 %v7810, %v7876
  %v7881 = vmul.f32 %v7811, %v7876
  %v7882 = vmul.f32 %v7812, %v7876
  %v7883 = vmul.f32 %v7813, %v7876
  %v7884 = vmul.f32 %v7814, %v7876
  %v7885 = vmul.f32 %v7815, %v7876
  %v7886 = vmul.f32 %v7816, %v7876
  %v7887 = vmul.f32 %v7817, %v7876
  %v7888 = vmul.f32 %v7818, %v7876
  %v7889 = vmul.f32 %v7819, %v7876
  %v7890 = vmul.f32 %v7820, %v7876
  %v7891 = vmul.f32 %v7821, %v7876
  %v7892 = vmul.f32 %v7822, %v7876
  %v7893 = vmul.f32 %v7823, %v7876
  %v7894 = vmul.f32 %v7824, %v7876
  %v7895 = vmul.f32 %v7825, %v7876
  %v7896 = vmul.f32 %v7826, %v7876
  %v7897 = vmul.f32 %v7827, %v7876
  %v7898 = vmul.f32 %v7828, %v7876
  %v7899 = vmul.f32 %v7829, %v7876
  %v7900 = vmul.f32 %v7830, %v7876
  %v7901 = vmul.f32 %v7831, %v7876
  %v7902 = vmul.f32 %v7832, %v7876
  %v7903 = vmul.f32 %v7833, %v7876
  %v7904 = vmul.f32 %v7834, %v7876
  %v7905 = vmul.f32 %v7835, %v7876
  %v7906 = vmul.f32 %v7836, %v7876
  %v7907 = vmul.f32 %v7837, %v7876
  %v7908 = vmul.f32 %v7838, %v7876
  %v7909 = vmul.f32 %v7839, %v7876
  %v7910 = vmul.f32 %v7840, %v7876
  %v7911 = vmul.f32 %v7841, %v7876
  %v7912 = vmul.f32 %v7842, %v7876
  %v7913 = vmul.f32 %v7843, %v7876
  %v7914 = vmul.f32 %v7844, %v7876
  %v7915 = vmul.f32 %v7845, %v7876
  %v7916 = vmul.f32 %v7846, %v7876
  %v7917 = vmul.f32 %v7847, %v7876
  %v7918 = vmul.f32 %v7848, %v7876
  %v7919 = vmul.f32 %v7849, %v7876
  %v7920 = vmul.f32 %v7850, %v7876
  %v7921 = vmul.f32 %v7851, %v7876
  %v7922 = vmul.f32 %v7852, %v7876
  %v7923 = vmul.f32 %v7853, %v7876
  %v7924 = vmul.f32 %v7854, %v7876
  %v7925 = vmul.f32 %v7855, %v7876
  %v7926 = vmul.f32 %v7856, %v7876
  %v7927 = vmul.f32 %v7857, %v7876
  %v7928 = vmul.f32 %v7858, %v7876
  %v7929 = vmul.f32 %v7859, %v7876
  %v7930 = vmul.f32 %v7860, %v7876
  %v7931 = vmul.f32 %v7861, %v7876
  %v7932 = vmul.f32 %v7862, %v7876
  %v7933 = vmul.f32 %v7863, %v7876
  %v7934 = vmul.f32 %v7864, %v7876
  %v7935 = vmul.f32 %v7865, %v7876
  %v7936 = vmul.f32 %v7866, %v7876
  %v7937 = vmul.f32 %v7867, %v7876
  %v7938 = vmul.f32 %v7868, %v7876
  %v7939 = vmul.f32 %v7869, %v7876
  %v7940 = vmul.f32 %v7870, %v7876
  %v7941 = vmul.f32 %v7871, %v7876
  %v7943 = vlaneseq
  %v7944 = vshrl.u32 %v7943, 7
  %v7945 = vsub.s32 0, %v7944
  %v7946 = vrot.slane %v7409, %v7945
  %v7948 = vadd.f32 %v7878, %v7946
  %v7949 = vadd.f32 %v7879, %v7946
  %v7950 = vadd.f32 %v7880, %v7946
  %v7951 = vadd.f32 %v7881, %v7946
  %v7952 = vadd.f32 %v7882, %v7946
  %v7953 = vadd.f32 %v7883, %v7946
  %v7954 = vadd.f32 %v7884, %v7946
  %v7955 = vadd.f32 %v7885, %v7946
  %v7956 = vadd.f32 %v7886, %v7946
  %v7957 = vadd.f32 %v7887, %v7946
  %v7958 = vadd.f32 %v7888, %v7946
  %v7959 = vadd.f32 %v7889, %v7946
  %v7960 = vadd.f32 %v7890, %v7946
  %v7961 = vadd.f32 %v7891, %v7946
  %v7962 = vadd.f32 %v7892, %v7946
  %v7963 = vadd.f32 %v7893, %v7946
  %v7964 = vadd.f32 %v7894, %v7946
  %v7965 = vadd.f32 %v7895, %v7946
  %v7966 = vadd.f32 %v7896, %v7946
  %v7967 = vadd.f32 %v7897, %v7946
  %v7968 = vadd.f32 %v7898, %v7946
  %v7969 = vadd.f32 %v7899, %v7946
  %v7970 = vadd.f32 %v7900, %v7946
  %v7971 = vadd.f32 %v7901, %v7946
  %v7972 = vadd.f32 %v7902, %v7946
  %v7973 = vadd.f32 %v7903, %v7946
  %v7974 = vadd.f32 %v7904, %v7946
  %v7975 = vadd.f32 %v7905, %v7946
  %v7976 = vadd.f32 %v7906, %v7946
  %v7977 = vadd.f32 %v7907, %v7946
  %v7978 = vadd.f32 %v7908, %v7946
  %v7979 = vadd.f32 %v7909, %v7946
  %v7980 = vadd.f32 %v7910, %v7946
  %v7981 = vadd.f32 %v7911, %v7946
  %v7982 = vadd.f32 %v7912, %v7946
  %v7983 = vadd.f32 %v7913, %v7946
  %v7984 = vadd.f32 %v7914, %v7946
  %v7985 = vadd.f32 %v7915, %v7946
  %v7986 = vadd.f32 %v7916, %v7946
  %v7987 = vadd.f32 %v7917, %v7946
  %v7988 = vadd.f32 %v7918, %v7946
  %v7989 = vadd.f32 %v7919, %v7946
  %v7990 = vadd.f32 %v7920, %v7946
  %v7991 = vadd.f32 %v7921, %v7946
  %v7992 = vadd.f32 %v7922, %v7946
  %v7993 = vadd.f32 %v7923, %v7946
  %v7994 = vadd.f32 %v7924, %v7946
  %v7995 = vadd.f32 %v7925, %v7946
  %v7996 = vadd.f32 %v7926, %v7946
  %v7997 = vadd.f32 %v7927, %v7946
  %v7998 = vadd.f32 %v7928, %v7946
  %v7999 = vadd.f32 %v7929, %v7946
  %v8000 = vadd.f32 %v7930, %v7946
  %v8001 = vadd.f32 %v7931, %v7946
  %v8002 = vadd.f32 %v7932, %v7946
  %v8003 = vadd.f32 %v7933, %v7946
  %v8004 = vadd.f32 %v7934, %v7946
  %v8005 = vadd.f32 %v7935, %v7946
  %v8006 = vadd.f32 %v7936, %v7946
  %v8007 = vadd.f32 %v7937, %v7946
  %v8008 = vadd.f32 %v7938, %v7946
  %v8009 = vadd.f32 %v7939, %v7946
  %v8010 = vadd.f32 %v7940, %v7946
  %v8011 = vadd.f32 %v7941, %v7946
  %v8012 = vld [vmem:[%s9] sm:$0xf]
  %v8013 = vld [vmem:[%s10] sm:$0x1]
  %v8015 = vlaneseq
  %v8016 = vshrl.u32 %v8015, 7
  %v8017 = vsub.s32 0, %v8016
  %v8018 = vrot.slane %v8013, %v8017
  %v8020 = vsel %vm2359, %v44, 0
  %v8022 = vsel %vm2359, %v45, 0
  %v8024 = vsel %vm2359, %v46, 0
  %v8026 = vsel %vm2359, %v47, 0
  %v8028 = vsel %vm2359, %v48, 0
  %v8030 = vsel %vm2359, %v49, 0
  %v8032 = vsel %vm2359, %v50, 0
  %v8034 = vsel %vm2359, %v51, 0
  %v8036 = vsel %vm2359, %v52, 0
  %v8038 = vsel %vm2359, %v53, 0
  %v8040 = vsel %vm2359, %v54, 0
  %v8042 = vsel %vm2359, %v55, 0
  %v8044 = vsel %vm2359, %v56, 0
  %v8046 = vsel %vm2359, %v57, 0
  %v8048 = vsel %vm2359, %v58, 0
  %v8050 = vsel %vm2359, %v59, 0
  %v8052 = vsel %vm2359, %v60, 0
  %v8054 = vsel %vm2359, %v61, 0
  %v8056 = vsel %vm2359, %v62, 0
  %v8058 = vsel %vm2359, %v63, 0
  %v8060 = vsel %vm2359, %v64, 0
  %v8062 = vsel %vm2359, %v65, 0
  %v8064 = vsel %vm2359, %v66, 0
  %v8066 = vsel %vm2359, %v67, 0
  %v8068 = vsel %vm2359, %v68, 0
  %v8070 = vsel %vm2359, %v69, 0
  %v8072 = vsel %vm2359, %v70, 0
  %v8074 = vsel %vm2359, %v71, 0
  %v8076 = vsel %vm2359, %v72, 0
  %v8078 = vsel %vm2359, %v73, 0
  %v8080 = vsel %vm2359, %v74, 0
  %v8082 = vsel %vm2359, %v75, 0
  %v8084 = vsel %vm2359, %v76, 0
  %v8086 = vsel %vm2359, %v77, 0
  %v8088 = vsel %vm2359, %v78, 0
  %v8090 = vsel %vm2359, %v79, 0
  %v8092 = vsel %vm2359, %v80, 0
  %v8094 = vsel %vm2359, %v81, 0
  %v8096 = vsel %vm2359, %v82, 0
  %v8098 = vsel %vm2359, %v83, 0
  %v8100 = vsel %vm2359, %v84, 0
  %v8102 = vsel %vm2359, %v85, 0
  %v8104 = vsel %vm2359, %v86, 0
  %v8106 = vsel %vm2359, %v87, 0
  %v8108 = vsel %vm2359, %v88, 0
  %v8110 = vsel %vm2359, %v89, 0
  %v8112 = vsel %vm2359, %v90, 0
  %v8114 = vsel %vm2359, %v91, 0
  %v8116 = vsel %vm2359, %v92, 0
  %v8118 = vsel %vm2359, %v93, 0
  %v8120 = vsel %vm2359, %v94, 0
  %v8122 = vsel %vm2359, %v95, 0
  %v8124 = vsel %vm2359, %v96, 0
  %v8126 = vsel %vm2359, %v97, 0
  %v8128 = vsel %vm2359, %v98, 0
  %v8130 = vsel %vm2359, %v99, 0
  %v8132 = vsel %vm2359, %v100, 0
  %v8134 = vsel %vm2359, %v101, 0
  %v8136 = vsel %vm2359, %v102, 0
  %v8138 = vsel %vm2359, %v103, 0
  %v8140 = vsel %vm2359, %v104, 0
  %v8142 = vsel %vm2359, %v105, 0
  %v8144 = vsel %vm2359, %v106, 0
  %v8146 = vsel %vm2359, %v107, 0
  %v8149 = vsel %vm3070, %v8012, 0
  %8151 = vmatprep.subr.mxu0 0.0
  %8152 = vmatpush1.msra.mxu0 0.0
  %8153 = vmatprep.subr.mxu0 0.0
  %8154 = vmatpush1.msra.mxu0 0.0
  %8155 = vmatprep.subr.mxu0 0.0
  %8156 = vmatpush1.msra.mxu0 0.0
  %8157 = vmatprep.subr.mxu0 0.0
  %8158 = vmatpush1.msra.mxu0 0.0
  %8159 = vmatprep.subr.mxu0 0.0
  %8160 = vmatpush1.msra.mxu0 0.0
  %8161 = vmatprep.subr.mxu0 0.0
  %8162 = vmatpush1.msra.mxu0 0.0
  %8163 = vmatprep.subr.mxu0 0.0
  %8164 = vmatpush1.msra.mxu0 0.0
  %8165 = vmatprep.subr.mxu0 0.0
  %8166 = vmatpush1.msra.mxu0 0.0
  %8167 = vmatprep.subr.mxu0 0.0
  %8168 = vmatpush1.msra.mxu0 0.0
  %8169 = vmatprep.subr.mxu0 0.0
  %8170 = vmatpush1.msra.mxu0 0.0
  %8171 = vmatprep.subr.mxu0 0.0
  %8172 = vmatpush1.msra.mxu0 0.0
  %8173 = vmatprep.subr.mxu0 0.0
  %8174 = vmatpush1.msra.mxu0 0.0
  %8175 = vmatprep.subr.mxu0 0.0
  %8176 = vmatpush1.msra.mxu0 0.0
  %8177 = vmatprep.subr.mxu0 0.0
  %8178 = vmatpush1.msra.mxu0 0.0
  %8179 = vmatprep.subr.mxu0 0.0
  %8180 = vmatpush1.msra.mxu0 0.0
  %8181 = vmatprep.subr.mxu0 0.0
  %8182 = vmatpush1.msra.mxu0 %v8149
  %8183 = vmatprep.subr.mxu0 0.0
  %8184 = vmatpush2.msra.mxu0 0.0
  %8185 = vmatprep.subr.mxu0 0.0
  %8186 = vmatpush2.msra.mxu0 0.0
  %8187 = vmatprep.subr.mxu0 0.0
  %8188 = vmatpush2.msra.mxu0 0.0
  %8189 = vmatprep.subr.mxu0 0.0
  %8190 = vmatpush2.msra.mxu0 0.0
  %8191 = vmatprep.subr.mxu0 0.0
  %8192 = vmatpush2.msra.mxu0 0.0
  %8193 = vmatprep.subr.mxu0 0.0
  %8194 = vmatpush2.msra.mxu0 0.0
  %8195 = vmatprep.subr.mxu0 0.0
  %8196 = vmatpush2.msra.mxu0 0.0
  %8197 = vmatprep.subr.mxu0 0.0
  %8198 = vmatpush2.msra.mxu0 0.0
  %8199 = vmatprep.subr.mxu0 0.0
  %8200 = vmatpush2.msra.mxu0 0.0
  %8201 = vmatprep.subr.mxu0 0.0
  %8202 = vmatpush2.msra.mxu0 0.0
  %8203 = vmatprep.subr.mxu0 0.0
  %8204 = vmatpush2.msra.mxu0 0.0
  %8205 = vmatprep.subr.mxu0 0.0
  %8206 = vmatpush2.msra.mxu0 0.0
  %8207 = vmatprep.subr.mxu0 0.0
  %8208 = vmatpush2.msra.mxu0 0.0
  %8209 = vmatprep.subr.mxu0 0.0
  %8210 = vmatpush2.msra.mxu0 0.0
  %8211 = vmatprep.subr.mxu0 0.0
  %8212 = vmatpush2.msra.mxu0 0.0
  %8213 = vmatprep.subr.mxu0 0.0
  %8214 = vmatpush2.msra.mxu0 0.0
  %8215 = vmatprep.mubr.f32.mxu0 0.0
  %8216 = vmatmul.mubr.f32.gmra.mxu0 %v8020
  %v8217 = vpop.f32.mrf.mxu0
  %v8218 = vadd.f32 %v8018, %v8217
  %v8219 = vpop.f32.mrf.mxu0
  %8220 = vmatprep.mubr.f32.mxu0 0.0
  %8221 = vmatmul.mubr.f32.gmra.mxu0 %v8022
  %v8222 = vpop.f32.mrf.mxu0
  %v8223 = vadd.f32 %v8018, %v8222
  %v8224 = vpop.f32.mrf.mxu0
  %8225 = vmatprep.mubr.f32.mxu0 0.0
  %8226 = vmatmul.mubr.f32.gmra.mxu0 %v8024
  %v8227 = vpop.f32.mrf.mxu0
  %v8228 = vadd.f32 %v8018, %v8227
  %v8229 = vpop.f32.mrf.mxu0
  %8230 = vmatprep.mubr.f32.mxu0 0.0
  %8231 = vmatmul.mubr.f32.gmra.mxu0 %v8026
  %v8232 = vpop.f32.mrf.mxu0
  %v8233 = vadd.f32 %v8018, %v8232
  %v8234 = vpop.f32.mrf.mxu0
  %8235 = vmatprep.mubr.f32.mxu0 0.0
  %8236 = vmatmul.mubr.f32.gmra.mxu0 %v8028
  %v8237 = vpop.f32.mrf.mxu0
  %v8238 = vadd.f32 %v8018, %v8237
  %v8239 = vpop.f32.mrf.mxu0
  %8240 = vmatprep.mubr.f32.mxu0 0.0
  %8241 = vmatmul.mubr.f32.gmra.mxu0 %v8030
  %v8242 = vpop.f32.mrf.mxu0
  %v8243 = vadd.f32 %v8018, %v8242
  %v8244 = vpop.f32.mrf.mxu0
  %8245 = vmatprep.mubr.f32.mxu0 0.0
  %8246 = vmatmul.mubr.f32.gmra.mxu0 %v8032
  %v8247 = vpop.f32.mrf.mxu0
  %v8248 = vadd.f32 %v8018, %v8247
  %v8249 = vpop.f32.mrf.mxu0
  %8250 = vmatprep.mubr.f32.mxu0 0.0
  %8251 = vmatmul.mubr.f32.gmra.mxu0 %v8034
  %v8252 = vpop.f32.mrf.mxu0
  %v8253 = vadd.f32 %v8018, %v8252
  %v8254 = vpop.f32.mrf.mxu0
  %8255 = vmatprep.mubr.f32.mxu0 0.0
  %8256 = vmatmul.mubr.f32.gmra.mxu0 %v8036
  %v8257 = vpop.f32.mrf.mxu0
  %v8258 = vadd.f32 %v8018, %v8257
  %v8259 = vpop.f32.mrf.mxu0
  %8260 = vmatprep.mubr.f32.mxu0 0.0
  %8261 = vmatmul.mubr.f32.gmra.mxu0 %v8038
  %v8262 = vpop.f32.mrf.mxu0
  %v8263 = vadd.f32 %v8018, %v8262
  %v8264 = vpop.f32.mrf.mxu0
  %8265 = vmatprep.mubr.f32.mxu0 0.0
  %8266 = vmatmul.mubr.f32.gmra.mxu0 %v8040
  %v8267 = vpop.f32.mrf.mxu0
  %v8268 = vadd.f32 %v8018, %v8267
  %v8269 = vpop.f32.mrf.mxu0
  %8270 = vmatprep.mubr.f32.mxu0 0.0
  %8271 = vmatmul.mubr.f32.gmra.mxu0 %v8042
  %v8272 = vpop.f32.mrf.mxu0
  %v8273 = vadd.f32 %v8018, %v8272
  %v8274 = vpop.f32.mrf.mxu0
  %8275 = vmatprep.mubr.f32.mxu0 0.0
  %8276 = vmatmul.mubr.f32.gmra.mxu0 %v8044
  %v8277 = vpop.f32.mrf.mxu0
  %v8278 = vadd.f32 %v8018, %v8277
  %v8279 = vpop.f32.mrf.mxu0
  %8280 = vmatprep.mubr.f32.mxu0 0.0
  %8281 = vmatmul.mubr.f32.gmra.mxu0 %v8046
  %v8282 = vpop.f32.mrf.mxu0
  %v8283 = vadd.f32 %v8018, %v8282
  %v8284 = vpop.f32.mrf.mxu0
  %8285 = vmatprep.mubr.f32.mxu0 0.0
  %8286 = vmatmul.mubr.f32.gmra.mxu0 %v8048
  %v8287 = vpop.f32.mrf.mxu0
  %v8288 = vadd.f32 %v8018, %v8287
  %v8289 = vpop.f32.mrf.mxu0
  %8290 = vmatprep.mubr.f32.mxu0 0.0
  %8291 = vmatmul.mubr.f32.gmra.mxu0 %v8050
  %v8292 = vpop.f32.mrf.mxu0
  %v8293 = vadd.f32 %v8018, %v8292
  %v8294 = vpop.f32.mrf.mxu0
  %8295 = vmatprep.mubr.f32.mxu0 0.0
  %8296 = vmatmul.mubr.f32.gmra.mxu0 %v8052
  %v8297 = vpop.f32.mrf.mxu0
  %v8298 = vadd.f32 %v8018, %v8297
  %v8299 = vpop.f32.mrf.mxu0
  %8300 = vmatprep.mubr.f32.mxu0 0.0
  %8301 = vmatmul.mubr.f32.gmra.mxu0 %v8054
  %v8302 = vpop.f32.mrf.mxu0
  %v8303 = vadd.f32 %v8018, %v8302
  %v8304 = vpop.f32.mrf.mxu0
  %8305 = vmatprep.mubr.f32.mxu0 0.0
  %8306 = vmatmul.mubr.f32.gmra.mxu0 %v8056
  %v8307 = vpop.f32.mrf.mxu0
  %v8308 = vadd.f32 %v8018, %v8307
  %v8309 = vpop.f32.mrf.mxu0
  %8310 = vmatprep.mubr.f32.mxu0 0.0
  %8311 = vmatmul.mubr.f32.gmra.mxu0 %v8058
  %v8312 = vpop.f32.mrf.mxu0
  %v8313 = vadd.f32 %v8018, %v8312
  %v8314 = vpop.f32.mrf.mxu0
  %8315 = vmatprep.mubr.f32.mxu0 0.0
  %8316 = vmatmul.mubr.f32.gmra.mxu0 %v8060
  %v8317 = vpop.f32.mrf.mxu0
  %v8318 = vadd.f32 %v8018, %v8317
  %v8319 = vpop.f32.mrf.mxu0
  %8320 = vmatprep.mubr.f32.mxu0 0.0
  %8321 = vmatmul.mubr.f32.gmra.mxu0 %v8062
  %v8322 = vpop.f32.mrf.mxu0
  %v8323 = vadd.f32 %v8018, %v8322
  %v8324 = vpop.f32.mrf.mxu0
  %8325 = vmatprep.mubr.f32.mxu0 0.0
  %8326 = vmatmul.mubr.f32.gmra.mxu0 %v8064
  %v8327 = vpop.f32.mrf.mxu0
  %v8328 = vadd.f32 %v8018, %v8327
  %v8329 = vpop.f32.mrf.mxu0
  %8330 = vmatprep.mubr.f32.mxu0 0.0
  %8331 = vmatmul.mubr.f32.gmra.mxu0 %v8066
  %v8332 = vpop.f32.mrf.mxu0
  %v8333 = vadd.f32 %v8018, %v8332
  %v8334 = vpop.f32.mrf.mxu0
  %8335 = vmatprep.mubr.f32.mxu0 0.0
  %8336 = vmatmul.mubr.f32.gmra.mxu0 %v8068
  %v8337 = vpop.f32.mrf.mxu0
  %v8338 = vadd.f32 %v8018, %v8337
  %v8339 = vpop.f32.mrf.mxu0
  %8340 = vmatprep.mubr.f32.mxu0 0.0
  %8341 = vmatmul.mubr.f32.gmra.mxu0 %v8070
  %v8342 = vpop.f32.mrf.mxu0
  %v8343 = vadd.f32 %v8018, %v8342
  %v8344 = vpop.f32.mrf.mxu0
  %8345 = vmatprep.mubr.f32.mxu0 0.0
  %8346 = vmatmul.mubr.f32.gmra.mxu0 %v8072
  %v8347 = vpop.f32.mrf.mxu0
  %v8348 = vadd.f32 %v8018, %v8347
  %v8349 = vpop.f32.mrf.mxu0
  %8350 = vmatprep.mubr.f32.mxu0 0.0
  %8351 = vmatmul.mubr.f32.gmra.mxu0 %v8074
  %v8352 = vpop.f32.mrf.mxu0
  %v8353 = vadd.f32 %v8018, %v8352
  %v8354 = vpop.f32.mrf.mxu0
  %8355 = vmatprep.mubr.f32.mxu0 0.0
  %8356 = vmatmul.mubr.f32.gmra.mxu0 %v8076
  %v8357 = vpop.f32.mrf.mxu0
  %v8358 = vadd.f32 %v8018, %v8357
  %v8359 = vpop.f32.mrf.mxu0
  %8360 = vmatprep.mubr.f32.mxu0 0.0
  %8361 = vmatmul.mubr.f32.gmra.mxu0 %v8078
  %v8362 = vpop.f32.mrf.mxu0
  %v8363 = vadd.f32 %v8018, %v8362
  %v8364 = vpop.f32.mrf.mxu0
  %8365 = vmatprep.mubr.f32.mxu0 0.0
  %8366 = vmatmul.mubr.f32.gmra.mxu0 %v8080
  %v8367 = vpop.f32.mrf.mxu0
  %v8368 = vadd.f32 %v8018, %v8367
  %v8369 = vpop.f32.mrf.mxu0
  %8370 = vmatprep.mubr.f32.mxu0 0.0
  %8371 = vmatmul.mubr.f32.gmra.mxu0 %v8082
  %v8372 = vpop.f32.mrf.mxu0
  %v8373 = vadd.f32 %v8018, %v8372
  %v8374 = vpop.f32.mrf.mxu0
  %8375 = vmatprep.mubr.f32.mxu0 0.0
  %8376 = vmatmul.mubr.f32.gmra.mxu0 %v8084
  %v8377 = vpop.f32.mrf.mxu0
  %v8378 = vadd.f32 %v8018, %v8377
  %v8379 = vpop.f32.mrf.mxu0
  %8380 = vmatprep.mubr.f32.mxu0 0.0
  %8381 = vmatmul.mubr.f32.gmra.mxu0 %v8086
  %v8382 = vpop.f32.mrf.mxu0
  %v8383 = vadd.f32 %v8018, %v8382
  %v8384 = vpop.f32.mrf.mxu0
  %8385 = vmatprep.mubr.f32.mxu0 0.0
  %8386 = vmatmul.mubr.f32.gmra.mxu0 %v8088
  %v8387 = vpop.f32.mrf.mxu0
  %v8388 = vadd.f32 %v8018, %v8387
  %v8389 = vpop.f32.mrf.mxu0
  %8390 = vmatprep.mubr.f32.mxu0 0.0
  %8391 = vmatmul.mubr.f32.gmra.mxu0 %v8090
  %v8392 = vpop.f32.mrf.mxu0
  %v8393 = vadd.f32 %v8018, %v8392
  %v8394 = vpop.f32.mrf.mxu0
  %8395 = vmatprep.mubr.f32.mxu0 0.0
  %8396 = vmatmul.mubr.f32.gmra.mxu0 %v8092
  %v8397 = vpop.f32.mrf.mxu0
  %v8398 = vadd.f32 %v8018, %v8397
  %v8399 = vpop.f32.mrf.mxu0
  %8400 = vmatprep.mubr.f32.mxu0 0.0
  %8401 = vmatmul.mubr.f32.gmra.mxu0 %v8094
  %v8402 = vpop.f32.mrf.mxu0
  %v8403 = vadd.f32 %v8018, %v8402
  %v8404 = vpop.f32.mrf.mxu0
  %8405 = vmatprep.mubr.f32.mxu0 0.0
  %8406 = vmatmul.mubr.f32.gmra.mxu0 %v8096
  %v8407 = vpop.f32.mrf.mxu0
  %v8408 = vadd.f32 %v8018, %v8407
  %v8409 = vpop.f32.mrf.mxu0
  %8410 = vmatprep.mubr.f32.mxu0 0.0
  %8411 = vmatmul.mubr.f32.gmra.mxu0 %v8098
  %v8412 = vpop.f32.mrf.mxu0
  %v8413 = vadd.f32 %v8018, %v8412
  %v8414 = vpop.f32.mrf.mxu0
  %8415 = vmatprep.mubr.f32.mxu0 0.0
  %8416 = vmatmul.mubr.f32.gmra.mxu0 %v8100
  %v8417 = vpop.f32.mrf.mxu0
  %v8418 = vadd.f32 %v8018, %v8417
  %v8419 = vpop.f32.mrf.mxu0
  %8420 = vmatprep.mubr.f32.mxu0 0.0
  %8421 = vmatmul.mubr.f32.gmra.mxu0 %v8102
  %v8422 = vpop.f32.mrf.mxu0
  %v8423 = vadd.f32 %v8018, %v8422
  %v8424 = vpop.f32.mrf.mxu0
  %8425 = vmatprep.mubr.f32.mxu0 0.0
  %8426 = vmatmul.mubr.f32.gmra.mxu0 %v8104
  %v8427 = vpop.f32.mrf.mxu0
  %v8428 = vadd.f32 %v8018, %v8427
  %v8429 = vpop.f32.mrf.mxu0
  %8430 = vmatprep.mubr.f32.mxu0 0.0
  %8431 = vmatmul.mubr.f32.gmra.mxu0 %v8106
  %v8432 = vpop.f32.mrf.mxu0
  %v8433 = vadd.f32 %v8018, %v8432
  %v8434 = vpop.f32.mrf.mxu0
  %8435 = vmatprep.mubr.f32.mxu0 0.0
  %8436 = vmatmul.mubr.f32.gmra.mxu0 %v8108
  %v8437 = vpop.f32.mrf.mxu0
  %v8438 = vadd.f32 %v8018, %v8437
  %v8439 = vpop.f32.mrf.mxu0
  %8440 = vmatprep.mubr.f32.mxu0 0.0
  %8441 = vmatmul.mubr.f32.gmra.mxu0 %v8110
  %v8442 = vpop.f32.mrf.mxu0
  %v8443 = vadd.f32 %v8018, %v8442
  %v8444 = vpop.f32.mrf.mxu0
  %8445 = vmatprep.mubr.f32.mxu0 0.0
  %8446 = vmatmul.mubr.f32.gmra.mxu0 %v8112
  %v8447 = vpop.f32.mrf.mxu0
  %v8448 = vadd.f32 %v8018, %v8447
  %v8449 = vpop.f32.mrf.mxu0
  %8450 = vmatprep.mubr.f32.mxu0 0.0
  %8451 = vmatmul.mubr.f32.gmra.mxu0 %v8114
  %v8452 = vpop.f32.mrf.mxu0
  %v8453 = vadd.f32 %v8018, %v8452
  %v8454 = vpop.f32.mrf.mxu0
  %8455 = vmatprep.mubr.f32.mxu0 0.0
  %8456 = vmatmul.mubr.f32.gmra.mxu0 %v8116
  %v8457 = vpop.f32.mrf.mxu0
  %v8458 = vadd.f32 %v8018, %v8457
  %v8459 = vpop.f32.mrf.mxu0
  %8460 = vmatprep.mubr.f32.mxu0 0.0
  %8461 = vmatmul.mubr.f32.gmra.mxu0 %v8118
  %v8462 = vpop.f32.mrf.mxu0
  %v8463 = vadd.f32 %v8018, %v8462
  %v8464 = vpop.f32.mrf.mxu0
  %8465 = vmatprep.mubr.f32.mxu0 0.0
  %8466 = vmatmul.mubr.f32.gmra.mxu0 %v8120
  %v8467 = vpop.f32.mrf.mxu0
  %v8468 = vadd.f32 %v8018, %v8467
  %v8469 = vpop.f32.mrf.mxu0
  %8470 = vmatprep.mubr.f32.mxu0 0.0
  %8471 = vmatmul.mubr.f32.gmra.mxu0 %v8122
  %v8472 = vpop.f32.mrf.mxu0
  %v8473 = vadd.f32 %v8018, %v8472
  %v8474 = vpop.f32.mrf.mxu0
  %8475 = vmatprep.mubr.f32.mxu0 0.0
  %8476 = vmatmul.mubr.f32.gmra.mxu0 %v8124
  %v8477 = vpop.f32.mrf.mxu0
  %v8478 = vadd.f32 %v8018, %v8477
  %v8479 = vpop.f32.mrf.mxu0
  %8480 = vmatprep.mubr.f32.mxu0 0.0
  %8481 = vmatmul.mubr.f32.gmra.mxu0 %v8126
  %v8482 = vpop.f32.mrf.mxu0
  %v8483 = vadd.f32 %v8018, %v8482
  %v8484 = vpop.f32.mrf.mxu0
  %8485 = vmatprep.mubr.f32.mxu0 0.0
  %8486 = vmatmul.mubr.f32.gmra.mxu0 %v8128
  %v8487 = vpop.f32.mrf.mxu0
  %v8488 = vadd.f32 %v8018, %v8487
  %v8489 = vpop.f32.mrf.mxu0
  %8490 = vmatprep.mubr.f32.mxu0 0.0
  %8491 = vmatmul.mubr.f32.gmra.mxu0 %v8130
  %v8492 = vpop.f32.mrf.mxu0
  %v8493 = vadd.f32 %v8018, %v8492
  %v8494 = vpop.f32.mrf.mxu0
  %8495 = vmatprep.mubr.f32.mxu0 0.0
  %8496 = vmatmul.mubr.f32.gmra.mxu0 %v8132
  %v8497 = vpop.f32.mrf.mxu0
  %v8498 = vadd.f32 %v8018, %v8497
  %v8499 = vpop.f32.mrf.mxu0
  %8500 = vmatprep.mubr.f32.mxu0 0.0
  %8501 = vmatmul.mubr.f32.gmra.mxu0 %v8134
  %v8502 = vpop.f32.mrf.mxu0
  %v8503 = vadd.f32 %v8018, %v8502
  %v8504 = vpop.f32.mrf.mxu0
  %8505 = vmatprep.mubr.f32.mxu0 0.0
  %8506 = vmatmul.mubr.f32.gmra.mxu0 %v8136
  %v8507 = vpop.f32.mrf.mxu0
  %v8508 = vadd.f32 %v8018, %v8507
  %v8509 = vpop.f32.mrf.mxu0
  %8510 = vmatprep.mubr.f32.mxu0 0.0
  %8511 = vmatmul.mubr.f32.gmra.mxu0 %v8138
  %v8512 = vpop.f32.mrf.mxu0
  %v8513 = vadd.f32 %v8018, %v8512
  %v8514 = vpop.f32.mrf.mxu0
  %8515 = vmatprep.mubr.f32.mxu0 0.0
  %8516 = vmatmul.mubr.f32.gmra.mxu0 %v8140
  %v8517 = vpop.f32.mrf.mxu0
  %v8518 = vadd.f32 %v8018, %v8517
  %v8519 = vpop.f32.mrf.mxu0
  %8520 = vmatprep.mubr.f32.mxu0 0.0
  %8521 = vmatmul.mubr.f32.gmra.mxu0 %v8142
  %v8522 = vpop.f32.mrf.mxu0
  %v8523 = vadd.f32 %v8018, %v8522
  %v8524 = vpop.f32.mrf.mxu0
  %8525 = vmatprep.mubr.f32.mxu0 0.0
  %8526 = vmatmul.mubr.f32.gmra.mxu0 %v8144
  %v8527 = vpop.f32.mrf.mxu0
  %v8528 = vadd.f32 %v8018, %v8527
  %v8529 = vpop.f32.mrf.mxu0
  %8530 = vmatprep.mubr.f32.mxu0 0.0
  %8531 = vmatmul.mubr.f32.gmra.mxu0 %v8146
  %v8532 = vpop.f32.mrf.mxu0
  %v8533 = vadd.f32 %v8018, %v8532
  %v8534 = vpop.f32.mrf.mxu0
  %8535 = vdwg.mxu0
  %v8536 = vld [vmem:[%s11] sm:$0x1]
  %v8537 = vld [vmem:[%s12] sm:$0x1]
  %v8538 = vsel %vm2420, %v8218, 0.0
  %v8539 = vsel %vm2420, %v8223, 0.0
  %v8540 = vadd.f32 %v8538, %v8539
  %v8541 = vsel %vm2420, %v8228, 0.0
  %v8542 = vadd.f32 %v8540, %v8541
  %v8543 = vsel %vm2420, %v8233, 0.0
  %v8544 = vadd.f32 %v8542, %v8543
  %v8545 = vsel %vm2420, %v8238, 0.0
  %v8546 = vadd.f32 %v8544, %v8545
  %v8547 = vsel %vm2420, %v8243, 0.0
  %v8548 = vadd.f32 %v8546, %v8547
  %v8549 = vsel %vm2420, %v8248, 0.0
  %v8550 = vadd.f32 %v8548, %v8549
  %v8551 = vsel %vm2420, %v8253, 0.0
  %v8552 = vadd.f32 %v8550, %v8551
  %v8553 = vsel %vm2420, %v8258, 0.0
  %v8554 = vadd.f32 %v8552, %v8553
  %v8555 = vsel %vm2420, %v8263, 0.0
  %v8556 = vadd.f32 %v8554, %v8555
  %v8557 = vsel %vm2420, %v8268, 0.0
  %v8558 = vadd.f32 %v8556, %v8557
  %v8559 = vsel %vm2420, %v8273, 0.0
  %v8560 = vadd.f32 %v8558, %v8559
  %v8561 = vsel %vm2420, %v8278, 0.0
  %v8562 = vadd.f32 %v8560, %v8561
  %v8563 = vsel %vm2420, %v8283, 0.0
  %v8564 = vadd.f32 %v8562, %v8563
  %v8565 = vsel %vm2420, %v8288, 0.0
  %v8566 = vadd.f32 %v8564, %v8565
  %v8567 = vsel %vm2420, %v8293, 0.0
  %v8568 = vadd.f32 %v8566, %v8567
  %v8569 = vsel %vm2420, %v8298, 0.0
  %v8570 = vadd.f32 %v8568, %v8569
  %v8571 = vsel %vm2420, %v8303, 0.0
  %v8572 = vadd.f32 %v8570, %v8571
  %v8573 = vsel %vm2420, %v8308, 0.0
  %v8574 = vadd.f32 %v8572, %v8573
  %v8575 = vsel %vm2420, %v8313, 0.0
  %v8576 = vadd.f32 %v8574, %v8575
  %v8577 = vsel %vm2420, %v8318, 0.0
  %v8578 = vadd.f32 %v8576, %v8577
  %v8579 = vsel %vm2420, %v8323, 0.0
  %v8580 = vadd.f32 %v8578, %v8579
  %v8581 = vsel %vm2420, %v8328, 0.0
  %v8582 = vadd.f32 %v8580, %v8581
  %v8583 = vsel %vm2420, %v8333, 0.0
  %v8584 = vadd.f32 %v8582, %v8583
  %v8585 = vsel %vm2420, %v8338, 0.0
  %v8586 = vadd.f32 %v8584, %v8585
  %v8587 = vsel %vm2420, %v8343, 0.0
  %v8588 = vadd.f32 %v8586, %v8587
  %v8589 = vsel %vm2420, %v8348, 0.0
  %v8590 = vadd.f32 %v8588, %v8589
  %v8591 = vsel %vm2420, %v8353, 0.0
  %v8592 = vadd.f32 %v8590, %v8591
  %v8593 = vsel %vm2420, %v8358, 0.0
  %v8594 = vadd.f32 %v8592, %v8593
  %v8595 = vsel %vm2420, %v8363, 0.0
  %v8596 = vadd.f32 %v8594, %v8595
  %v8597 = vsel %vm2420, %v8368, 0.0
  %v8598 = vadd.f32 %v8596, %v8597
  %v8599 = vsel %vm2420, %v8373, 0.0
  %v8600 = vadd.f32 %v8598, %v8599
  %v8601 = vsel %vm2420, %v8378, 0.0
  %v8602 = vadd.f32 %v8600, %v8601
  %v8603 = vsel %vm2420, %v8383, 0.0
  %v8604 = vadd.f32 %v8602, %v8603
  %v8605 = vsel %vm2420, %v8388, 0.0
  %v8606 = vadd.f32 %v8604, %v8605
  %v8607 = vsel %vm2420, %v8393, 0.0
  %v8608 = vadd.f32 %v8606, %v8607
  %v8609 = vsel %vm2420, %v8398, 0.0
  %v8610 = vadd.f32 %v8608, %v8609
  %v8611 = vsel %vm2420, %v8403, 0.0
  %v8612 = vadd.f32 %v8610, %v8611
  %v8613 = vsel %vm2420, %v8408, 0.0
  %v8614 = vadd.f32 %v8612, %v8613
  %v8615 = vsel %vm2420, %v8413, 0.0
  %v8616 = vadd.f32 %v8614, %v8615
  %v8617 = vsel %vm2420, %v8418, 0.0
  %v8618 = vadd.f32 %v8616, %v8617
  %v8619 = vsel %vm2420, %v8423, 0.0
  %v8620 = vadd.f32 %v8618, %v8619
  %v8621 = vsel %vm2420, %v8428, 0.0
  %v8622 = vadd.f32 %v8620, %v8621
  %v8623 = vsel %vm2420, %v8433, 0.0
  %v8624 = vadd.f32 %v8622, %v8623
  %v8625 = vsel %vm2420, %v8438, 0.0
  %v8626 = vadd.f32 %v8624, %v8625
  %v8627 = vsel %vm2420, %v8443, 0.0
  %v8628 = vadd.f32 %v8626, %v8627
  %v8629 = vsel %vm2420, %v8448, 0.0
  %v8630 = vadd.f32 %v8628, %v8629
  %v8631 = vsel %vm2420, %v8453, 0.0
  %v8632 = vadd.f32 %v8630, %v8631
  %v8633 = vsel %vm2420, %v8458, 0.0
  %v8634 = vadd.f32 %v8632, %v8633
  %v8635 = vsel %vm2420, %v8463, 0.0
  %v8636 = vadd.f32 %v8634, %v8635
  %v8637 = vsel %vm2420, %v8468, 0.0
  %v8638 = vadd.f32 %v8636, %v8637
  %v8639 = vsel %vm2420, %v8473, 0.0
  %v8640 = vadd.f32 %v8638, %v8639
  %v8641 = vsel %vm2420, %v8478, 0.0
  %v8642 = vadd.f32 %v8640, %v8641
  %v8643 = vsel %vm2420, %v8483, 0.0
  %v8644 = vadd.f32 %v8642, %v8643
  %v8645 = vsel %vm2420, %v8488, 0.0
  %v8646 = vadd.f32 %v8644, %v8645
  %v8647 = vsel %vm2420, %v8493, 0.0
  %v8648 = vadd.f32 %v8646, %v8647
  %v8649 = vsel %vm2420, %v8498, 0.0
  %v8650 = vadd.f32 %v8648, %v8649
  %v8651 = vsel %vm2420, %v8503, 0.0
  %v8652 = vadd.f32 %v8650, %v8651
  %v8653 = vsel %vm2420, %v8508, 0.0
  %v8654 = vadd.f32 %v8652, %v8653
  %v8655 = vsel %vm2420, %v8513, 0.0
  %v8656 = vadd.f32 %v8654, %v8655
  %v8657 = vsel %vm2420, %v8518, 0.0
  %v8658 = vadd.f32 %v8656, %v8657
  %v8659 = vsel %vm2420, %v8523, 0.0
  %v8660 = vadd.f32 %v8658, %v8659
  %v8661 = vsel %vm2420, %v8528, 0.0
  %v8662 = vadd.f32 %v8660, %v8661
  %v8663 = vsel %vm2420, %v8533, 0.0
  %v8664 = vadd.f32 %v8662, %v8663
  %v8665 = vrot.slane %v8664, 4
  %v8666 = vadd.f32 %v8664, %v8665
  %v8667 = vrot.slane %v8666, 2
  %v8668 = vadd.f32 %v8666, %v8667
  %v8669 = vrot.slane %v8668, 1
  %v8670 = vadd.f32 %v8668, %v8669
  %v8671 = vmul.f32 %v8670, %v3594
  %v8672 = vsub.f32 %v8218, %v8671
  %v8673 = vsub.f32 %v8223, %v8671
  %v8674 = vsub.f32 %v8228, %v8671
  %v8675 = vsub.f32 %v8233, %v8671
  %v8676 = vsub.f32 %v8238, %v8671
  %v8677 = vsub.f32 %v8243, %v8671
  %v8678 = vsub.f32 %v8248, %v8671
  %v8679 = vsub.f32 %v8253, %v8671
  %v8680 = vsub.f32 %v8258, %v8671
  %v8681 = vsub.f32 %v8263, %v8671
  %v8682 = vsub.f32 %v8268, %v8671
  %v8683 = vsub.f32 %v8273, %v8671
  %v8684 = vsub.f32 %v8278, %v8671
  %v8685 = vsub.f32 %v8283, %v8671
  %v8686 = vsub.f32 %v8288, %v8671
  %v8687 = vsub.f32 %v8293, %v8671
  %v8688 = vsub.f32 %v8298, %v8671
  %v8689 = vsub.f32 %v8303, %v8671
  %v8690 = vsub.f32 %v8308, %v8671
  %v8691 = vsub.f32 %v8313, %v8671
  %v8692 = vsub.f32 %v8318, %v8671
  %v8693 = vsub.f32 %v8323, %v8671
  %v8694 = vsub.f32 %v8328, %v8671
  %v8695 = vsub.f32 %v8333, %v8671
  %v8696 = vsub.f32 %v8338, %v8671
  %v8697 = vsub.f32 %v8343, %v8671
  %v8698 = vsub.f32 %v8348, %v8671
  %v8699 = vsub.f32 %v8353, %v8671
  %v8700 = vsub.f32 %v8358, %v8671
  %v8701 = vsub.f32 %v8363, %v8671
  %v8702 = vsub.f32 %v8368, %v8671
  %v8703 = vsub.f32 %v8373, %v8671
  %v8704 = vsub.f32 %v8378, %v8671
  %v8705 = vsub.f32 %v8383, %v8671
  %v8706 = vsub.f32 %v8388, %v8671
  %v8707 = vsub.f32 %v8393, %v8671
  %v8708 = vsub.f32 %v8398, %v8671
  %v8709 = vsub.f32 %v8403, %v8671
  %v8710 = vsub.f32 %v8408, %v8671
  %v8711 = vsub.f32 %v8413, %v8671
  %v8712 = vsub.f32 %v8418, %v8671
  %v8713 = vsub.f32 %v8423, %v8671
  %v8714 = vsub.f32 %v8428, %v8671
  %v8715 = vsub.f32 %v8433, %v8671
  %v8716 = vsub.f32 %v8438, %v8671
  %v8717 = vsub.f32 %v8443, %v8671
  %v8718 = vsub.f32 %v8448, %v8671
  %v8719 = vsub.f32 %v8453, %v8671
  %v8720 = vsub.f32 %v8458, %v8671
  %v8721 = vsub.f32 %v8463, %v8671
  %v8722 = vsub.f32 %v8468, %v8671
  %v8723 = vsub.f32 %v8473, %v8671
  %v8724 = vsub.f32 %v8478, %v8671
  %v8725 = vsub.f32 %v8483, %v8671
  %v8726 = vsub.f32 %v8488, %v8671
  %v8727 = vsub.f32 %v8493, %v8671
  %v8728 = vsub.f32 %v8498, %v8671
  %v8729 = vsub.f32 %v8503, %v8671
  %v8730 = vsub.f32 %v8508, %v8671
  %v8731 = vsub.f32 %v8513, %v8671
  %v8732 = vsub.f32 %v8518, %v8671
  %v8733 = vsub.f32 %v8523, %v8671
  %v8734 = vsub.f32 %v8528, %v8671
  %v8735 = vsub.f32 %v8533, %v8671
  %v8736 = vmul.f32 %v8672, %v8672
  %v8737 = vmul.f32 %v8673, %v8673
  %v8738 = vmul.f32 %v8674, %v8674
  %v8739 = vmul.f32 %v8675, %v8675
  %v8740 = vmul.f32 %v8676, %v8676
  %v8741 = vmul.f32 %v8677, %v8677
  %v8742 = vmul.f32 %v8678, %v8678
  %v8743 = vmul.f32 %v8679, %v8679
  %v8744 = vmul.f32 %v8680, %v8680
  %v8745 = vmul.f32 %v8681, %v8681
  %v8746 = vmul.f32 %v8682, %v8682
  %v8747 = vmul.f32 %v8683, %v8683
  %v8748 = vmul.f32 %v8684, %v8684
  %v8749 = vmul.f32 %v8685, %v8685
  %v8750 = vmul.f32 %v8686, %v8686
  %v8751 = vmul.f32 %v8687, %v8687
  %v8752 = vmul.f32 %v8688, %v8688
  %v8753 = vmul.f32 %v8689, %v8689
  %v8754 = vmul.f32 %v8690, %v8690
  %v8755 = vmul.f32 %v8691, %v8691
  %v8756 = vmul.f32 %v8692, %v8692
  %v8757 = vmul.f32 %v8693, %v8693
  %v8758 = vmul.f32 %v8694, %v8694
  %v8759 = vmul.f32 %v8695, %v8695
  %v8760 = vmul.f32 %v8696, %v8696
  %v8761 = vmul.f32 %v8697, %v8697
  %v8762 = vmul.f32 %v8698, %v8698
  %v8763 = vmul.f32 %v8699, %v8699
  %v8764 = vmul.f32 %v8700, %v8700
  %v8765 = vmul.f32 %v8701, %v8701
  %v8766 = vmul.f32 %v8702, %v8702
  %v8767 = vmul.f32 %v8703, %v8703
  %v8768 = vmul.f32 %v8704, %v8704
  %v8769 = vmul.f32 %v8705, %v8705
  %v8770 = vmul.f32 %v8706, %v8706
  %v8771 = vmul.f32 %v8707, %v8707
  %v8772 = vmul.f32 %v8708, %v8708
  %v8773 = vmul.f32 %v8709, %v8709
  %v8774 = vmul.f32 %v8710, %v8710
  %v8775 = vmul.f32 %v8711, %v8711
  %v8776 = vmul.f32 %v8712, %v8712
  %v8777 = vmul.f32 %v8713, %v8713
  %v8778 = vmul.f32 %v8714, %v8714
  %v8779 = vmul.f32 %v8715, %v8715
  %v8780 = vmul.f32 %v8716, %v8716
  %v8781 = vmul.f32 %v8717, %v8717
  %v8782 = vmul.f32 %v8718, %v8718
  %v8783 = vmul.f32 %v8719, %v8719
  %v8784 = vmul.f32 %v8720, %v8720
  %v8785 = vmul.f32 %v8721, %v8721
  %v8786 = vmul.f32 %v8722, %v8722
  %v8787 = vmul.f32 %v8723, %v8723
  %v8788 = vmul.f32 %v8724, %v8724
  %v8789 = vmul.f32 %v8725, %v8725
  %v8790 = vmul.f32 %v8726, %v8726
  %v8791 = vmul.f32 %v8727, %v8727
  %v8792 = vmul.f32 %v8728, %v8728
  %v8793 = vmul.f32 %v8729, %v8729
  %v8794 = vmul.f32 %v8730, %v8730
  %v8795 = vmul.f32 %v8731, %v8731
  %v8796 = vmul.f32 %v8732, %v8732
  %v8797 = vmul.f32 %v8733, %v8733
  %v8798 = vmul.f32 %v8734, %v8734
  %v8799 = vmul.f32 %v8735, %v8735
  %v8800 = vsel %vm2420, %v8736, 0.0
  %v8801 = vsel %vm2420, %v8737, 0.0
  %v8802 = vadd.f32 %v8800, %v8801
  %v8803 = vsel %vm2420, %v8738, 0.0
  %v8804 = vadd.f32 %v8802, %v8803
  %v8805 = vsel %vm2420, %v8739, 0.0
  %v8806 = vadd.f32 %v8804, %v8805
  %v8807 = vsel %vm2420, %v8740, 0.0
  %v8808 = vadd.f32 %v8806, %v8807
  %v8809 = vsel %vm2420, %v8741, 0.0
  %v8810 = vadd.f32 %v8808, %v8809
  %v8811 = vsel %vm2420, %v8742, 0.0
  %v8812 = vadd.f32 %v8810, %v8811
  %v8813 = vsel %vm2420, %v8743, 0.0
  %v8814 = vadd.f32 %v8812, %v8813
  %v8815 = vsel %vm2420, %v8744, 0.0
  %v8816 = vadd.f32 %v8814, %v8815
  %v8817 = vsel %vm2420, %v8745, 0.0
  %v8818 = vadd.f32 %v8816, %v8817
  %v8819 = vsel %vm2420, %v8746, 0.0
  %v8820 = vadd.f32 %v8818, %v8819
  %v8821 = vsel %vm2420, %v8747, 0.0
  %v8822 = vadd.f32 %v8820, %v8821
  %v8823 = vsel %vm2420, %v8748, 0.0
  %v8824 = vadd.f32 %v8822, %v8823
  %v8825 = vsel %vm2420, %v8749, 0.0
  %v8826 = vadd.f32 %v8824, %v8825
  %v8827 = vsel %vm2420, %v8750, 0.0
  %v8828 = vadd.f32 %v8826, %v8827
  %v8829 = vsel %vm2420, %v8751, 0.0
  %v8830 = vadd.f32 %v8828, %v8829
  %v8831 = vsel %vm2420, %v8752, 0.0
  %v8832 = vadd.f32 %v8830, %v8831
  %v8833 = vsel %vm2420, %v8753, 0.0
  %v8834 = vadd.f32 %v8832, %v8833
  %v8835 = vsel %vm2420, %v8754, 0.0
  %v8836 = vadd.f32 %v8834, %v8835
  %v8837 = vsel %vm2420, %v8755, 0.0
  %v8838 = vadd.f32 %v8836, %v8837
  %v8839 = vsel %vm2420, %v8756, 0.0
  %v8840 = vadd.f32 %v8838, %v8839
  %v8841 = vsel %vm2420, %v8757, 0.0
  %v8842 = vadd.f32 %v8840, %v8841
  %v8843 = vsel %vm2420, %v8758, 0.0
  %v8844 = vadd.f32 %v8842, %v8843
  %v8845 = vsel %vm2420, %v8759, 0.0
  %v8846 = vadd.f32 %v8844, %v8845
  %v8847 = vsel %vm2420, %v8760, 0.0
  %v8848 = vadd.f32 %v8846, %v8847
  %v8849 = vsel %vm2420, %v8761, 0.0
  %v8850 = vadd.f32 %v8848, %v8849
  %v8851 = vsel %vm2420, %v8762, 0.0
  %v8852 = vadd.f32 %v8850, %v8851
  %v8853 = vsel %vm2420, %v8763, 0.0
  %v8854 = vadd.f32 %v8852, %v8853
  %v8855 = vsel %vm2420, %v8764, 0.0
  %v8856 = vadd.f32 %v8854, %v8855
  %v8857 = vsel %vm2420, %v8765, 0.0
  %v8858 = vadd.f32 %v8856, %v8857
  %v8859 = vsel %vm2420, %v8766, 0.0
  %v8860 = vadd.f32 %v8858, %v8859
  %v8861 = vsel %vm2420, %v8767, 0.0
  %v8862 = vadd.f32 %v8860, %v8861
  %v8863 = vsel %vm2420, %v8768, 0.0
  %v8864 = vadd.f32 %v8862, %v8863
  %v8865 = vsel %vm2420, %v8769, 0.0
  %v8866 = vadd.f32 %v8864, %v8865
  %v8867 = vsel %vm2420, %v8770, 0.0
  %v8868 = vadd.f32 %v8866, %v8867
  %v8869 = vsel %vm2420, %v8771, 0.0
  %v8870 = vadd.f32 %v8868, %v8869
  %v8871 = vsel %vm2420, %v8772, 0.0
  %v8872 = vadd.f32 %v8870, %v8871
  %v8873 = vsel %vm2420, %v8773, 0.0
  %v8874 = vadd.f32 %v8872, %v8873
  %v8875 = vsel %vm2420, %v8774, 0.0
  %v8876 = vadd.f32 %v8874, %v8875
  %v8877 = vsel %vm2420, %v8775, 0.0
  %v8878 = vadd.f32 %v8876, %v8877
  %v8879 = vsel %vm2420, %v8776, 0.0
  %v8880 = vadd.f32 %v8878, %v8879
  %v8881 = vsel %vm2420, %v8777, 0.0
  %v8882 = vadd.f32 %v8880, %v8881
  %v8883 = vsel %vm2420, %v8778, 0.0
  %v8884 = vadd.f32 %v8882, %v8883
  %v8885 = vsel %vm2420, %v8779, 0.0
  %v8886 = vadd.f32 %v8884, %v8885
  %v8887 = vsel %vm2420, %v8780, 0.0
  %v8888 = vadd.f32 %v8886, %v8887
  %v8889 = vsel %vm2420, %v8781, 0.0
  %v8890 = vadd.f32 %v8888, %v8889
  %v8891 = vsel %vm2420, %v8782, 0.0
  %v8892 = vadd.f32 %v8890, %v8891
  %v8893 = vsel %vm2420, %v8783, 0.0
  %v8894 = vadd.f32 %v8892, %v8893
  %v8895 = vsel %vm2420, %v8784, 0.0
  %v8896 = vadd.f32 %v8894, %v8895
  %v8897 = vsel %vm2420, %v8785, 0.0
  %v8898 = vadd.f32 %v8896, %v8897
  %v8899 = vsel %vm2420, %v8786, 0.0
  %v8900 = vadd.f32 %v8898, %v8899
  %v8901 = vsel %vm2420, %v8787, 0.0
  %v8902 = vadd.f32 %v8900, %v8901
  %v8903 = vsel %vm2420, %v8788, 0.0
  %v8904 = vadd.f32 %v8902, %v8903
  %v8905 = vsel %vm2420, %v8789, 0.0
  %v8906 = vadd.f32 %v8904, %v8905
  %v8907 = vsel %vm2420, %v8790, 0.0
  %v8908 = vadd.f32 %v8906, %v8907
  %v8909 = vsel %vm2420, %v8791, 0.0
  %v8910 = vadd.f32 %v8908, %v8909
  %v8911 = vsel %vm2420, %v8792, 0.0
  %v8912 = vadd.f32 %v8910, %v8911
  %v8913 = vsel %vm2420, %v8793, 0.0
  %v8914 = vadd.f32 %v8912, %v8913
  %v8915 = vsel %vm2420, %v8794, 0.0
  %v8916 = vadd.f32 %v8914, %v8915
  %v8917 = vsel %vm2420, %v8795, 0.0
  %v8918 = vadd.f32 %v8916, %v8917
  %v8919 = vsel %vm2420, %v8796, 0.0
  %v8920 = vadd.f32 %v8918, %v8919
  %v8921 = vsel %vm2420, %v8797, 0.0
  %v8922 = vadd.f32 %v8920, %v8921
  %v8923 = vsel %vm2420, %v8798, 0.0
  %v8924 = vadd.f32 %v8922, %v8923
  %v8925 = vsel %vm2420, %v8799, 0.0
  %v8926 = vadd.f32 %v8924, %v8925
  %v8927 = vrot.slane %v8926, 4
  %v8928 = vadd.f32 %v8926, %v8927
  %v8929 = vrot.slane %v8928, 2
  %v8930 = vadd.f32 %v8928, %v8929
  %v8931 = vrot.slane %v8930, 1
  %v8932 = vadd.f32 %v8930, %v8931
  %v8933 = vmul.f32 %v8932, %v3594
  %v8934 = vadd.f32 %v8933, 1e-05
  %v8935 = vrsqrt.pop %v8934
  %v8936 = vmul.f32 %v8672, %v8935
  %v8937 = vmul.f32 %v8673, %v8935
  %v8938 = vmul.f32 %v8674, %v8935
  %v8939 = vmul.f32 %v8675, %v8935
  %v8940 = vmul.f32 %v8676, %v8935
  %v8941 = vmul.f32 %v8677, %v8935
  %v8942 = vmul.f32 %v8678, %v8935
  %v8943 = vmul.f32 %v8679, %v8935
  %v8944 = vmul.f32 %v8680, %v8935
  %v8945 = vmul.f32 %v8681, %v8935
  %v8946 = vmul.f32 %v8682, %v8935
  %v8947 = vmul.f32 %v8683, %v8935
  %v8948 = vmul.f32 %v8684, %v8935
  %v8949 = vmul.f32 %v8685, %v8935
  %v8950 = vmul.f32 %v8686, %v8935
  %v8951 = vmul.f32 %v8687, %v8935
  %v8952 = vmul.f32 %v8688, %v8935
  %v8953 = vmul.f32 %v8689, %v8935
  %v8954 = vmul.f32 %v8690, %v8935
  %v8955 = vmul.f32 %v8691, %v8935
  %v8956 = vmul.f32 %v8692, %v8935
  %v8957 = vmul.f32 %v8693, %v8935
  %v8958 = vmul.f32 %v8694, %v8935
  %v8959 = vmul.f32 %v8695, %v8935
  %v8960 = vmul.f32 %v8696, %v8935
  %v8961 = vmul.f32 %v8697, %v8935
  %v8962 = vmul.f32 %v8698, %v8935
  %v8963 = vmul.f32 %v8699, %v8935
  %v8964 = vmul.f32 %v8700, %v8935
  %v8965 = vmul.f32 %v8701, %v8935
  %v8966 = vmul.f32 %v8702, %v8935
  %v8967 = vmul.f32 %v8703, %v8935
  %v8968 = vmul.f32 %v8704, %v8935
  %v8969 = vmul.f32 %v8705, %v8935
  %v8970 = vmul.f32 %v8706, %v8935
  %v8971 = vmul.f32 %v8707, %v8935
  %v8972 = vmul.f32 %v8708, %v8935
  %v8973 = vmul.f32 %v8709, %v8935
  %v8974 = vmul.f32 %v8710, %v8935
  %v8975 = vmul.f32 %v8711, %v8935
  %v8976 = vmul.f32 %v8712, %v8935
  %v8977 = vmul.f32 %v8713, %v8935
  %v8978 = vmul.f32 %v8714, %v8935
  %v8979 = vmul.f32 %v8715, %v8935
  %v8980 = vmul.f32 %v8716, %v8935
  %v8981 = vmul.f32 %v8717, %v8935
  %v8982 = vmul.f32 %v8718, %v8935
  %v8983 = vmul.f32 %v8719, %v8935
  %v8984 = vmul.f32 %v8720, %v8935
  %v8985 = vmul.f32 %v8721, %v8935
  %v8986 = vmul.f32 %v8722, %v8935
  %v8987 = vmul.f32 %v8723, %v8935
  %v8988 = vmul.f32 %v8724, %v8935
  %v8989 = vmul.f32 %v8725, %v8935
  %v8990 = vmul.f32 %v8726, %v8935
  %v8991 = vmul.f32 %v8727, %v8935
  %v8992 = vmul.f32 %v8728, %v8935
  %v8993 = vmul.f32 %v8729, %v8935
  %v8994 = vmul.f32 %v8730, %v8935
  %v8995 = vmul.f32 %v8731, %v8935
  %v8996 = vmul.f32 %v8732, %v8935
  %v8997 = vmul.f32 %v8733, %v8935
  %v8998 = vmul.f32 %v8734, %v8935
  %v8999 = vmul.f32 %v8735, %v8935
  %v9001 = vlaneseq
  %v9002 = vshrl.u32 %v9001, 7
  %v9003 = vsub.s32 0, %v9002
  %v9004 = vrot.slane %v8536, %v9003
  %v9006 = vmul.f32 %v8936, %v9004
  %v9007 = vmul.f32 %v8937, %v9004
  %v9008 = vmul.f32 %v8938, %v9004
  %v9009 = vmul.f32 %v8939, %v9004
  %v9010 = vmul.f32 %v8940, %v9004
  %v9011 = vmul.f32 %v8941, %v9004
  %v9012 = vmul.f32 %v8942, %v9004
  %v9013 = vmul.f32 %v8943, %v9004
  %v9014 = vmul.f32 %v8944, %v9004
  %v9015 = vmul.f32 %v8945, %v9004
  %v9016 = vmul.f32 %v8946, %v9004
  %v9017 = vmul.f32 %v8947, %v9004
  %v9018 = vmul.f32 %v8948, %v9004
  %v9019 = vmul.f32 %v8949, %v9004
  %v9020 = vmul.f32 %v8950, %v9004
  %v9021 = vmul.f32 %v8951, %v9004
  %v9022 = vmul.f32 %v8952, %v9004
  %v9023 = vmul.f32 %v8953, %v9004
  %v9024 = vmul.f32 %v8954, %v9004
  %v9025 = vmul.f32 %v8955, %v9004
  %v9026 = vmul.f32 %v8956, %v9004
  %v9027 = vmul.f32 %v8957, %v9004
  %v9028 = vmul.f32 %v8958, %v9004
  %v9029 = vmul.f32 %v8959, %v9004
  %v9030 = vmul.f32 %v8960, %v9004
  %v9031 = vmul.f32 %v8961, %v9004
  %v9032 = vmul.f32 %v8962, %v9004
  %v9033 = vmul.f32 %v8963, %v9004
  %v9034 = vmul.f32 %v8964, %v9004
  %v9035 = vmul.f32 %v8965, %v9004
  %v9036 = vmul.f32 %v8966, %v9004
  %v9037 = vmul.f32 %v8967, %v9004
  %v9038 = vmul.f32 %v8968, %v9004
  %v9039 = vmul.f32 %v8969, %v9004
  %v9040 = vmul.f32 %v8970, %v9004
  %v9041 = vmul.f32 %v8971, %v9004
  %v9042 = vmul.f32 %v8972, %v9004
  %v9043 = vmul.f32 %v8973, %v9004
  %v9044 = vmul.f32 %v8974, %v9004
  %v9045 = vmul.f32 %v8975, %v9004
  %v9046 = vmul.f32 %v8976, %v9004
  %v9047 = vmul.f32 %v8977, %v9004
  %v9048 = vmul.f32 %v8978, %v9004
  %v9049 = vmul.f32 %v8979, %v9004
  %v9050 = vmul.f32 %v8980, %v9004
  %v9051 = vmul.f32 %v8981, %v9004
  %v9052 = vmul.f32 %v8982, %v9004
  %v9053 = vmul.f32 %v8983, %v9004
  %v9054 = vmul.f32 %v8984, %v9004
  %v9055 = vmul.f32 %v8985, %v9004
  %v9056 = vmul.f32 %v8986, %v9004
  %v9057 = vmul.f32 %v8987, %v9004
  %v9058 = vmul.f32 %v8988, %v9004
  %v9059 = vmul.f32 %v8989, %v9004
  %v9060 = vmul.f32 %v8990, %v9004
  %v9061 = vmul.f32 %v8991, %v9004
  %v9062 = vmul.f32 %v8992, %v9004
  %v9063 = vmul.f32 %v8993, %v9004
  %v9064 = vmul.f32 %v8994, %v9004
  %v9065 = vmul.f32 %v8995, %v9004
  %v9066 = vmul.f32 %v8996, %v9004
  %v9067 = vmul.f32 %v8997, %v9004
  %v9068 = vmul.f32 %v8998, %v9004
  %v9069 = vmul.f32 %v8999, %v9004
  %v9071 = vlaneseq
  %v9072 = vshrl.u32 %v9071, 7
  %v9073 = vsub.s32 0, %v9072
  %v9074 = vrot.slane %v8537, %v9073
  %v9076 = vadd.f32 %v9006, %v9074
  %v9077 = vadd.f32 %v9007, %v9074
  %v9078 = vadd.f32 %v9008, %v9074
  %v9079 = vadd.f32 %v9009, %v9074
  %v9080 = vadd.f32 %v9010, %v9074
  %v9081 = vadd.f32 %v9011, %v9074
  %v9082 = vadd.f32 %v9012, %v9074
  %v9083 = vadd.f32 %v9013, %v9074
  %v9084 = vadd.f32 %v9014, %v9074
  %v9085 = vadd.f32 %v9015, %v9074
  %v9086 = vadd.f32 %v9016, %v9074
  %v9087 = vadd.f32 %v9017, %v9074
  %v9088 = vadd.f32 %v9018, %v9074
  %v9089 = vadd.f32 %v9019, %v9074
  %v9090 = vadd.f32 %v9020, %v9074
  %v9091 = vadd.f32 %v9021, %v9074
  %v9092 = vadd.f32 %v9022, %v9074
  %v9093 = vadd.f32 %v9023, %v9074
  %v9094 = vadd.f32 %v9024, %v9074
  %v9095 = vadd.f32 %v9025, %v9074
  %v9096 = vadd.f32 %v9026, %v9074
  %v9097 = vadd.f32 %v9027, %v9074
  %v9098 = vadd.f32 %v9028, %v9074
  %v9099 = vadd.f32 %v9029, %v9074
  %v9100 = vadd.f32 %v9030, %v9074
  %v9101 = vadd.f32 %v9031, %v9074
  %v9102 = vadd.f32 %v9032, %v9074
  %v9103 = vadd.f32 %v9033, %v9074
  %v9104 = vadd.f32 %v9034, %v9074
  %v9105 = vadd.f32 %v9035, %v9074
  %v9106 = vadd.f32 %v9036, %v9074
  %v9107 = vadd.f32 %v9037, %v9074
  %v9108 = vadd.f32 %v9038, %v9074
  %v9109 = vadd.f32 %v9039, %v9074
  %v9110 = vadd.f32 %v9040, %v9074
  %v9111 = vadd.f32 %v9041, %v9074
  %v9112 = vadd.f32 %v9042, %v9074
  %v9113 = vadd.f32 %v9043, %v9074
  %v9114 = vadd.f32 %v9044, %v9074
  %v9115 = vadd.f32 %v9045, %v9074
  %v9116 = vadd.f32 %v9046, %v9074
  %v9117 = vadd.f32 %v9047, %v9074
  %v9118 = vadd.f32 %v9048, %v9074
  %v9119 = vadd.f32 %v9049, %v9074
  %v9120 = vadd.f32 %v9050, %v9074
  %v9121 = vadd.f32 %v9051, %v9074
  %v9122 = vadd.f32 %v9052, %v9074
  %v9123 = vadd.f32 %v9053, %v9074
  %v9124 = vadd.f32 %v9054, %v9074
  %v9125 = vadd.f32 %v9055, %v9074
  %v9126 = vadd.f32 %v9056, %v9074
  %v9127 = vadd.f32 %v9057, %v9074
  %v9128 = vadd.f32 %v9058, %v9074
  %v9129 = vadd.f32 %v9059, %v9074
  %v9130 = vadd.f32 %v9060, %v9074
  %v9131 = vadd.f32 %v9061, %v9074
  %v9132 = vadd.f32 %v9062, %v9074
  %v9133 = vadd.f32 %v9063, %v9074
  %v9134 = vadd.f32 %v9064, %v9074
  %v9135 = vadd.f32 %v9065, %v9074
  %v9136 = vadd.f32 %v9066, %v9074
  %v9137 = vadd.f32 %v9067, %v9074
  %v9138 = vadd.f32 %v9068, %v9074
  %v9139 = vadd.f32 %v9069, %v9074
  %v9140 = vadd.f32 %v9076, %v7948
  %v9141 = vadd.f32 %v9077, %v7949
  %v9142 = vadd.f32 %v9078, %v7950
  %v9143 = vadd.f32 %v9079, %v7951
  %v9144 = vadd.f32 %v9080, %v7952
  %v9145 = vadd.f32 %v9081, %v7953
  %v9146 = vadd.f32 %v9082, %v7954
  %v9147 = vadd.f32 %v9083, %v7955
  %v9148 = vadd.f32 %v9084, %v7956
  %v9149 = vadd.f32 %v9085, %v7957
  %v9150 = vadd.f32 %v9086, %v7958
  %v9151 = vadd.f32 %v9087, %v7959
  %v9152 = vadd.f32 %v9088, %v7960
  %v9153 = vadd.f32 %v9089, %v7961
  %v9154 = vadd.f32 %v9090, %v7962
  %v9155 = vadd.f32 %v9091, %v7963
  %v9156 = vadd.f32 %v9092, %v7964
  %v9157 = vadd.f32 %v9093, %v7965
  %v9158 = vadd.f32 %v9094, %v7966
  %v9159 = vadd.f32 %v9095, %v7967
  %v9160 = vadd.f32 %v9096, %v7968
  %v9161 = vadd.f32 %v9097, %v7969
  %v9162 = vadd.f32 %v9098, %v7970
  %v9163 = vadd.f32 %v9099, %v7971
  %v9164 = vadd.f32 %v9100, %v7972
  %v9165 = vadd.f32 %v9101, %v7973
  %v9166 = vadd.f32 %v9102, %v7974
  %v9167 = vadd.f32 %v9103, %v7975
  %v9168 = vadd.f32 %v9104, %v7976
  %v9169 = vadd.f32 %v9105, %v7977
  %v9170 = vadd.f32 %v9106, %v7978
  %v9171 = vadd.f32 %v9107, %v7979
  %v9172 = vadd.f32 %v9108, %v7980
  %v9173 = vadd.f32 %v9109, %v7981
  %v9174 = vadd.f32 %v9110, %v7982
  %v9175 = vadd.f32 %v9111, %v7983
  %v9176 = vadd.f32 %v9112, %v7984
  %v9177 = vadd.f32 %v9113, %v7985
  %v9178 = vadd.f32 %v9114, %v7986
  %v9179 = vadd.f32 %v9115, %v7987
  %v9180 = vadd.f32 %v9116, %v7988
  %v9181 = vadd.f32 %v9117, %v7989
  %v9182 = vadd.f32 %v9118, %v7990
  %v9183 = vadd.f32 %v9119, %v7991
  %v9184 = vadd.f32 %v9120, %v7992
  %v9185 = vadd.f32 %v9121, %v7993
  %v9186 = vadd.f32 %v9122, %v7994
  %v9187 = vadd.f32 %v9123, %v7995
  %v9188 = vadd.f32 %v9124, %v7996
  %v9189 = vadd.f32 %v9125, %v7997
  %v9190 = vadd.f32 %v9126, %v7998
  %v9191 = vadd.f32 %v9127, %v7999
  %v9192 = vadd.f32 %v9128, %v8000
  %v9193 = vadd.f32 %v9129, %v8001
  %v9194 = vadd.f32 %v9130, %v8002
  %v9195 = vadd.f32 %v9131, %v8003
  %v9196 = vadd.f32 %v9132, %v8004
  %v9197 = vadd.f32 %v9133, %v8005
  %v9198 = vadd.f32 %v9134, %v8006
  %v9199 = vadd.f32 %v9135, %v8007
  %v9200 = vadd.f32 %v9136, %v8008
  %v9201 = vadd.f32 %v9137, %v8009
  %v9202 = vadd.f32 %v9138, %v8010
  %v9203 = vadd.f32 %v9139, %v8011
  %v9204 = vmax.f32 %v9140, 0.0
  %v9205 = vmax.f32 %v9141, 0.0
  %v9206 = vmax.f32 %v9142, 0.0
  %v9207 = vmax.f32 %v9143, 0.0
  %v9208 = vmax.f32 %v9144, 0.0
  %v9209 = vmax.f32 %v9145, 0.0
  %v9210 = vmax.f32 %v9146, 0.0
  %v9211 = vmax.f32 %v9147, 0.0
  %v9212 = vmax.f32 %v9148, 0.0
  %v9213 = vmax.f32 %v9149, 0.0
  %v9214 = vmax.f32 %v9150, 0.0
  %v9215 = vmax.f32 %v9151, 0.0
  %v9216 = vmax.f32 %v9152, 0.0
  %v9217 = vmax.f32 %v9153, 0.0
  %v9218 = vmax.f32 %v9154, 0.0
  %v9219 = vmax.f32 %v9155, 0.0
  %v9220 = vmax.f32 %v9156, 0.0
  %v9221 = vmax.f32 %v9157, 0.0
  %v9222 = vmax.f32 %v9158, 0.0
  %v9223 = vmax.f32 %v9159, 0.0
  %v9224 = vmax.f32 %v9160, 0.0
  %v9225 = vmax.f32 %v9161, 0.0
  %v9226 = vmax.f32 %v9162, 0.0
  %v9227 = vmax.f32 %v9163, 0.0
  %v9228 = vmax.f32 %v9164, 0.0
  %v9229 = vmax.f32 %v9165, 0.0
  %v9230 = vmax.f32 %v9166, 0.0
  %v9231 = vmax.f32 %v9167, 0.0
  %v9232 = vmax.f32 %v9168, 0.0
  %v9233 = vmax.f32 %v9169, 0.0
  %v9234 = vmax.f32 %v9170, 0.0
  %v9235 = vmax.f32 %v9171, 0.0
  %v9236 = vmax.f32 %v9172, 0.0
  %v9237 = vmax.f32 %v9173, 0.0
  %v9238 = vmax.f32 %v9174, 0.0
  %v9239 = vmax.f32 %v9175, 0.0
  %v9240 = vmax.f32 %v9176, 0.0
  %v9241 = vmax.f32 %v9177, 0.0
  %v9242 = vmax.f32 %v9178, 0.0
  %v9243 = vmax.f32 %v9179, 0.0
  %v9244 = vmax.f32 %v9180, 0.0
  %v9245 = vmax.f32 %v9181, 0.0
  %v9246 = vmax.f32 %v9182, 0.0
  %v9247 = vmax.f32 %v9183, 0.0
  %v9248 = vmax.f32 %v9184, 0.0
  %v9249 = vmax.f32 %v9185, 0.0
  %v9250 = vmax.f32 %v9186, 0.0
  %v9251 = vmax.f32 %v9187, 0.0
  %v9252 = vmax.f32 %v9188, 0.0
  %v9253 = vmax.f32 %v9189, 0.0
  %v9254 = vmax.f32 %v9190, 0.0
  %v9255 = vmax.f32 %v9191, 0.0
  %v9256 = vmax.f32 %v9192, 0.0
  %v9257 = vmax.f32 %v9193, 0.0
  %v9258 = vmax.f32 %v9194, 0.0
  %v9259 = vmax.f32 %v9195, 0.0
  %v9260 = vmax.f32 %v9196, 0.0
  %v9261 = vmax.f32 %v9197, 0.0
  %v9262 = vmax.f32 %v9198, 0.0
  %v9263 = vmax.f32 %v9199, 0.0
  %v9264 = vmax.f32 %v9200, 0.0
  %v9265 = vmax.f32 %v9201, 0.0
  %v9266 = vmax.f32 %v9202, 0.0
  %v9267 = vmax.f32 %v9203, 0.0
  %9268 = vst.msk [vmem:[%s13] sm:$0xff] %vm2420, %v9204
  %9269 = vst.msk [vmem:[%s13 + $0x8] sm:$0xff] %vm2420, %v9205
  %9270 = vst.msk [vmem:[%s13 + $0x10] sm:$0xff] %vm2420, %v9206
  %9271 = vst.msk [vmem:[%s13 + $0x18] sm:$0xff] %vm2420, %v9207
  %9272 = vst.msk [vmem:[%s13 + $0x20] sm:$0xff] %vm2420, %v9208
  %9273 = vst.msk [vmem:[%s13 + $0x28] sm:$0xff] %vm2420, %v9209
  %9274 = vst.msk [vmem:[%s13 + $0x30] sm:$0xff] %vm2420, %v9210
  %9275 = vst.msk [vmem:[%s13 + $0x38] sm:$0xff] %vm2420, %v9211
  %9276 = vst.msk [vmem:[%s13 + $0x40] sm:$0xff] %vm2420, %v9212
  %9277 = vst.msk [vmem:[%s13 + $0x48] sm:$0xff] %vm2420, %v9213
  %9278 = vst.msk [vmem:[%s13 + $0x50] sm:$0xff] %vm2420, %v9214
  %9279 = vst.msk [vmem:[%s13 + $0x58] sm:$0xff] %vm2420, %v9215
  %9280 = vst.msk [vmem:[%s13 + $0x60] sm:$0xff] %vm2420, %v9216
  %9281 = vst.msk [vmem:[%s13 + $0x68] sm:$0xff] %vm2420, %v9217
  %9282 = vst.msk [vmem:[%s13 + $0x70] sm:$0xff] %vm2420, %v9218
  %9283 = vst.msk [vmem:[%s13 + $0x78] sm:$0xff] %vm2420, %v9219
  %9284 = vst.msk [vmem:[%s13 + $0x80] sm:$0xff] %vm2420, %v9220
  %9285 = vst.msk [vmem:[%s13 + $0x88] sm:$0xff] %vm2420, %v9221
  %9286 = vst.msk [vmem:[%s13 + $0x90] sm:$0xff] %vm2420, %v9222
  %9287 = vst.msk [vmem:[%s13 + $0x98] sm:$0xff] %vm2420, %v9223
  %9288 = vst.msk [vmem:[%s13 + $0xa0] sm:$0xff] %vm2420, %v9224
  %9289 = vst.msk [vmem:[%s13 + $0xa8] sm:$0xff] %vm2420, %v9225
  %9290 = vst.msk [vmem:[%s13 + $0xb0] sm:$0xff] %vm2420, %v9226
  %9291 = vst.msk [vmem:[%s13 + $0xb8] sm:$0xff] %vm2420, %v9227
  %9292 = vst.msk [vmem:[%s13 + $0xc0] sm:$0xff] %vm2420, %v9228
  %9293 = vst.msk [vmem:[%s13 + $0xc8] sm:$0xff] %vm2420, %v9229
  %9294 = vst.msk [vmem:[%s13 + $0xd0] sm:$0xff] %vm2420, %v9230
  %9295 = vst.msk [vmem:[%s13 + $0xd8] sm:$0xff] %vm2420, %v9231
  %9296 = vst.msk [vmem:[%s13 + $0xe0] sm:$0xff] %vm2420, %v9232
  %9297 = vst.msk [vmem:[%s13 + $0xe8] sm:$0xff] %vm2420, %v9233
  %9298 = vst.msk [vmem:[%s13 + $0xf0] sm:$0xff] %vm2420, %v9234
  %9299 = vst.msk [vmem:[%s13 + $0xf8] sm:$0xff] %vm2420, %v9235
  %9300 = vst.msk [vmem:[%s13 + $0x100] sm:$0xff] %vm2420, %v9236
  %9301 = vst.msk [vmem:[%s13 + $0x108] sm:$0xff] %vm2420, %v9237
  %9302 = vst.msk [vmem:[%s13 + $0x110] sm:$0xff] %vm2420, %v9238
  %9303 = vst.msk [vmem:[%s13 + $0x118] sm:$0xff] %vm2420, %v9239
  %9304 = vst.msk [vmem:[%s13 + $0x120] sm:$0xff] %vm2420, %v9240
  %9305 = vst.msk [vmem:[%s13 + $0x128] sm:$0xff] %vm2420, %v9241
  %9306 = vst.msk [vmem:[%s13 + $0x130] sm:$0xff] %vm2420, %v9242
  %9307 = vst.msk [vmem:[%s13 + $0x138] sm:$0xff] %vm2420, %v9243
  %9308 = vst.msk [vmem:[%s13 + $0x140] sm:$0xff] %vm2420, %v9244
  %9309 = vst.msk [vmem:[%s13 + $0x148] sm:$0xff] %vm2420, %v9245
  %9310 = vst.msk [vmem:[%s13 + $0x150] sm:$0xff] %vm2420, %v9246
  %9311 = vst.msk [vmem:[%s13 + $0x158] sm:$0xff] %vm2420, %v9247
  %9312 = vst.msk [vmem:[%s13 + $0x160] sm:$0xff] %vm2420, %v9248
  %9313 = vst.msk [vmem:[%s13 + $0x168] sm:$0xff] %vm2420, %v9249
  %9314 = vst.msk [vmem:[%s13 + $0x170] sm:$0xff] %vm2420, %v9250
  %9315 = vst.msk [vmem:[%s13 + $0x178] sm:$0xff] %vm2420, %v9251
  %9316 = vst.msk [vmem:[%s13 + $0x180] sm:$0xff] %vm2420, %v9252
  %9317 = vst.msk [vmem:[%s13 + $0x188] sm:$0xff] %vm2420, %v9253
  %9318 = vst.msk [vmem:[%s13 + $0x190] sm:$0xff] %vm2420, %v9254
  %9319 = vst.msk [vmem:[%s13 + $0x198] sm:$0xff] %vm2420, %v9255
  %9320 = vst.msk [vmem:[%s13 + $0x1a0] sm:$0xff] %vm2420, %v9256
  %9321 = vst.msk [vmem:[%s13 + $0x1a8] sm:$0xff] %vm2420, %v9257
  %9322 = vst.msk [vmem:[%s13 + $0x1b0] sm:$0xff] %vm2420, %v9258
  %9323 = vst.msk [vmem:[%s13 + $0x1b8] sm:$0xff] %vm2420, %v9259
  %9324 = vst.msk [vmem:[%s13 + $0x1c0] sm:$0xff] %vm2420, %v9260
  %9325 = vst.msk [vmem:[%s13 + $0x1c8] sm:$0xff] %vm2420, %v9261
  %9326 = vst.msk [vmem:[%s13 + $0x1d0] sm:$0xff] %vm2420, %v9262
  %9327 = vst.msk [vmem:[%s13 + $0x1d8] sm:$0xff] %vm2420, %v9263
  %9328 = vst.msk [vmem:[%s13 + $0x1e0] sm:$0xff] %vm2420, %v9264
  %9329 = vst.msk [vmem:[%s13 + $0x1e8] sm:$0xff] %vm2420, %v9265
  %9330 = vst.msk [vmem:[%s13 + $0x1f0] sm:$0xff] %vm2420, %v9266
  %9331 = vst.msk [vmem:[%s13 + $0x1f8] sm:$0xff] %vm2420, %v9267
  // Predicated region
  $region54: #{tpu_custom_call.1} parent=0 // pred_check
    _
  $region55: #{tpu_custom_call.1} parent=0 // pred_check_branch
    %9333 = sbr.rel (0) target = $region57
  $region56: #{tpu_custom_call.1} parent=0 // pred_region
    _
  $region57: #{tpu_custom_call.1} parent=0 // pred_fallthru
    _
  // Predicated region
  $region58: #{tpu_custom_call.1} parent=0 // pred_check
    _
  $region59: #{tpu_custom_call.1} parent=0 // pred_check_branch
    %9335 = sbr.rel (0) target = $region61
  $region60: #{tpu_custom_call.1} parent=0 // pred_region
    _
  $region61: #{tpu_custom_call.1} parent=0 // pred_fallthru
    _

</llo_original>
